<compile_context>
chip_gen: v6e
topology: v6e:2x2x1
jax: 0.10.0
libtpu: 0.0.40
codegen_flags: <defaults>
</compile_context>

<pallas_src>
import math
import functools

import jax
import jax.numpy as jnp
from jax import lax
from jax.experimental import pallas as pl
from jax.experimental.pallas import tpu as pltpu


def _axpy(acc, vec, w):
    """acc += w * vec with static strength reduction for w in {0, +1, -1}."""
    if w == 0.0:
        return acc
    if w == 1.0:
        return acc + vec
    if w == -1.0:
        return acc - vec
    return acc + vec * w


def _flow_reg_kernel(x_ref, out_ref, *, U, V, md, fac, wsize, sub):
    D = U * V
    TR = x_ref.shape[2]
    n_sub = TR // sub
    inv_log_loc = 1.0 / math.log((2 * wsize + 1) ** 2)
    inv_log_glb = 1.0 / math.log(D)

    def process(rc, carry):
        r0 = pl.multiple_of(rc * sub, sub)
        rsl = pl.ds(r0, sub)

        # ---- pass 1: fused max + first-occurrence argmax over D ----------
        # (comparisons stay in the input dtype; bf16 inputs stay packed)
        best = x_ref[0, 0, rsl, :]
        u_star = jnp.zeros(best.shape, jnp.int32)
        v_star = jnp.zeros(best.shape, jnp.int32)
        for d in range(1, D):
            ci = x_ref[0, d, rsl, :]
            gt = ci > best                      # strict -> first occurrence kept
            best = jnp.where(gt, ci, best)
            u_star = jnp.where(gt, d // V, u_star)
            v_star = jnp.where(gt, d % V, v_star)
        best_f = best.astype(jnp.float32)

        # ---- pass 2: fused accumulation of the six per-pixel reductions ---
        zero = jnp.zeros(best.shape, jnp.float32)
        s_loc, s_glb = zero, zero
        t_loc, t_glb = zero, zero
        ox, oy = zero, zero
        for d in range(D):
            ud, vd = d // V, d % V
            ci = x_ref[0, d, rsl, :].astype(jnp.float32)
            cs = ci - best_f                    # finite, <= 0 (window keeps argmax)
            e = jnp.exp(cs)                     # shared by both softmaxes
            # truncation-window membership; statically vacuous compares pruned
            conds = []
            if ud - wsize > 0:
                conds.append(u_star >= ud - wsize)
            if ud + wsize < U - 1:
                conds.append(u_star <= ud + wsize)
            if vd - wsize > 0:
                conds.append(v_star >= vd - wsize)
            if vd + wsize < V - 1:
                conds.append(v_star <= vd + wsize)
            if conds:
                m = conds[0]
                for c in conds[1:]:
                    m = m & c
                em = jnp.where(m, e, 0.0)
            else:
                em = e
            s_glb = s_glb + e
            t_glb = t_glb + e * cs
            s_loc = s_loc + em
            t_loc = t_loc + em * cs
            ox = _axpy(ox, em, float(ud - md))          # flowx buffer values
            oy = _axpy(oy, em, float(vd - md // fac))   # flowy buffer values

        inv_loc = 1.0 / s_loc                   # s_loc, s_glb >= 1 (exp(0) term)
        inv_glb = 1.0 / s_glb
        out_ref[0, 0, rsl, :] = ox * inv_loc
        out_ref[0, 1, rsl, :] = oy * inv_loc
        # -sum p log p = log(s) - t/s  (masked-out terms are exactly 0)
        out_ref[0, 2, rsl, :] = (jnp.log(s_loc) - t_loc * inv_loc) * inv_log_loc
        out_ref[0, 3, rsl, :] = (jnp.log(s_glb) - t_glb * inv_glb) * inv_log_glb
        return carry
        # TODO(synk): the PyTorch NaN-fallback branch (softmax of oldx at NaN
        # positions) is dead/buggy code; the truncated softmax here is NaN-free
        # for finite inputs, so the branch is not reproduced.

    lax.fori_loop(0, n_sub, process, 0)


def _ceil(a, b):
    return -(-a // b)


def _choose_rows_tile(rows, cap):
    """rows is a multiple of 8; pick a row tile (multiple of 8, <= cap)
    minimizing padded compute + per-grid-step overhead (~7 row-equivalents)."""
    cap = max(8, (min(cap, rows) // 8) * 8)
    best_tr, best_cost = 8, None
    for tr in range(8, cap + 1, 8):
        steps = _ceil(rows, tr)
        cost = steps * (tr + 7)
        if best_cost is None or cost < best_cost or (cost == best_cost and tr > best_tr):
            best_tr, best_cost = tr, cost
    return best_tr


def flow_reg_pallas(x, *, maxdisp=4, fac=1, ent=True, max_rows_per_tile=64):
    """x: (B, U, V, H, W) cost volume. Returns (flow, entropy), each (B, 2, H, W)."""
    B, U, V, H, W = x.shape
    assert U == 2 * maxdisp + 1 and V == 2 * (maxdisp // fac) + 1
    wsize = 3
    D = U * V
    HW = H * W
    lanes = 128

    # Lane-dense spatial layout: pad HW so rows is a multiple of 8 and of tr.
    rows_min = max(8, _ceil(_ceil(HW, lanes), 8) * 8)
    tr = _choose_rows_tile(rows_min, max_rows_per_tile)
    rows = _ceil(rows_min, tr) * tr
    hw_pad = rows * lanes

    xf = x.reshape(B, D, HW)                    # keep HBM dtype (bf16 stays bf16)
    if hw_pad != HW:
        xf = jnp.pad(xf, ((0, 0), (0, 0), (0, hw_pad - HW)))
    x4 = xf.reshape(B, D, rows, lanes)

    kernel = functools.partial(_flow_reg_kernel, U=U, V=V, md=maxdisp,
                               fac=fac, wsize=wsize, sub=8)

    out = pl.pallas_call(
        kernel,
        out_shape=jax.ShapeDtypeStruct((B, 4, rows, lanes), jnp.float32),
        grid_spec=pltpu.PrefetchScalarGridSpec(
            num_scalar_prefetch=0,
            grid=(B, rows // tr),
            in_specs=[pl.BlockSpec((1, D, tr, lanes), lambda b, r: (b, 0, r, 0))],
            out_specs=pl.BlockSpec((1, 4, tr, lanes), lambda b, r: (b, 0, r, 0)),
        ),
        compiler_params=pltpu.CompilerParams(
            dimension_semantics=("parallel", "parallel")),
    )(x4)

    out = out.reshape(B, 4, hw_pad)[:, :, :HW].reshape(B, 4, H, W)
    flow, entropy = out[:, :2], out[:, 2:]
    return (flow, entropy) if ent else (flow, None)


def _flow_reg_reference(x, *, maxdisp=4, fac=1, wsize=3):
    """Pure-JAX reference mirroring the PyTorch forward (ent=True)."""
    B, U, V, H, W = x.shape
    D = U * V
    c = x.reshape(B, D, H, W).astype(jnp.float32)
    d = jnp.arange(D)
    u_idx, v_idx = d // V, d % V
    fx = (u_idx - maxdisp).astype(jnp.float32)[None, :, None, None]
    fy = (v_idx - maxdisp // fac).astype(jnp.float32)[None, :, None, None]
    idx = jnp.argmax(c, axis=1)                                    # (B,H,W)
    u_s, v_s = idx // V, idx % V
    mask = ((jnp.abs(u_idx[None, :, None, None] - u_s[:, None]) <= wsize) &
            (jnp.abs(v_idx[None, :, None, None] - v_s[:, None]) <= wsize))
    cm = jnp.where(mask, c, -jnp.inf)
    p = jax.nn.softmax(cm, axis=1)
    outx = jnp.sum(p * fx, axis=1, keepdims=True)
    outy = jnp.sum(p * fy, axis=1, keepdims=True)
    le = -jnp.sum(p * jnp.log(jnp.clip(p, 1e-9, 1 - 1e-9)), axis=1,
                  keepdims=True) / math.log((2 * wsize + 1) ** 2)
    q = jax.nn.softmax(c, axis=1)
    ge = -jnp.sum(q * jnp.log(jnp.clip(q, 1e-9, 1 - 1e-9)), axis=1,
                  keepdims=True) / math.log(U * V)
    return jnp.concatenate([outx, outy], 1), jnp.concatenate([le, ge], 1)


if __name__ == "__main__":
    key0, key1 = jax.random.split(jax.random.PRNGKey(0))

    # Case 1: lane-aligned spatial grid, full 9x9 search window.
    B, H, W, maxdisp, fac = 2, 16, 16, 4, 1
    U, V = 2 * maxdisp + 1, 2 * (maxdisp // fac) + 1
    x = jax.random.normal(key0, (B, U, V, H, W), dtype=jnp.float32)
    flow, entropy = flow_reg_pallas(x, maxdisp=maxdisp, fac=fac, ent=True)
    flow = jax.block_until_ready(flow)
    entropy = jax.block_until_ready(entropy)
    ref_f, ref_e = _flow_reg_reference(x, maxdisp=maxdisp, fac=fac)
    assert flow.shape == (B, 2, H, W) and entropy.shape == (B, 2, H, W)
    assert jnp.allclose(flow, ref_f, atol=2e-5, rtol=1e-5)
    assert jnp.allclose(entropy, ref_e, atol=1e-4, rtol=1e-5)

    # Case 2: ragged spatial grid (exercises lane padding) + squeezed 9x5 window.
    B2, H2, W2, fac2 = 1, 13, 10, 2
    U2, V2 = 2 * maxdisp + 1, 2 * (maxdisp // fac2) + 1
    x2 = jax.random.normal(key1, (B2, U2, V2, H2, W2), dtype=jnp.float32)
    flow2, ent2 = flow_reg_pallas(x2, maxdisp=maxdisp, fac=fac2, ent=True)
    flow2 = jax.block_until_ready(flow2)
    ent2 = jax.block_until_ready(ent2)
    ref_f2, ref_e2 = _flow_reg_reference(x2, maxdisp=maxdisp, fac=fac2)
    assert flow2.shape == (B2, 2, H2, W2) and ent2.shape == (B2, 2, H2, W2)
    assert jnp.allclose(flow2, ref_f2, atol=2e-5, rtol=1e-5)
    assert jnp.allclose(ent2, ref_e2, atol=1e-4, rtol=1e-5)

    print("KERNEL_OK")
</pallas_src>

<mosaic_0001>
module attributes {stable_mosaic.version = 11 : i64} {
  func.func @_flow_reg_kernel(%arg0: i32, %arg1: i32, %arg2: memref<1x81x8x128xf32, #tpu.memory_space<vmem>>, %arg3: memref<1x4x8x128xf32, #tpu.memory_space<vmem>>) attributes {dimension_semantics = [#tpu.dimension_semantics<parallel>, #tpu.dimension_semantics<parallel>], iteration_bounds = array<i64: 2, 1>, scalar_prefetch = 0 : i64, scratch_operands = 0 : i64, tpu.core_type = #tpu.core_type<tc>, window_params = [{transform_indices = @transform_0, window_bounds = array<i64: 1, 81, 8, 128>}, {transform_indices = @transform_1, window_bounds = array<i64: 1, 4, 8, 128>}]} {
    %c0_i32 = arith.constant 0 : i32
    %c8_i32 = arith.constant 8 : i32
    %0 = arith.muli %c0_i32, %c8_i32 : i32
    %1 = tpu.assume_multiple %0, 8 : i32
    %c0 = arith.constant 0 : index
    %c0_0 = arith.constant 0 : index
    %2 = arith.index_cast %1 : i32 to index
    %c0_1 = arith.constant 0 : index
    %3 = vector.load %arg2[%c0, %c0_0, %2, %c0_1] : memref<1x81x8x128xf32, #tpu.memory_space<vmem>>, vector<1x1x8x128xf32>
    %4 = vector.shape_cast %3 : vector<1x1x8x128xf32> to vector<8x128xf32>
    %c0_i32_2 = arith.constant 0 : i32
    %5 = vector.broadcast %c0_i32_2 : i32 to vector<8x128xi32>
    %c0_i32_3 = arith.constant 0 : i32
    %6 = vector.broadcast %c0_i32_3 : i32 to vector<8x128xi32>
    %c0_4 = arith.constant 0 : index
    %c1 = arith.constant 1 : index
    %7 = arith.index_cast %1 : i32 to index
    %c0_5 = arith.constant 0 : index
    %8 = vector.load %arg2[%c0_4, %c1, %7, %c0_5] : memref<1x81x8x128xf32, #tpu.memory_space<vmem>>, vector<1x1x8x128xf32>
    %9 = vector.shape_cast %8 : vector<1x1x8x128xf32> to vector<8x128xf32>
    %10 = arith.cmpf ogt, %9, %4 : vector<8x128xf32>
    %11 = arith.select %10, %9, %4 : vector<8x128xi1>, vector<8x128xf32>
    %c0_i32_6 = arith.constant 0 : i32
    %12 = vector.broadcast %c0_i32_6 : i32 to vector<8x128xi32>
    %13 = arith.select %10, %12, %5 : vector<8x128xi1>, vector<8x128xi32>
    %c1_i32 = arith.constant 1 : i32
    %14 = vector.broadcast %c1_i32 : i32 to vector<8x128xi32>
    %15 = arith.select %10, %14, %6 : vector<8x128xi1>, vector<8x128xi32>
    %c0_7 = arith.constant 0 : index
    %c2 = arith.constant 2 : index
    %16 = arith.index_cast %1 : i32 to index
    %c0_8 = arith.constant 0 : index
    %17 = vector.load %arg2[%c0_7, %c2, %16, %c0_8] : memref<1x81x8x128xf32, #tpu.memory_space<vmem>>, vector<1x1x8x128xf32>
    %18 = vector.shape_cast %17 : vector<1x1x8x128xf32> to vector<8x128xf32>
    %19 = arith.cmpf ogt, %18, %11 : vector<8x128xf32>
    %20 = arith.select %19, %18, %11 : vector<8x128xi1>, vector<8x128xf32>
    %c0_i32_9 = arith.constant 0 : i32
    %21 = vector.broadcast %c0_i32_9 : i32 to vector<8x128xi32>
    %22 = arith.select %19, %21, %13 : vector<8x128xi1>, vector<8x128xi32>
    %c2_i32 = arith.constant 2 : i32
    %23 = vector.broadcast %c2_i32 : i32 to vector<8x128xi32>
    %24 = arith.select %19, %23, %15 : vector<8x128xi1>, vector<8x128xi32>
    %c0_10 = arith.constant 0 : index
    %c3 = arith.constant 3 : index
    %25 = arith.index_cast %1 : i32 to index
    %c0_11 = arith.constant 0 : index
    %26 = vector.load %arg2[%c0_10, %c3, %25, %c0_11] : memref<1x81x8x128xf32, #tpu.memory_space<vmem>>, vector<1x1x8x128xf32>
    %27 = vector.shape_cast %26 : vector<1x1x8x128xf32> to vector<8x128xf32>
    %28 = arith.cmpf ogt, %27, %20 : vector<8x128xf32>
    %29 = arith.select %28, %27, %20 : vector<8x128xi1>, vector<8x128xf32>
    %c0_i32_12 = arith.constant 0 : i32
    %30 = vector.broadcast %c0_i32_12 : i32 to vector<8x128xi32>
    %31 = arith.select %28, %30, %22 : vector<8x128xi1>, vector<8x128xi32>
    %c3_i32 = arith.constant 3 : i32
    %32 = vector.broadcast %c3_i32 : i32 to vector<8x128xi32>
    %33 = arith.select %28, %32, %24 : vector<8x128xi1>, vector<8x128xi32>
    %c0_13 = arith.constant 0 : index
    %c4 = arith.constant 4 : index
    %34 = arith.index_cast %1 : i32 to index
    %c0_14 = arith.constant 0 : index
    %35 = vector.load %arg2[%c0_13, %c4, %34, %c0_14] : memref<1x81x8x128xf32, #tpu.memory_space<vmem>>, vector<1x1x8x128xf32>
    %36 = vector.shape_cast %35 : vector<1x1x8x128xf32> to vector<8x128xf32>
    %37 = arith.cmpf ogt, %36, %29 : vector<8x128xf32>
    %38 = arith.select %37, %36, %29 : vector<8x128xi1>, vector<8x128xf32>
    %c0_i32_15 = arith.constant 0 : i32
    %39 = vector.broadcast %c0_i32_15 : i32 to vector<8x128xi32>
    %40 = arith.select %37, %39, %31 : vector<8x128xi1>, vector<8x128xi32>
    %c4_i32 = arith.constant 4 : i32
    %41 = vector.broadcast %c4_i32 : i32 to vector<8x128xi32>
    %42 = arith.select %37, %41, %33 : vector<8x128xi1>, vector<8x128xi32>
    %c0_16 = arith.constant 0 : index
    %c5 = arith.constant 5 : index
    %43 = arith.index_cast %1 : i32 to index
    %c0_17 = arith.constant 0 : index
    %44 = vector.load %arg2[%c0_16, %c5, %43, %c0_17] : memref<1x81x8x128xf32, #tpu.memory_space<vmem>>, vector<1x1x8x128xf32>
    %45 = vector.shape_cast %44 : vector<1x1x8x128xf32> to vector<8x128xf32>
    %46 = arith.cmpf ogt, %45, %38 : vector<8x128xf32>
    %47 = arith.select %46, %45, %38 : vector<8x128xi1>, vector<8x128xf32>
    %c0_i32_18 = arith.constant 0 : i32
    %48 = vector.broadcast %c0_i32_18 : i32 to vector<8x128xi32>
    %49 = arith.select %46, %48, %40 : vector<8x128xi1>, vector<8x128xi32>
    %c5_i32 = arith.constant 5 : i32
    %50 = vector.broadcast %c5_i32 : i32 to vector<8x128xi32>
    %51 = arith.select %46, %50, %42 : vector<8x128xi1>, vector<8x128xi32>
    %c0_19 = arith.constant 0 : index
    %c6 = arith.constant 6 : index
    %52 = arith.index_cast %1 : i32 to index
    %c0_20 = arith.constant 0 : index
    %53 = vector.load %arg2[%c0_19, %c6, %52, %c0_20] : memref<1x81x8x128xf32, #tpu.memory_space<vmem>>, vector<1x1x8x128xf32>
    %54 = vector.shape_cast %53 : vector<1x1x8x128xf32> to vector<8x128xf32>
    %55 = arith.cmpf ogt, %54, %47 : vector<8x128xf32>
    %56 = arith.select %55, %54, %47 : vector<8x128xi1>, vector<8x128xf32>
    %c0_i32_21 = arith.constant 0 : i32
    %57 = vector.broadcast %c0_i32_21 : i32 to vector<8x128xi32>
    %58 = arith.select %55, %57, %49 : vector<8x128xi1>, vector<8x128xi32>
    %c6_i32 = arith.constant 6 : i32
    %59 = vector.broadcast %c6_i32 : i32 to vector<8x128xi32>
    %60 = arith.select %55, %59, %51 : vector<8x128xi1>, vector<8x128xi32>
    %c0_22 = arith.constant 0 : index
    %c7 = arith.constant 7 : index
    %61 = arith.index_cast %1 : i32 to index
    %c0_23 = arith.constant 0 : index
    %62 = vector.load %arg2[%c0_22, %c7, %61, %c0_23] : memref<1x81x8x128xf32, #tpu.memory_space<vmem>>, vector<1x1x8x128xf32>
    %63 = vector.shape_cast %62 : vector<1x1x8x128xf32> to vector<8x128xf32>
    %64 = arith.cmpf ogt, %63, %56 : vector<8x128xf32>
    %65 = arith.select %64, %63, %56 : vector<8x128xi1>, vector<8x128xf32>
    %c0_i32_24 = arith.constant 0 : i32
    %66 = vector.broadcast %c0_i32_24 : i32 to vector<8x128xi32>
    %67 = arith.select %64, %66, %58 : vector<8x128xi1>, vector<8x128xi32>
    %c7_i32 = arith.constant 7 : i32
    %68 = vector.broadcast %c7_i32 : i32 to vector<8x128xi32>
    %69 = arith.select %64, %68, %60 : vector<8x128xi1>, vector<8x128xi32>
    %c0_25 = arith.constant 0 : index
    %c8 = arith.constant 8 : index
    %70 = arith.index_cast %1 : i32 to index
    %c0_26 = arith.constant 0 : index
    %71 = vector.load %arg2[%c0_25, %c8, %70, %c0_26] : memref<1x81x8x128xf32, #tpu.memory_space<vmem>>, vector<1x1x8x128xf32>
    %72 = vector.shape_cast %71 : vector<1x1x8x128xf32> to vector<8x128xf32>
    %73 = arith.cmpf ogt, %72, %65 : vector<8x128xf32>
    %74 = arith.select %73, %72, %65 : vector<8x128xi1>, vector<8x128xf32>
    %c0_i32_27 = arith.constant 0 : i32
    %75 = vector.broadcast %c0_i32_27 : i32 to vector<8x128xi32>
    %76 = arith.select %73, %75, %67 : vector<8x128xi1>, vector<8x128xi32>
    %c8_i32_28 = arith.constant 8 : i32
    %77 = vector.broadcast %c8_i32_28 : i32 to vector<8x128xi32>
    %78 = arith.select %73, %77, %69 : vector<8x128xi1>, vector<8x128xi32>
    %c0_29 = arith.constant 0 : index
    %c9 = arith.constant 9 : index
    %79 = arith.index_cast %1 : i32 to index
    %c0_30 = arith.constant 0 : index
    %80 = vector.load %arg2[%c0_29, %c9, %79, %c0_30] : memref<1x81x8x128xf32, #tpu.memory_space<vmem>>, vector<1x1x8x128xf32>
    %81 = vector.shape_cast %80 : vector<1x1x8x128xf32> to vector<8x128xf32>
    %82 = arith.cmpf ogt, %81, %74 : vector<8x128xf32>
    %83 = arith.select %82, %81, %74 : vector<8x128xi1>, vector<8x128xf32>
    %c1_i32_31 = arith.constant 1 : i32
    %84 = vector.broadcast %c1_i32_31 : i32 to vector<8x128xi32>
    %85 = arith.select %82, %84, %76 : vector<8x128xi1>, vector<8x128xi32>
    %c0_i32_32 = arith.constant 0 : i32
    %86 = vector.broadcast %c0_i32_32 : i32 to vector<8x128xi32>
    %87 = arith.select %82, %86, %78 : vector<8x128xi1>, vector<8x128xi32>
    %c0_33 = arith.constant 0 : index
    %c10 = arith.constant 10 : index
    %88 = arith.index_cast %1 : i32 to index
    %c0_34 = arith.constant 0 : index
    %89 = vector.load %arg2[%c0_33, %c10, %88, %c0_34] : memref<1x81x8x128xf32, #tpu.memory_space<vmem>>, vector<1x1x8x128xf32>
    %90 = vector.shape_cast %89 : vector<1x1x8x128xf32> to vector<8x128xf32>
    %91 = arith.cmpf ogt, %90, %83 : vector<8x128xf32>
    %92 = arith.select %91, %90, %83 : vector<8x128xi1>, vector<8x128xf32>
    %c1_i32_35 = arith.constant 1 : i32
    %93 = vector.broadcast %c1_i32_35 : i32 to vector<8x128xi32>
    %94 = arith.select %91, %93, %85 : vector<8x128xi1>, vector<8x128xi32>
    %c1_i32_36 = arith.constant 1 : i32
    %95 = vector.broadcast %c1_i32_36 : i32 to vector<8x128xi32>
    %96 = arith.select %91, %95, %87 : vector<8x128xi1>, vector<8x128xi32>
    %c0_37 = arith.constant 0 : index
    %c11 = arith.constant 11 : index
    %97 = arith.index_cast %1 : i32 to index
    %c0_38 = arith.constant 0 : index
    %98 = vector.load %arg2[%c0_37, %c11, %97, %c0_38] : memref<1x81x8x128xf32, #tpu.memory_space<vmem>>, vector<1x1x8x128xf32>
    %99 = vector.shape_cast %98 : vector<1x1x8x128xf32> to vector<8x128xf32>
    %100 = arith.cmpf ogt, %99, %92 : vector<8x128xf32>
    %101 = arith.select %100, %99, %92 : vector<8x128xi1>, vector<8x128xf32>
    %c1_i32_39 = arith.constant 1 : i32
    %102 = vector.broadcast %c1_i32_39 : i32 to vector<8x128xi32>
    %103 = arith.select %100, %102, %94 : vector<8x128xi1>, vector<8x128xi32>
    %c2_i32_40 = arith.constant 2 : i32
    %104 = vector.broadcast %c2_i32_40 : i32 to vector<8x128xi32>
    %105 = arith.select %100, %104, %96 : vector<8x128xi1>, vector<8x128xi32>
    %c0_41 = arith.constant 0 : index
    %c12 = arith.constant 12 : index
    %106 = arith.index_cast %1 : i32 to index
    %c0_42 = arith.constant 0 : index
    %107 = vector.load %arg2[%c0_41, %c12, %106, %c0_42] : memref<1x81x8x128xf32, #tpu.memory_space<vmem>>, vector<1x1x8x128xf32>
    %108 = vector.shape_cast %107 : vector<1x1x8x128xf32> to vector<8x128xf32>
    %109 = arith.cmpf ogt, %108, %101 : vector<8x128xf32>
    %110 = arith.select %109, %108, %101 : vector<8x128xi1>, vector<8x128xf32>
    %c1_i32_43 = arith.constant 1 : i32
    %111 = vector.broadcast %c1_i32_43 : i32 to vector<8x128xi32>
    %112 = arith.select %109, %111, %103 : vector<8x128xi1>, vector<8x128xi32>
    %c3_i32_44 = arith.constant 3 : i32
    %113 = vector.broadcast %c3_i32_44 : i32 to vector<8x128xi32>
    %114 = arith.select %109, %113, %105 : vector<8x128xi1>, vector<8x128xi32>
    %c0_45 = arith.constant 0 : index
    %c13 = arith.constant 13 : index
    %115 = arith.index_cast %1 : i32 to index
    %c0_46 = arith.constant 0 : index
    %116 = vector.load %arg2[%c0_45, %c13, %115, %c0_46] : memref<1x81x8x128xf32, #tpu.memory_space<vmem>>, vector<1x1x8x128xf32>
    %117 = vector.shape_cast %116 : vector<1x1x8x128xf32> to vector<8x128xf32>
    %118 = arith.cmpf ogt, %117, %110 : vector<8x128xf32>
    %119 = arith.select %118, %117, %110 : vector<8x128xi1>, vector<8x128xf32>
    %c1_i32_47 = arith.constant 1 : i32
    %120 = vector.broadcast %c1_i32_47 : i32 to vector<8x128xi32>
    %121 = arith.select %118, %120, %112 : vector<8x128xi1>, vector<8x128xi32>
    %c4_i32_48 = arith.constant 4 : i32
    %122 = vector.broadcast %c4_i32_48 : i32 to vector<8x128xi32>
    %123 = arith.select %118, %122, %114 : vector<8x128xi1>, vector<8x128xi32>
    %c0_49 = arith.constant 0 : index
    %c14 = arith.constant 14 : index
    %124 = arith.index_cast %1 : i32 to index
    %c0_50 = arith.constant 0 : index
    %125 = vector.load %arg2[%c0_49, %c14, %124, %c0_50] : memref<1x81x8x128xf32, #tpu.memory_space<vmem>>, vector<1x1x8x128xf32>
    %126 = vector.shape_cast %125 : vector<1x1x8x128xf32> to vector<8x128xf32>
    %127 = arith.cmpf ogt, %126, %119 : vector<8x128xf32>
    %128 = arith.select %127, %126, %119 : vector<8x128xi1>, vector<8x128xf32>
    %c1_i32_51 = arith.constant 1 : i32
    %129 = vector.broadcast %c1_i32_51 : i32 to vector<8x128xi32>
    %130 = arith.select %127, %129, %121 : vector<8x128xi1>, vector<8x128xi32>
    %c5_i32_52 = arith.constant 5 : i32
    %131 = vector.broadcast %c5_i32_52 : i32 to vector<8x128xi32>
    %132 = arith.select %127, %131, %123 : vector<8x128xi1>, vector<8x128xi32>
    %c0_53 = arith.constant 0 : index
    %c15 = arith.constant 15 : index
    %133 = arith.index_cast %1 : i32 to index
    %c0_54 = arith.constant 0 : index
    %134 = vector.load %arg2[%c0_53, %c15, %133, %c0_54] : memref<1x81x8x128xf32, #tpu.memory_space<vmem>>, vector<1x1x8x128xf32>
    %135 = vector.shape_cast %134 : vector<1x1x8x128xf32> to vector<8x128xf32>
    %136 = arith.cmpf ogt, %135, %128 : vector<8x128xf32>
    %137 = arith.select %136, %135, %128 : vector<8x128xi1>, vector<8x128xf32>
    %c1_i32_55 = arith.constant 1 : i32
    %138 = vector.broadcast %c1_i32_55 : i32 to vector<8x128xi32>
    %139 = arith.select %136, %138, %130 : vector<8x128xi1>, vector<8x128xi32>
    %c6_i32_56 = arith.constant 6 : i32
    %140 = vector.broadcast %c6_i32_56 : i32 to vector<8x128xi32>
    %141 = arith.select %136, %140, %132 : vector<8x128xi1>, vector<8x128xi32>
    %c0_57 = arith.constant 0 : index
    %c16 = arith.constant 16 : index
    %142 = arith.index_cast %1 : i32 to index
    %c0_58 = arith.constant 0 : index
    %143 = vector.load %arg2[%c0_57, %c16, %142, %c0_58] : memref<1x81x8x128xf32, #tpu.memory_space<vmem>>, vector<1x1x8x128xf32>
    %144 = vector.shape_cast %143 : vector<1x1x8x128xf32> to vector<8x128xf32>
    %145 = arith.cmpf ogt, %144, %137 : vector<8x128xf32>
    %146 = arith.select %145, %144, %137 : vector<8x128xi1>, vector<8x128xf32>
    %c1_i32_59 = arith.constant 1 : i32
    %147 = vector.broadcast %c1_i32_59 : i32 to vector<8x128xi32>
    %148 = arith.select %145, %147, %139 : vector<8x128xi1>, vector<8x128xi32>
    %c7_i32_60 = arith.constant 7 : i32
    %149 = vector.broadcast %c7_i32_60 : i32 to vector<8x128xi32>
    %150 = arith.select %145, %149, %141 : vector<8x128xi1>, vector<8x128xi32>
    %c0_61 = arith.constant 0 : index
    %c17 = arith.constant 17 : index
    %151 = arith.index_cast %1 : i32 to index
    %c0_62 = arith.constant 0 : index
    %152 = vector.load %arg2[%c0_61, %c17, %151, %c0_62] : memref<1x81x8x128xf32, #tpu.memory_space<vmem>>, vector<1x1x8x128xf32>
    %153 = vector.shape_cast %152 : vector<1x1x8x128xf32> to vector<8x128xf32>
    %154 = arith.cmpf ogt, %153, %146 : vector<8x128xf32>
    %155 = arith.select %154, %153, %146 : vector<8x128xi1>, vector<8x128xf32>
    %c1_i32_63 = arith.constant 1 : i32
    %156 = vector.broadcast %c1_i32_63 : i32 to vector<8x128xi32>
    %157 = arith.select %154, %156, %148 : vector<8x128xi1>, vector<8x128xi32>
    %c8_i32_64 = arith.constant 8 : i32
    %158 = vector.broadcast %c8_i32_64 : i32 to vector<8x128xi32>
    %159 = arith.select %154, %158, %150 : vector<8x128xi1>, vector<8x128xi32>
    %c0_65 = arith.constant 0 : index
    %c18 = arith.constant 18 : index
    %160 = arith.index_cast %1 : i32 to index
    %c0_66 = arith.constant 0 : index
    %161 = vector.load %arg2[%c0_65, %c18, %160, %c0_66] : memref<1x81x8x128xf32, #tpu.memory_space<vmem>>, vector<1x1x8x128xf32>
    %162 = vector.shape_cast %161 : vector<1x1x8x128xf32> to vector<8x128xf32>
    %163 = arith.cmpf ogt, %162, %155 : vector<8x128xf32>
    %164 = arith.select %163, %162, %155 : vector<8x128xi1>, vector<8x128xf32>
    %c2_i32_67 = arith.constant 2 : i32
    %165 = vector.broadcast %c2_i32_67 : i32 to vector<8x128xi32>
    %166 = arith.select %163, %165, %157 : vector<8x128xi1>, vector<8x128xi32>
    %c0_i32_68 = arith.constant 0 : i32
    %167 = vector.broadcast %c0_i32_68 : i32 to vector<8x128xi32>
    %168 = arith.select %163, %167, %159 : vector<8x128xi1>, vector<8x128xi32>
    %c0_69 = arith.constant 0 : index
    %c19 = arith.constant 19 : index
    %169 = arith.index_cast %1 : i32 to index
    %c0_70 = arith.constant 0 : index
    %170 = vector.load %arg2[%c0_69, %c19, %169, %c0_70] : memref<1x81x8x128xf32, #tpu.memory_space<vmem>>, vector<1x1x8x128xf32>
    %171 = vector.shape_cast %170 : vector<1x1x8x128xf32> to vector<8x128xf32>
    %172 = arith.cmpf ogt, %171, %164 : vector<8x128xf32>
    %173 = arith.select %172, %171, %164 : vector<8x128xi1>, vector<8x128xf32>
    %c2_i32_71 = arith.constant 2 : i32
    %174 = vector.broadcast %c2_i32_71 : i32 to vector<8x128xi32>
    %175 = arith.select %172, %174, %166 : vector<8x128xi1>, vector<8x128xi32>
    %c1_i32_72 = arith.constant 1 : i32
    %176 = vector.broadcast %c1_i32_72 : i32 to vector<8x128xi32>
    %177 = arith.select %172, %176, %168 : vector<8x128xi1>, vector<8x128xi32>
    %c0_73 = arith.constant 0 : index
    %c20 = arith.constant 20 : index
    %178 = arith.index_cast %1 : i32 to index
    %c0_74 = arith.constant 0 : index
    %179 = vector.load %arg2[%c0_73, %c20, %178, %c0_74] : memref<1x81x8x128xf32, #tpu.memory_space<vmem>>, vector<1x1x8x128xf32>
    %180 = vector.shape_cast %179 : vector<1x1x8x128xf32> to vector<8x128xf32>
    %181 = arith.cmpf ogt, %180, %173 : vector<8x128xf32>
    %182 = arith.select %181, %180, %173 : vector<8x128xi1>, vector<8x128xf32>
    %c2_i32_75 = arith.constant 2 : i32
    %183 = vector.broadcast %c2_i32_75 : i32 to vector<8x128xi32>
    %184 = arith.select %181, %183, %175 : vector<8x128xi1>, vector<8x128xi32>
    %c2_i32_76 = arith.constant 2 : i32
    %185 = vector.broadcast %c2_i32_76 : i32 to vector<8x128xi32>
    %186 = arith.select %181, %185, %177 : vector<8x128xi1>, vector<8x128xi32>
    %c0_77 = arith.constant 0 : index
    %c21 = arith.constant 21 : index
    %187 = arith.index_cast %1 : i32 to index
    %c0_78 = arith.constant 0 : index
    %188 = vector.load %arg2[%c0_77, %c21, %187, %c0_78] : memref<1x81x8x128xf32, #tpu.memory_space<vmem>>, vector<1x1x8x128xf32>
    %189 = vector.shape_cast %188 : vector<1x1x8x128xf32> to vector<8x128xf32>
    %190 = arith.cmpf ogt, %189, %182 : vector<8x128xf32>
    %191 = arith.select %190, %189, %182 : vector<8x128xi1>, vector<8x128xf32>
    %c2_i32_79 = arith.constant 2 : i32
    %192 = vector.broadcast %c2_i32_79 : i32 to vector<8x128xi32>
    %193 = arith.select %190, %192, %184 : vector<8x128xi1>, vector<8x128xi32>
    %c3_i32_80 = arith.constant 3 : i32
    %194 = vector.broadcast %c3_i32_80 : i32 to vector<8x128xi32>
    %195 = arith.select %190, %194, %186 : vector<8x128xi1>, vector<8x128xi32>
    %c0_81 = arith.constant 0 : index
    %c22 = arith.constant 22 : index
    %196 = arith.index_cast %1 : i32 to index
    %c0_82 = arith.constant 0 : index
    %197 = vector.load %arg2[%c0_81, %c22, %196, %c0_82] : memref<1x81x8x128xf32, #tpu.memory_space<vmem>>, vector<1x1x8x128xf32>
    %198 = vector.shape_cast %197 : vector<1x1x8x128xf32> to vector<8x128xf32>
    %199 = arith.cmpf ogt, %198, %191 : vector<8x128xf32>
    %200 = arith.select %199, %198, %191 : vector<8x128xi1>, vector<8x128xf32>
    %c2_i32_83 = arith.constant 2 : i32
    %201 = vector.broadcast %c2_i32_83 : i32 to vector<8x128xi32>
    %202 = arith.select %199, %201, %193 : vector<8x128xi1>, vector<8x128xi32>
    %c4_i32_84 = arith.constant 4 : i32
    %203 = vector.broadcast %c4_i32_84 : i32 to vector<8x128xi32>
    %204 = arith.select %199, %203, %195 : vector<8x128xi1>, vector<8x128xi32>
    %c0_85 = arith.constant 0 : index
    %c23 = arith.constant 23 : index
    %205 = arith.index_cast %1 : i32 to index
    %c0_86 = arith.constant 0 : index
    %206 = vector.load %arg2[%c0_85, %c23, %205, %c0_86] : memref<1x81x8x128xf32, #tpu.memory_space<vmem>>, vector<1x1x8x128xf32>
    %207 = vector.shape_cast %206 : vector<1x1x8x128xf32> to vector<8x128xf32>
    %208 = arith.cmpf ogt, %207, %200 : vector<8x128xf32>
    %209 = arith.select %208, %207, %200 : vector<8x128xi1>, vector<8x128xf32>
    %c2_i32_87 = arith.constant 2 : i32
    %210 = vector.broadcast %c2_i32_87 : i32 to vector<8x128xi32>
    %211 = arith.select %208, %210, %202 : vector<8x128xi1>, vector<8x128xi32>
    %c5_i32_88 = arith.constant 5 : i32
    %212 = vector.broadcast %c5_i32_88 : i32 to vector<8x128xi32>
    %213 = arith.select %208, %212, %204 : vector<8x128xi1>, vector<8x128xi32>
    %c0_89 = arith.constant 0 : index
    %c24 = arith.constant 24 : index
    %214 = arith.index_cast %1 : i32 to index
    %c0_90 = arith.constant 0 : index
    %215 = vector.load %arg2[%c0_89, %c24, %214, %c0_90] : memref<1x81x8x128xf32, #tpu.memory_space<vmem>>, vector<1x1x8x128xf32>
    %216 = vector.shape_cast %215 : vector<1x1x8x128xf32> to vector<8x128xf32>
    %217 = arith.cmpf ogt, %216, %209 : vector<8x128xf32>
    %218 = arith.select %217, %216, %209 : vector<8x128xi1>, vector<8x128xf32>
    %c2_i32_91 = arith.constant 2 : i32
    %219 = vector.broadcast %c2_i32_91 : i32 to vector<8x128xi32>
    %220 = arith.select %217, %219, %211 : vector<8x128xi1>, vector<8x128xi32>
    %c6_i32_92 = arith.constant 6 : i32
    %221 = vector.broadcast %c6_i32_92 : i32 to vector<8x128xi32>
    %222 = arith.select %217, %221, %213 : vector<8x128xi1>, vector<8x128xi32>
    %c0_93 = arith.constant 0 : index
    %c25 = arith.constant 25 : index
    %223 = arith.index_cast %1 : i32 to index
    %c0_94 = arith.constant 0 : index
    %224 = vector.load %arg2[%c0_93, %c25, %223, %c0_94] : memref<1x81x8x128xf32, #tpu.memory_space<vmem>>, vector<1x1x8x128xf32>
    %225 = vector.shape_cast %224 : vector<1x1x8x128xf32> to vector<8x128xf32>
    %226 = arith.cmpf ogt, %225, %218 : vector<8x128xf32>
    %227 = arith.select %226, %225, %218 : vector<8x128xi1>, vector<8x128xf32>
    %c2_i32_95 = arith.constant 2 : i32
    %228 = vector.broadcast %c2_i32_95 : i32 to vector<8x128xi32>
    %229 = arith.select %226, %228, %220 : vector<8x128xi1>, vector<8x128xi32>
    %c7_i32_96 = arith.constant 7 : i32
    %230 = vector.broadcast %c7_i32_96 : i32 to vector<8x128xi32>
    %231 = arith.select %226, %230, %222 : vector<8x128xi1>, vector<8x128xi32>
    %c0_97 = arith.constant 0 : index
    %c26 = arith.constant 26 : index
    %232 = arith.index_cast %1 : i32 to index
    %c0_98 = arith.constant 0 : index
    %233 = vector.load %arg2[%c0_97, %c26, %232, %c0_98] : memref<1x81x8x128xf32, #tpu.memory_space<vmem>>, vector<1x1x8x128xf32>
    %234 = vector.shape_cast %233 : vector<1x1x8x128xf32> to vector<8x128xf32>
    %235 = arith.cmpf ogt, %234, %227 : vector<8x128xf32>
    %236 = arith.select %235, %234, %227 : vector<8x128xi1>, vector<8x128xf32>
    %c2_i32_99 = arith.constant 2 : i32
    %237 = vector.broadcast %c2_i32_99 : i32 to vector<8x128xi32>
    %238 = arith.select %235, %237, %229 : vector<8x128xi1>, vector<8x128xi32>
    %c8_i32_100 = arith.constant 8 : i32
    %239 = vector.broadcast %c8_i32_100 : i32 to vector<8x128xi32>
    %240 = arith.select %235, %239, %231 : vector<8x128xi1>, vector<8x128xi32>
    %c0_101 = arith.constant 0 : index
    %c27 = arith.constant 27 : index
    %241 = arith.index_cast %1 : i32 to index
    %c0_102 = arith.constant 0 : index
    %242 = vector.load %arg2[%c0_101, %c27, %241, %c0_102] : memref<1x81x8x128xf32, #tpu.memory_space<vmem>>, vector<1x1x8x128xf32>
    %243 = vector.shape_cast %242 : vector<1x1x8x128xf32> to vector<8x128xf32>
    %244 = arith.cmpf ogt, %243, %236 : vector<8x128xf32>
    %245 = arith.select %244, %243, %236 : vector<8x128xi1>, vector<8x128xf32>
    %c3_i32_103 = arith.constant 3 : i32
    %246 = vector.broadcast %c3_i32_103 : i32 to vector<8x128xi32>
    %247 = arith.select %244, %246, %238 : vector<8x128xi1>, vector<8x128xi32>
    %c0_i32_104 = arith.constant 0 : i32
    %248 = vector.broadcast %c0_i32_104 : i32 to vector<8x128xi32>
    %249 = arith.select %244, %248, %240 : vector<8x128xi1>, vector<8x128xi32>
    %c0_105 = arith.constant 0 : index
    %c28 = arith.constant 28 : index
    %250 = arith.index_cast %1 : i32 to index
    %c0_106 = arith.constant 0 : index
    %251 = vector.load %arg2[%c0_105, %c28, %250, %c0_106] : memref<1x81x8x128xf32, #tpu.memory_space<vmem>>, vector<1x1x8x128xf32>
    %252 = vector.shape_cast %251 : vector<1x1x8x128xf32> to vector<8x128xf32>
    %253 = arith.cmpf ogt, %252, %245 : vector<8x128xf32>
    %254 = arith.select %253, %252, %245 : vector<8x128xi1>, vector<8x128xf32>
    %c3_i32_107 = arith.constant 3 : i32
    %255 = vector.broadcast %c3_i32_107 : i32 to vector<8x128xi32>
    %256 = arith.select %253, %255, %247 : vector<8x128xi1>, vector<8x128xi32>
    %c1_i32_108 = arith.constant 1 : i32
    %257 = vector.broadcast %c1_i32_108 : i32 to vector<8x128xi32>
    %258 = arith.select %253, %257, %249 : vector<8x128xi1>, vector<8x128xi32>
    %c0_109 = arith.constant 0 : index
    %c29 = arith.constant 29 : index
    %259 = arith.index_cast %1 : i32 to index
    %c0_110 = arith.constant 0 : index
    %260 = vector.load %arg2[%c0_109, %c29, %259, %c0_110] : memref<1x81x8x128xf32, #tpu.memory_space<vmem>>, vector<1x1x8x128xf32>
    %261 = vector.shape_cast %260 : vector<1x1x8x128xf32> to vector<8x128xf32>
    %262 = arith.cmpf ogt, %261, %254 : vector<8x128xf32>
    %263 = arith.select %262, %261, %254 : vector<8x128xi1>, vector<8x128xf32>
    %c3_i32_111 = arith.constant 3 : i32
    %264 = vector.broadcast %c3_i32_111 : i32 to vector<8x128xi32>
    %265 = arith.select %262, %264, %256 : vector<8x128xi1>, vector<8x128xi32>
    %c2_i32_112 = arith.constant 2 : i32
    %266 = vector.broadcast %c2_i32_112 : i32 to vector<8x128xi32>
    %267 = arith.select %262, %266, %258 : vector<8x128xi1>, vector<8x128xi32>
    %c0_113 = arith.constant 0 : index
    %c30 = arith.constant 30 : index
    %268 = arith.index_cast %1 : i32 to index
    %c0_114 = arith.constant 0 : index
    %269 = vector.load %arg2[%c0_113, %c30, %268, %c0_114] : memref<1x81x8x128xf32, #tpu.memory_space<vmem>>, vector<1x1x8x128xf32>
    %270 = vector.shape_cast %269 : vector<1x1x8x128xf32> to vector<8x128xf32>
    %271 = arith.cmpf ogt, %270, %263 : vector<8x128xf32>
    %272 = arith.select %271, %270, %263 : vector<8x128xi1>, vector<8x128xf32>
    %c3_i32_115 = arith.constant 3 : i32
    %273 = vector.broadcast %c3_i32_115 : i32 to vector<8x128xi32>
    %274 = arith.select %271, %273, %265 : vector<8x128xi1>, vector<8x128xi32>
    %c3_i32_116 = arith.constant 3 : i32
    %275 = vector.broadcast %c3_i32_116 : i32 to vector<8x128xi32>
    %276 = arith.select %271, %275, %267 : vector<8x128xi1>, vector<8x128xi32>
    %c0_117 = arith.constant 0 : index
    %c31 = arith.constant 31 : index
    %277 = arith.index_cast %1 : i32 to index
    %c0_118 = arith.constant 0 : index
    %278 = vector.load %arg2[%c0_117, %c31, %277, %c0_118] : memref<1x81x8x128xf32, #tpu.memory_space<vmem>>, vector<1x1x8x128xf32>
    %279 = vector.shape_cast %278 : vector<1x1x8x128xf32> to vector<8x128xf32>
    %280 = arith.cmpf ogt, %279, %272 : vector<8x128xf32>
    %281 = arith.select %280, %279, %272 : vector<8x128xi1>, vector<8x128xf32>
    %c3_i32_119 = arith.constant 3 : i32
    %282 = vector.broadcast %c3_i32_119 : i32 to vector<8x128xi32>
    %283 = arith.select %280, %282, %274 : vector<8x128xi1>, vector<8x128xi32>
    %c4_i32_120 = arith.constant 4 : i32
    %284 = vector.broadcast %c4_i32_120 : i32 to vector<8x128xi32>
    %285 = arith.select %280, %284, %276 : vector<8x128xi1>, vector<8x128xi32>
    %c0_121 = arith.constant 0 : index
    %c32 = arith.constant 32 : index
    %286 = arith.index_cast %1 : i32 to index
    %c0_122 = arith.constant 0 : index
    %287 = vector.load %arg2[%c0_121, %c32, %286, %c0_122] : memref<1x81x8x128xf32, #tpu.memory_space<vmem>>, vector<1x1x8x128xf32>
    %288 = vector.shape_cast %287 : vector<1x1x8x128xf32> to vector<8x128xf32>
    %289 = arith.cmpf ogt, %288, %281 : vector<8x128xf32>
    %290 = arith.select %289, %288, %281 : vector<8x128xi1>, vector<8x128xf32>
    %c3_i32_123 = arith.constant 3 : i32
    %291 = vector.broadcast %c3_i32_123 : i32 to vector<8x128xi32>
    %292 = arith.select %289, %291, %283 : vector<8x128xi1>, vector<8x128xi32>
    %c5_i32_124 = arith.constant 5 : i32
    %293 = vector.broadcast %c5_i32_124 : i32 to vector<8x128xi32>
    %294 = arith.select %289, %293, %285 : vector<8x128xi1>, vector<8x128xi32>
    %c0_125 = arith.constant 0 : index
    %c33 = arith.constant 33 : index
    %295 = arith.index_cast %1 : i32 to index
    %c0_126 = arith.constant 0 : index
    %296 = vector.load %arg2[%c0_125, %c33, %295, %c0_126] : memref<1x81x8x128xf32, #tpu.memory_space<vmem>>, vector<1x1x8x128xf32>
    %297 = vector.shape_cast %296 : vector<1x1x8x128xf32> to vector<8x128xf32>
    %298 = arith.cmpf ogt, %297, %290 : vector<8x128xf32>
    %299 = arith.select %298, %297, %290 : vector<8x128xi1>, vector<8x128xf32>
    %c3_i32_127 = arith.constant 3 : i32
    %300 = vector.broadcast %c3_i32_127 : i32 to vector<8x128xi32>
    %301 = arith.select %298, %300, %292 : vector<8x128xi1>, vector<8x128xi32>
    %c6_i32_128 = arith.constant 6 : i32
    %302 = vector.broadcast %c6_i32_128 : i32 to vector<8x128xi32>
    %303 = arith.select %298, %302, %294 : vector<8x128xi1>, vector<8x128xi32>
    %c0_129 = arith.constant 0 : index
    %c34 = arith.constant 34 : index
    %304 = arith.index_cast %1 : i32 to index
    %c0_130 = arith.constant 0 : index
    %305 = vector.load %arg2[%c0_129, %c34, %304, %c0_130] : memref<1x81x8x128xf32, #tpu.memory_space<vmem>>, vector<1x1x8x128xf32>
    %306 = vector.shape_cast %305 : vector<1x1x8x128xf32> to vector<8x128xf32>
    %307 = arith.cmpf ogt, %306, %299 : vector<8x128xf32>
    %308 = arith.select %307, %306, %299 : vector<8x128xi1>, vector<8x128xf32>
    %c3_i32_131 = arith.constant 3 : i32
    %309 = vector.broadcast %c3_i32_131 : i32 to vector<8x128xi32>
    %310 = arith.select %307, %309, %301 : vector<8x128xi1>, vector<8x128xi32>
    %c7_i32_132 = arith.constant 7 : i32
    %311 = vector.broadcast %c7_i32_132 : i32 to vector<8x128xi32>
    %312 = arith.select %307, %311, %303 : vector<8x128xi1>, vector<8x128xi32>
    %c0_133 = arith.constant 0 : index
    %c35 = arith.constant 35 : index
    %313 = arith.index_cast %1 : i32 to index
    %c0_134 = arith.constant 0 : index
    %314 = vector.load %arg2[%c0_133, %c35, %313, %c0_134] : memref<1x81x8x128xf32, #tpu.memory_space<vmem>>, vector<1x1x8x128xf32>
    %315 = vector.shape_cast %314 : vector<1x1x8x128xf32> to vector<8x128xf32>
    %316 = arith.cmpf ogt, %315, %308 : vector<8x128xf32>
    %317 = arith.select %316, %315, %308 : vector<8x128xi1>, vector<8x128xf32>
    %c3_i32_135 = arith.constant 3 : i32
    %318 = vector.broadcast %c3_i32_135 : i32 to vector<8x128xi32>
    %319 = arith.select %316, %318, %310 : vector<8x128xi1>, vector<8x128xi32>
    %c8_i32_136 = arith.constant 8 : i32
    %320 = vector.broadcast %c8_i32_136 : i32 to vector<8x128xi32>
    %321 = arith.select %316, %320, %312 : vector<8x128xi1>, vector<8x128xi32>
    %c0_137 = arith.constant 0 : index
    %c36 = arith.constant 36 : index
    %322 = arith.index_cast %1 : i32 to index
    %c0_138 = arith.constant 0 : index
    %323 = vector.load %arg2[%c0_137, %c36, %322, %c0_138] : memref<1x81x8x128xf32, #tpu.memory_space<vmem>>, vector<1x1x8x128xf32>
    %324 = vector.shape_cast %323 : vector<1x1x8x128xf32> to vector<8x128xf32>
    %325 = arith.cmpf ogt, %324, %317 : vector<8x128xf32>
    %326 = arith.select %325, %324, %317 : vector<8x128xi1>, vector<8x128xf32>
    %c4_i32_139 = arith.constant 4 : i32
    %327 = vector.broadcast %c4_i32_139 : i32 to vector<8x128xi32>
    %328 = arith.select %325, %327, %319 : vector<8x128xi1>, vector<8x128xi32>
    %c0_i32_140 = arith.constant 0 : i32
    %329 = vector.broadcast %c0_i32_140 : i32 to vector<8x128xi32>
    %330 = arith.select %325, %329, %321 : vector<8x128xi1>, vector<8x128xi32>
    %c0_141 = arith.constant 0 : index
    %c37 = arith.constant 37 : index
    %331 = arith.index_cast %1 : i32 to index
    %c0_142 = arith.constant 0 : index
    %332 = vector.load %arg2[%c0_141, %c37, %331, %c0_142] : memref<1x81x8x128xf32, #tpu.memory_space<vmem>>, vector<1x1x8x128xf32>
    %333 = vector.shape_cast %332 : vector<1x1x8x128xf32> to vector<8x128xf32>
    %334 = arith.cmpf ogt, %333, %326 : vector<8x128xf32>
    %335 = arith.select %334, %333, %326 : vector<8x128xi1>, vector<8x128xf32>
    %c4_i32_143 = arith.constant 4 : i32
    %336 = vector.broadcast %c4_i32_143 : i32 to vector<8x128xi32>
    %337 = arith.select %334, %336, %328 : vector<8x128xi1>, vector<8x128xi32>
    %c1_i32_144 = arith.constant 1 : i32
    %338 = vector.broadcast %c1_i32_144 : i32 to vector<8x128xi32>
    %339 = arith.select %334, %338, %330 : vector<8x128xi1>, vector<8x128xi32>
    %c0_145 = arith.constant 0 : index
    %c38 = arith.constant 38 : index
    %340 = arith.index_cast %1 : i32 to index
    %c0_146 = arith.constant 0 : index
    %341 = vector.load %arg2[%c0_145, %c38, %340, %c0_146] : memref<1x81x8x128xf32, #tpu.memory_space<vmem>>, vector<1x1x8x128xf32>
    %342 = vector.shape_cast %341 : vector<1x1x8x128xf32> to vector<8x128xf32>
    %343 = arith.cmpf ogt, %342, %335 : vector<8x128xf32>
    %344 = arith.select %343, %342, %335 : vector<8x128xi1>, vector<8x128xf32>
    %c4_i32_147 = arith.constant 4 : i32
    %345 = vector.broadcast %c4_i32_147 : i32 to vector<8x128xi32>
    %346 = arith.select %343, %345, %337 : vector<8x128xi1>, vector<8x128xi32>
    %c2_i32_148 = arith.constant 2 : i32
    %347 = vector.broadcast %c2_i32_148 : i32 to vector<8x128xi32>
    %348 = arith.select %343, %347, %339 : vector<8x128xi1>, vector<8x128xi32>
    %c0_149 = arith.constant 0 : index
    %c39 = arith.constant 39 : index
    %349 = arith.index_cast %1 : i32 to index
    %c0_150 = arith.constant 0 : index
    %350 = vector.load %arg2[%c0_149, %c39, %349, %c0_150] : memref<1x81x8x128xf32, #tpu.memory_space<vmem>>, vector<1x1x8x128xf32>
    %351 = vector.shape_cast %350 : vector<1x1x8x128xf32> to vector<8x128xf32>
    %352 = arith.cmpf ogt, %351, %344 : vector<8x128xf32>
    %353 = arith.select %352, %351, %344 : vector<8x128xi1>, vector<8x128xf32>
    %c4_i32_151 = arith.constant 4 : i32
    %354 = vector.broadcast %c4_i32_151 : i32 to vector<8x128xi32>
    %355 = arith.select %352, %354, %346 : vector<8x128xi1>, vector<8x128xi32>
    %c3_i32_152 = arith.constant 3 : i32
    %356 = vector.broadcast %c3_i32_152 : i32 to vector<8x128xi32>
    %357 = arith.select %352, %356, %348 : vector<8x128xi1>, vector<8x128xi32>
    %c0_153 = arith.constant 0 : index
    %c40 = arith.constant 40 : index
    %358 = arith.index_cast %1 : i32 to index
    %c0_154 = arith.constant 0 : index
    %359 = vector.load %arg2[%c0_153, %c40, %358, %c0_154] : memref<1x81x8x128xf32, #tpu.memory_space<vmem>>, vector<1x1x8x128xf32>
    %360 = vector.shape_cast %359 : vector<1x1x8x128xf32> to vector<8x128xf32>
    %361 = arith.cmpf ogt, %360, %353 : vector<8x128xf32>
    %362 = arith.select %361, %360, %353 : vector<8x128xi1>, vector<8x128xf32>
    %c4_i32_155 = arith.constant 4 : i32
    %363 = vector.broadcast %c4_i32_155 : i32 to vector<8x128xi32>
    %364 = arith.select %361, %363, %355 : vector<8x128xi1>, vector<8x128xi32>
    %c4_i32_156 = arith.constant 4 : i32
    %365 = vector.broadcast %c4_i32_156 : i32 to vector<8x128xi32>
    %366 = arith.select %361, %365, %357 : vector<8x128xi1>, vector<8x128xi32>
    %c0_157 = arith.constant 0 : index
    %c41 = arith.constant 41 : index
    %367 = arith.index_cast %1 : i32 to index
    %c0_158 = arith.constant 0 : index
    %368 = vector.load %arg2[%c0_157, %c41, %367, %c0_158] : memref<1x81x8x128xf32, #tpu.memory_space<vmem>>, vector<1x1x8x128xf32>
    %369 = vector.shape_cast %368 : vector<1x1x8x128xf32> to vector<8x128xf32>
    %370 = arith.cmpf ogt, %369, %362 : vector<8x128xf32>
    %371 = arith.select %370, %369, %362 : vector<8x128xi1>, vector<8x128xf32>
    %c4_i32_159 = arith.constant 4 : i32
    %372 = vector.broadcast %c4_i32_159 : i32 to vector<8x128xi32>
    %373 = arith.select %370, %372, %364 : vector<8x128xi1>, vector<8x128xi32>
    %c5_i32_160 = arith.constant 5 : i32
    %374 = vector.broadcast %c5_i32_160 : i32 to vector<8x128xi32>
    %375 = arith.select %370, %374, %366 : vector<8x128xi1>, vector<8x128xi32>
    %c0_161 = arith.constant 0 : index
    %c42 = arith.constant 42 : index
    %376 = arith.index_cast %1 : i32 to index
    %c0_162 = arith.constant 0 : index
    %377 = vector.load %arg2[%c0_161, %c42, %376, %c0_162] : memref<1x81x8x128xf32, #tpu.memory_space<vmem>>, vector<1x1x8x128xf32>
    %378 = vector.shape_cast %377 : vector<1x1x8x128xf32> to vector<8x128xf32>
    %379 = arith.cmpf ogt, %378, %371 : vector<8x128xf32>
    %380 = arith.select %379, %378, %371 : vector<8x128xi1>, vector<8x128xf32>
    %c4_i32_163 = arith.constant 4 : i32
    %381 = vector.broadcast %c4_i32_163 : i32 to vector<8x128xi32>
    %382 = arith.select %379, %381, %373 : vector<8x128xi1>, vector<8x128xi32>
    %c6_i32_164 = arith.constant 6 : i32
    %383 = vector.broadcast %c6_i32_164 : i32 to vector<8x128xi32>
    %384 = arith.select %379, %383, %375 : vector<8x128xi1>, vector<8x128xi32>
    %c0_165 = arith.constant 0 : index
    %c43 = arith.constant 43 : index
    %385 = arith.index_cast %1 : i32 to index
    %c0_166 = arith.constant 0 : index
    %386 = vector.load %arg2[%c0_165, %c43, %385, %c0_166] : memref<1x81x8x128xf32, #tpu.memory_space<vmem>>, vector<1x1x8x128xf32>
    %387 = vector.shape_cast %386 : vector<1x1x8x128xf32> to vector<8x128xf32>
    %388 = arith.cmpf ogt, %387, %380 : vector<8x128xf32>
    %389 = arith.select %388, %387, %380 : vector<8x128xi1>, vector<8x128xf32>
    %c4_i32_167 = arith.constant 4 : i32
    %390 = vector.broadcast %c4_i32_167 : i32 to vector<8x128xi32>
    %391 = arith.select %388, %390, %382 : vector<8x128xi1>, vector<8x128xi32>
    %c7_i32_168 = arith.constant 7 : i32
    %392 = vector.broadcast %c7_i32_168 : i32 to vector<8x128xi32>
    %393 = arith.select %388, %392, %384 : vector<8x128xi1>, vector<8x128xi32>
    %c0_169 = arith.constant 0 : index
    %c44 = arith.constant 44 : index
    %394 = arith.index_cast %1 : i32 to index
    %c0_170 = arith.constant 0 : index
    %395 = vector.load %arg2[%c0_169, %c44, %394, %c0_170] : memref<1x81x8x128xf32, #tpu.memory_space<vmem>>, vector<1x1x8x128xf32>
    %396 = vector.shape_cast %395 : vector<1x1x8x128xf32> to vector<8x128xf32>
    %397 = arith.cmpf ogt, %396, %389 : vector<8x128xf32>
    %398 = arith.select %397, %396, %389 : vector<8x128xi1>, vector<8x128xf32>
    %c4_i32_171 = arith.constant 4 : i32
    %399 = vector.broadcast %c4_i32_171 : i32 to vector<8x128xi32>
    %400 = arith.select %397, %399, %391 : vector<8x128xi1>, vector<8x128xi32>
    %c8_i32_172 = arith.constant 8 : i32
    %401 = vector.broadcast %c8_i32_172 : i32 to vector<8x128xi32>
    %402 = arith.select %397, %401, %393 : vector<8x128xi1>, vector<8x128xi32>
    %c0_173 = arith.constant 0 : index
    %c45 = arith.constant 45 : index
    %403 = arith.index_cast %1 : i32 to index
    %c0_174 = arith.constant 0 : index
    %404 = vector.load %arg2[%c0_173, %c45, %403, %c0_174] : memref<1x81x8x128xf32, #tpu.memory_space<vmem>>, vector<1x1x8x128xf32>
    %405 = vector.shape_cast %404 : vector<1x1x8x128xf32> to vector<8x128xf32>
    %406 = arith.cmpf ogt, %405, %398 : vector<8x128xf32>
    %407 = arith.select %406, %405, %398 : vector<8x128xi1>, vector<8x128xf32>
    %c5_i32_175 = arith.constant 5 : i32
    %408 = vector.broadcast %c5_i32_175 : i32 to vector<8x128xi32>
    %409 = arith.select %406, %408, %400 : vector<8x128xi1>, vector<8x128xi32>
    %c0_i32_176 = arith.constant 0 : i32
    %410 = vector.broadcast %c0_i32_176 : i32 to vector<8x128xi32>
    %411 = arith.select %406, %410, %402 : vector<8x128xi1>, vector<8x128xi32>
    %c0_177 = arith.constant 0 : index
    %c46 = arith.constant 46 : index
    %412 = arith.index_cast %1 : i32 to index
    %c0_178 = arith.constant 0 : index
    %413 = vector.load %arg2[%c0_177, %c46, %412, %c0_178] : memref<1x81x8x128xf32, #tpu.memory_space<vmem>>, vector<1x1x8x128xf32>
    %414 = vector.shape_cast %413 : vector<1x1x8x128xf32> to vector<8x128xf32>
    %415 = arith.cmpf ogt, %414, %407 : vector<8x128xf32>
    %416 = arith.select %415, %414, %407 : vector<8x128xi1>, vector<8x128xf32>
    %c5_i32_179 = arith.constant 5 : i32
    %417 = vector.broadcast %c5_i32_179 : i32 to vector<8x128xi32>
    %418 = arith.select %415, %417, %409 : vector<8x128xi1>, vector<8x128xi32>
    %c1_i32_180 = arith.constant 1 : i32
    %419 = vector.broadcast %c1_i32_180 : i32 to vector<8x128xi32>
    %420 = arith.select %415, %419, %411 : vector<8x128xi1>, vector<8x128xi32>
    %c0_181 = arith.constant 0 : index
    %c47 = arith.constant 47 : index
    %421 = arith.index_cast %1 : i32 to index
    %c0_182 = arith.constant 0 : index
    %422 = vector.load %arg2[%c0_181, %c47, %421, %c0_182] : memref<1x81x8x128xf32, #tpu.memory_space<vmem>>, vector<1x1x8x128xf32>
    %423 = vector.shape_cast %422 : vector<1x1x8x128xf32> to vector<8x128xf32>
    %424 = arith.cmpf ogt, %423, %416 : vector<8x128xf32>
    %425 = arith.select %424, %423, %416 : vector<8x128xi1>, vector<8x128xf32>
    %c5_i32_183 = arith.constant 5 : i32
    %426 = vector.broadcast %c5_i32_183 : i32 to vector<8x128xi32>
    %427 = arith.select %424, %426, %418 : vector<8x128xi1>, vector<8x128xi32>
    %c2_i32_184 = arith.constant 2 : i32
    %428 = vector.broadcast %c2_i32_184 : i32 to vector<8x128xi32>
    %429 = arith.select %424, %428, %420 : vector<8x128xi1>, vector<8x128xi32>
    %c0_185 = arith.constant 0 : index
    %c48 = arith.constant 48 : index
    %430 = arith.index_cast %1 : i32 to index
    %c0_186 = arith.constant 0 : index
    %431 = vector.load %arg2[%c0_185, %c48, %430, %c0_186] : memref<1x81x8x128xf32, #tpu.memory_space<vmem>>, vector<1x1x8x128xf32>
    %432 = vector.shape_cast %431 : vector<1x1x8x128xf32> to vector<8x128xf32>
    %433 = arith.cmpf ogt, %432, %425 : vector<8x128xf32>
    %434 = arith.select %433, %432, %425 : vector<8x128xi1>, vector<8x128xf32>
    %c5_i32_187 = arith.constant 5 : i32
    %435 = vector.broadcast %c5_i32_187 : i32 to vector<8x128xi32>
    %436 = arith.select %433, %435, %427 : vector<8x128xi1>, vector<8x128xi32>
    %c3_i32_188 = arith.constant 3 : i32
    %437 = vector.broadcast %c3_i32_188 : i32 to vector<8x128xi32>
    %438 = arith.select %433, %437, %429 : vector<8x128xi1>, vector<8x128xi32>
    %c0_189 = arith.constant 0 : index
    %c49 = arith.constant 49 : index
    %439 = arith.index_cast %1 : i32 to index
    %c0_190 = arith.constant 0 : index
    %440 = vector.load %arg2[%c0_189, %c49, %439, %c0_190] : memref<1x81x8x128xf32, #tpu.memory_space<vmem>>, vector<1x1x8x128xf32>
    %441 = vector.shape_cast %440 : vector<1x1x8x128xf32> to vector<8x128xf32>
    %442 = arith.cmpf ogt, %441, %434 : vector<8x128xf32>
    %443 = arith.select %442, %441, %434 : vector<8x128xi1>, vector<8x128xf32>
    %c5_i32_191 = arith.constant 5 : i32
    %444 = vector.broadcast %c5_i32_191 : i32 to vector<8x128xi32>
    %445 = arith.select %442, %444, %436 : vector<8x128xi1>, vector<8x128xi32>
    %c4_i32_192 = arith.constant 4 : i32
    %446 = vector.broadcast %c4_i32_192 : i32 to vector<8x128xi32>
    %447 = arith.select %442, %446, %438 : vector<8x128xi1>, vector<8x128xi32>
    %c0_193 = arith.constant 0 : index
    %c50 = arith.constant 50 : index
    %448 = arith.index_cast %1 : i32 to index
    %c0_194 = arith.constant 0 : index
    %449 = vector.load %arg2[%c0_193, %c50, %448, %c0_194] : memref<1x81x8x128xf32, #tpu.memory_space<vmem>>, vector<1x1x8x128xf32>
    %450 = vector.shape_cast %449 : vector<1x1x8x128xf32> to vector<8x128xf32>
    %451 = arith.cmpf ogt, %450, %443 : vector<8x128xf32>
    %452 = arith.select %451, %450, %443 : vector<8x128xi1>, vector<8x128xf32>
    %c5_i32_195 = arith.constant 5 : i32
    %453 = vector.broadcast %c5_i32_195 : i32 to vector<8x128xi32>
    %454 = arith.select %451, %453, %445 : vector<8x128xi1>, vector<8x128xi32>
    %c5_i32_196 = arith.constant 5 : i32
    %455 = vector.broadcast %c5_i32_196 : i32 to vector<8x128xi32>
    %456 = arith.select %451, %455, %447 : vector<8x128xi1>, vector<8x128xi32>
    %c0_197 = arith.constant 0 : index
    %c51 = arith.constant 51 : index
    %457 = arith.index_cast %1 : i32 to index
    %c0_198 = arith.constant 0 : index
    %458 = vector.load %arg2[%c0_197, %c51, %457, %c0_198] : memref<1x81x8x128xf32, #tpu.memory_space<vmem>>, vector<1x1x8x128xf32>
    %459 = vector.shape_cast %458 : vector<1x1x8x128xf32> to vector<8x128xf32>
    %460 = arith.cmpf ogt, %459, %452 : vector<8x128xf32>
    %461 = arith.select %460, %459, %452 : vector<8x128xi1>, vector<8x128xf32>
    %c5_i32_199 = arith.constant 5 : i32
    %462 = vector.broadcast %c5_i32_199 : i32 to vector<8x128xi32>
    %463 = arith.select %460, %462, %454 : vector<8x128xi1>, vector<8x128xi32>
    %c6_i32_200 = arith.constant 6 : i32
    %464 = vector.broadcast %c6_i32_200 : i32 to vector<8x128xi32>
    %465 = arith.select %460, %464, %456 : vector<8x128xi1>, vector<8x128xi32>
    %c0_201 = arith.constant 0 : index
    %c52 = arith.constant 52 : index
    %466 = arith.index_cast %1 : i32 to index
    %c0_202 = arith.constant 0 : index
    %467 = vector.load %arg2[%c0_201, %c52, %466, %c0_202] : memref<1x81x8x128xf32, #tpu.memory_space<vmem>>, vector<1x1x8x128xf32>
    %468 = vector.shape_cast %467 : vector<1x1x8x128xf32> to vector<8x128xf32>
    %469 = arith.cmpf ogt, %468, %461 : vector<8x128xf32>
    %470 = arith.select %469, %468, %461 : vector<8x128xi1>, vector<8x128xf32>
    %c5_i32_203 = arith.constant 5 : i32
    %471 = vector.broadcast %c5_i32_203 : i32 to vector<8x128xi32>
    %472 = arith.select %469, %471, %463 : vector<8x128xi1>, vector<8x128xi32>
    %c7_i32_204 = arith.constant 7 : i32
    %473 = vector.broadcast %c7_i32_204 : i32 to vector<8x128xi32>
    %474 = arith.select %469, %473, %465 : vector<8x128xi1>, vector<8x128xi32>
    %c0_205 = arith.constant 0 : index
    %c53 = arith.constant 53 : index
    %475 = arith.index_cast %1 : i32 to index
    %c0_206 = arith.constant 0 : index
    %476 = vector.load %arg2[%c0_205, %c53, %475, %c0_206] : memref<1x81x8x128xf32, #tpu.memory_space<vmem>>, vector<1x1x8x128xf32>
    %477 = vector.shape_cast %476 : vector<1x1x8x128xf32> to vector<8x128xf32>
    %478 = arith.cmpf ogt, %477, %470 : vector<8x128xf32>
    %479 = arith.select %478, %477, %470 : vector<8x128xi1>, vector<8x128xf32>
    %c5_i32_207 = arith.constant 5 : i32
    %480 = vector.broadcast %c5_i32_207 : i32 to vector<8x128xi32>
    %481 = arith.select %478, %480, %472 : vector<8x128xi1>, vector<8x128xi32>
    %c8_i32_208 = arith.constant 8 : i32
    %482 = vector.broadcast %c8_i32_208 : i32 to vector<8x128xi32>
    %483 = arith.select %478, %482, %474 : vector<8x128xi1>, vector<8x128xi32>
    %c0_209 = arith.constant 0 : index
    %c54 = arith.constant 54 : index
    %484 = arith.index_cast %1 : i32 to index
    %c0_210 = arith.constant 0 : index
    %485 = vector.load %arg2[%c0_209, %c54, %484, %c0_210] : memref<1x81x8x128xf32, #tpu.memory_space<vmem>>, vector<1x1x8x128xf32>
    %486 = vector.shape_cast %485 : vector<1x1x8x128xf32> to vector<8x128xf32>
    %487 = arith.cmpf ogt, %486, %479 : vector<8x128xf32>
    %488 = arith.select %487, %486, %479 : vector<8x128xi1>, vector<8x128xf32>
    %c6_i32_211 = arith.constant 6 : i32
    %489 = vector.broadcast %c6_i32_211 : i32 to vector<8x128xi32>
    %490 = arith.select %487, %489, %481 : vector<8x128xi1>, vector<8x128xi32>
    %c0_i32_212 = arith.constant 0 : i32
    %491 = vector.broadcast %c0_i32_212 : i32 to vector<8x128xi32>
    %492 = arith.select %487, %491, %483 : vector<8x128xi1>, vector<8x128xi32>
    %c0_213 = arith.constant 0 : index
    %c55 = arith.constant 55 : index
    %493 = arith.index_cast %1 : i32 to index
    %c0_214 = arith.constant 0 : index
    %494 = vector.load %arg2[%c0_213, %c55, %493, %c0_214] : memref<1x81x8x128xf32, #tpu.memory_space<vmem>>, vector<1x1x8x128xf32>
    %495 = vector.shape_cast %494 : vector<1x1x8x128xf32> to vector<8x128xf32>
    %496 = arith.cmpf ogt, %495, %488 : vector<8x128xf32>
    %497 = arith.select %496, %495, %488 : vector<8x128xi1>, vector<8x128xf32>
    %c6_i32_215 = arith.constant 6 : i32
    %498 = vector.broadcast %c6_i32_215 : i32 to vector<8x128xi32>
    %499 = arith.select %496, %498, %490 : vector<8x128xi1>, vector<8x128xi32>
    %c1_i32_216 = arith.constant 1 : i32
    %500 = vector.broadcast %c1_i32_216 : i32 to vector<8x128xi32>
    %501 = arith.select %496, %500, %492 : vector<8x128xi1>, vector<8x128xi32>
    %c0_217 = arith.constant 0 : index
    %c56 = arith.constant 56 : index
    %502 = arith.index_cast %1 : i32 to index
    %c0_218 = arith.constant 0 : index
    %503 = vector.load %arg2[%c0_217, %c56, %502, %c0_218] : memref<1x81x8x128xf32, #tpu.memory_space<vmem>>, vector<1x1x8x128xf32>
    %504 = vector.shape_cast %503 : vector<1x1x8x128xf32> to vector<8x128xf32>
    %505 = arith.cmpf ogt, %504, %497 : vector<8x128xf32>
    %506 = arith.select %505, %504, %497 : vector<8x128xi1>, vector<8x128xf32>
    %c6_i32_219 = arith.constant 6 : i32
    %507 = vector.broadcast %c6_i32_219 : i32 to vector<8x128xi32>
    %508 = arith.select %505, %507, %499 : vector<8x128xi1>, vector<8x128xi32>
    %c2_i32_220 = arith.constant 2 : i32
    %509 = vector.broadcast %c2_i32_220 : i32 to vector<8x128xi32>
    %510 = arith.select %505, %509, %501 : vector<8x128xi1>, vector<8x128xi32>
    %c0_221 = arith.constant 0 : index
    %c57 = arith.constant 57 : index
    %511 = arith.index_cast %1 : i32 to index
    %c0_222 = arith.constant 0 : index
    %512 = vector.load %arg2[%c0_221, %c57, %511, %c0_222] : memref<1x81x8x128xf32, #tpu.memory_space<vmem>>, vector<1x1x8x128xf32>
    %513 = vector.shape_cast %512 : vector<1x1x8x128xf32> to vector<8x128xf32>
    %514 = arith.cmpf ogt, %513, %506 : vector<8x128xf32>
    %515 = arith.select %514, %513, %506 : vector<8x128xi1>, vector<8x128xf32>
    %c6_i32_223 = arith.constant 6 : i32
    %516 = vector.broadcast %c6_i32_223 : i32 to vector<8x128xi32>
    %517 = arith.select %514, %516, %508 : vector<8x128xi1>, vector<8x128xi32>
    %c3_i32_224 = arith.constant 3 : i32
    %518 = vector.broadcast %c3_i32_224 : i32 to vector<8x128xi32>
    %519 = arith.select %514, %518, %510 : vector<8x128xi1>, vector<8x128xi32>
    %c0_225 = arith.constant 0 : index
    %c58 = arith.constant 58 : index
    %520 = arith.index_cast %1 : i32 to index
    %c0_226 = arith.constant 0 : index
    %521 = vector.load %arg2[%c0_225, %c58, %520, %c0_226] : memref<1x81x8x128xf32, #tpu.memory_space<vmem>>, vector<1x1x8x128xf32>
    %522 = vector.shape_cast %521 : vector<1x1x8x128xf32> to vector<8x128xf32>
    %523 = arith.cmpf ogt, %522, %515 : vector<8x128xf32>
    %524 = arith.select %523, %522, %515 : vector<8x128xi1>, vector<8x128xf32>
    %c6_i32_227 = arith.constant 6 : i32
    %525 = vector.broadcast %c6_i32_227 : i32 to vector<8x128xi32>
    %526 = arith.select %523, %525, %517 : vector<8x128xi1>, vector<8x128xi32>
    %c4_i32_228 = arith.constant 4 : i32
    %527 = vector.broadcast %c4_i32_228 : i32 to vector<8x128xi32>
    %528 = arith.select %523, %527, %519 : vector<8x128xi1>, vector<8x128xi32>
    %c0_229 = arith.constant 0 : index
    %c59 = arith.constant 59 : index
    %529 = arith.index_cast %1 : i32 to index
    %c0_230 = arith.constant 0 : index
    %530 = vector.load %arg2[%c0_229, %c59, %529, %c0_230] : memref<1x81x8x128xf32, #tpu.memory_space<vmem>>, vector<1x1x8x128xf32>
    %531 = vector.shape_cast %530 : vector<1x1x8x128xf32> to vector<8x128xf32>
    %532 = arith.cmpf ogt, %531, %524 : vector<8x128xf32>
    %533 = arith.select %532, %531, %524 : vector<8x128xi1>, vector<8x128xf32>
    %c6_i32_231 = arith.constant 6 : i32
    %534 = vector.broadcast %c6_i32_231 : i32 to vector<8x128xi32>
    %535 = arith.select %532, %534, %526 : vector<8x128xi1>, vector<8x128xi32>
    %c5_i32_232 = arith.constant 5 : i32
    %536 = vector.broadcast %c5_i32_232 : i32 to vector<8x128xi32>
    %537 = arith.select %532, %536, %528 : vector<8x128xi1>, vector<8x128xi32>
    %c0_233 = arith.constant 0 : index
    %c60 = arith.constant 60 : index
    %538 = arith.index_cast %1 : i32 to index
    %c0_234 = arith.constant 0 : index
    %539 = vector.load %arg2[%c0_233, %c60, %538, %c0_234] : memref<1x81x8x128xf32, #tpu.memory_space<vmem>>, vector<1x1x8x128xf32>
    %540 = vector.shape_cast %539 : vector<1x1x8x128xf32> to vector<8x128xf32>
    %541 = arith.cmpf ogt, %540, %533 : vector<8x128xf32>
    %542 = arith.select %541, %540, %533 : vector<8x128xi1>, vector<8x128xf32>
    %c6_i32_235 = arith.constant 6 : i32
    %543 = vector.broadcast %c6_i32_235 : i32 to vector<8x128xi32>
    %544 = arith.select %541, %543, %535 : vector<8x128xi1>, vector<8x128xi32>
    %c6_i32_236 = arith.constant 6 : i32
    %545 = vector.broadcast %c6_i32_236 : i32 to vector<8x128xi32>
    %546 = arith.select %541, %545, %537 : vector<8x128xi1>, vector<8x128xi32>
    %c0_237 = arith.constant 0 : index
    %c61 = arith.constant 61 : index
    %547 = arith.index_cast %1 : i32 to index
    %c0_238 = arith.constant 0 : index
    %548 = vector.load %arg2[%c0_237, %c61, %547, %c0_238] : memref<1x81x8x128xf32, #tpu.memory_space<vmem>>, vector<1x1x8x128xf32>
    %549 = vector.shape_cast %548 : vector<1x1x8x128xf32> to vector<8x128xf32>
    %550 = arith.cmpf ogt, %549, %542 : vector<8x128xf32>
    %551 = arith.select %550, %549, %542 : vector<8x128xi1>, vector<8x128xf32>
    %c6_i32_239 = arith.constant 6 : i32
    %552 = vector.broadcast %c6_i32_239 : i32 to vector<8x128xi32>
    %553 = arith.select %550, %552, %544 : vector<8x128xi1>, vector<8x128xi32>
    %c7_i32_240 = arith.constant 7 : i32
    %554 = vector.broadcast %c7_i32_240 : i32 to vector<8x128xi32>
    %555 = arith.select %550, %554, %546 : vector<8x128xi1>, vector<8x128xi32>
    %c0_241 = arith.constant 0 : index
    %c62 = arith.constant 62 : index
    %556 = arith.index_cast %1 : i32 to index
    %c0_242 = arith.constant 0 : index
    %557 = vector.load %arg2[%c0_241, %c62, %556, %c0_242] : memref<1x81x8x128xf32, #tpu.memory_space<vmem>>, vector<1x1x8x128xf32>
    %558 = vector.shape_cast %557 : vector<1x1x8x128xf32> to vector<8x128xf32>
    %559 = arith.cmpf ogt, %558, %551 : vector<8x128xf32>
    %560 = arith.select %559, %558, %551 : vector<8x128xi1>, vector<8x128xf32>
    %c6_i32_243 = arith.constant 6 : i32
    %561 = vector.broadcast %c6_i32_243 : i32 to vector<8x128xi32>
    %562 = arith.select %559, %561, %553 : vector<8x128xi1>, vector<8x128xi32>
    %c8_i32_244 = arith.constant 8 : i32
    %563 = vector.broadcast %c8_i32_244 : i32 to vector<8x128xi32>
    %564 = arith.select %559, %563, %555 : vector<8x128xi1>, vector<8x128xi32>
    %c0_245 = arith.constant 0 : index
    %c63 = arith.constant 63 : index
    %565 = arith.index_cast %1 : i32 to index
    %c0_246 = arith.constant 0 : index
    %566 = vector.load %arg2[%c0_245, %c63, %565, %c0_246] : memref<1x81x8x128xf32, #tpu.memory_space<vmem>>, vector<1x1x8x128xf32>
    %567 = vector.shape_cast %566 : vector<1x1x8x128xf32> to vector<8x128xf32>
    %568 = arith.cmpf ogt, %567, %560 : vector<8x128xf32>
    %569 = arith.select %568, %567, %560 : vector<8x128xi1>, vector<8x128xf32>
    %c7_i32_247 = arith.constant 7 : i32
    %570 = vector.broadcast %c7_i32_247 : i32 to vector<8x128xi32>
    %571 = arith.select %568, %570, %562 : vector<8x128xi1>, vector<8x128xi32>
    %c0_i32_248 = arith.constant 0 : i32
    %572 = vector.broadcast %c0_i32_248 : i32 to vector<8x128xi32>
    %573 = arith.select %568, %572, %564 : vector<8x128xi1>, vector<8x128xi32>
    %c0_249 = arith.constant 0 : index
    %c64 = arith.constant 64 : index
    %574 = arith.index_cast %1 : i32 to index
    %c0_250 = arith.constant 0 : index
    %575 = vector.load %arg2[%c0_249, %c64, %574, %c0_250] : memref<1x81x8x128xf32, #tpu.memory_space<vmem>>, vector<1x1x8x128xf32>
    %576 = vector.shape_cast %575 : vector<1x1x8x128xf32> to vector<8x128xf32>
    %577 = arith.cmpf ogt, %576, %569 : vector<8x128xf32>
    %578 = arith.select %577, %576, %569 : vector<8x128xi1>, vector<8x128xf32>
    %c7_i32_251 = arith.constant 7 : i32
    %579 = vector.broadcast %c7_i32_251 : i32 to vector<8x128xi32>
    %580 = arith.select %577, %579, %571 : vector<8x128xi1>, vector<8x128xi32>
    %c1_i32_252 = arith.constant 1 : i32
    %581 = vector.broadcast %c1_i32_252 : i32 to vector<8x128xi32>
    %582 = arith.select %577, %581, %573 : vector<8x128xi1>, vector<8x128xi32>
    %c0_253 = arith.constant 0 : index
    %c65 = arith.constant 65 : index
    %583 = arith.index_cast %1 : i32 to index
    %c0_254 = arith.constant 0 : index
    %584 = vector.load %arg2[%c0_253, %c65, %583, %c0_254] : memref<1x81x8x128xf32, #tpu.memory_space<vmem>>, vector<1x1x8x128xf32>
    %585 = vector.shape_cast %584 : vector<1x1x8x128xf32> to vector<8x128xf32>
    %586 = arith.cmpf ogt, %585, %578 : vector<8x128xf32>
    %587 = arith.select %586, %585, %578 : vector<8x128xi1>, vector<8x128xf32>
    %c7_i32_255 = arith.constant 7 : i32
    %588 = vector.broadcast %c7_i32_255 : i32 to vector<8x128xi32>
    %589 = arith.select %586, %588, %580 : vector<8x128xi1>, vector<8x128xi32>
    %c2_i32_256 = arith.constant 2 : i32
    %590 = vector.broadcast %c2_i32_256 : i32 to vector<8x128xi32>
    %591 = arith.select %586, %590, %582 : vector<8x128xi1>, vector<8x128xi32>
    %c0_257 = arith.constant 0 : index
    %c66 = arith.constant 66 : index
    %592 = arith.index_cast %1 : i32 to index
    %c0_258 = arith.constant 0 : index
    %593 = vector.load %arg2[%c0_257, %c66, %592, %c0_258] : memref<1x81x8x128xf32, #tpu.memory_space<vmem>>, vector<1x1x8x128xf32>
    %594 = vector.shape_cast %593 : vector<1x1x8x128xf32> to vector<8x128xf32>
    %595 = arith.cmpf ogt, %594, %587 : vector<8x128xf32>
    %596 = arith.select %595, %594, %587 : vector<8x128xi1>, vector<8x128xf32>
    %c7_i32_259 = arith.constant 7 : i32
    %597 = vector.broadcast %c7_i32_259 : i32 to vector<8x128xi32>
    %598 = arith.select %595, %597, %589 : vector<8x128xi1>, vector<8x128xi32>
    %c3_i32_260 = arith.constant 3 : i32
    %599 = vector.broadcast %c3_i32_260 : i32 to vector<8x128xi32>
    %600 = arith.select %595, %599, %591 : vector<8x128xi1>, vector<8x128xi32>
    %c0_261 = arith.constant 0 : index
    %c67 = arith.constant 67 : index
    %601 = arith.index_cast %1 : i32 to index
    %c0_262 = arith.constant 0 : index
    %602 = vector.load %arg2[%c0_261, %c67, %601, %c0_262] : memref<1x81x8x128xf32, #tpu.memory_space<vmem>>, vector<1x1x8x128xf32>
    %603 = vector.shape_cast %602 : vector<1x1x8x128xf32> to vector<8x128xf32>
    %604 = arith.cmpf ogt, %603, %596 : vector<8x128xf32>
    %605 = arith.select %604, %603, %596 : vector<8x128xi1>, vector<8x128xf32>
    %c7_i32_263 = arith.constant 7 : i32
    %606 = vector.broadcast %c7_i32_263 : i32 to vector<8x128xi32>
    %607 = arith.select %604, %606, %598 : vector<8x128xi1>, vector<8x128xi32>
    %c4_i32_264 = arith.constant 4 : i32
    %608 = vector.broadcast %c4_i32_264 : i32 to vector<8x128xi32>
    %609 = arith.select %604, %608, %600 : vector<8x128xi1>, vector<8x128xi32>
    %c0_265 = arith.constant 0 : index
    %c68 = arith.constant 68 : index
    %610 = arith.index_cast %1 : i32 to index
    %c0_266 = arith.constant 0 : index
    %611 = vector.load %arg2[%c0_265, %c68, %610, %c0_266] : memref<1x81x8x128xf32, #tpu.memory_space<vmem>>, vector<1x1x8x128xf32>
    %612 = vector.shape_cast %611 : vector<1x1x8x128xf32> to vector<8x128xf32>
    %613 = arith.cmpf ogt, %612, %605 : vector<8x128xf32>
    %614 = arith.select %613, %612, %605 : vector<8x128xi1>, vector<8x128xf32>
    %c7_i32_267 = arith.constant 7 : i32
    %615 = vector.broadcast %c7_i32_267 : i32 to vector<8x128xi32>
    %616 = arith.select %613, %615, %607 : vector<8x128xi1>, vector<8x128xi32>
    %c5_i32_268 = arith.constant 5 : i32
    %617 = vector.broadcast %c5_i32_268 : i32 to vector<8x128xi32>
    %618 = arith.select %613, %617, %609 : vector<8x128xi1>, vector<8x128xi32>
    %c0_269 = arith.constant 0 : index
    %c69 = arith.constant 69 : index
    %619 = arith.index_cast %1 : i32 to index
    %c0_270 = arith.constant 0 : index
    %620 = vector.load %arg2[%c0_269, %c69, %619, %c0_270] : memref<1x81x8x128xf32, #tpu.memory_space<vmem>>, vector<1x1x8x128xf32>
    %621 = vector.shape_cast %620 : vector<1x1x8x128xf32> to vector<8x128xf32>
    %622 = arith.cmpf ogt, %621, %614 : vector<8x128xf32>
    %623 = arith.select %622, %621, %614 : vector<8x128xi1>, vector<8x128xf32>
    %c7_i32_271 = arith.constant 7 : i32
    %624 = vector.broadcast %c7_i32_271 : i32 to vector<8x128xi32>
    %625 = arith.select %622, %624, %616 : vector<8x128xi1>, vector<8x128xi32>
    %c6_i32_272 = arith.constant 6 : i32
    %626 = vector.broadcast %c6_i32_272 : i32 to vector<8x128xi32>
    %627 = arith.select %622, %626, %618 : vector<8x128xi1>, vector<8x128xi32>
    %c0_273 = arith.constant 0 : index
    %c70 = arith.constant 70 : index
    %628 = arith.index_cast %1 : i32 to index
    %c0_274 = arith.constant 0 : index
    %629 = vector.load %arg2[%c0_273, %c70, %628, %c0_274] : memref<1x81x8x128xf32, #tpu.memory_space<vmem>>, vector<1x1x8x128xf32>
    %630 = vector.shape_cast %629 : vector<1x1x8x128xf32> to vector<8x128xf32>
    %631 = arith.cmpf ogt, %630, %623 : vector<8x128xf32>
    %632 = arith.select %631, %630, %623 : vector<8x128xi1>, vector<8x128xf32>
    %c7_i32_275 = arith.constant 7 : i32
    %633 = vector.broadcast %c7_i32_275 : i32 to vector<8x128xi32>
    %634 = arith.select %631, %633, %625 : vector<8x128xi1>, vector<8x128xi32>
    %c7_i32_276 = arith.constant 7 : i32
    %635 = vector.broadcast %c7_i32_276 : i32 to vector<8x128xi32>
    %636 = arith.select %631, %635, %627 : vector<8x128xi1>, vector<8x128xi32>
    %c0_277 = arith.constant 0 : index
    %c71 = arith.constant 71 : index
    %637 = arith.index_cast %1 : i32 to index
    %c0_278 = arith.constant 0 : index
    %638 = vector.load %arg2[%c0_277, %c71, %637, %c0_278] : memref<1x81x8x128xf32, #tpu.memory_space<vmem>>, vector<1x1x8x128xf32>
    %639 = vector.shape_cast %638 : vector<1x1x8x128xf32> to vector<8x128xf32>
    %640 = arith.cmpf ogt, %639, %632 : vector<8x128xf32>
    %641 = arith.select %640, %639, %632 : vector<8x128xi1>, vector<8x128xf32>
    %c7_i32_279 = arith.constant 7 : i32
    %642 = vector.broadcast %c7_i32_279 : i32 to vector<8x128xi32>
    %643 = arith.select %640, %642, %634 : vector<8x128xi1>, vector<8x128xi32>
    %c8_i32_280 = arith.constant 8 : i32
    %644 = vector.broadcast %c8_i32_280 : i32 to vector<8x128xi32>
    %645 = arith.select %640, %644, %636 : vector<8x128xi1>, vector<8x128xi32>
    %c0_281 = arith.constant 0 : index
    %c72 = arith.constant 72 : index
    %646 = arith.index_cast %1 : i32 to index
    %c0_282 = arith.constant 0 : index
    %647 = vector.load %arg2[%c0_281, %c72, %646, %c0_282] : memref<1x81x8x128xf32, #tpu.memory_space<vmem>>, vector<1x1x8x128xf32>
    %648 = vector.shape_cast %647 : vector<1x1x8x128xf32> to vector<8x128xf32>
    %649 = arith.cmpf ogt, %648, %641 : vector<8x128xf32>
    %650 = arith.select %649, %648, %641 : vector<8x128xi1>, vector<8x128xf32>
    %c8_i32_283 = arith.constant 8 : i32
    %651 = vector.broadcast %c8_i32_283 : i32 to vector<8x128xi32>
    %652 = arith.select %649, %651, %643 : vector<8x128xi1>, vector<8x128xi32>
    %c0_i32_284 = arith.constant 0 : i32
    %653 = vector.broadcast %c0_i32_284 : i32 to vector<8x128xi32>
    %654 = arith.select %649, %653, %645 : vector<8x128xi1>, vector<8x128xi32>
    %c0_285 = arith.constant 0 : index
    %c73 = arith.constant 73 : index
    %655 = arith.index_cast %1 : i32 to index
    %c0_286 = arith.constant 0 : index
    %656 = vector.load %arg2[%c0_285, %c73, %655, %c0_286] : memref<1x81x8x128xf32, #tpu.memory_space<vmem>>, vector<1x1x8x128xf32>
    %657 = vector.shape_cast %656 : vector<1x1x8x128xf32> to vector<8x128xf32>
    %658 = arith.cmpf ogt, %657, %650 : vector<8x128xf32>
    %659 = arith.select %658, %657, %650 : vector<8x128xi1>, vector<8x128xf32>
    %c8_i32_287 = arith.constant 8 : i32
    %660 = vector.broadcast %c8_i32_287 : i32 to vector<8x128xi32>
    %661 = arith.select %658, %660, %652 : vector<8x128xi1>, vector<8x128xi32>
    %c1_i32_288 = arith.constant 1 : i32
    %662 = vector.broadcast %c1_i32_288 : i32 to vector<8x128xi32>
    %663 = arith.select %658, %662, %654 : vector<8x128xi1>, vector<8x128xi32>
    %c0_289 = arith.constant 0 : index
    %c74 = arith.constant 74 : index
    %664 = arith.index_cast %1 : i32 to index
    %c0_290 = arith.constant 0 : index
    %665 = vector.load %arg2[%c0_289, %c74, %664, %c0_290] : memref<1x81x8x128xf32, #tpu.memory_space<vmem>>, vector<1x1x8x128xf32>
    %666 = vector.shape_cast %665 : vector<1x1x8x128xf32> to vector<8x128xf32>
    %667 = arith.cmpf ogt, %666, %659 : vector<8x128xf32>
    %668 = arith.select %667, %666, %659 : vector<8x128xi1>, vector<8x128xf32>
    %c8_i32_291 = arith.constant 8 : i32
    %669 = vector.broadcast %c8_i32_291 : i32 to vector<8x128xi32>
    %670 = arith.select %667, %669, %661 : vector<8x128xi1>, vector<8x128xi32>
    %c2_i32_292 = arith.constant 2 : i32
    %671 = vector.broadcast %c2_i32_292 : i32 to vector<8x128xi32>
    %672 = arith.select %667, %671, %663 : vector<8x128xi1>, vector<8x128xi32>
    %c0_293 = arith.constant 0 : index
    %c75 = arith.constant 75 : index
    %673 = arith.index_cast %1 : i32 to index
    %c0_294 = arith.constant 0 : index
    %674 = vector.load %arg2[%c0_293, %c75, %673, %c0_294] : memref<1x81x8x128xf32, #tpu.memory_space<vmem>>, vector<1x1x8x128xf32>
    %675 = vector.shape_cast %674 : vector<1x1x8x128xf32> to vector<8x128xf32>
    %676 = arith.cmpf ogt, %675, %668 : vector<8x128xf32>
    %677 = arith.select %676, %675, %668 : vector<8x128xi1>, vector<8x128xf32>
    %c8_i32_295 = arith.constant 8 : i32
    %678 = vector.broadcast %c8_i32_295 : i32 to vector<8x128xi32>
    %679 = arith.select %676, %678, %670 : vector<8x128xi1>, vector<8x128xi32>
    %c3_i32_296 = arith.constant 3 : i32
    %680 = vector.broadcast %c3_i32_296 : i32 to vector<8x128xi32>
    %681 = arith.select %676, %680, %672 : vector<8x128xi1>, vector<8x128xi32>
    %c0_297 = arith.constant 0 : index
    %c76 = arith.constant 76 : index
    %682 = arith.index_cast %1 : i32 to index
    %c0_298 = arith.constant 0 : index
    %683 = vector.load %arg2[%c0_297, %c76, %682, %c0_298] : memref<1x81x8x128xf32, #tpu.memory_space<vmem>>, vector<1x1x8x128xf32>
    %684 = vector.shape_cast %683 : vector<1x1x8x128xf32> to vector<8x128xf32>
    %685 = arith.cmpf ogt, %684, %677 : vector<8x128xf32>
    %686 = arith.select %685, %684, %677 : vector<8x128xi1>, vector<8x128xf32>
    %c8_i32_299 = arith.constant 8 : i32
    %687 = vector.broadcast %c8_i32_299 : i32 to vector<8x128xi32>
    %688 = arith.select %685, %687, %679 : vector<8x128xi1>, vector<8x128xi32>
    %c4_i32_300 = arith.constant 4 : i32
    %689 = vector.broadcast %c4_i32_300 : i32 to vector<8x128xi32>
    %690 = arith.select %685, %689, %681 : vector<8x128xi1>, vector<8x128xi32>
    %c0_301 = arith.constant 0 : index
    %c77 = arith.constant 77 : index
    %691 = arith.index_cast %1 : i32 to index
    %c0_302 = arith.constant 0 : index
    %692 = vector.load %arg2[%c0_301, %c77, %691, %c0_302] : memref<1x81x8x128xf32, #tpu.memory_space<vmem>>, vector<1x1x8x128xf32>
    %693 = vector.shape_cast %692 : vector<1x1x8x128xf32> to vector<8x128xf32>
    %694 = arith.cmpf ogt, %693, %686 : vector<8x128xf32>
    %695 = arith.select %694, %693, %686 : vector<8x128xi1>, vector<8x128xf32>
    %c8_i32_303 = arith.constant 8 : i32
    %696 = vector.broadcast %c8_i32_303 : i32 to vector<8x128xi32>
    %697 = arith.select %694, %696, %688 : vector<8x128xi1>, vector<8x128xi32>
    %c5_i32_304 = arith.constant 5 : i32
    %698 = vector.broadcast %c5_i32_304 : i32 to vector<8x128xi32>
    %699 = arith.select %694, %698, %690 : vector<8x128xi1>, vector<8x128xi32>
    %c0_305 = arith.constant 0 : index
    %c78 = arith.constant 78 : index
    %700 = arith.index_cast %1 : i32 to index
    %c0_306 = arith.constant 0 : index
    %701 = vector.load %arg2[%c0_305, %c78, %700, %c0_306] : memref<1x81x8x128xf32, #tpu.memory_space<vmem>>, vector<1x1x8x128xf32>
    %702 = vector.shape_cast %701 : vector<1x1x8x128xf32> to vector<8x128xf32>
    %703 = arith.cmpf ogt, %702, %695 : vector<8x128xf32>
    %704 = arith.select %703, %702, %695 : vector<8x128xi1>, vector<8x128xf32>
    %c8_i32_307 = arith.constant 8 : i32
    %705 = vector.broadcast %c8_i32_307 : i32 to vector<8x128xi32>
    %706 = arith.select %703, %705, %697 : vector<8x128xi1>, vector<8x128xi32>
    %c6_i32_308 = arith.constant 6 : i32
    %707 = vector.broadcast %c6_i32_308 : i32 to vector<8x128xi32>
    %708 = arith.select %703, %707, %699 : vector<8x128xi1>, vector<8x128xi32>
    %c0_309 = arith.constant 0 : index
    %c79 = arith.constant 79 : index
    %709 = arith.index_cast %1 : i32 to index
    %c0_310 = arith.constant 0 : index
    %710 = vector.load %arg2[%c0_309, %c79, %709, %c0_310] : memref<1x81x8x128xf32, #tpu.memory_space<vmem>>, vector<1x1x8x128xf32>
    %711 = vector.shape_cast %710 : vector<1x1x8x128xf32> to vector<8x128xf32>
    %712 = arith.cmpf ogt, %711, %704 : vector<8x128xf32>
    %713 = arith.select %712, %711, %704 : vector<8x128xi1>, vector<8x128xf32>
    %c8_i32_311 = arith.constant 8 : i32
    %714 = vector.broadcast %c8_i32_311 : i32 to vector<8x128xi32>
    %715 = arith.select %712, %714, %706 : vector<8x128xi1>, vector<8x128xi32>
    %c7_i32_312 = arith.constant 7 : i32
    %716 = vector.broadcast %c7_i32_312 : i32 to vector<8x128xi32>
    %717 = arith.select %712, %716, %708 : vector<8x128xi1>, vector<8x128xi32>
    %c0_313 = arith.constant 0 : index
    %c80 = arith.constant 80 : index
    %718 = arith.index_cast %1 : i32 to index
    %c0_314 = arith.constant 0 : index
    %719 = vector.load %arg2[%c0_313, %c80, %718, %c0_314] : memref<1x81x8x128xf32, #tpu.memory_space<vmem>>, vector<1x1x8x128xf32>
    %720 = vector.shape_cast %719 : vector<1x1x8x128xf32> to vector<8x128xf32>
    %721 = arith.cmpf ogt, %720, %713 : vector<8x128xf32>
    %722 = arith.select %721, %720, %713 : vector<8x128xi1>, vector<8x128xf32>
    %c8_i32_315 = arith.constant 8 : i32
    %723 = vector.broadcast %c8_i32_315 : i32 to vector<8x128xi32>
    %724 = arith.select %721, %723, %715 : vector<8x128xi1>, vector<8x128xi32>
    %c8_i32_316 = arith.constant 8 : i32
    %725 = vector.broadcast %c8_i32_316 : i32 to vector<8x128xi32>
    %726 = arith.select %721, %725, %717 : vector<8x128xi1>, vector<8x128xi32>
    %cst = arith.constant 0.000000e+00 : f32
    %727 = vector.broadcast %cst : f32 to vector<8x128xf32>
    %c0_317 = arith.constant 0 : index
    %c0_318 = arith.constant 0 : index
    %728 = arith.index_cast %1 : i32 to index
    %c0_319 = arith.constant 0 : index
    %729 = vector.load %arg2[%c0_317, %c0_318, %728, %c0_319] : memref<1x81x8x128xf32, #tpu.memory_space<vmem>>, vector<1x1x8x128xf32>
    %730 = vector.shape_cast %729 : vector<1x1x8x128xf32> to vector<8x128xf32>
    %731 = arith.subf %730, %722 : vector<8x128xf32>
    %732 = math.exp %731 : vector<8x128xf32>
    %c3_i32_320 = arith.constant 3 : i32
    %733 = vector.broadcast %c3_i32_320 : i32 to vector<8x128xi32>
    %734 = arith.cmpi sle, %724, %733 : vector<8x128xi32>
    %c3_i32_321 = arith.constant 3 : i32
    %735 = vector.broadcast %c3_i32_321 : i32 to vector<8x128xi32>
    %736 = arith.cmpi sle, %726, %735 : vector<8x128xi32>
    %737 = arith.andi %734, %736 : vector<8x128xi1>
    %cst_322 = arith.constant 0.000000e+00 : f32
    %738 = vector.broadcast %cst_322 : f32 to vector<8x128xf32>
    %739 = arith.select %737, %732, %738 : vector<8x128xi1>, vector<8x128xf32>
    %740 = arith.addf %727, %732 : vector<8x128xf32>
    %741 = arith.mulf %732, %731 : vector<8x128xf32>
    %742 = arith.addf %727, %741 : vector<8x128xf32>
    %743 = arith.addf %727, %739 : vector<8x128xf32>
    %744 = arith.mulf %739, %731 : vector<8x128xf32>
    %745 = arith.addf %727, %744 : vector<8x128xf32>
    %cst_323 = arith.constant -4.000000e+00 : f32
    %746 = vector.broadcast %cst_323 : f32 to vector<8x128xf32>
    %747 = arith.mulf %739, %746 : vector<8x128xf32>
    %748 = arith.addf %727, %747 : vector<8x128xf32>
    %cst_324 = arith.constant -4.000000e+00 : f32
    %749 = vector.broadcast %cst_324 : f32 to vector<8x128xf32>
    %750 = arith.mulf %739, %749 : vector<8x128xf32>
    %751 = arith.addf %727, %750 : vector<8x128xf32>
    %c0_325 = arith.constant 0 : index
    %c1_326 = arith.constant 1 : index
    %752 = arith.index_cast %1 : i32 to index
    %c0_327 = arith.constant 0 : index
    %753 = vector.load %arg2[%c0_325, %c1_326, %752, %c0_327] : memref<1x81x8x128xf32, #tpu.memory_space<vmem>>, vector<1x1x8x128xf32>
    %754 = vector.shape_cast %753 : vector<1x1x8x128xf32> to vector<8x128xf32>
    %755 = arith.subf %754, %722 : vector<8x128xf32>
    %756 = math.exp %755 : vector<8x128xf32>
    %c3_i32_328 = arith.constant 3 : i32
    %757 = vector.broadcast %c3_i32_328 : i32 to vector<8x128xi32>
    %758 = arith.cmpi sle, %724, %757 : vector<8x128xi32>
    %c4_i32_329 = arith.constant 4 : i32
    %759 = vector.broadcast %c4_i32_329 : i32 to vector<8x128xi32>
    %760 = arith.cmpi sle, %726, %759 : vector<8x128xi32>
    %761 = arith.andi %758, %760 : vector<8x128xi1>
    %cst_330 = arith.constant 0.000000e+00 : f32
    %762 = vector.broadcast %cst_330 : f32 to vector<8x128xf32>
    %763 = arith.select %761, %756, %762 : vector<8x128xi1>, vector<8x128xf32>
    %764 = arith.addf %740, %756 : vector<8x128xf32>
    %765 = arith.mulf %756, %755 : vector<8x128xf32>
    %766 = arith.addf %742, %765 : vector<8x128xf32>
    %767 = arith.addf %743, %763 : vector<8x128xf32>
    %768 = arith.mulf %763, %755 : vector<8x128xf32>
    %769 = arith.addf %745, %768 : vector<8x128xf32>
    %cst_331 = arith.constant -4.000000e+00 : f32
    %770 = vector.broadcast %cst_331 : f32 to vector<8x128xf32>
    %771 = arith.mulf %763, %770 : vector<8x128xf32>
    %772 = arith.addf %748, %771 : vector<8x128xf32>
    %cst_332 = arith.constant -3.000000e+00 : f32
    %773 = vector.broadcast %cst_332 : f32 to vector<8x128xf32>
    %774 = arith.mulf %763, %773 : vector<8x128xf32>
    %775 = arith.addf %751, %774 : vector<8x128xf32>
    %c0_333 = arith.constant 0 : index
    %c2_334 = arith.constant 2 : index
    %776 = arith.index_cast %1 : i32 to index
    %c0_335 = arith.constant 0 : index
    %777 = vector.load %arg2[%c0_333, %c2_334, %776, %c0_335] : memref<1x81x8x128xf32, #tpu.memory_space<vmem>>, vector<1x1x8x128xf32>
    %778 = vector.shape_cast %777 : vector<1x1x8x128xf32> to vector<8x128xf32>
    %779 = arith.subf %778, %722 : vector<8x128xf32>
    %780 = math.exp %779 : vector<8x128xf32>
    %c3_i32_336 = arith.constant 3 : i32
    %781 = vector.broadcast %c3_i32_336 : i32 to vector<8x128xi32>
    %782 = arith.cmpi sle, %724, %781 : vector<8x128xi32>
    %c5_i32_337 = arith.constant 5 : i32
    %783 = vector.broadcast %c5_i32_337 : i32 to vector<8x128xi32>
    %784 = arith.cmpi sle, %726, %783 : vector<8x128xi32>
    %785 = arith.andi %782, %784 : vector<8x128xi1>
    %cst_338 = arith.constant 0.000000e+00 : f32
    %786 = vector.broadcast %cst_338 : f32 to vector<8x128xf32>
    %787 = arith.select %785, %780, %786 : vector<8x128xi1>, vector<8x128xf32>
    %788 = arith.addf %764, %780 : vector<8x128xf32>
    %789 = arith.mulf %780, %779 : vector<8x128xf32>
    %790 = arith.addf %766, %789 : vector<8x128xf32>
    %791 = arith.addf %767, %787 : vector<8x128xf32>
    %792 = arith.mulf %787, %779 : vector<8x128xf32>
    %793 = arith.addf %769, %792 : vector<8x128xf32>
    %cst_339 = arith.constant -4.000000e+00 : f32
    %794 = vector.broadcast %cst_339 : f32 to vector<8x128xf32>
    %795 = arith.mulf %787, %794 : vector<8x128xf32>
    %796 = arith.addf %772, %795 : vector<8x128xf32>
    %cst_340 = arith.constant -2.000000e+00 : f32
    %797 = vector.broadcast %cst_340 : f32 to vector<8x128xf32>
    %798 = arith.mulf %787, %797 : vector<8x128xf32>
    %799 = arith.addf %775, %798 : vector<8x128xf32>
    %c0_341 = arith.constant 0 : index
    %c3_342 = arith.constant 3 : index
    %800 = arith.index_cast %1 : i32 to index
    %c0_343 = arith.constant 0 : index
    %801 = vector.load %arg2[%c0_341, %c3_342, %800, %c0_343] : memref<1x81x8x128xf32, #tpu.memory_space<vmem>>, vector<1x1x8x128xf32>
    %802 = vector.shape_cast %801 : vector<1x1x8x128xf32> to vector<8x128xf32>
    %803 = arith.subf %802, %722 : vector<8x128xf32>
    %804 = math.exp %803 : vector<8x128xf32>
    %c3_i32_344 = arith.constant 3 : i32
    %805 = vector.broadcast %c3_i32_344 : i32 to vector<8x128xi32>
    %806 = arith.cmpi sle, %724, %805 : vector<8x128xi32>
    %c6_i32_345 = arith.constant 6 : i32
    %807 = vector.broadcast %c6_i32_345 : i32 to vector<8x128xi32>
    %808 = arith.cmpi sle, %726, %807 : vector<8x128xi32>
    %809 = arith.andi %806, %808 : vector<8x128xi1>
    %cst_346 = arith.constant 0.000000e+00 : f32
    %810 = vector.broadcast %cst_346 : f32 to vector<8x128xf32>
    %811 = arith.select %809, %804, %810 : vector<8x128xi1>, vector<8x128xf32>
    %812 = arith.addf %788, %804 : vector<8x128xf32>
    %813 = arith.mulf %804, %803 : vector<8x128xf32>
    %814 = arith.addf %790, %813 : vector<8x128xf32>
    %815 = arith.addf %791, %811 : vector<8x128xf32>
    %816 = arith.mulf %811, %803 : vector<8x128xf32>
    %817 = arith.addf %793, %816 : vector<8x128xf32>
    %cst_347 = arith.constant -4.000000e+00 : f32
    %818 = vector.broadcast %cst_347 : f32 to vector<8x128xf32>
    %819 = arith.mulf %811, %818 : vector<8x128xf32>
    %820 = arith.addf %796, %819 : vector<8x128xf32>
    %821 = arith.subf %799, %811 : vector<8x128xf32>
    %c0_348 = arith.constant 0 : index
    %c4_349 = arith.constant 4 : index
    %822 = arith.index_cast %1 : i32 to index
    %c0_350 = arith.constant 0 : index
    %823 = vector.load %arg2[%c0_348, %c4_349, %822, %c0_350] : memref<1x81x8x128xf32, #tpu.memory_space<vmem>>, vector<1x1x8x128xf32>
    %824 = vector.shape_cast %823 : vector<1x1x8x128xf32> to vector<8x128xf32>
    %825 = arith.subf %824, %722 : vector<8x128xf32>
    %826 = math.exp %825 : vector<8x128xf32>
    %c3_i32_351 = arith.constant 3 : i32
    %827 = vector.broadcast %c3_i32_351 : i32 to vector<8x128xi32>
    %828 = arith.cmpi sle, %724, %827 : vector<8x128xi32>
    %c1_i32_352 = arith.constant 1 : i32
    %829 = vector.broadcast %c1_i32_352 : i32 to vector<8x128xi32>
    %830 = arith.cmpi sge, %726, %829 : vector<8x128xi32>
    %c7_i32_353 = arith.constant 7 : i32
    %831 = vector.broadcast %c7_i32_353 : i32 to vector<8x128xi32>
    %832 = arith.cmpi sle, %726, %831 : vector<8x128xi32>
    %833 = arith.andi %828, %830 : vector<8x128xi1>
    %834 = arith.andi %833, %832 : vector<8x128xi1>
    %cst_354 = arith.constant 0.000000e+00 : f32
    %835 = vector.broadcast %cst_354 : f32 to vector<8x128xf32>
    %836 = arith.select %834, %826, %835 : vector<8x128xi1>, vector<8x128xf32>
    %837 = arith.addf %812, %826 : vector<8x128xf32>
    %838 = arith.mulf %826, %825 : vector<8x128xf32>
    %839 = arith.addf %814, %838 : vector<8x128xf32>
    %840 = arith.addf %815, %836 : vector<8x128xf32>
    %841 = arith.mulf %836, %825 : vector<8x128xf32>
    %842 = arith.addf %817, %841 : vector<8x128xf32>
    %cst_355 = arith.constant -4.000000e+00 : f32
    %843 = vector.broadcast %cst_355 : f32 to vector<8x128xf32>
    %844 = arith.mulf %836, %843 : vector<8x128xf32>
    %845 = arith.addf %820, %844 : vector<8x128xf32>
    %c0_356 = arith.constant 0 : index
    %c5_357 = arith.constant 5 : index
    %846 = arith.index_cast %1 : i32 to index
    %c0_358 = arith.constant 0 : index
    %847 = vector.load %arg2[%c0_356, %c5_357, %846, %c0_358] : memref<1x81x8x128xf32, #tpu.memory_space<vmem>>, vector<1x1x8x128xf32>
    %848 = vector.shape_cast %847 : vector<1x1x8x128xf32> to vector<8x128xf32>
    %849 = arith.subf %848, %722 : vector<8x128xf32>
    %850 = math.exp %849 : vector<8x128xf32>
    %c3_i32_359 = arith.constant 3 : i32
    %851 = vector.broadcast %c3_i32_359 : i32 to vector<8x128xi32>
    %852 = arith.cmpi sle, %724, %851 : vector<8x128xi32>
    %c2_i32_360 = arith.constant 2 : i32
    %853 = vector.broadcast %c2_i32_360 : i32 to vector<8x128xi32>
    %854 = arith.cmpi sge, %726, %853 : vector<8x128xi32>
    %855 = arith.andi %852, %854 : vector<8x128xi1>
    %cst_361 = arith.constant 0.000000e+00 : f32
    %856 = vector.broadcast %cst_361 : f32 to vector<8x128xf32>
    %857 = arith.select %855, %850, %856 : vector<8x128xi1>, vector<8x128xf32>
    %858 = arith.addf %837, %850 : vector<8x128xf32>
    %859 = arith.mulf %850, %849 : vector<8x128xf32>
    %860 = arith.addf %839, %859 : vector<8x128xf32>
    %861 = arith.addf %840, %857 : vector<8x128xf32>
    %862 = arith.mulf %857, %849 : vector<8x128xf32>
    %863 = arith.addf %842, %862 : vector<8x128xf32>
    %cst_362 = arith.constant -4.000000e+00 : f32
    %864 = vector.broadcast %cst_362 : f32 to vector<8x128xf32>
    %865 = arith.mulf %857, %864 : vector<8x128xf32>
    %866 = arith.addf %845, %865 : vector<8x128xf32>
    %867 = arith.addf %821, %857 : vector<8x128xf32>
    %c0_363 = arith.constant 0 : index
    %c6_364 = arith.constant 6 : index
    %868 = arith.index_cast %1 : i32 to index
    %c0_365 = arith.constant 0 : index
    %869 = vector.load %arg2[%c0_363, %c6_364, %868, %c0_365] : memref<1x81x8x128xf32, #tpu.memory_space<vmem>>, vector<1x1x8x128xf32>
    %870 = vector.shape_cast %869 : vector<1x1x8x128xf32> to vector<8x128xf32>
    %871 = arith.subf %870, %722 : vector<8x128xf32>
    %872 = math.exp %871 : vector<8x128xf32>
    %c3_i32_366 = arith.constant 3 : i32
    %873 = vector.broadcast %c3_i32_366 : i32 to vector<8x128xi32>
    %874 = arith.cmpi sle, %724, %873 : vector<8x128xi32>
    %c3_i32_367 = arith.constant 3 : i32
    %875 = vector.broadcast %c3_i32_367 : i32 to vector<8x128xi32>
    %876 = arith.cmpi sge, %726, %875 : vector<8x128xi32>
    %877 = arith.andi %874, %876 : vector<8x128xi1>
    %cst_368 = arith.constant 0.000000e+00 : f32
    %878 = vector.broadcast %cst_368 : f32 to vector<8x128xf32>
    %879 = arith.select %877, %872, %878 : vector<8x128xi1>, vector<8x128xf32>
    %880 = arith.addf %858, %872 : vector<8x128xf32>
    %881 = arith.mulf %872, %871 : vector<8x128xf32>
    %882 = arith.addf %860, %881 : vector<8x128xf32>
    %883 = arith.addf %861, %879 : vector<8x128xf32>
    %884 = arith.mulf %879, %871 : vector<8x128xf32>
    %885 = arith.addf %863, %884 : vector<8x128xf32>
    %cst_369 = arith.constant -4.000000e+00 : f32
    %886 = vector.broadcast %cst_369 : f32 to vector<8x128xf32>
    %887 = arith.mulf %879, %886 : vector<8x128xf32>
    %888 = arith.addf %866, %887 : vector<8x128xf32>
    %cst_370 = arith.constant 2.000000e+00 : f32
    %889 = vector.broadcast %cst_370 : f32 to vector<8x128xf32>
    %890 = arith.mulf %879, %889 : vector<8x128xf32>
    %891 = arith.addf %867, %890 : vector<8x128xf32>
    %c0_371 = arith.constant 0 : index
    %c7_372 = arith.constant 7 : index
    %892 = arith.index_cast %1 : i32 to index
    %c0_373 = arith.constant 0 : index
    %893 = vector.load %arg2[%c0_371, %c7_372, %892, %c0_373] : memref<1x81x8x128xf32, #tpu.memory_space<vmem>>, vector<1x1x8x128xf32>
    %894 = vector.shape_cast %893 : vector<1x1x8x128xf32> to vector<8x128xf32>
    %895 = arith.subf %894, %722 : vector<8x128xf32>
    %896 = math.exp %895 : vector<8x128xf32>
    %c3_i32_374 = arith.constant 3 : i32
    %897 = vector.broadcast %c3_i32_374 : i32 to vector<8x128xi32>
    %898 = arith.cmpi sle, %724, %897 : vector<8x128xi32>
    %c4_i32_375 = arith.constant 4 : i32
    %899 = vector.broadcast %c4_i32_375 : i32 to vector<8x128xi32>
    %900 = arith.cmpi sge, %726, %899 : vector<8x128xi32>
    %901 = arith.andi %898, %900 : vector<8x128xi1>
    %cst_376 = arith.constant 0.000000e+00 : f32
    %902 = vector.broadcast %cst_376 : f32 to vector<8x128xf32>
    %903 = arith.select %901, %896, %902 : vector<8x128xi1>, vector<8x128xf32>
    %904 = arith.addf %880, %896 : vector<8x128xf32>
    %905 = arith.mulf %896, %895 : vector<8x128xf32>
    %906 = arith.addf %882, %905 : vector<8x128xf32>
    %907 = arith.addf %883, %903 : vector<8x128xf32>
    %908 = arith.mulf %903, %895 : vector<8x128xf32>
    %909 = arith.addf %885, %908 : vector<8x128xf32>
    %cst_377 = arith.constant -4.000000e+00 : f32
    %910 = vector.broadcast %cst_377 : f32 to vector<8x128xf32>
    %911 = arith.mulf %903, %910 : vector<8x128xf32>
    %912 = arith.addf %888, %911 : vector<8x128xf32>
    %cst_378 = arith.constant 3.000000e+00 : f32
    %913 = vector.broadcast %cst_378 : f32 to vector<8x128xf32>
    %914 = arith.mulf %903, %913 : vector<8x128xf32>
    %915 = arith.addf %891, %914 : vector<8x128xf32>
    %c0_379 = arith.constant 0 : index
    %c8_380 = arith.constant 8 : index
    %916 = arith.index_cast %1 : i32 to index
    %c0_381 = arith.constant 0 : index
    %917 = vector.load %arg2[%c0_379, %c8_380, %916, %c0_381] : memref<1x81x8x128xf32, #tpu.memory_space<vmem>>, vector<1x1x8x128xf32>
    %918 = vector.shape_cast %917 : vector<1x1x8x128xf32> to vector<8x128xf32>
    %919 = arith.subf %918, %722 : vector<8x128xf32>
    %920 = math.exp %919 : vector<8x128xf32>
    %c3_i32_382 = arith.constant 3 : i32
    %921 = vector.broadcast %c3_i32_382 : i32 to vector<8x128xi32>
    %922 = arith.cmpi sle, %724, %921 : vector<8x128xi32>
    %c5_i32_383 = arith.constant 5 : i32
    %923 = vector.broadcast %c5_i32_383 : i32 to vector<8x128xi32>
    %924 = arith.cmpi sge, %726, %923 : vector<8x128xi32>
    %925 = arith.andi %922, %924 : vector<8x128xi1>
    %cst_384 = arith.constant 0.000000e+00 : f32
    %926 = vector.broadcast %cst_384 : f32 to vector<8x128xf32>
    %927 = arith.select %925, %920, %926 : vector<8x128xi1>, vector<8x128xf32>
    %928 = arith.addf %904, %920 : vector<8x128xf32>
    %929 = arith.mulf %920, %919 : vector<8x128xf32>
    %930 = arith.addf %906, %929 : vector<8x128xf32>
    %931 = arith.addf %907, %927 : vector<8x128xf32>
    %932 = arith.mulf %927, %919 : vector<8x128xf32>
    %933 = arith.addf %909, %932 : vector<8x128xf32>
    %cst_385 = arith.constant -4.000000e+00 : f32
    %934 = vector.broadcast %cst_385 : f32 to vector<8x128xf32>
    %935 = arith.mulf %927, %934 : vector<8x128xf32>
    %936 = arith.addf %912, %935 : vector<8x128xf32>
    %cst_386 = arith.constant 4.000000e+00 : f32
    %937 = vector.broadcast %cst_386 : f32 to vector<8x128xf32>
    %938 = arith.mulf %927, %937 : vector<8x128xf32>
    %939 = arith.addf %915, %938 : vector<8x128xf32>
    %c0_387 = arith.constant 0 : index
    %c9_388 = arith.constant 9 : index
    %940 = arith.index_cast %1 : i32 to index
    %c0_389 = arith.constant 0 : index
    %941 = vector.load %arg2[%c0_387, %c9_388, %940, %c0_389] : memref<1x81x8x128xf32, #tpu.memory_space<vmem>>, vector<1x1x8x128xf32>
    %942 = vector.shape_cast %941 : vector<1x1x8x128xf32> to vector<8x128xf32>
    %943 = arith.subf %942, %722 : vector<8x128xf32>
    %944 = math.exp %943 : vector<8x128xf32>
    %c4_i32_390 = arith.constant 4 : i32
    %945 = vector.broadcast %c4_i32_390 : i32 to vector<8x128xi32>
    %946 = arith.cmpi sle, %724, %945 : vector<8x128xi32>
    %c3_i32_391 = arith.constant 3 : i32
    %947 = vector.broadcast %c3_i32_391 : i32 to vector<8x128xi32>
    %948 = arith.cmpi sle, %726, %947 : vector<8x128xi32>
    %949 = arith.andi %946, %948 : vector<8x128xi1>
    %cst_392 = arith.constant 0.000000e+00 : f32
    %950 = vector.broadcast %cst_392 : f32 to vector<8x128xf32>
    %951 = arith.select %949, %944, %950 : vector<8x128xi1>, vector<8x128xf32>
    %952 = arith.addf %928, %944 : vector<8x128xf32>
    %953 = arith.mulf %944, %943 : vector<8x128xf32>
    %954 = arith.addf %930, %953 : vector<8x128xf32>
    %955 = arith.addf %931, %951 : vector<8x128xf32>
    %956 = arith.mulf %951, %943 : vector<8x128xf32>
    %957 = arith.addf %933, %956 : vector<8x128xf32>
    %cst_393 = arith.constant -3.000000e+00 : f32
    %958 = vector.broadcast %cst_393 : f32 to vector<8x128xf32>
    %959 = arith.mulf %951, %958 : vector<8x128xf32>
    %960 = arith.addf %936, %959 : vector<8x128xf32>
    %cst_394 = arith.constant -4.000000e+00 : f32
    %961 = vector.broadcast %cst_394 : f32 to vector<8x128xf32>
    %962 = arith.mulf %951, %961 : vector<8x128xf32>
    %963 = arith.addf %939, %962 : vector<8x128xf32>
    %c0_395 = arith.constant 0 : index
    %c10_396 = arith.constant 10 : index
    %964 = arith.index_cast %1 : i32 to index
    %c0_397 = arith.constant 0 : index
    %965 = vector.load %arg2[%c0_395, %c10_396, %964, %c0_397] : memref<1x81x8x128xf32, #tpu.memory_space<vmem>>, vector<1x1x8x128xf32>
    %966 = vector.shape_cast %965 : vector<1x1x8x128xf32> to vector<8x128xf32>
    %967 = arith.subf %966, %722 : vector<8x128xf32>
    %968 = math.exp %967 : vector<8x128xf32>
    %c4_i32_398 = arith.constant 4 : i32
    %969 = vector.broadcast %c4_i32_398 : i32 to vector<8x128xi32>
    %970 = arith.cmpi sle, %724, %969 : vector<8x128xi32>
    %c4_i32_399 = arith.constant 4 : i32
    %971 = vector.broadcast %c4_i32_399 : i32 to vector<8x128xi32>
    %972 = arith.cmpi sle, %726, %971 : vector<8x128xi32>
    %973 = arith.andi %970, %972 : vector<8x128xi1>
    %cst_400 = arith.constant 0.000000e+00 : f32
    %974 = vector.broadcast %cst_400 : f32 to vector<8x128xf32>
    %975 = arith.select %973, %968, %974 : vector<8x128xi1>, vector<8x128xf32>
    %976 = arith.addf %952, %968 : vector<8x128xf32>
    %977 = arith.mulf %968, %967 : vector<8x128xf32>
    %978 = arith.addf %954, %977 : vector<8x128xf32>
    %979 = arith.addf %955, %975 : vector<8x128xf32>
    %980 = arith.mulf %975, %967 : vector<8x128xf32>
    %981 = arith.addf %957, %980 : vector<8x128xf32>
    %cst_401 = arith.constant -3.000000e+00 : f32
    %982 = vector.broadcast %cst_401 : f32 to vector<8x128xf32>
    %983 = arith.mulf %975, %982 : vector<8x128xf32>
    %984 = arith.addf %960, %983 : vector<8x128xf32>
    %cst_402 = arith.constant -3.000000e+00 : f32
    %985 = vector.broadcast %cst_402 : f32 to vector<8x128xf32>
    %986 = arith.mulf %975, %985 : vector<8x128xf32>
    %987 = arith.addf %963, %986 : vector<8x128xf32>
    %c0_403 = arith.constant 0 : index
    %c11_404 = arith.constant 11 : index
    %988 = arith.index_cast %1 : i32 to index
    %c0_405 = arith.constant 0 : index
    %989 = vector.load %arg2[%c0_403, %c11_404, %988, %c0_405] : memref<1x81x8x128xf32, #tpu.memory_space<vmem>>, vector<1x1x8x128xf32>
    %990 = vector.shape_cast %989 : vector<1x1x8x128xf32> to vector<8x128xf32>
    %991 = arith.subf %990, %722 : vector<8x128xf32>
    %992 = math.exp %991 : vector<8x128xf32>
    %c4_i32_406 = arith.constant 4 : i32
    %993 = vector.broadcast %c4_i32_406 : i32 to vector<8x128xi32>
    %994 = arith.cmpi sle, %724, %993 : vector<8x128xi32>
    %c5_i32_407 = arith.constant 5 : i32
    %995 = vector.broadcast %c5_i32_407 : i32 to vector<8x128xi32>
    %996 = arith.cmpi sle, %726, %995 : vector<8x128xi32>
    %997 = arith.andi %994, %996 : vector<8x128xi1>
    %cst_408 = arith.constant 0.000000e+00 : f32
    %998 = vector.broadcast %cst_408 : f32 to vector<8x128xf32>
    %999 = arith.select %997, %992, %998 : vector<8x128xi1>, vector<8x128xf32>
    %1000 = arith.addf %976, %992 : vector<8x128xf32>
    %1001 = arith.mulf %992, %991 : vector<8x128xf32>
    %1002 = arith.addf %978, %1001 : vector<8x128xf32>
    %1003 = arith.addf %979, %999 : vector<8x128xf32>
    %1004 = arith.mulf %999, %991 : vector<8x128xf32>
    %1005 = arith.addf %981, %1004 : vector<8x128xf32>
    %cst_409 = arith.constant -3.000000e+00 : f32
    %1006 = vector.broadcast %cst_409 : f32 to vector<8x128xf32>
    %1007 = arith.mulf %999, %1006 : vector<8x128xf32>
    %1008 = arith.addf %984, %1007 : vector<8x128xf32>
    %cst_410 = arith.constant -2.000000e+00 : f32
    %1009 = vector.broadcast %cst_410 : f32 to vector<8x128xf32>
    %1010 = arith.mulf %999, %1009 : vector<8x128xf32>
    %1011 = arith.addf %987, %1010 : vector<8x128xf32>
    %c0_411 = arith.constant 0 : index
    %c12_412 = arith.constant 12 : index
    %1012 = arith.index_cast %1 : i32 to index
    %c0_413 = arith.constant 0 : index
    %1013 = vector.load %arg2[%c0_411, %c12_412, %1012, %c0_413] : memref<1x81x8x128xf32, #tpu.memory_space<vmem>>, vector<1x1x8x128xf32>
    %1014 = vector.shape_cast %1013 : vector<1x1x8x128xf32> to vector<8x128xf32>
    %1015 = arith.subf %1014, %722 : vector<8x128xf32>
    %1016 = math.exp %1015 : vector<8x128xf32>
    %c4_i32_414 = arith.constant 4 : i32
    %1017 = vector.broadcast %c4_i32_414 : i32 to vector<8x128xi32>
    %1018 = arith.cmpi sle, %724, %1017 : vector<8x128xi32>
    %c6_i32_415 = arith.constant 6 : i32
    %1019 = vector.broadcast %c6_i32_415 : i32 to vector<8x128xi32>
    %1020 = arith.cmpi sle, %726, %1019 : vector<8x128xi32>
    %1021 = arith.andi %1018, %1020 : vector<8x128xi1>
    %cst_416 = arith.constant 0.000000e+00 : f32
    %1022 = vector.broadcast %cst_416 : f32 to vector<8x128xf32>
    %1023 = arith.select %1021, %1016, %1022 : vector<8x128xi1>, vector<8x128xf32>
    %1024 = arith.addf %1000, %1016 : vector<8x128xf32>
    %1025 = arith.mulf %1016, %1015 : vector<8x128xf32>
    %1026 = arith.addf %1002, %1025 : vector<8x128xf32>
    %1027 = arith.addf %1003, %1023 : vector<8x128xf32>
    %1028 = arith.mulf %1023, %1015 : vector<8x128xf32>
    %1029 = arith.addf %1005, %1028 : vector<8x128xf32>
    %cst_417 = arith.constant -3.000000e+00 : f32
    %1030 = vector.broadcast %cst_417 : f32 to vector<8x128xf32>
    %1031 = arith.mulf %1023, %1030 : vector<8x128xf32>
    %1032 = arith.addf %1008, %1031 : vector<8x128xf32>
    %1033 = arith.subf %1011, %1023 : vector<8x128xf32>
    %c0_418 = arith.constant 0 : index
    %c13_419 = arith.constant 13 : index
    %1034 = arith.index_cast %1 : i32 to index
    %c0_420 = arith.constant 0 : index
    %1035 = vector.load %arg2[%c0_418, %c13_419, %1034, %c0_420] : memref<1x81x8x128xf32, #tpu.memory_space<vmem>>, vector<1x1x8x128xf32>
    %1036 = vector.shape_cast %1035 : vector<1x1x8x128xf32> to vector<8x128xf32>
    %1037 = arith.subf %1036, %722 : vector<8x128xf32>
    %1038 = math.exp %1037 : vector<8x128xf32>
    %c4_i32_421 = arith.constant 4 : i32
    %1039 = vector.broadcast %c4_i32_421 : i32 to vector<8x128xi32>
    %1040 = arith.cmpi sle, %724, %1039 : vector<8x128xi32>
    %c1_i32_422 = arith.constant 1 : i32
    %1041 = vector.broadcast %c1_i32_422 : i32 to vector<8x128xi32>
    %1042 = arith.cmpi sge, %726, %1041 : vector<8x128xi32>
    %c7_i32_423 = arith.constant 7 : i32
    %1043 = vector.broadcast %c7_i32_423 : i32 to vector<8x128xi32>
    %1044 = arith.cmpi sle, %726, %1043 : vector<8x128xi32>
    %1045 = arith.andi %1040, %1042 : vector<8x128xi1>
    %1046 = arith.andi %1045, %1044 : vector<8x128xi1>
    %cst_424 = arith.constant 0.000000e+00 : f32
    %1047 = vector.broadcast %cst_424 : f32 to vector<8x128xf32>
    %1048 = arith.select %1046, %1038, %1047 : vector<8x128xi1>, vector<8x128xf32>
    %1049 = arith.addf %1024, %1038 : vector<8x128xf32>
    %1050 = arith.mulf %1038, %1037 : vector<8x128xf32>
    %1051 = arith.addf %1026, %1050 : vector<8x128xf32>
    %1052 = arith.addf %1027, %1048 : vector<8x128xf32>
    %1053 = arith.mulf %1048, %1037 : vector<8x128xf32>
    %1054 = arith.addf %1029, %1053 : vector<8x128xf32>
    %cst_425 = arith.constant -3.000000e+00 : f32
    %1055 = vector.broadcast %cst_425 : f32 to vector<8x128xf32>
    %1056 = arith.mulf %1048, %1055 : vector<8x128xf32>
    %1057 = arith.addf %1032, %1056 : vector<8x128xf32>
    %c0_426 = arith.constant 0 : index
    %c14_427 = arith.constant 14 : index
    %1058 = arith.index_cast %1 : i32 to index
    %c0_428 = arith.constant 0 : index
    %1059 = vector.load %arg2[%c0_426, %c14_427, %1058, %c0_428] : memref<1x81x8x128xf32, #tpu.memory_space<vmem>>, vector<1x1x8x128xf32>
    %1060 = vector.shape_cast %1059 : vector<1x1x8x128xf32> to vector<8x128xf32>
    %1061 = arith.subf %1060, %722 : vector<8x128xf32>
    %1062 = math.exp %1061 : vector<8x128xf32>
    %c4_i32_429 = arith.constant 4 : i32
    %1063 = vector.broadcast %c4_i32_429 : i32 to vector<8x128xi32>
    %1064 = arith.cmpi sle, %724, %1063 : vector<8x128xi32>
    %c2_i32_430 = arith.constant 2 : i32
    %1065 = vector.broadcast %c2_i32_430 : i32 to vector<8x128xi32>
    %1066 = arith.cmpi sge, %726, %1065 : vector<8x128xi32>
    %1067 = arith.andi %1064, %1066 : vector<8x128xi1>
    %cst_431 = arith.constant 0.000000e+00 : f32
    %1068 = vector.broadcast %cst_431 : f32 to vector<8x128xf32>
    %1069 = arith.select %1067, %1062, %1068 : vector<8x128xi1>, vector<8x128xf32>
    %1070 = arith.addf %1049, %1062 : vector<8x128xf32>
    %1071 = arith.mulf %1062, %1061 : vector<8x128xf32>
    %1072 = arith.addf %1051, %1071 : vector<8x128xf32>
    %1073 = arith.addf %1052, %1069 : vector<8x128xf32>
    %1074 = arith.mulf %1069, %1061 : vector<8x128xf32>
    %1075 = arith.addf %1054, %1074 : vector<8x128xf32>
    %cst_432 = arith.constant -3.000000e+00 : f32
    %1076 = vector.broadcast %cst_432 : f32 to vector<8x128xf32>
    %1077 = arith.mulf %1069, %1076 : vector<8x128xf32>
    %1078 = arith.addf %1057, %1077 : vector<8x128xf32>
    %1079 = arith.addf %1033, %1069 : vector<8x128xf32>
    %c0_433 = arith.constant 0 : index
    %c15_434 = arith.constant 15 : index
    %1080 = arith.index_cast %1 : i32 to index
    %c0_435 = arith.constant 0 : index
    %1081 = vector.load %arg2[%c0_433, %c15_434, %1080, %c0_435] : memref<1x81x8x128xf32, #tpu.memory_space<vmem>>, vector<1x1x8x128xf32>
    %1082 = vector.shape_cast %1081 : vector<1x1x8x128xf32> to vector<8x128xf32>
    %1083 = arith.subf %1082, %722 : vector<8x128xf32>
    %1084 = math.exp %1083 : vector<8x128xf32>
    %c4_i32_436 = arith.constant 4 : i32
    %1085 = vector.broadcast %c4_i32_436 : i32 to vector<8x128xi32>
    %1086 = arith.cmpi sle, %724, %1085 : vector<8x128xi32>
    %c3_i32_437 = arith.constant 3 : i32
    %1087 = vector.broadcast %c3_i32_437 : i32 to vector<8x128xi32>
    %1088 = arith.cmpi sge, %726, %1087 : vector<8x128xi32>
    %1089 = arith.andi %1086, %1088 : vector<8x128xi1>
    %cst_438 = arith.constant 0.000000e+00 : f32
    %1090 = vector.broadcast %cst_438 : f32 to vector<8x128xf32>
    %1091 = arith.select %1089, %1084, %1090 : vector<8x128xi1>, vector<8x128xf32>
    %1092 = arith.addf %1070, %1084 : vector<8x128xf32>
    %1093 = arith.mulf %1084, %1083 : vector<8x128xf32>
    %1094 = arith.addf %1072, %1093 : vector<8x128xf32>
    %1095 = arith.addf %1073, %1091 : vector<8x128xf32>
    %1096 = arith.mulf %1091, %1083 : vector<8x128xf32>
    %1097 = arith.addf %1075, %1096 : vector<8x128xf32>
    %cst_439 = arith.constant -3.000000e+00 : f32
    %1098 = vector.broadcast %cst_439 : f32 to vector<8x128xf32>
    %1099 = arith.mulf %1091, %1098 : vector<8x128xf32>
    %1100 = arith.addf %1078, %1099 : vector<8x128xf32>
    %cst_440 = arith.constant 2.000000e+00 : f32
    %1101 = vector.broadcast %cst_440 : f32 to vector<8x128xf32>
    %1102 = arith.mulf %1091, %1101 : vector<8x128xf32>
    %1103 = arith.addf %1079, %1102 : vector<8x128xf32>
    %c0_441 = arith.constant 0 : index
    %c16_442 = arith.constant 16 : index
    %1104 = arith.index_cast %1 : i32 to index
    %c0_443 = arith.constant 0 : index
    %1105 = vector.load %arg2[%c0_441, %c16_442, %1104, %c0_443] : memref<1x81x8x128xf32, #tpu.memory_space<vmem>>, vector<1x1x8x128xf32>
    %1106 = vector.shape_cast %1105 : vector<1x1x8x128xf32> to vector<8x128xf32>
    %1107 = arith.subf %1106, %722 : vector<8x128xf32>
    %1108 = math.exp %1107 : vector<8x128xf32>
    %c4_i32_444 = arith.constant 4 : i32
    %1109 = vector.broadcast %c4_i32_444 : i32 to vector<8x128xi32>
    %1110 = arith.cmpi sle, %724, %1109 : vector<8x128xi32>
    %c4_i32_445 = arith.constant 4 : i32
    %1111 = vector.broadcast %c4_i32_445 : i32 to vector<8x128xi32>
    %1112 = arith.cmpi sge, %726, %1111 : vector<8x128xi32>
    %1113 = arith.andi %1110, %1112 : vector<8x128xi1>
    %cst_446 = arith.constant 0.000000e+00 : f32
    %1114 = vector.broadcast %cst_446 : f32 to vector<8x128xf32>
    %1115 = arith.select %1113, %1108, %1114 : vector<8x128xi1>, vector<8x128xf32>
    %1116 = arith.addf %1092, %1108 : vector<8x128xf32>
    %1117 = arith.mulf %1108, %1107 : vector<8x128xf32>
    %1118 = arith.addf %1094, %1117 : vector<8x128xf32>
    %1119 = arith.addf %1095, %1115 : vector<8x128xf32>
    %1120 = arith.mulf %1115, %1107 : vector<8x128xf32>
    %1121 = arith.addf %1097, %1120 : vector<8x128xf32>
    %cst_447 = arith.constant -3.000000e+00 : f32
    %1122 = vector.broadcast %cst_447 : f32 to vector<8x128xf32>
    %1123 = arith.mulf %1115, %1122 : vector<8x128xf32>
    %1124 = arith.addf %1100, %1123 : vector<8x128xf32>
    %cst_448 = arith.constant 3.000000e+00 : f32
    %1125 = vector.broadcast %cst_448 : f32 to vector<8x128xf32>
    %1126 = arith.mulf %1115, %1125 : vector<8x128xf32>
    %1127 = arith.addf %1103, %1126 : vector<8x128xf32>
    %c0_449 = arith.constant 0 : index
    %c17_450 = arith.constant 17 : index
    %1128 = arith.index_cast %1 : i32 to index
    %c0_451 = arith.constant 0 : index
    %1129 = vector.load %arg2[%c0_449, %c17_450, %1128, %c0_451] : memref<1x81x8x128xf32, #tpu.memory_space<vmem>>, vector<1x1x8x128xf32>
    %1130 = vector.shape_cast %1129 : vector<1x1x8x128xf32> to vector<8x128xf32>
    %1131 = arith.subf %1130, %722 : vector<8x128xf32>
    %1132 = math.exp %1131 : vector<8x128xf32>
    %c4_i32_452 = arith.constant 4 : i32
    %1133 = vector.broadcast %c4_i32_452 : i32 to vector<8x128xi32>
    %1134 = arith.cmpi sle, %724, %1133 : vector<8x128xi32>
    %c5_i32_453 = arith.constant 5 : i32
    %1135 = vector.broadcast %c5_i32_453 : i32 to vector<8x128xi32>
    %1136 = arith.cmpi sge, %726, %1135 : vector<8x128xi32>
    %1137 = arith.andi %1134, %1136 : vector<8x128xi1>
    %cst_454 = arith.constant 0.000000e+00 : f32
    %1138 = vector.broadcast %cst_454 : f32 to vector<8x128xf32>
    %1139 = arith.select %1137, %1132, %1138 : vector<8x128xi1>, vector<8x128xf32>
    %1140 = arith.addf %1116, %1132 : vector<8x128xf32>
    %1141 = arith.mulf %1132, %1131 : vector<8x128xf32>
    %1142 = arith.addf %1118, %1141 : vector<8x128xf32>
    %1143 = arith.addf %1119, %1139 : vector<8x128xf32>
    %1144 = arith.mulf %1139, %1131 : vector<8x128xf32>
    %1145 = arith.addf %1121, %1144 : vector<8x128xf32>
    %cst_455 = arith.constant -3.000000e+00 : f32
    %1146 = vector.broadcast %cst_455 : f32 to vector<8x128xf32>
    %1147 = arith.mulf %1139, %1146 : vector<8x128xf32>
    %1148 = arith.addf %1124, %1147 : vector<8x128xf32>
    %cst_456 = arith.constant 4.000000e+00 : f32
    %1149 = vector.broadcast %cst_456 : f32 to vector<8x128xf32>
    %1150 = arith.mulf %1139, %1149 : vector<8x128xf32>
    %1151 = arith.addf %1127, %1150 : vector<8x128xf32>
    %c0_457 = arith.constant 0 : index
    %c18_458 = arith.constant 18 : index
    %1152 = arith.index_cast %1 : i32 to index
    %c0_459 = arith.constant 0 : index
    %1153 = vector.load %arg2[%c0_457, %c18_458, %1152, %c0_459] : memref<1x81x8x128xf32, #tpu.memory_space<vmem>>, vector<1x1x8x128xf32>
    %1154 = vector.shape_cast %1153 : vector<1x1x8x128xf32> to vector<8x128xf32>
    %1155 = arith.subf %1154, %722 : vector<8x128xf32>
    %1156 = math.exp %1155 : vector<8x128xf32>
    %c5_i32_460 = arith.constant 5 : i32
    %1157 = vector.broadcast %c5_i32_460 : i32 to vector<8x128xi32>
    %1158 = arith.cmpi sle, %724, %1157 : vector<8x128xi32>
    %c3_i32_461 = arith.constant 3 : i32
    %1159 = vector.broadcast %c3_i32_461 : i32 to vector<8x128xi32>
    %1160 = arith.cmpi sle, %726, %1159 : vector<8x128xi32>
    %1161 = arith.andi %1158, %1160 : vector<8x128xi1>
    %cst_462 = arith.constant 0.000000e+00 : f32
    %1162 = vector.broadcast %cst_462 : f32 to vector<8x128xf32>
    %1163 = arith.select %1161, %1156, %1162 : vector<8x128xi1>, vector<8x128xf32>
    %1164 = arith.addf %1140, %1156 : vector<8x128xf32>
    %1165 = arith.mulf %1156, %1155 : vector<8x128xf32>
    %1166 = arith.addf %1142, %1165 : vector<8x128xf32>
    %1167 = arith.addf %1143, %1163 : vector<8x128xf32>
    %1168 = arith.mulf %1163, %1155 : vector<8x128xf32>
    %1169 = arith.addf %1145, %1168 : vector<8x128xf32>
    %cst_463 = arith.constant -2.000000e+00 : f32
    %1170 = vector.broadcast %cst_463 : f32 to vector<8x128xf32>
    %1171 = arith.mulf %1163, %1170 : vector<8x128xf32>
    %1172 = arith.addf %1148, %1171 : vector<8x128xf32>
    %cst_464 = arith.constant -4.000000e+00 : f32
    %1173 = vector.broadcast %cst_464 : f32 to vector<8x128xf32>
    %1174 = arith.mulf %1163, %1173 : vector<8x128xf32>
    %1175 = arith.addf %1151, %1174 : vector<8x128xf32>
    %c0_465 = arith.constant 0 : index
    %c19_466 = arith.constant 19 : index
    %1176 = arith.index_cast %1 : i32 to index
    %c0_467 = arith.constant 0 : index
    %1177 = vector.load %arg2[%c0_465, %c19_466, %1176, %c0_467] : memref<1x81x8x128xf32, #tpu.memory_space<vmem>>, vector<1x1x8x128xf32>
    %1178 = vector.shape_cast %1177 : vector<1x1x8x128xf32> to vector<8x128xf32>
    %1179 = arith.subf %1178, %722 : vector<8x128xf32>
    %1180 = math.exp %1179 : vector<8x128xf32>
    %c5_i32_468 = arith.constant 5 : i32
    %1181 = vector.broadcast %c5_i32_468 : i32 to vector<8x128xi32>
    %1182 = arith.cmpi sle, %724, %1181 : vector<8x128xi32>
    %c4_i32_469 = arith.constant 4 : i32
    %1183 = vector.broadcast %c4_i32_469 : i32 to vector<8x128xi32>
    %1184 = arith.cmpi sle, %726, %1183 : vector<8x128xi32>
    %1185 = arith.andi %1182, %1184 : vector<8x128xi1>
    %cst_470 = arith.constant 0.000000e+00 : f32
    %1186 = vector.broadcast %cst_470 : f32 to vector<8x128xf32>
    %1187 = arith.select %1185, %1180, %1186 : vector<8x128xi1>, vector<8x128xf32>
    %1188 = arith.addf %1164, %1180 : vector<8x128xf32>
    %1189 = arith.mulf %1180, %1179 : vector<8x128xf32>
    %1190 = arith.addf %1166, %1189 : vector<8x128xf32>
    %1191 = arith.addf %1167, %1187 : vector<8x128xf32>
    %1192 = arith.mulf %1187, %1179 : vector<8x128xf32>
    %1193 = arith.addf %1169, %1192 : vector<8x128xf32>
    %cst_471 = arith.constant -2.000000e+00 : f32
    %1194 = vector.broadcast %cst_471 : f32 to vector<8x128xf32>
    %1195 = arith.mulf %1187, %1194 : vector<8x128xf32>
    %1196 = arith.addf %1172, %1195 : vector<8x128xf32>
    %cst_472 = arith.constant -3.000000e+00 : f32
    %1197 = vector.broadcast %cst_472 : f32 to vector<8x128xf32>
    %1198 = arith.mulf %1187, %1197 : vector<8x128xf32>
    %1199 = arith.addf %1175, %1198 : vector<8x128xf32>
    %c0_473 = arith.constant 0 : index
    %c20_474 = arith.constant 20 : index
    %1200 = arith.index_cast %1 : i32 to index
    %c0_475 = arith.constant 0 : index
    %1201 = vector.load %arg2[%c0_473, %c20_474, %1200, %c0_475] : memref<1x81x8x128xf32, #tpu.memory_space<vmem>>, vector<1x1x8x128xf32>
    %1202 = vector.shape_cast %1201 : vector<1x1x8x128xf32> to vector<8x128xf32>
    %1203 = arith.subf %1202, %722 : vector<8x128xf32>
    %1204 = math.exp %1203 : vector<8x128xf32>
    %c5_i32_476 = arith.constant 5 : i32
    %1205 = vector.broadcast %c5_i32_476 : i32 to vector<8x128xi32>
    %1206 = arith.cmpi sle, %724, %1205 : vector<8x128xi32>
    %c5_i32_477 = arith.constant 5 : i32
    %1207 = vector.broadcast %c5_i32_477 : i32 to vector<8x128xi32>
    %1208 = arith.cmpi sle, %726, %1207 : vector<8x128xi32>
    %1209 = arith.andi %1206, %1208 : vector<8x128xi1>
    %cst_478 = arith.constant 0.000000e+00 : f32
    %1210 = vector.broadcast %cst_478 : f32 to vector<8x128xf32>
    %1211 = arith.select %1209, %1204, %1210 : vector<8x128xi1>, vector<8x128xf32>
    %1212 = arith.addf %1188, %1204 : vector<8x128xf32>
    %1213 = arith.mulf %1204, %1203 : vector<8x128xf32>
    %1214 = arith.addf %1190, %1213 : vector<8x128xf32>
    %1215 = arith.addf %1191, %1211 : vector<8x128xf32>
    %1216 = arith.mulf %1211, %1203 : vector<8x128xf32>
    %1217 = arith.addf %1193, %1216 : vector<8x128xf32>
    %cst_479 = arith.constant -2.000000e+00 : f32
    %1218 = vector.broadcast %cst_479 : f32 to vector<8x128xf32>
    %1219 = arith.mulf %1211, %1218 : vector<8x128xf32>
    %1220 = arith.addf %1196, %1219 : vector<8x128xf32>
    %cst_480 = arith.constant -2.000000e+00 : f32
    %1221 = vector.broadcast %cst_480 : f32 to vector<8x128xf32>
    %1222 = arith.mulf %1211, %1221 : vector<8x128xf32>
    %1223 = arith.addf %1199, %1222 : vector<8x128xf32>
    %c0_481 = arith.constant 0 : index
    %c21_482 = arith.constant 21 : index
    %1224 = arith.index_cast %1 : i32 to index
    %c0_483 = arith.constant 0 : index
    %1225 = vector.load %arg2[%c0_481, %c21_482, %1224, %c0_483] : memref<1x81x8x128xf32, #tpu.memory_space<vmem>>, vector<1x1x8x128xf32>
    %1226 = vector.shape_cast %1225 : vector<1x1x8x128xf32> to vector<8x128xf32>
    %1227 = arith.subf %1226, %722 : vector<8x128xf32>
    %1228 = math.exp %1227 : vector<8x128xf32>
    %c5_i32_484 = arith.constant 5 : i32
    %1229 = vector.broadcast %c5_i32_484 : i32 to vector<8x128xi32>
    %1230 = arith.cmpi sle, %724, %1229 : vector<8x128xi32>
    %c6_i32_485 = arith.constant 6 : i32
    %1231 = vector.broadcast %c6_i32_485 : i32 to vector<8x128xi32>
    %1232 = arith.cmpi sle, %726, %1231 : vector<8x128xi32>
    %1233 = arith.andi %1230, %1232 : vector<8x128xi1>
    %cst_486 = arith.constant 0.000000e+00 : f32
    %1234 = vector.broadcast %cst_486 : f32 to vector<8x128xf32>
    %1235 = arith.select %1233, %1228, %1234 : vector<8x128xi1>, vector<8x128xf32>
    %1236 = arith.addf %1212, %1228 : vector<8x128xf32>
    %1237 = arith.mulf %1228, %1227 : vector<8x128xf32>
    %1238 = arith.addf %1214, %1237 : vector<8x128xf32>
    %1239 = arith.addf %1215, %1235 : vector<8x128xf32>
    %1240 = arith.mulf %1235, %1227 : vector<8x128xf32>
    %1241 = arith.addf %1217, %1240 : vector<8x128xf32>
    %cst_487 = arith.constant -2.000000e+00 : f32
    %1242 = vector.broadcast %cst_487 : f32 to vector<8x128xf32>
    %1243 = arith.mulf %1235, %1242 : vector<8x128xf32>
    %1244 = arith.addf %1220, %1243 : vector<8x128xf32>
    %1245 = arith.subf %1223, %1235 : vector<8x128xf32>
    %c0_488 = arith.constant 0 : index
    %c22_489 = arith.constant 22 : index
    %1246 = arith.index_cast %1 : i32 to index
    %c0_490 = arith.constant 0 : index
    %1247 = vector.load %arg2[%c0_488, %c22_489, %1246, %c0_490] : memref<1x81x8x128xf32, #tpu.memory_space<vmem>>, vector<1x1x8x128xf32>
    %1248 = vector.shape_cast %1247 : vector<1x1x8x128xf32> to vector<8x128xf32>
    %1249 = arith.subf %1248, %722 : vector<8x128xf32>
    %1250 = math.exp %1249 : vector<8x128xf32>
    %c5_i32_491 = arith.constant 5 : i32
    %1251 = vector.broadcast %c5_i32_491 : i32 to vector<8x128xi32>
    %1252 = arith.cmpi sle, %724, %1251 : vector<8x128xi32>
    %c1_i32_492 = arith.constant 1 : i32
    %1253 = vector.broadcast %c1_i32_492 : i32 to vector<8x128xi32>
    %1254 = arith.cmpi sge, %726, %1253 : vector<8x128xi32>
    %c7_i32_493 = arith.constant 7 : i32
    %1255 = vector.broadcast %c7_i32_493 : i32 to vector<8x128xi32>
    %1256 = arith.cmpi sle, %726, %1255 : vector<8x128xi32>
    %1257 = arith.andi %1252, %1254 : vector<8x128xi1>
    %1258 = arith.andi %1257, %1256 : vector<8x128xi1>
    %cst_494 = arith.constant 0.000000e+00 : f32
    %1259 = vector.broadcast %cst_494 : f32 to vector<8x128xf32>
    %1260 = arith.select %1258, %1250, %1259 : vector<8x128xi1>, vector<8x128xf32>
    %1261 = arith.addf %1236, %1250 : vector<8x128xf32>
    %1262 = arith.mulf %1250, %1249 : vector<8x128xf32>
    %1263 = arith.addf %1238, %1262 : vector<8x128xf32>
    %1264 = arith.addf %1239, %1260 : vector<8x128xf32>
    %1265 = arith.mulf %1260, %1249 : vector<8x128xf32>
    %1266 = arith.addf %1241, %1265 : vector<8x128xf32>
    %cst_495 = arith.constant -2.000000e+00 : f32
    %1267 = vector.broadcast %cst_495 : f32 to vector<8x128xf32>
    %1268 = arith.mulf %1260, %1267 : vector<8x128xf32>
    %1269 = arith.addf %1244, %1268 : vector<8x128xf32>
    %c0_496 = arith.constant 0 : index
    %c23_497 = arith.constant 23 : index
    %1270 = arith.index_cast %1 : i32 to index
    %c0_498 = arith.constant 0 : index
    %1271 = vector.load %arg2[%c0_496, %c23_497, %1270, %c0_498] : memref<1x81x8x128xf32, #tpu.memory_space<vmem>>, vector<1x1x8x128xf32>
    %1272 = vector.shape_cast %1271 : vector<1x1x8x128xf32> to vector<8x128xf32>
    %1273 = arith.subf %1272, %722 : vector<8x128xf32>
    %1274 = math.exp %1273 : vector<8x128xf32>
    %c5_i32_499 = arith.constant 5 : i32
    %1275 = vector.broadcast %c5_i32_499 : i32 to vector<8x128xi32>
    %1276 = arith.cmpi sle, %724, %1275 : vector<8x128xi32>
    %c2_i32_500 = arith.constant 2 : i32
    %1277 = vector.broadcast %c2_i32_500 : i32 to vector<8x128xi32>
    %1278 = arith.cmpi sge, %726, %1277 : vector<8x128xi32>
    %1279 = arith.andi %1276, %1278 : vector<8x128xi1>
    %cst_501 = arith.constant 0.000000e+00 : f32
    %1280 = vector.broadcast %cst_501 : f32 to vector<8x128xf32>
    %1281 = arith.select %1279, %1274, %1280 : vector<8x128xi1>, vector<8x128xf32>
    %1282 = arith.addf %1261, %1274 : vector<8x128xf32>
    %1283 = arith.mulf %1274, %1273 : vector<8x128xf32>
    %1284 = arith.addf %1263, %1283 : vector<8x128xf32>
    %1285 = arith.addf %1264, %1281 : vector<8x128xf32>
    %1286 = arith.mulf %1281, %1273 : vector<8x128xf32>
    %1287 = arith.addf %1266, %1286 : vector<8x128xf32>
    %cst_502 = arith.constant -2.000000e+00 : f32
    %1288 = vector.broadcast %cst_502 : f32 to vector<8x128xf32>
    %1289 = arith.mulf %1281, %1288 : vector<8x128xf32>
    %1290 = arith.addf %1269, %1289 : vector<8x128xf32>
    %1291 = arith.addf %1245, %1281 : vector<8x128xf32>
    %c0_503 = arith.constant 0 : index
    %c24_504 = arith.constant 24 : index
    %1292 = arith.index_cast %1 : i32 to index
    %c0_505 = arith.constant 0 : index
    %1293 = vector.load %arg2[%c0_503, %c24_504, %1292, %c0_505] : memref<1x81x8x128xf32, #tpu.memory_space<vmem>>, vector<1x1x8x128xf32>
    %1294 = vector.shape_cast %1293 : vector<1x1x8x128xf32> to vector<8x128xf32>
    %1295 = arith.subf %1294, %722 : vector<8x128xf32>
    %1296 = math.exp %1295 : vector<8x128xf32>
    %c5_i32_506 = arith.constant 5 : i32
    %1297 = vector.broadcast %c5_i32_506 : i32 to vector<8x128xi32>
    %1298 = arith.cmpi sle, %724, %1297 : vector<8x128xi32>
    %c3_i32_507 = arith.constant 3 : i32
    %1299 = vector.broadcast %c3_i32_507 : i32 to vector<8x128xi32>
    %1300 = arith.cmpi sge, %726, %1299 : vector<8x128xi32>
    %1301 = arith.andi %1298, %1300 : vector<8x128xi1>
    %cst_508 = arith.constant 0.000000e+00 : f32
    %1302 = vector.broadcast %cst_508 : f32 to vector<8x128xf32>
    %1303 = arith.select %1301, %1296, %1302 : vector<8x128xi1>, vector<8x128xf32>
    %1304 = arith.addf %1282, %1296 : vector<8x128xf32>
    %1305 = arith.mulf %1296, %1295 : vector<8x128xf32>
    %1306 = arith.addf %1284, %1305 : vector<8x128xf32>
    %1307 = arith.addf %1285, %1303 : vector<8x128xf32>
    %1308 = arith.mulf %1303, %1295 : vector<8x128xf32>
    %1309 = arith.addf %1287, %1308 : vector<8x128xf32>
    %cst_509 = arith.constant -2.000000e+00 : f32
    %1310 = vector.broadcast %cst_509 : f32 to vector<8x128xf32>
    %1311 = arith.mulf %1303, %1310 : vector<8x128xf32>
    %1312 = arith.addf %1290, %1311 : vector<8x128xf32>
    %cst_510 = arith.constant 2.000000e+00 : f32
    %1313 = vector.broadcast %cst_510 : f32 to vector<8x128xf32>
    %1314 = arith.mulf %1303, %1313 : vector<8x128xf32>
    %1315 = arith.addf %1291, %1314 : vector<8x128xf32>
    %c0_511 = arith.constant 0 : index
    %c25_512 = arith.constant 25 : index
    %1316 = arith.index_cast %1 : i32 to index
    %c0_513 = arith.constant 0 : index
    %1317 = vector.load %arg2[%c0_511, %c25_512, %1316, %c0_513] : memref<1x81x8x128xf32, #tpu.memory_space<vmem>>, vector<1x1x8x128xf32>
    %1318 = vector.shape_cast %1317 : vector<1x1x8x128xf32> to vector<8x128xf32>
    %1319 = arith.subf %1318, %722 : vector<8x128xf32>
    %1320 = math.exp %1319 : vector<8x128xf32>
    %c5_i32_514 = arith.constant 5 : i32
    %1321 = vector.broadcast %c5_i32_514 : i32 to vector<8x128xi32>
    %1322 = arith.cmpi sle, %724, %1321 : vector<8x128xi32>
    %c4_i32_515 = arith.constant 4 : i32
    %1323 = vector.broadcast %c4_i32_515 : i32 to vector<8x128xi32>
    %1324 = arith.cmpi sge, %726, %1323 : vector<8x128xi32>
    %1325 = arith.andi %1322, %1324 : vector<8x128xi1>
    %cst_516 = arith.constant 0.000000e+00 : f32
    %1326 = vector.broadcast %cst_516 : f32 to vector<8x128xf32>
    %1327 = arith.select %1325, %1320, %1326 : vector<8x128xi1>, vector<8x128xf32>
    %1328 = arith.addf %1304, %1320 : vector<8x128xf32>
    %1329 = arith.mulf %1320, %1319 : vector<8x128xf32>
    %1330 = arith.addf %1306, %1329 : vector<8x128xf32>
    %1331 = arith.addf %1307, %1327 : vector<8x128xf32>
    %1332 = arith.mulf %1327, %1319 : vector<8x128xf32>
    %1333 = arith.addf %1309, %1332 : vector<8x128xf32>
    %cst_517 = arith.constant -2.000000e+00 : f32
    %1334 = vector.broadcast %cst_517 : f32 to vector<8x128xf32>
    %1335 = arith.mulf %1327, %1334 : vector<8x128xf32>
    %1336 = arith.addf %1312, %1335 : vector<8x128xf32>
    %cst_518 = arith.constant 3.000000e+00 : f32
    %1337 = vector.broadcast %cst_518 : f32 to vector<8x128xf32>
    %1338 = arith.mulf %1327, %1337 : vector<8x128xf32>
    %1339 = arith.addf %1315, %1338 : vector<8x128xf32>
    %c0_519 = arith.constant 0 : index
    %c26_520 = arith.constant 26 : index
    %1340 = arith.index_cast %1 : i32 to index
    %c0_521 = arith.constant 0 : index
    %1341 = vector.load %arg2[%c0_519, %c26_520, %1340, %c0_521] : memref<1x81x8x128xf32, #tpu.memory_space<vmem>>, vector<1x1x8x128xf32>
    %1342 = vector.shape_cast %1341 : vector<1x1x8x128xf32> to vector<8x128xf32>
    %1343 = arith.subf %1342, %722 : vector<8x128xf32>
    %1344 = math.exp %1343 : vector<8x128xf32>
    %c5_i32_522 = arith.constant 5 : i32
    %1345 = vector.broadcast %c5_i32_522 : i32 to vector<8x128xi32>
    %1346 = arith.cmpi sle, %724, %1345 : vector<8x128xi32>
    %c5_i32_523 = arith.constant 5 : i32
    %1347 = vector.broadcast %c5_i32_523 : i32 to vector<8x128xi32>
    %1348 = arith.cmpi sge, %726, %1347 : vector<8x128xi32>
    %1349 = arith.andi %1346, %1348 : vector<8x128xi1>
    %cst_524 = arith.constant 0.000000e+00 : f32
    %1350 = vector.broadcast %cst_524 : f32 to vector<8x128xf32>
    %1351 = arith.select %1349, %1344, %1350 : vector<8x128xi1>, vector<8x128xf32>
    %1352 = arith.addf %1328, %1344 : vector<8x128xf32>
    %1353 = arith.mulf %1344, %1343 : vector<8x128xf32>
    %1354 = arith.addf %1330, %1353 : vector<8x128xf32>
    %1355 = arith.addf %1331, %1351 : vector<8x128xf32>
    %1356 = arith.mulf %1351, %1343 : vector<8x128xf32>
    %1357 = arith.addf %1333, %1356 : vector<8x128xf32>
    %cst_525 = arith.constant -2.000000e+00 : f32
    %1358 = vector.broadcast %cst_525 : f32 to vector<8x128xf32>
    %1359 = arith.mulf %1351, %1358 : vector<8x128xf32>
    %1360 = arith.addf %1336, %1359 : vector<8x128xf32>
    %cst_526 = arith.constant 4.000000e+00 : f32
    %1361 = vector.broadcast %cst_526 : f32 to vector<8x128xf32>
    %1362 = arith.mulf %1351, %1361 : vector<8x128xf32>
    %1363 = arith.addf %1339, %1362 : vector<8x128xf32>
    %c0_527 = arith.constant 0 : index
    %c27_528 = arith.constant 27 : index
    %1364 = arith.index_cast %1 : i32 to index
    %c0_529 = arith.constant 0 : index
    %1365 = vector.load %arg2[%c0_527, %c27_528, %1364, %c0_529] : memref<1x81x8x128xf32, #tpu.memory_space<vmem>>, vector<1x1x8x128xf32>
    %1366 = vector.shape_cast %1365 : vector<1x1x8x128xf32> to vector<8x128xf32>
    %1367 = arith.subf %1366, %722 : vector<8x128xf32>
    %1368 = math.exp %1367 : vector<8x128xf32>
    %c6_i32_530 = arith.constant 6 : i32
    %1369 = vector.broadcast %c6_i32_530 : i32 to vector<8x128xi32>
    %1370 = arith.cmpi sle, %724, %1369 : vector<8x128xi32>
    %c3_i32_531 = arith.constant 3 : i32
    %1371 = vector.broadcast %c3_i32_531 : i32 to vector<8x128xi32>
    %1372 = arith.cmpi sle, %726, %1371 : vector<8x128xi32>
    %1373 = arith.andi %1370, %1372 : vector<8x128xi1>
    %cst_532 = arith.constant 0.000000e+00 : f32
    %1374 = vector.broadcast %cst_532 : f32 to vector<8x128xf32>
    %1375 = arith.select %1373, %1368, %1374 : vector<8x128xi1>, vector<8x128xf32>
    %1376 = arith.addf %1352, %1368 : vector<8x128xf32>
    %1377 = arith.mulf %1368, %1367 : vector<8x128xf32>
    %1378 = arith.addf %1354, %1377 : vector<8x128xf32>
    %1379 = arith.addf %1355, %1375 : vector<8x128xf32>
    %1380 = arith.mulf %1375, %1367 : vector<8x128xf32>
    %1381 = arith.addf %1357, %1380 : vector<8x128xf32>
    %1382 = arith.subf %1360, %1375 : vector<8x128xf32>
    %cst_533 = arith.constant -4.000000e+00 : f32
    %1383 = vector.broadcast %cst_533 : f32 to vector<8x128xf32>
    %1384 = arith.mulf %1375, %1383 : vector<8x128xf32>
    %1385 = arith.addf %1363, %1384 : vector<8x128xf32>
    %c0_534 = arith.constant 0 : index
    %c28_535 = arith.constant 28 : index
    %1386 = arith.index_cast %1 : i32 to index
    %c0_536 = arith.constant 0 : index
    %1387 = vector.load %arg2[%c0_534, %c28_535, %1386, %c0_536] : memref<1x81x8x128xf32, #tpu.memory_space<vmem>>, vector<1x1x8x128xf32>
    %1388 = vector.shape_cast %1387 : vector<1x1x8x128xf32> to vector<8x128xf32>
    %1389 = arith.subf %1388, %722 : vector<8x128xf32>
    %1390 = math.exp %1389 : vector<8x128xf32>
    %c6_i32_537 = arith.constant 6 : i32
    %1391 = vector.broadcast %c6_i32_537 : i32 to vector<8x128xi32>
    %1392 = arith.cmpi sle, %724, %1391 : vector<8x128xi32>
    %c4_i32_538 = arith.constant 4 : i32
    %1393 = vector.broadcast %c4_i32_538 : i32 to vector<8x128xi32>
    %1394 = arith.cmpi sle, %726, %1393 : vector<8x128xi32>
    %1395 = arith.andi %1392, %1394 : vector<8x128xi1>
    %cst_539 = arith.constant 0.000000e+00 : f32
    %1396 = vector.broadcast %cst_539 : f32 to vector<8x128xf32>
    %1397 = arith.select %1395, %1390, %1396 : vector<8x128xi1>, vector<8x128xf32>
    %1398 = arith.addf %1376, %1390 : vector<8x128xf32>
    %1399 = arith.mulf %1390, %1389 : vector<8x128xf32>
    %1400 = arith.addf %1378, %1399 : vector<8x128xf32>
    %1401 = arith.addf %1379, %1397 : vector<8x128xf32>
    %1402 = arith.mulf %1397, %1389 : vector<8x128xf32>
    %1403 = arith.addf %1381, %1402 : vector<8x128xf32>
    %1404 = arith.subf %1382, %1397 : vector<8x128xf32>
    %cst_540 = arith.constant -3.000000e+00 : f32
    %1405 = vector.broadcast %cst_540 : f32 to vector<8x128xf32>
    %1406 = arith.mulf %1397, %1405 : vector<8x128xf32>
    %1407 = arith.addf %1385, %1406 : vector<8x128xf32>
    %c0_541 = arith.constant 0 : index
    %c29_542 = arith.constant 29 : index
    %1408 = arith.index_cast %1 : i32 to index
    %c0_543 = arith.constant 0 : index
    %1409 = vector.load %arg2[%c0_541, %c29_542, %1408, %c0_543] : memref<1x81x8x128xf32, #tpu.memory_space<vmem>>, vector<1x1x8x128xf32>
    %1410 = vector.shape_cast %1409 : vector<1x1x8x128xf32> to vector<8x128xf32>
    %1411 = arith.subf %1410, %722 : vector<8x128xf32>
    %1412 = math.exp %1411 : vector<8x128xf32>
    %c6_i32_544 = arith.constant 6 : i32
    %1413 = vector.broadcast %c6_i32_544 : i32 to vector<8x128xi32>
    %1414 = arith.cmpi sle, %724, %1413 : vector<8x128xi32>
    %c5_i32_545 = arith.constant 5 : i32
    %1415 = vector.broadcast %c5_i32_545 : i32 to vector<8x128xi32>
    %1416 = arith.cmpi sle, %726, %1415 : vector<8x128xi32>
    %1417 = arith.andi %1414, %1416 : vector<8x128xi1>
    %cst_546 = arith.constant 0.000000e+00 : f32
    %1418 = vector.broadcast %cst_546 : f32 to vector<8x128xf32>
    %1419 = arith.select %1417, %1412, %1418 : vector<8x128xi1>, vector<8x128xf32>
    %1420 = arith.addf %1398, %1412 : vector<8x128xf32>
    %1421 = arith.mulf %1412, %1411 : vector<8x128xf32>
    %1422 = arith.addf %1400, %1421 : vector<8x128xf32>
    %1423 = arith.addf %1401, %1419 : vector<8x128xf32>
    %1424 = arith.mulf %1419, %1411 : vector<8x128xf32>
    %1425 = arith.addf %1403, %1424 : vector<8x128xf32>
    %1426 = arith.subf %1404, %1419 : vector<8x128xf32>
    %cst_547 = arith.constant -2.000000e+00 : f32
    %1427 = vector.broadcast %cst_547 : f32 to vector<8x128xf32>
    %1428 = arith.mulf %1419, %1427 : vector<8x128xf32>
    %1429 = arith.addf %1407, %1428 : vector<8x128xf32>
    %c0_548 = arith.constant 0 : index
    %c30_549 = arith.constant 30 : index
    %1430 = arith.index_cast %1 : i32 to index
    %c0_550 = arith.constant 0 : index
    %1431 = vector.load %arg2[%c0_548, %c30_549, %1430, %c0_550] : memref<1x81x8x128xf32, #tpu.memory_space<vmem>>, vector<1x1x8x128xf32>
    %1432 = vector.shape_cast %1431 : vector<1x1x8x128xf32> to vector<8x128xf32>
    %1433 = arith.subf %1432, %722 : vector<8x128xf32>
    %1434 = math.exp %1433 : vector<8x128xf32>
    %c6_i32_551 = arith.constant 6 : i32
    %1435 = vector.broadcast %c6_i32_551 : i32 to vector<8x128xi32>
    %1436 = arith.cmpi sle, %724, %1435 : vector<8x128xi32>
    %c6_i32_552 = arith.constant 6 : i32
    %1437 = vector.broadcast %c6_i32_552 : i32 to vector<8x128xi32>
    %1438 = arith.cmpi sle, %726, %1437 : vector<8x128xi32>
    %1439 = arith.andi %1436, %1438 : vector<8x128xi1>
    %cst_553 = arith.constant 0.000000e+00 : f32
    %1440 = vector.broadcast %cst_553 : f32 to vector<8x128xf32>
    %1441 = arith.select %1439, %1434, %1440 : vector<8x128xi1>, vector<8x128xf32>
    %1442 = arith.addf %1420, %1434 : vector<8x128xf32>
    %1443 = arith.mulf %1434, %1433 : vector<8x128xf32>
    %1444 = arith.addf %1422, %1443 : vector<8x128xf32>
    %1445 = arith.addf %1423, %1441 : vector<8x128xf32>
    %1446 = arith.mulf %1441, %1433 : vector<8x128xf32>
    %1447 = arith.addf %1425, %1446 : vector<8x128xf32>
    %1448 = arith.subf %1426, %1441 : vector<8x128xf32>
    %1449 = arith.subf %1429, %1441 : vector<8x128xf32>
    %c0_554 = arith.constant 0 : index
    %c31_555 = arith.constant 31 : index
    %1450 = arith.index_cast %1 : i32 to index
    %c0_556 = arith.constant 0 : index
    %1451 = vector.load %arg2[%c0_554, %c31_555, %1450, %c0_556] : memref<1x81x8x128xf32, #tpu.memory_space<vmem>>, vector<1x1x8x128xf32>
    %1452 = vector.shape_cast %1451 : vector<1x1x8x128xf32> to vector<8x128xf32>
    %1453 = arith.subf %1452, %722 : vector<8x128xf32>
    %1454 = math.exp %1453 : vector<8x128xf32>
    %c6_i32_557 = arith.constant 6 : i32
    %1455 = vector.broadcast %c6_i32_557 : i32 to vector<8x128xi32>
    %1456 = arith.cmpi sle, %724, %1455 : vector<8x128xi32>
    %c1_i32_558 = arith.constant 1 : i32
    %1457 = vector.broadcast %c1_i32_558 : i32 to vector<8x128xi32>
    %1458 = arith.cmpi sge, %726, %1457 : vector<8x128xi32>
    %c7_i32_559 = arith.constant 7 : i32
    %1459 = vector.broadcast %c7_i32_559 : i32 to vector<8x128xi32>
    %1460 = arith.cmpi sle, %726, %1459 : vector<8x128xi32>
    %1461 = arith.andi %1456, %1458 : vector<8x128xi1>
    %1462 = arith.andi %1461, %1460 : vector<8x128xi1>
    %cst_560 = arith.constant 0.000000e+00 : f32
    %1463 = vector.broadcast %cst_560 : f32 to vector<8x128xf32>
    %1464 = arith.select %1462, %1454, %1463 : vector<8x128xi1>, vector<8x128xf32>
    %1465 = arith.addf %1442, %1454 : vector<8x128xf32>
    %1466 = arith.mulf %1454, %1453 : vector<8x128xf32>
    %1467 = arith.addf %1444, %1466 : vector<8x128xf32>
    %1468 = arith.addf %1445, %1464 : vector<8x128xf32>
    %1469 = arith.mulf %1464, %1453 : vector<8x128xf32>
    %1470 = arith.addf %1447, %1469 : vector<8x128xf32>
    %1471 = arith.subf %1448, %1464 : vector<8x128xf32>
    %c0_561 = arith.constant 0 : index
    %c32_562 = arith.constant 32 : index
    %1472 = arith.index_cast %1 : i32 to index
    %c0_563 = arith.constant 0 : index
    %1473 = vector.load %arg2[%c0_561, %c32_562, %1472, %c0_563] : memref<1x81x8x128xf32, #tpu.memory_space<vmem>>, vector<1x1x8x128xf32>
    %1474 = vector.shape_cast %1473 : vector<1x1x8x128xf32> to vector<8x128xf32>
    %1475 = arith.subf %1474, %722 : vector<8x128xf32>
    %1476 = math.exp %1475 : vector<8x128xf32>
    %c6_i32_564 = arith.constant 6 : i32
    %1477 = vector.broadcast %c6_i32_564 : i32 to vector<8x128xi32>
    %1478 = arith.cmpi sle, %724, %1477 : vector<8x128xi32>
    %c2_i32_565 = arith.constant 2 : i32
    %1479 = vector.broadcast %c2_i32_565 : i32 to vector<8x128xi32>
    %1480 = arith.cmpi sge, %726, %1479 : vector<8x128xi32>
    %1481 = arith.andi %1478, %1480 : vector<8x128xi1>
    %cst_566 = arith.constant 0.000000e+00 : f32
    %1482 = vector.broadcast %cst_566 : f32 to vector<8x128xf32>
    %1483 = arith.select %1481, %1476, %1482 : vector<8x128xi1>, vector<8x128xf32>
    %1484 = arith.addf %1465, %1476 : vector<8x128xf32>
    %1485 = arith.mulf %1476, %1475 : vector<8x128xf32>
    %1486 = arith.addf %1467, %1485 : vector<8x128xf32>
    %1487 = arith.addf %1468, %1483 : vector<8x128xf32>
    %1488 = arith.mulf %1483, %1475 : vector<8x128xf32>
    %1489 = arith.addf %1470, %1488 : vector<8x128xf32>
    %1490 = arith.subf %1471, %1483 : vector<8x128xf32>
    %1491 = arith.addf %1449, %1483 : vector<8x128xf32>
    %c0_567 = arith.constant 0 : index
    %c33_568 = arith.constant 33 : index
    %1492 = arith.index_cast %1 : i32 to index
    %c0_569 = arith.constant 0 : index
    %1493 = vector.load %arg2[%c0_567, %c33_568, %1492, %c0_569] : memref<1x81x8x128xf32, #tpu.memory_space<vmem>>, vector<1x1x8x128xf32>
    %1494 = vector.shape_cast %1493 : vector<1x1x8x128xf32> to vector<8x128xf32>
    %1495 = arith.subf %1494, %722 : vector<8x128xf32>
    %1496 = math.exp %1495 : vector<8x128xf32>
    %c6_i32_570 = arith.constant 6 : i32
    %1497 = vector.broadcast %c6_i32_570 : i32 to vector<8x128xi32>
    %1498 = arith.cmpi sle, %724, %1497 : vector<8x128xi32>
    %c3_i32_571 = arith.constant 3 : i32
    %1499 = vector.broadcast %c3_i32_571 : i32 to vector<8x128xi32>
    %1500 = arith.cmpi sge, %726, %1499 : vector<8x128xi32>
    %1501 = arith.andi %1498, %1500 : vector<8x128xi1>
    %cst_572 = arith.constant 0.000000e+00 : f32
    %1502 = vector.broadcast %cst_572 : f32 to vector<8x128xf32>
    %1503 = arith.select %1501, %1496, %1502 : vector<8x128xi1>, vector<8x128xf32>
    %1504 = arith.addf %1484, %1496 : vector<8x128xf32>
    %1505 = arith.mulf %1496, %1495 : vector<8x128xf32>
    %1506 = arith.addf %1486, %1505 : vector<8x128xf32>
    %1507 = arith.addf %1487, %1503 : vector<8x128xf32>
    %1508 = arith.mulf %1503, %1495 : vector<8x128xf32>
    %1509 = arith.addf %1489, %1508 : vector<8x128xf32>
    %1510 = arith.subf %1490, %1503 : vector<8x128xf32>
    %cst_573 = arith.constant 2.000000e+00 : f32
    %1511 = vector.broadcast %cst_573 : f32 to vector<8x128xf32>
    %1512 = arith.mulf %1503, %1511 : vector<8x128xf32>
    %1513 = arith.addf %1491, %1512 : vector<8x128xf32>
    %c0_574 = arith.constant 0 : index
    %c34_575 = arith.constant 34 : index
    %1514 = arith.index_cast %1 : i32 to index
    %c0_576 = arith.constant 0 : index
    %1515 = vector.load %arg2[%c0_574, %c34_575, %1514, %c0_576] : memref<1x81x8x128xf32, #tpu.memory_space<vmem>>, vector<1x1x8x128xf32>
    %1516 = vector.shape_cast %1515 : vector<1x1x8x128xf32> to vector<8x128xf32>
    %1517 = arith.subf %1516, %722 : vector<8x128xf32>
    %1518 = math.exp %1517 : vector<8x128xf32>
    %c6_i32_577 = arith.constant 6 : i32
    %1519 = vector.broadcast %c6_i32_577 : i32 to vector<8x128xi32>
    %1520 = arith.cmpi sle, %724, %1519 : vector<8x128xi32>
    %c4_i32_578 = arith.constant 4 : i32
    %1521 = vector.broadcast %c4_i32_578 : i32 to vector<8x128xi32>
    %1522 = arith.cmpi sge, %726, %1521 : vector<8x128xi32>
    %1523 = arith.andi %1520, %1522 : vector<8x128xi1>
    %cst_579 = arith.constant 0.000000e+00 : f32
    %1524 = vector.broadcast %cst_579 : f32 to vector<8x128xf32>
    %1525 = arith.select %1523, %1518, %1524 : vector<8x128xi1>, vector<8x128xf32>
    %1526 = arith.addf %1504, %1518 : vector<8x128xf32>
    %1527 = arith.mulf %1518, %1517 : vector<8x128xf32>
    %1528 = arith.addf %1506, %1527 : vector<8x128xf32>
    %1529 = arith.addf %1507, %1525 : vector<8x128xf32>
    %1530 = arith.mulf %1525, %1517 : vector<8x128xf32>
    %1531 = arith.addf %1509, %1530 : vector<8x128xf32>
    %1532 = arith.subf %1510, %1525 : vector<8x128xf32>
    %cst_580 = arith.constant 3.000000e+00 : f32
    %1533 = vector.broadcast %cst_580 : f32 to vector<8x128xf32>
    %1534 = arith.mulf %1525, %1533 : vector<8x128xf32>
    %1535 = arith.addf %1513, %1534 : vector<8x128xf32>
    %c0_581 = arith.constant 0 : index
    %c35_582 = arith.constant 35 : index
    %1536 = arith.index_cast %1 : i32 to index
    %c0_583 = arith.constant 0 : index
    %1537 = vector.load %arg2[%c0_581, %c35_582, %1536, %c0_583] : memref<1x81x8x128xf32, #tpu.memory_space<vmem>>, vector<1x1x8x128xf32>
    %1538 = vector.shape_cast %1537 : vector<1x1x8x128xf32> to vector<8x128xf32>
    %1539 = arith.subf %1538, %722 : vector<8x128xf32>
    %1540 = math.exp %1539 : vector<8x128xf32>
    %c6_i32_584 = arith.constant 6 : i32
    %1541 = vector.broadcast %c6_i32_584 : i32 to vector<8x128xi32>
    %1542 = arith.cmpi sle, %724, %1541 : vector<8x128xi32>
    %c5_i32_585 = arith.constant 5 : i32
    %1543 = vector.broadcast %c5_i32_585 : i32 to vector<8x128xi32>
    %1544 = arith.cmpi sge, %726, %1543 : vector<8x128xi32>
    %1545 = arith.andi %1542, %1544 : vector<8x128xi1>
    %cst_586 = arith.constant 0.000000e+00 : f32
    %1546 = vector.broadcast %cst_586 : f32 to vector<8x128xf32>
    %1547 = arith.select %1545, %1540, %1546 : vector<8x128xi1>, vector<8x128xf32>
    %1548 = arith.addf %1526, %1540 : vector<8x128xf32>
    %1549 = arith.mulf %1540, %1539 : vector<8x128xf32>
    %1550 = arith.addf %1528, %1549 : vector<8x128xf32>
    %1551 = arith.addf %1529, %1547 : vector<8x128xf32>
    %1552 = arith.mulf %1547, %1539 : vector<8x128xf32>
    %1553 = arith.addf %1531, %1552 : vector<8x128xf32>
    %1554 = arith.subf %1532, %1547 : vector<8x128xf32>
    %cst_587 = arith.constant 4.000000e+00 : f32
    %1555 = vector.broadcast %cst_587 : f32 to vector<8x128xf32>
    %1556 = arith.mulf %1547, %1555 : vector<8x128xf32>
    %1557 = arith.addf %1535, %1556 : vector<8x128xf32>
    %c0_588 = arith.constant 0 : index
    %c36_589 = arith.constant 36 : index
    %1558 = arith.index_cast %1 : i32 to index
    %c0_590 = arith.constant 0 : index
    %1559 = vector.load %arg2[%c0_588, %c36_589, %1558, %c0_590] : memref<1x81x8x128xf32, #tpu.memory_space<vmem>>, vector<1x1x8x128xf32>
    %1560 = vector.shape_cast %1559 : vector<1x1x8x128xf32> to vector<8x128xf32>
    %1561 = arith.subf %1560, %722 : vector<8x128xf32>
    %1562 = math.exp %1561 : vector<8x128xf32>
    %c1_i32_591 = arith.constant 1 : i32
    %1563 = vector.broadcast %c1_i32_591 : i32 to vector<8x128xi32>
    %1564 = arith.cmpi sge, %724, %1563 : vector<8x128xi32>
    %c7_i32_592 = arith.constant 7 : i32
    %1565 = vector.broadcast %c7_i32_592 : i32 to vector<8x128xi32>
    %1566 = arith.cmpi sle, %724, %1565 : vector<8x128xi32>
    %c3_i32_593 = arith.constant 3 : i32
    %1567 = vector.broadcast %c3_i32_593 : i32 to vector<8x128xi32>
    %1568 = arith.cmpi sle, %726, %1567 : vector<8x128xi32>
    %1569 = arith.andi %1564, %1566 : vector<8x128xi1>
    %1570 = arith.andi %1569, %1568 : vector<8x128xi1>
    %cst_594 = arith.constant 0.000000e+00 : f32
    %1571 = vector.broadcast %cst_594 : f32 to vector<8x128xf32>
    %1572 = arith.select %1570, %1562, %1571 : vector<8x128xi1>, vector<8x128xf32>
    %1573 = arith.addf %1548, %1562 : vector<8x128xf32>
    %1574 = arith.mulf %1562, %1561 : vector<8x128xf32>
    %1575 = arith.addf %1550, %1574 : vector<8x128xf32>
    %1576 = arith.addf %1551, %1572 : vector<8x128xf32>
    %1577 = arith.mulf %1572, %1561 : vector<8x128xf32>
    %1578 = arith.addf %1553, %1577 : vector<8x128xf32>
    %cst_595 = arith.constant -4.000000e+00 : f32
    %1579 = vector.broadcast %cst_595 : f32 to vector<8x128xf32>
    %1580 = arith.mulf %1572, %1579 : vector<8x128xf32>
    %1581 = arith.addf %1557, %1580 : vector<8x128xf32>
    %c0_596 = arith.constant 0 : index
    %c37_597 = arith.constant 37 : index
    %1582 = arith.index_cast %1 : i32 to index
    %c0_598 = arith.constant 0 : index
    %1583 = vector.load %arg2[%c0_596, %c37_597, %1582, %c0_598] : memref<1x81x8x128xf32, #tpu.memory_space<vmem>>, vector<1x1x8x128xf32>
    %1584 = vector.shape_cast %1583 : vector<1x1x8x128xf32> to vector<8x128xf32>
    %1585 = arith.subf %1584, %722 : vector<8x128xf32>
    %1586 = math.exp %1585 : vector<8x128xf32>
    %c1_i32_599 = arith.constant 1 : i32
    %1587 = vector.broadcast %c1_i32_599 : i32 to vector<8x128xi32>
    %1588 = arith.cmpi sge, %724, %1587 : vector<8x128xi32>
    %c7_i32_600 = arith.constant 7 : i32
    %1589 = vector.broadcast %c7_i32_600 : i32 to vector<8x128xi32>
    %1590 = arith.cmpi sle, %724, %1589 : vector<8x128xi32>
    %c4_i32_601 = arith.constant 4 : i32
    %1591 = vector.broadcast %c4_i32_601 : i32 to vector<8x128xi32>
    %1592 = arith.cmpi sle, %726, %1591 : vector<8x128xi32>
    %1593 = arith.andi %1588, %1590 : vector<8x128xi1>
    %1594 = arith.andi %1593, %1592 : vector<8x128xi1>
    %cst_602 = arith.constant 0.000000e+00 : f32
    %1595 = vector.broadcast %cst_602 : f32 to vector<8x128xf32>
    %1596 = arith.select %1594, %1586, %1595 : vector<8x128xi1>, vector<8x128xf32>
    %1597 = arith.addf %1573, %1586 : vector<8x128xf32>
    %1598 = arith.mulf %1586, %1585 : vector<8x128xf32>
    %1599 = arith.addf %1575, %1598 : vector<8x128xf32>
    %1600 = arith.addf %1576, %1596 : vector<8x128xf32>
    %1601 = arith.mulf %1596, %1585 : vector<8x128xf32>
    %1602 = arith.addf %1578, %1601 : vector<8x128xf32>
    %cst_603 = arith.constant -3.000000e+00 : f32
    %1603 = vector.broadcast %cst_603 : f32 to vector<8x128xf32>
    %1604 = arith.mulf %1596, %1603 : vector<8x128xf32>
    %1605 = arith.addf %1581, %1604 : vector<8x128xf32>
    %c0_604 = arith.constant 0 : index
    %c38_605 = arith.constant 38 : index
    %1606 = arith.index_cast %1 : i32 to index
    %c0_606 = arith.constant 0 : index
    %1607 = vector.load %arg2[%c0_604, %c38_605, %1606, %c0_606] : memref<1x81x8x128xf32, #tpu.memory_space<vmem>>, vector<1x1x8x128xf32>
    %1608 = vector.shape_cast %1607 : vector<1x1x8x128xf32> to vector<8x128xf32>
    %1609 = arith.subf %1608, %722 : vector<8x128xf32>
    %1610 = math.exp %1609 : vector<8x128xf32>
    %c1_i32_607 = arith.constant 1 : i32
    %1611 = vector.broadcast %c1_i32_607 : i32 to vector<8x128xi32>
    %1612 = arith.cmpi sge, %724, %1611 : vector<8x128xi32>
    %c7_i32_608 = arith.constant 7 : i32
    %1613 = vector.broadcast %c7_i32_608 : i32 to vector<8x128xi32>
    %1614 = arith.cmpi sle, %724, %1613 : vector<8x128xi32>
    %c5_i32_609 = arith.constant 5 : i32
    %1615 = vector.broadcast %c5_i32_609 : i32 to vector<8x128xi32>
    %1616 = arith.cmpi sle, %726, %1615 : vector<8x128xi32>
    %1617 = arith.andi %1612, %1614 : vector<8x128xi1>
    %1618 = arith.andi %1617, %1616 : vector<8x128xi1>
    %cst_610 = arith.constant 0.000000e+00 : f32
    %1619 = vector.broadcast %cst_610 : f32 to vector<8x128xf32>
    %1620 = arith.select %1618, %1610, %1619 : vector<8x128xi1>, vector<8x128xf32>
    %1621 = arith.addf %1597, %1610 : vector<8x128xf32>
    %1622 = arith.mulf %1610, %1609 : vector<8x128xf32>
    %1623 = arith.addf %1599, %1622 : vector<8x128xf32>
    %1624 = arith.addf %1600, %1620 : vector<8x128xf32>
    %1625 = arith.mulf %1620, %1609 : vector<8x128xf32>
    %1626 = arith.addf %1602, %1625 : vector<8x128xf32>
    %cst_611 = arith.constant -2.000000e+00 : f32
    %1627 = vector.broadcast %cst_611 : f32 to vector<8x128xf32>
    %1628 = arith.mulf %1620, %1627 : vector<8x128xf32>
    %1629 = arith.addf %1605, %1628 : vector<8x128xf32>
    %c0_612 = arith.constant 0 : index
    %c39_613 = arith.constant 39 : index
    %1630 = arith.index_cast %1 : i32 to index
    %c0_614 = arith.constant 0 : index
    %1631 = vector.load %arg2[%c0_612, %c39_613, %1630, %c0_614] : memref<1x81x8x128xf32, #tpu.memory_space<vmem>>, vector<1x1x8x128xf32>
    %1632 = vector.shape_cast %1631 : vector<1x1x8x128xf32> to vector<8x128xf32>
    %1633 = arith.subf %1632, %722 : vector<8x128xf32>
    %1634 = math.exp %1633 : vector<8x128xf32>
    %c1_i32_615 = arith.constant 1 : i32
    %1635 = vector.broadcast %c1_i32_615 : i32 to vector<8x128xi32>
    %1636 = arith.cmpi sge, %724, %1635 : vector<8x128xi32>
    %c7_i32_616 = arith.constant 7 : i32
    %1637 = vector.broadcast %c7_i32_616 : i32 to vector<8x128xi32>
    %1638 = arith.cmpi sle, %724, %1637 : vector<8x128xi32>
    %c6_i32_617 = arith.constant 6 : i32
    %1639 = vector.broadcast %c6_i32_617 : i32 to vector<8x128xi32>
    %1640 = arith.cmpi sle, %726, %1639 : vector<8x128xi32>
    %1641 = arith.andi %1636, %1638 : vector<8x128xi1>
    %1642 = arith.andi %1641, %1640 : vector<8x128xi1>
    %cst_618 = arith.constant 0.000000e+00 : f32
    %1643 = vector.broadcast %cst_618 : f32 to vector<8x128xf32>
    %1644 = arith.select %1642, %1634, %1643 : vector<8x128xi1>, vector<8x128xf32>
    %1645 = arith.addf %1621, %1634 : vector<8x128xf32>
    %1646 = arith.mulf %1634, %1633 : vector<8x128xf32>
    %1647 = arith.addf %1623, %1646 : vector<8x128xf32>
    %1648 = arith.addf %1624, %1644 : vector<8x128xf32>
    %1649 = arith.mulf %1644, %1633 : vector<8x128xf32>
    %1650 = arith.addf %1626, %1649 : vector<8x128xf32>
    %1651 = arith.subf %1629, %1644 : vector<8x128xf32>
    %c0_619 = arith.constant 0 : index
    %c40_620 = arith.constant 40 : index
    %1652 = arith.index_cast %1 : i32 to index
    %c0_621 = arith.constant 0 : index
    %1653 = vector.load %arg2[%c0_619, %c40_620, %1652, %c0_621] : memref<1x81x8x128xf32, #tpu.memory_space<vmem>>, vector<1x1x8x128xf32>
    %1654 = vector.shape_cast %1653 : vector<1x1x8x128xf32> to vector<8x128xf32>
    %1655 = arith.subf %1654, %722 : vector<8x128xf32>
    %1656 = math.exp %1655 : vector<8x128xf32>
    %c1_i32_622 = arith.constant 1 : i32
    %1657 = vector.broadcast %c1_i32_622 : i32 to vector<8x128xi32>
    %1658 = arith.cmpi sge, %724, %1657 : vector<8x128xi32>
    %c7_i32_623 = arith.constant 7 : i32
    %1659 = vector.broadcast %c7_i32_623 : i32 to vector<8x128xi32>
    %1660 = arith.cmpi sle, %724, %1659 : vector<8x128xi32>
    %c1_i32_624 = arith.constant 1 : i32
    %1661 = vector.broadcast %c1_i32_624 : i32 to vector<8x128xi32>
    %1662 = arith.cmpi sge, %726, %1661 : vector<8x128xi32>
    %c7_i32_625 = arith.constant 7 : i32
    %1663 = vector.broadcast %c7_i32_625 : i32 to vector<8x128xi32>
    %1664 = arith.cmpi sle, %726, %1663 : vector<8x128xi32>
    %1665 = arith.andi %1658, %1660 : vector<8x128xi1>
    %1666 = arith.andi %1665, %1662 : vector<8x128xi1>
    %1667 = arith.andi %1666, %1664 : vector<8x128xi1>
    %cst_626 = arith.constant 0.000000e+00 : f32
    %1668 = vector.broadcast %cst_626 : f32 to vector<8x128xf32>
    %1669 = arith.select %1667, %1656, %1668 : vector<8x128xi1>, vector<8x128xf32>
    %1670 = arith.addf %1645, %1656 : vector<8x128xf32>
    %1671 = arith.mulf %1656, %1655 : vector<8x128xf32>
    %1672 = arith.addf %1647, %1671 : vector<8x128xf32>
    %1673 = arith.addf %1648, %1669 : vector<8x128xf32>
    %1674 = arith.mulf %1669, %1655 : vector<8x128xf32>
    %1675 = arith.addf %1650, %1674 : vector<8x128xf32>
    %c0_627 = arith.constant 0 : index
    %c41_628 = arith.constant 41 : index
    %1676 = arith.index_cast %1 : i32 to index
    %c0_629 = arith.constant 0 : index
    %1677 = vector.load %arg2[%c0_627, %c41_628, %1676, %c0_629] : memref<1x81x8x128xf32, #tpu.memory_space<vmem>>, vector<1x1x8x128xf32>
    %1678 = vector.shape_cast %1677 : vector<1x1x8x128xf32> to vector<8x128xf32>
    %1679 = arith.subf %1678, %722 : vector<8x128xf32>
    %1680 = math.exp %1679 : vector<8x128xf32>
    %c1_i32_630 = arith.constant 1 : i32
    %1681 = vector.broadcast %c1_i32_630 : i32 to vector<8x128xi32>
    %1682 = arith.cmpi sge, %724, %1681 : vector<8x128xi32>
    %c7_i32_631 = arith.constant 7 : i32
    %1683 = vector.broadcast %c7_i32_631 : i32 to vector<8x128xi32>
    %1684 = arith.cmpi sle, %724, %1683 : vector<8x128xi32>
    %c2_i32_632 = arith.constant 2 : i32
    %1685 = vector.broadcast %c2_i32_632 : i32 to vector<8x128xi32>
    %1686 = arith.cmpi sge, %726, %1685 : vector<8x128xi32>
    %1687 = arith.andi %1682, %1684 : vector<8x128xi1>
    %1688 = arith.andi %1687, %1686 : vector<8x128xi1>
    %cst_633 = arith.constant 0.000000e+00 : f32
    %1689 = vector.broadcast %cst_633 : f32 to vector<8x128xf32>
    %1690 = arith.select %1688, %1680, %1689 : vector<8x128xi1>, vector<8x128xf32>
    %1691 = arith.addf %1670, %1680 : vector<8x128xf32>
    %1692 = arith.mulf %1680, %1679 : vector<8x128xf32>
    %1693 = arith.addf %1672, %1692 : vector<8x128xf32>
    %1694 = arith.addf %1673, %1690 : vector<8x128xf32>
    %1695 = arith.mulf %1690, %1679 : vector<8x128xf32>
    %1696 = arith.addf %1675, %1695 : vector<8x128xf32>
    %1697 = arith.addf %1651, %1690 : vector<8x128xf32>
    %c0_634 = arith.constant 0 : index
    %c42_635 = arith.constant 42 : index
    %1698 = arith.index_cast %1 : i32 to index
    %c0_636 = arith.constant 0 : index
    %1699 = vector.load %arg2[%c0_634, %c42_635, %1698, %c0_636] : memref<1x81x8x128xf32, #tpu.memory_space<vmem>>, vector<1x1x8x128xf32>
    %1700 = vector.shape_cast %1699 : vector<1x1x8x128xf32> to vector<8x128xf32>
    %1701 = arith.subf %1700, %722 : vector<8x128xf32>
    %1702 = math.exp %1701 : vector<8x128xf32>
    %c1_i32_637 = arith.constant 1 : i32
    %1703 = vector.broadcast %c1_i32_637 : i32 to vector<8x128xi32>
    %1704 = arith.cmpi sge, %724, %1703 : vector<8x128xi32>
    %c7_i32_638 = arith.constant 7 : i32
    %1705 = vector.broadcast %c7_i32_638 : i32 to vector<8x128xi32>
    %1706 = arith.cmpi sle, %724, %1705 : vector<8x128xi32>
    %c3_i32_639 = arith.constant 3 : i32
    %1707 = vector.broadcast %c3_i32_639 : i32 to vector<8x128xi32>
    %1708 = arith.cmpi sge, %726, %1707 : vector<8x128xi32>
    %1709 = arith.andi %1704, %1706 : vector<8x128xi1>
    %1710 = arith.andi %1709, %1708 : vector<8x128xi1>
    %cst_640 = arith.constant 0.000000e+00 : f32
    %1711 = vector.broadcast %cst_640 : f32 to vector<8x128xf32>
    %1712 = arith.select %1710, %1702, %1711 : vector<8x128xi1>, vector<8x128xf32>
    %1713 = arith.addf %1691, %1702 : vector<8x128xf32>
    %1714 = arith.mulf %1702, %1701 : vector<8x128xf32>
    %1715 = arith.addf %1693, %1714 : vector<8x128xf32>
    %1716 = arith.addf %1694, %1712 : vector<8x128xf32>
    %1717 = arith.mulf %1712, %1701 : vector<8x128xf32>
    %1718 = arith.addf %1696, %1717 : vector<8x128xf32>
    %cst_641 = arith.constant 2.000000e+00 : f32
    %1719 = vector.broadcast %cst_641 : f32 to vector<8x128xf32>
    %1720 = arith.mulf %1712, %1719 : vector<8x128xf32>
    %1721 = arith.addf %1697, %1720 : vector<8x128xf32>
    %c0_642 = arith.constant 0 : index
    %c43_643 = arith.constant 43 : index
    %1722 = arith.index_cast %1 : i32 to index
    %c0_644 = arith.constant 0 : index
    %1723 = vector.load %arg2[%c0_642, %c43_643, %1722, %c0_644] : memref<1x81x8x128xf32, #tpu.memory_space<vmem>>, vector<1x1x8x128xf32>
    %1724 = vector.shape_cast %1723 : vector<1x1x8x128xf32> to vector<8x128xf32>
    %1725 = arith.subf %1724, %722 : vector<8x128xf32>
    %1726 = math.exp %1725 : vector<8x128xf32>
    %c1_i32_645 = arith.constant 1 : i32
    %1727 = vector.broadcast %c1_i32_645 : i32 to vector<8x128xi32>
    %1728 = arith.cmpi sge, %724, %1727 : vector<8x128xi32>
    %c7_i32_646 = arith.constant 7 : i32
    %1729 = vector.broadcast %c7_i32_646 : i32 to vector<8x128xi32>
    %1730 = arith.cmpi sle, %724, %1729 : vector<8x128xi32>
    %c4_i32_647 = arith.constant 4 : i32
    %1731 = vector.broadcast %c4_i32_647 : i32 to vector<8x128xi32>
    %1732 = arith.cmpi sge, %726, %1731 : vector<8x128xi32>
    %1733 = arith.andi %1728, %1730 : vector<8x128xi1>
    %1734 = arith.andi %1733, %1732 : vector<8x128xi1>
    %cst_648 = arith.constant 0.000000e+00 : f32
    %1735 = vector.broadcast %cst_648 : f32 to vector<8x128xf32>
    %1736 = arith.select %1734, %1726, %1735 : vector<8x128xi1>, vector<8x128xf32>
    %1737 = arith.addf %1713, %1726 : vector<8x128xf32>
    %1738 = arith.mulf %1726, %1725 : vector<8x128xf32>
    %1739 = arith.addf %1715, %1738 : vector<8x128xf32>
    %1740 = arith.addf %1716, %1736 : vector<8x128xf32>
    %1741 = arith.mulf %1736, %1725 : vector<8x128xf32>
    %1742 = arith.addf %1718, %1741 : vector<8x128xf32>
    %cst_649 = arith.constant 3.000000e+00 : f32
    %1743 = vector.broadcast %cst_649 : f32 to vector<8x128xf32>
    %1744 = arith.mulf %1736, %1743 : vector<8x128xf32>
    %1745 = arith.addf %1721, %1744 : vector<8x128xf32>
    %c0_650 = arith.constant 0 : index
    %c44_651 = arith.constant 44 : index
    %1746 = arith.index_cast %1 : i32 to index
    %c0_652 = arith.constant 0 : index
    %1747 = vector.load %arg2[%c0_650, %c44_651, %1746, %c0_652] : memref<1x81x8x128xf32, #tpu.memory_space<vmem>>, vector<1x1x8x128xf32>
    %1748 = vector.shape_cast %1747 : vector<1x1x8x128xf32> to vector<8x128xf32>
    %1749 = arith.subf %1748, %722 : vector<8x128xf32>
    %1750 = math.exp %1749 : vector<8x128xf32>
    %c1_i32_653 = arith.constant 1 : i32
    %1751 = vector.broadcast %c1_i32_653 : i32 to vector<8x128xi32>
    %1752 = arith.cmpi sge, %724, %1751 : vector<8x128xi32>
    %c7_i32_654 = arith.constant 7 : i32
    %1753 = vector.broadcast %c7_i32_654 : i32 to vector<8x128xi32>
    %1754 = arith.cmpi sle, %724, %1753 : vector<8x128xi32>
    %c5_i32_655 = arith.constant 5 : i32
    %1755 = vector.broadcast %c5_i32_655 : i32 to vector<8x128xi32>
    %1756 = arith.cmpi sge, %726, %1755 : vector<8x128xi32>
    %1757 = arith.andi %1752, %1754 : vector<8x128xi1>
    %1758 = arith.andi %1757, %1756 : vector<8x128xi1>
    %cst_656 = arith.constant 0.000000e+00 : f32
    %1759 = vector.broadcast %cst_656 : f32 to vector<8x128xf32>
    %1760 = arith.select %1758, %1750, %1759 : vector<8x128xi1>, vector<8x128xf32>
    %1761 = arith.addf %1737, %1750 : vector<8x128xf32>
    %1762 = arith.mulf %1750, %1749 : vector<8x128xf32>
    %1763 = arith.addf %1739, %1762 : vector<8x128xf32>
    %1764 = arith.addf %1740, %1760 : vector<8x128xf32>
    %1765 = arith.mulf %1760, %1749 : vector<8x128xf32>
    %1766 = arith.addf %1742, %1765 : vector<8x128xf32>
    %cst_657 = arith.constant 4.000000e+00 : f32
    %1767 = vector.broadcast %cst_657 : f32 to vector<8x128xf32>
    %1768 = arith.mulf %1760, %1767 : vector<8x128xf32>
    %1769 = arith.addf %1745, %1768 : vector<8x128xf32>
    %c0_658 = arith.constant 0 : index
    %c45_659 = arith.constant 45 : index
    %1770 = arith.index_cast %1 : i32 to index
    %c0_660 = arith.constant 0 : index
    %1771 = vector.load %arg2[%c0_658, %c45_659, %1770, %c0_660] : memref<1x81x8x128xf32, #tpu.memory_space<vmem>>, vector<1x1x8x128xf32>
    %1772 = vector.shape_cast %1771 : vector<1x1x8x128xf32> to vector<8x128xf32>
    %1773 = arith.subf %1772, %722 : vector<8x128xf32>
    %1774 = math.exp %1773 : vector<8x128xf32>
    %c2_i32_661 = arith.constant 2 : i32
    %1775 = vector.broadcast %c2_i32_661 : i32 to vector<8x128xi32>
    %1776 = arith.cmpi sge, %724, %1775 : vector<8x128xi32>
    %c3_i32_662 = arith.constant 3 : i32
    %1777 = vector.broadcast %c3_i32_662 : i32 to vector<8x128xi32>
    %1778 = arith.cmpi sle, %726, %1777 : vector<8x128xi32>
    %1779 = arith.andi %1776, %1778 : vector<8x128xi1>
    %cst_663 = arith.constant 0.000000e+00 : f32
    %1780 = vector.broadcast %cst_663 : f32 to vector<8x128xf32>
    %1781 = arith.select %1779, %1774, %1780 : vector<8x128xi1>, vector<8x128xf32>
    %1782 = arith.addf %1761, %1774 : vector<8x128xf32>
    %1783 = arith.mulf %1774, %1773 : vector<8x128xf32>
    %1784 = arith.addf %1763, %1783 : vector<8x128xf32>
    %1785 = arith.addf %1764, %1781 : vector<8x128xf32>
    %1786 = arith.mulf %1781, %1773 : vector<8x128xf32>
    %1787 = arith.addf %1766, %1786 : vector<8x128xf32>
    %1788 = arith.addf %1554, %1781 : vector<8x128xf32>
    %cst_664 = arith.constant -4.000000e+00 : f32
    %1789 = vector.broadcast %cst_664 : f32 to vector<8x128xf32>
    %1790 = arith.mulf %1781, %1789 : vector<8x128xf32>
    %1791 = arith.addf %1769, %1790 : vector<8x128xf32>
    %c0_665 = arith.constant 0 : index
    %c46_666 = arith.constant 46 : index
    %1792 = arith.index_cast %1 : i32 to index
    %c0_667 = arith.constant 0 : index
    %1793 = vector.load %arg2[%c0_665, %c46_666, %1792, %c0_667] : memref<1x81x8x128xf32, #tpu.memory_space<vmem>>, vector<1x1x8x128xf32>
    %1794 = vector.shape_cast %1793 : vector<1x1x8x128xf32> to vector<8x128xf32>
    %1795 = arith.subf %1794, %722 : vector<8x128xf32>
    %1796 = math.exp %1795 : vector<8x128xf32>
    %c2_i32_668 = arith.constant 2 : i32
    %1797 = vector.broadcast %c2_i32_668 : i32 to vector<8x128xi32>
    %1798 = arith.cmpi sge, %724, %1797 : vector<8x128xi32>
    %c4_i32_669 = arith.constant 4 : i32
    %1799 = vector.broadcast %c4_i32_669 : i32 to vector<8x128xi32>
    %1800 = arith.cmpi sle, %726, %1799 : vector<8x128xi32>
    %1801 = arith.andi %1798, %1800 : vector<8x128xi1>
    %cst_670 = arith.constant 0.000000e+00 : f32
    %1802 = vector.broadcast %cst_670 : f32 to vector<8x128xf32>
    %1803 = arith.select %1801, %1796, %1802 : vector<8x128xi1>, vector<8x128xf32>
    %1804 = arith.addf %1782, %1796 : vector<8x128xf32>
    %1805 = arith.mulf %1796, %1795 : vector<8x128xf32>
    %1806 = arith.addf %1784, %1805 : vector<8x128xf32>
    %1807 = arith.addf %1785, %1803 : vector<8x128xf32>
    %1808 = arith.mulf %1803, %1795 : vector<8x128xf32>
    %1809 = arith.addf %1787, %1808 : vector<8x128xf32>
    %1810 = arith.addf %1788, %1803 : vector<8x128xf32>
    %cst_671 = arith.constant -3.000000e+00 : f32
    %1811 = vector.broadcast %cst_671 : f32 to vector<8x128xf32>
    %1812 = arith.mulf %1803, %1811 : vector<8x128xf32>
    %1813 = arith.addf %1791, %1812 : vector<8x128xf32>
    %c0_672 = arith.constant 0 : index
    %c47_673 = arith.constant 47 : index
    %1814 = arith.index_cast %1 : i32 to index
    %c0_674 = arith.constant 0 : index
    %1815 = vector.load %arg2[%c0_672, %c47_673, %1814, %c0_674] : memref<1x81x8x128xf32, #tpu.memory_space<vmem>>, vector<1x1x8x128xf32>
    %1816 = vector.shape_cast %1815 : vector<1x1x8x128xf32> to vector<8x128xf32>
    %1817 = arith.subf %1816, %722 : vector<8x128xf32>
    %1818 = math.exp %1817 : vector<8x128xf32>
    %c2_i32_675 = arith.constant 2 : i32
    %1819 = vector.broadcast %c2_i32_675 : i32 to vector<8x128xi32>
    %1820 = arith.cmpi sge, %724, %1819 : vector<8x128xi32>
    %c5_i32_676 = arith.constant 5 : i32
    %1821 = vector.broadcast %c5_i32_676 : i32 to vector<8x128xi32>
    %1822 = arith.cmpi sle, %726, %1821 : vector<8x128xi32>
    %1823 = arith.andi %1820, %1822 : vector<8x128xi1>
    %cst_677 = arith.constant 0.000000e+00 : f32
    %1824 = vector.broadcast %cst_677 : f32 to vector<8x128xf32>
    %1825 = arith.select %1823, %1818, %1824 : vector<8x128xi1>, vector<8x128xf32>
    %1826 = arith.addf %1804, %1818 : vector<8x128xf32>
    %1827 = arith.mulf %1818, %1817 : vector<8x128xf32>
    %1828 = arith.addf %1806, %1827 : vector<8x128xf32>
    %1829 = arith.addf %1807, %1825 : vector<8x128xf32>
    %1830 = arith.mulf %1825, %1817 : vector<8x128xf32>
    %1831 = arith.addf %1809, %1830 : vector<8x128xf32>
    %1832 = arith.addf %1810, %1825 : vector<8x128xf32>
    %cst_678 = arith.constant -2.000000e+00 : f32
    %1833 = vector.broadcast %cst_678 : f32 to vector<8x128xf32>
    %1834 = arith.mulf %1825, %1833 : vector<8x128xf32>
    %1835 = arith.addf %1813, %1834 : vector<8x128xf32>
    %c0_679 = arith.constant 0 : index
    %c48_680 = arith.constant 48 : index
    %1836 = arith.index_cast %1 : i32 to index
    %c0_681 = arith.constant 0 : index
    %1837 = vector.load %arg2[%c0_679, %c48_680, %1836, %c0_681] : memref<1x81x8x128xf32, #tpu.memory_space<vmem>>, vector<1x1x8x128xf32>
    %1838 = vector.shape_cast %1837 : vector<1x1x8x128xf32> to vector<8x128xf32>
    %1839 = arith.subf %1838, %722 : vector<8x128xf32>
    %1840 = math.exp %1839 : vector<8x128xf32>
    %c2_i32_682 = arith.constant 2 : i32
    %1841 = vector.broadcast %c2_i32_682 : i32 to vector<8x128xi32>
    %1842 = arith.cmpi sge, %724, %1841 : vector<8x128xi32>
    %c6_i32_683 = arith.constant 6 : i32
    %1843 = vector.broadcast %c6_i32_683 : i32 to vector<8x128xi32>
    %1844 = arith.cmpi sle, %726, %1843 : vector<8x128xi32>
    %1845 = arith.andi %1842, %1844 : vector<8x128xi1>
    %cst_684 = arith.constant 0.000000e+00 : f32
    %1846 = vector.broadcast %cst_684 : f32 to vector<8x128xf32>
    %1847 = arith.select %1845, %1840, %1846 : vector<8x128xi1>, vector<8x128xf32>
    %1848 = arith.addf %1826, %1840 : vector<8x128xf32>
    %1849 = arith.mulf %1840, %1839 : vector<8x128xf32>
    %1850 = arith.addf %1828, %1849 : vector<8x128xf32>
    %1851 = arith.addf %1829, %1847 : vector<8x128xf32>
    %1852 = arith.mulf %1847, %1839 : vector<8x128xf32>
    %1853 = arith.addf %1831, %1852 : vector<8x128xf32>
    %1854 = arith.addf %1832, %1847 : vector<8x128xf32>
    %1855 = arith.subf %1835, %1847 : vector<8x128xf32>
    %c0_685 = arith.constant 0 : index
    %c49_686 = arith.constant 49 : index
    %1856 = arith.index_cast %1 : i32 to index
    %c0_687 = arith.constant 0 : index
    %1857 = vector.load %arg2[%c0_685, %c49_686, %1856, %c0_687] : memref<1x81x8x128xf32, #tpu.memory_space<vmem>>, vector<1x1x8x128xf32>
    %1858 = vector.shape_cast %1857 : vector<1x1x8x128xf32> to vector<8x128xf32>
    %1859 = arith.subf %1858, %722 : vector<8x128xf32>
    %1860 = math.exp %1859 : vector<8x128xf32>
    %c2_i32_688 = arith.constant 2 : i32
    %1861 = vector.broadcast %c2_i32_688 : i32 to vector<8x128xi32>
    %1862 = arith.cmpi sge, %724, %1861 : vector<8x128xi32>
    %c1_i32_689 = arith.constant 1 : i32
    %1863 = vector.broadcast %c1_i32_689 : i32 to vector<8x128xi32>
    %1864 = arith.cmpi sge, %726, %1863 : vector<8x128xi32>
    %c7_i32_690 = arith.constant 7 : i32
    %1865 = vector.broadcast %c7_i32_690 : i32 to vector<8x128xi32>
    %1866 = arith.cmpi sle, %726, %1865 : vector<8x128xi32>
    %1867 = arith.andi %1862, %1864 : vector<8x128xi1>
    %1868 = arith.andi %1867, %1866 : vector<8x128xi1>
    %cst_691 = arith.constant 0.000000e+00 : f32
    %1869 = vector.broadcast %cst_691 : f32 to vector<8x128xf32>
    %1870 = arith.select %1868, %1860, %1869 : vector<8x128xi1>, vector<8x128xf32>
    %1871 = arith.addf %1848, %1860 : vector<8x128xf32>
    %1872 = arith.mulf %1860, %1859 : vector<8x128xf32>
    %1873 = arith.addf %1850, %1872 : vector<8x128xf32>
    %1874 = arith.addf %1851, %1870 : vector<8x128xf32>
    %1875 = arith.mulf %1870, %1859 : vector<8x128xf32>
    %1876 = arith.addf %1853, %1875 : vector<8x128xf32>
    %1877 = arith.addf %1854, %1870 : vector<8x128xf32>
    %c0_692 = arith.constant 0 : index
    %c50_693 = arith.constant 50 : index
    %1878 = arith.index_cast %1 : i32 to index
    %c0_694 = arith.constant 0 : index
    %1879 = vector.load %arg2[%c0_692, %c50_693, %1878, %c0_694] : memref<1x81x8x128xf32, #tpu.memory_space<vmem>>, vector<1x1x8x128xf32>
    %1880 = vector.shape_cast %1879 : vector<1x1x8x128xf32> to vector<8x128xf32>
    %1881 = arith.subf %1880, %722 : vector<8x128xf32>
    %1882 = math.exp %1881 : vector<8x128xf32>
    %c2_i32_695 = arith.constant 2 : i32
    %1883 = vector.broadcast %c2_i32_695 : i32 to vector<8x128xi32>
    %1884 = arith.cmpi sge, %724, %1883 : vector<8x128xi32>
    %c2_i32_696 = arith.constant 2 : i32
    %1885 = vector.broadcast %c2_i32_696 : i32 to vector<8x128xi32>
    %1886 = arith.cmpi sge, %726, %1885 : vector<8x128xi32>
    %1887 = arith.andi %1884, %1886 : vector<8x128xi1>
    %cst_697 = arith.constant 0.000000e+00 : f32
    %1888 = vector.broadcast %cst_697 : f32 to vector<8x128xf32>
    %1889 = arith.select %1887, %1882, %1888 : vector<8x128xi1>, vector<8x128xf32>
    %1890 = arith.addf %1871, %1882 : vector<8x128xf32>
    %1891 = arith.mulf %1882, %1881 : vector<8x128xf32>
    %1892 = arith.addf %1873, %1891 : vector<8x128xf32>
    %1893 = arith.addf %1874, %1889 : vector<8x128xf32>
    %1894 = arith.mulf %1889, %1881 : vector<8x128xf32>
    %1895 = arith.addf %1876, %1894 : vector<8x128xf32>
    %1896 = arith.addf %1877, %1889 : vector<8x128xf32>
    %1897 = arith.addf %1855, %1889 : vector<8x128xf32>
    %c0_698 = arith.constant 0 : index
    %c51_699 = arith.constant 51 : index
    %1898 = arith.index_cast %1 : i32 to index
    %c0_700 = arith.constant 0 : index
    %1899 = vector.load %arg2[%c0_698, %c51_699, %1898, %c0_700] : memref<1x81x8x128xf32, #tpu.memory_space<vmem>>, vector<1x1x8x128xf32>
    %1900 = vector.shape_cast %1899 : vector<1x1x8x128xf32> to vector<8x128xf32>
    %1901 = arith.subf %1900, %722 : vector<8x128xf32>
    %1902 = math.exp %1901 : vector<8x128xf32>
    %c2_i32_701 = arith.constant 2 : i32
    %1903 = vector.broadcast %c2_i32_701 : i32 to vector<8x128xi32>
    %1904 = arith.cmpi sge, %724, %1903 : vector<8x128xi32>
    %c3_i32_702 = arith.constant 3 : i32
    %1905 = vector.broadcast %c3_i32_702 : i32 to vector<8x128xi32>
    %1906 = arith.cmpi sge, %726, %1905 : vector<8x128xi32>
    %1907 = arith.andi %1904, %1906 : vector<8x128xi1>
    %cst_703 = arith.constant 0.000000e+00 : f32
    %1908 = vector.broadcast %cst_703 : f32 to vector<8x128xf32>
    %1909 = arith.select %1907, %1902, %1908 : vector<8x128xi1>, vector<8x128xf32>
    %1910 = arith.addf %1890, %1902 : vector<8x128xf32>
    %1911 = arith.mulf %1902, %1901 : vector<8x128xf32>
    %1912 = arith.addf %1892, %1911 : vector<8x128xf32>
    %1913 = arith.addf %1893, %1909 : vector<8x128xf32>
    %1914 = arith.mulf %1909, %1901 : vector<8x128xf32>
    %1915 = arith.addf %1895, %1914 : vector<8x128xf32>
    %1916 = arith.addf %1896, %1909 : vector<8x128xf32>
    %cst_704 = arith.constant 2.000000e+00 : f32
    %1917 = vector.broadcast %cst_704 : f32 to vector<8x128xf32>
    %1918 = arith.mulf %1909, %1917 : vector<8x128xf32>
    %1919 = arith.addf %1897, %1918 : vector<8x128xf32>
    %c0_705 = arith.constant 0 : index
    %c52_706 = arith.constant 52 : index
    %1920 = arith.index_cast %1 : i32 to index
    %c0_707 = arith.constant 0 : index
    %1921 = vector.load %arg2[%c0_705, %c52_706, %1920, %c0_707] : memref<1x81x8x128xf32, #tpu.memory_space<vmem>>, vector<1x1x8x128xf32>
    %1922 = vector.shape_cast %1921 : vector<1x1x8x128xf32> to vector<8x128xf32>
    %1923 = arith.subf %1922, %722 : vector<8x128xf32>
    %1924 = math.exp %1923 : vector<8x128xf32>
    %c2_i32_708 = arith.constant 2 : i32
    %1925 = vector.broadcast %c2_i32_708 : i32 to vector<8x128xi32>
    %1926 = arith.cmpi sge, %724, %1925 : vector<8x128xi32>
    %c4_i32_709 = arith.constant 4 : i32
    %1927 = vector.broadcast %c4_i32_709 : i32 to vector<8x128xi32>
    %1928 = arith.cmpi sge, %726, %1927 : vector<8x128xi32>
    %1929 = arith.andi %1926, %1928 : vector<8x128xi1>
    %cst_710 = arith.constant 0.000000e+00 : f32
    %1930 = vector.broadcast %cst_710 : f32 to vector<8x128xf32>
    %1931 = arith.select %1929, %1924, %1930 : vector<8x128xi1>, vector<8x128xf32>
    %1932 = arith.addf %1910, %1924 : vector<8x128xf32>
    %1933 = arith.mulf %1924, %1923 : vector<8x128xf32>
    %1934 = arith.addf %1912, %1933 : vector<8x128xf32>
    %1935 = arith.addf %1913, %1931 : vector<8x128xf32>
    %1936 = arith.mulf %1931, %1923 : vector<8x128xf32>
    %1937 = arith.addf %1915, %1936 : vector<8x128xf32>
    %1938 = arith.addf %1916, %1931 : vector<8x128xf32>
    %cst_711 = arith.constant 3.000000e+00 : f32
    %1939 = vector.broadcast %cst_711 : f32 to vector<8x128xf32>
    %1940 = arith.mulf %1931, %1939 : vector<8x128xf32>
    %1941 = arith.addf %1919, %1940 : vector<8x128xf32>
    %c0_712 = arith.constant 0 : index
    %c53_713 = arith.constant 53 : index
    %1942 = arith.index_cast %1 : i32 to index
    %c0_714 = arith.constant 0 : index
    %1943 = vector.load %arg2[%c0_712, %c53_713, %1942, %c0_714] : memref<1x81x8x128xf32, #tpu.memory_space<vmem>>, vector<1x1x8x128xf32>
    %1944 = vector.shape_cast %1943 : vector<1x1x8x128xf32> to vector<8x128xf32>
    %1945 = arith.subf %1944, %722 : vector<8x128xf32>
    %1946 = math.exp %1945 : vector<8x128xf32>
    %c2_i32_715 = arith.constant 2 : i32
    %1947 = vector.broadcast %c2_i32_715 : i32 to vector<8x128xi32>
    %1948 = arith.cmpi sge, %724, %1947 : vector<8x128xi32>
    %c5_i32_716 = arith.constant 5 : i32
    %1949 = vector.broadcast %c5_i32_716 : i32 to vector<8x128xi32>
    %1950 = arith.cmpi sge, %726, %1949 : vector<8x128xi32>
    %1951 = arith.andi %1948, %1950 : vector<8x128xi1>
    %cst_717 = arith.constant 0.000000e+00 : f32
    %1952 = vector.broadcast %cst_717 : f32 to vector<8x128xf32>
    %1953 = arith.select %1951, %1946, %1952 : vector<8x128xi1>, vector<8x128xf32>
    %1954 = arith.addf %1932, %1946 : vector<8x128xf32>
    %1955 = arith.mulf %1946, %1945 : vector<8x128xf32>
    %1956 = arith.addf %1934, %1955 : vector<8x128xf32>
    %1957 = arith.addf %1935, %1953 : vector<8x128xf32>
    %1958 = arith.mulf %1953, %1945 : vector<8x128xf32>
    %1959 = arith.addf %1937, %1958 : vector<8x128xf32>
    %1960 = arith.addf %1938, %1953 : vector<8x128xf32>
    %cst_718 = arith.constant 4.000000e+00 : f32
    %1961 = vector.broadcast %cst_718 : f32 to vector<8x128xf32>
    %1962 = arith.mulf %1953, %1961 : vector<8x128xf32>
    %1963 = arith.addf %1941, %1962 : vector<8x128xf32>
    %c0_719 = arith.constant 0 : index
    %c54_720 = arith.constant 54 : index
    %1964 = arith.index_cast %1 : i32 to index
    %c0_721 = arith.constant 0 : index
    %1965 = vector.load %arg2[%c0_719, %c54_720, %1964, %c0_721] : memref<1x81x8x128xf32, #tpu.memory_space<vmem>>, vector<1x1x8x128xf32>
    %1966 = vector.shape_cast %1965 : vector<1x1x8x128xf32> to vector<8x128xf32>
    %1967 = arith.subf %1966, %722 : vector<8x128xf32>
    %1968 = math.exp %1967 : vector<8x128xf32>
    %c3_i32_722 = arith.constant 3 : i32
    %1969 = vector.broadcast %c3_i32_722 : i32 to vector<8x128xi32>
    %1970 = arith.cmpi sge, %724, %1969 : vector<8x128xi32>
    %c3_i32_723 = arith.constant 3 : i32
    %1971 = vector.broadcast %c3_i32_723 : i32 to vector<8x128xi32>
    %1972 = arith.cmpi sle, %726, %1971 : vector<8x128xi32>
    %1973 = arith.andi %1970, %1972 : vector<8x128xi1>
    %cst_724 = arith.constant 0.000000e+00 : f32
    %1974 = vector.broadcast %cst_724 : f32 to vector<8x128xf32>
    %1975 = arith.select %1973, %1968, %1974 : vector<8x128xi1>, vector<8x128xf32>
    %1976 = arith.addf %1954, %1968 : vector<8x128xf32>
    %1977 = arith.mulf %1968, %1967 : vector<8x128xf32>
    %1978 = arith.addf %1956, %1977 : vector<8x128xf32>
    %1979 = arith.addf %1957, %1975 : vector<8x128xf32>
    %1980 = arith.mulf %1975, %1967 : vector<8x128xf32>
    %1981 = arith.addf %1959, %1980 : vector<8x128xf32>
    %cst_725 = arith.constant 2.000000e+00 : f32
    %1982 = vector.broadcast %cst_725 : f32 to vector<8x128xf32>
    %1983 = arith.mulf %1975, %1982 : vector<8x128xf32>
    %1984 = arith.addf %1960, %1983 : vector<8x128xf32>
    %cst_726 = arith.constant -4.000000e+00 : f32
    %1985 = vector.broadcast %cst_726 : f32 to vector<8x128xf32>
    %1986 = arith.mulf %1975, %1985 : vector<8x128xf32>
    %1987 = arith.addf %1963, %1986 : vector<8x128xf32>
    %c0_727 = arith.constant 0 : index
    %c55_728 = arith.constant 55 : index
    %1988 = arith.index_cast %1 : i32 to index
    %c0_729 = arith.constant 0 : index
    %1989 = vector.load %arg2[%c0_727, %c55_728, %1988, %c0_729] : memref<1x81x8x128xf32, #tpu.memory_space<vmem>>, vector<1x1x8x128xf32>
    %1990 = vector.shape_cast %1989 : vector<1x1x8x128xf32> to vector<8x128xf32>
    %1991 = arith.subf %1990, %722 : vector<8x128xf32>
    %1992 = math.exp %1991 : vector<8x128xf32>
    %c3_i32_730 = arith.constant 3 : i32
    %1993 = vector.broadcast %c3_i32_730 : i32 to vector<8x128xi32>
    %1994 = arith.cmpi sge, %724, %1993 : vector<8x128xi32>
    %c4_i32_731 = arith.constant 4 : i32
    %1995 = vector.broadcast %c4_i32_731 : i32 to vector<8x128xi32>
    %1996 = arith.cmpi sle, %726, %1995 : vector<8x128xi32>
    %1997 = arith.andi %1994, %1996 : vector<8x128xi1>
    %cst_732 = arith.constant 0.000000e+00 : f32
    %1998 = vector.broadcast %cst_732 : f32 to vector<8x128xf32>
    %1999 = arith.select %1997, %1992, %1998 : vector<8x128xi1>, vector<8x128xf32>
    %2000 = arith.addf %1976, %1992 : vector<8x128xf32>
    %2001 = arith.mulf %1992, %1991 : vector<8x128xf32>
    %2002 = arith.addf %1978, %2001 : vector<8x128xf32>
    %2003 = arith.addf %1979, %1999 : vector<8x128xf32>
    %2004 = arith.mulf %1999, %1991 : vector<8x128xf32>
    %2005 = arith.addf %1981, %2004 : vector<8x128xf32>
    %cst_733 = arith.constant 2.000000e+00 : f32
    %2006 = vector.broadcast %cst_733 : f32 to vector<8x128xf32>
    %2007 = arith.mulf %1999, %2006 : vector<8x128xf32>
    %2008 = arith.addf %1984, %2007 : vector<8x128xf32>
    %cst_734 = arith.constant -3.000000e+00 : f32
    %2009 = vector.broadcast %cst_734 : f32 to vector<8x128xf32>
    %2010 = arith.mulf %1999, %2009 : vector<8x128xf32>
    %2011 = arith.addf %1987, %2010 : vector<8x128xf32>
    %c0_735 = arith.constant 0 : index
    %c56_736 = arith.constant 56 : index
    %2012 = arith.index_cast %1 : i32 to index
    %c0_737 = arith.constant 0 : index
    %2013 = vector.load %arg2[%c0_735, %c56_736, %2012, %c0_737] : memref<1x81x8x128xf32, #tpu.memory_space<vmem>>, vector<1x1x8x128xf32>
    %2014 = vector.shape_cast %2013 : vector<1x1x8x128xf32> to vector<8x128xf32>
    %2015 = arith.subf %2014, %722 : vector<8x128xf32>
    %2016 = math.exp %2015 : vector<8x128xf32>
    %c3_i32_738 = arith.constant 3 : i32
    %2017 = vector.broadcast %c3_i32_738 : i32 to vector<8x128xi32>
    %2018 = arith.cmpi sge, %724, %2017 : vector<8x128xi32>
    %c5_i32_739 = arith.constant 5 : i32
    %2019 = vector.broadcast %c5_i32_739 : i32 to vector<8x128xi32>
    %2020 = arith.cmpi sle, %726, %2019 : vector<8x128xi32>
    %2021 = arith.andi %2018, %2020 : vector<8x128xi1>
    %cst_740 = arith.constant 0.000000e+00 : f32
    %2022 = vector.broadcast %cst_740 : f32 to vector<8x128xf32>
    %2023 = arith.select %2021, %2016, %2022 : vector<8x128xi1>, vector<8x128xf32>
    %2024 = arith.addf %2000, %2016 : vector<8x128xf32>
    %2025 = arith.mulf %2016, %2015 : vector<8x128xf32>
    %2026 = arith.addf %2002, %2025 : vector<8x128xf32>
    %2027 = arith.addf %2003, %2023 : vector<8x128xf32>
    %2028 = arith.mulf %2023, %2015 : vector<8x128xf32>
    %2029 = arith.addf %2005, %2028 : vector<8x128xf32>
    %cst_741 = arith.constant 2.000000e+00 : f32
    %2030 = vector.broadcast %cst_741 : f32 to vector<8x128xf32>
    %2031 = arith.mulf %2023, %2030 : vector<8x128xf32>
    %2032 = arith.addf %2008, %2031 : vector<8x128xf32>
    %cst_742 = arith.constant -2.000000e+00 : f32
    %2033 = vector.broadcast %cst_742 : f32 to vector<8x128xf32>
    %2034 = arith.mulf %2023, %2033 : vector<8x128xf32>
    %2035 = arith.addf %2011, %2034 : vector<8x128xf32>
    %c0_743 = arith.constant 0 : index
    %c57_744 = arith.constant 57 : index
    %2036 = arith.index_cast %1 : i32 to index
    %c0_745 = arith.constant 0 : index
    %2037 = vector.load %arg2[%c0_743, %c57_744, %2036, %c0_745] : memref<1x81x8x128xf32, #tpu.memory_space<vmem>>, vector<1x1x8x128xf32>
    %2038 = vector.shape_cast %2037 : vector<1x1x8x128xf32> to vector<8x128xf32>
    %2039 = arith.subf %2038, %722 : vector<8x128xf32>
    %2040 = math.exp %2039 : vector<8x128xf32>
    %c3_i32_746 = arith.constant 3 : i32
    %2041 = vector.broadcast %c3_i32_746 : i32 to vector<8x128xi32>
    %2042 = arith.cmpi sge, %724, %2041 : vector<8x128xi32>
    %c6_i32_747 = arith.constant 6 : i32
    %2043 = vector.broadcast %c6_i32_747 : i32 to vector<8x128xi32>
    %2044 = arith.cmpi sle, %726, %2043 : vector<8x128xi32>
    %2045 = arith.andi %2042, %2044 : vector<8x128xi1>
    %cst_748 = arith.constant 0.000000e+00 : f32
    %2046 = vector.broadcast %cst_748 : f32 to vector<8x128xf32>
    %2047 = arith.select %2045, %2040, %2046 : vector<8x128xi1>, vector<8x128xf32>
    %2048 = arith.addf %2024, %2040 : vector<8x128xf32>
    %2049 = arith.mulf %2040, %2039 : vector<8x128xf32>
    %2050 = arith.addf %2026, %2049 : vector<8x128xf32>
    %2051 = arith.addf %2027, %2047 : vector<8x128xf32>
    %2052 = arith.mulf %2047, %2039 : vector<8x128xf32>
    %2053 = arith.addf %2029, %2052 : vector<8x128xf32>
    %cst_749 = arith.constant 2.000000e+00 : f32
    %2054 = vector.broadcast %cst_749 : f32 to vector<8x128xf32>
    %2055 = arith.mulf %2047, %2054 : vector<8x128xf32>
    %2056 = arith.addf %2032, %2055 : vector<8x128xf32>
    %2057 = arith.subf %2035, %2047 : vector<8x128xf32>
    %c0_750 = arith.constant 0 : index
    %c58_751 = arith.constant 58 : index
    %2058 = arith.index_cast %1 : i32 to index
    %c0_752 = arith.constant 0 : index
    %2059 = vector.load %arg2[%c0_750, %c58_751, %2058, %c0_752] : memref<1x81x8x128xf32, #tpu.memory_space<vmem>>, vector<1x1x8x128xf32>
    %2060 = vector.shape_cast %2059 : vector<1x1x8x128xf32> to vector<8x128xf32>
    %2061 = arith.subf %2060, %722 : vector<8x128xf32>
    %2062 = math.exp %2061 : vector<8x128xf32>
    %c3_i32_753 = arith.constant 3 : i32
    %2063 = vector.broadcast %c3_i32_753 : i32 to vector<8x128xi32>
    %2064 = arith.cmpi sge, %724, %2063 : vector<8x128xi32>
    %c1_i32_754 = arith.constant 1 : i32
    %2065 = vector.broadcast %c1_i32_754 : i32 to vector<8x128xi32>
    %2066 = arith.cmpi sge, %726, %2065 : vector<8x128xi32>
    %c7_i32_755 = arith.constant 7 : i32
    %2067 = vector.broadcast %c7_i32_755 : i32 to vector<8x128xi32>
    %2068 = arith.cmpi sle, %726, %2067 : vector<8x128xi32>
    %2069 = arith.andi %2064, %2066 : vector<8x128xi1>
    %2070 = arith.andi %2069, %2068 : vector<8x128xi1>
    %cst_756 = arith.constant 0.000000e+00 : f32
    %2071 = vector.broadcast %cst_756 : f32 to vector<8x128xf32>
    %2072 = arith.select %2070, %2062, %2071 : vector<8x128xi1>, vector<8x128xf32>
    %2073 = arith.addf %2048, %2062 : vector<8x128xf32>
    %2074 = arith.mulf %2062, %2061 : vector<8x128xf32>
    %2075 = arith.addf %2050, %2074 : vector<8x128xf32>
    %2076 = arith.addf %2051, %2072 : vector<8x128xf32>
    %2077 = arith.mulf %2072, %2061 : vector<8x128xf32>
    %2078 = arith.addf %2053, %2077 : vector<8x128xf32>
    %cst_757 = arith.constant 2.000000e+00 : f32
    %2079 = vector.broadcast %cst_757 : f32 to vector<8x128xf32>
    %2080 = arith.mulf %2072, %2079 : vector<8x128xf32>
    %2081 = arith.addf %2056, %2080 : vector<8x128xf32>
    %c0_758 = arith.constant 0 : index
    %c59_759 = arith.constant 59 : index
    %2082 = arith.index_cast %1 : i32 to index
    %c0_760 = arith.constant 0 : index
    %2083 = vector.load %arg2[%c0_758, %c59_759, %2082, %c0_760] : memref<1x81x8x128xf32, #tpu.memory_space<vmem>>, vector<1x1x8x128xf32>
    %2084 = vector.shape_cast %2083 : vector<1x1x8x128xf32> to vector<8x128xf32>
    %2085 = arith.subf %2084, %722 : vector<8x128xf32>
    %2086 = math.exp %2085 : vector<8x128xf32>
    %c3_i32_761 = arith.constant 3 : i32
    %2087 = vector.broadcast %c3_i32_761 : i32 to vector<8x128xi32>
    %2088 = arith.cmpi sge, %724, %2087 : vector<8x128xi32>
    %c2_i32_762 = arith.constant 2 : i32
    %2089 = vector.broadcast %c2_i32_762 : i32 to vector<8x128xi32>
    %2090 = arith.cmpi sge, %726, %2089 : vector<8x128xi32>
    %2091 = arith.andi %2088, %2090 : vector<8x128xi1>
    %cst_763 = arith.constant 0.000000e+00 : f32
    %2092 = vector.broadcast %cst_763 : f32 to vector<8x128xf32>
    %2093 = arith.select %2091, %2086, %2092 : vector<8x128xi1>, vector<8x128xf32>
    %2094 = arith.addf %2073, %2086 : vector<8x128xf32>
    %2095 = arith.mulf %2086, %2085 : vector<8x128xf32>
    %2096 = arith.addf %2075, %2095 : vector<8x128xf32>
    %2097 = arith.addf %2076, %2093 : vector<8x128xf32>
    %2098 = arith.mulf %2093, %2085 : vector<8x128xf32>
    %2099 = arith.addf %2078, %2098 : vector<8x128xf32>
    %cst_764 = arith.constant 2.000000e+00 : f32
    %2100 = vector.broadcast %cst_764 : f32 to vector<8x128xf32>
    %2101 = arith.mulf %2093, %2100 : vector<8x128xf32>
    %2102 = arith.addf %2081, %2101 : vector<8x128xf32>
    %2103 = arith.addf %2057, %2093 : vector<8x128xf32>
    %c0_765 = arith.constant 0 : index
    %c60_766 = arith.constant 60 : index
    %2104 = arith.index_cast %1 : i32 to index
    %c0_767 = arith.constant 0 : index
    %2105 = vector.load %arg2[%c0_765, %c60_766, %2104, %c0_767] : memref<1x81x8x128xf32, #tpu.memory_space<vmem>>, vector<1x1x8x128xf32>
    %2106 = vector.shape_cast %2105 : vector<1x1x8x128xf32> to vector<8x128xf32>
    %2107 = arith.subf %2106, %722 : vector<8x128xf32>
    %2108 = math.exp %2107 : vector<8x128xf32>
    %c3_i32_768 = arith.constant 3 : i32
    %2109 = vector.broadcast %c3_i32_768 : i32 to vector<8x128xi32>
    %2110 = arith.cmpi sge, %724, %2109 : vector<8x128xi32>
    %c3_i32_769 = arith.constant 3 : i32
    %2111 = vector.broadcast %c3_i32_769 : i32 to vector<8x128xi32>
    %2112 = arith.cmpi sge, %726, %2111 : vector<8x128xi32>
    %2113 = arith.andi %2110, %2112 : vector<8x128xi1>
    %cst_770 = arith.constant 0.000000e+00 : f32
    %2114 = vector.broadcast %cst_770 : f32 to vector<8x128xf32>
    %2115 = arith.select %2113, %2108, %2114 : vector<8x128xi1>, vector<8x128xf32>
    %2116 = arith.addf %2094, %2108 : vector<8x128xf32>
    %2117 = arith.mulf %2108, %2107 : vector<8x128xf32>
    %2118 = arith.addf %2096, %2117 : vector<8x128xf32>
    %2119 = arith.addf %2097, %2115 : vector<8x128xf32>
    %2120 = arith.mulf %2115, %2107 : vector<8x128xf32>
    %2121 = arith.addf %2099, %2120 : vector<8x128xf32>
    %cst_771 = arith.constant 2.000000e+00 : f32
    %2122 = vector.broadcast %cst_771 : f32 to vector<8x128xf32>
    %2123 = arith.mulf %2115, %2122 : vector<8x128xf32>
    %2124 = arith.addf %2102, %2123 : vector<8x128xf32>
    %cst_772 = arith.constant 2.000000e+00 : f32
    %2125 = vector.broadcast %cst_772 : f32 to vector<8x128xf32>
    %2126 = arith.mulf %2115, %2125 : vector<8x128xf32>
    %2127 = arith.addf %2103, %2126 : vector<8x128xf32>
    %c0_773 = arith.constant 0 : index
    %c61_774 = arith.constant 61 : index
    %2128 = arith.index_cast %1 : i32 to index
    %c0_775 = arith.constant 0 : index
    %2129 = vector.load %arg2[%c0_773, %c61_774, %2128, %c0_775] : memref<1x81x8x128xf32, #tpu.memory_space<vmem>>, vector<1x1x8x128xf32>
    %2130 = vector.shape_cast %2129 : vector<1x1x8x128xf32> to vector<8x128xf32>
    %2131 = arith.subf %2130, %722 : vector<8x128xf32>
    %2132 = math.exp %2131 : vector<8x128xf32>
    %c3_i32_776 = arith.constant 3 : i32
    %2133 = vector.broadcast %c3_i32_776 : i32 to vector<8x128xi32>
    %2134 = arith.cmpi sge, %724, %2133 : vector<8x128xi32>
    %c4_i32_777 = arith.constant 4 : i32
    %2135 = vector.broadcast %c4_i32_777 : i32 to vector<8x128xi32>
    %2136 = arith.cmpi sge, %726, %2135 : vector<8x128xi32>
    %2137 = arith.andi %2134, %2136 : vector<8x128xi1>
    %cst_778 = arith.constant 0.000000e+00 : f32
    %2138 = vector.broadcast %cst_778 : f32 to vector<8x128xf32>
    %2139 = arith.select %2137, %2132, %2138 : vector<8x128xi1>, vector<8x128xf32>
    %2140 = arith.addf %2116, %2132 : vector<8x128xf32>
    %2141 = arith.mulf %2132, %2131 : vector<8x128xf32>
    %2142 = arith.addf %2118, %2141 : vector<8x128xf32>
    %2143 = arith.addf %2119, %2139 : vector<8x128xf32>
    %2144 = arith.mulf %2139, %2131 : vector<8x128xf32>
    %2145 = arith.addf %2121, %2144 : vector<8x128xf32>
    %cst_779 = arith.constant 2.000000e+00 : f32
    %2146 = vector.broadcast %cst_779 : f32 to vector<8x128xf32>
    %2147 = arith.mulf %2139, %2146 : vector<8x128xf32>
    %2148 = arith.addf %2124, %2147 : vector<8x128xf32>
    %cst_780 = arith.constant 3.000000e+00 : f32
    %2149 = vector.broadcast %cst_780 : f32 to vector<8x128xf32>
    %2150 = arith.mulf %2139, %2149 : vector<8x128xf32>
    %2151 = arith.addf %2127, %2150 : vector<8x128xf32>
    %c0_781 = arith.constant 0 : index
    %c62_782 = arith.constant 62 : index
    %2152 = arith.index_cast %1 : i32 to index
    %c0_783 = arith.constant 0 : index
    %2153 = vector.load %arg2[%c0_781, %c62_782, %2152, %c0_783] : memref<1x81x8x128xf32, #tpu.memory_space<vmem>>, vector<1x1x8x128xf32>
    %2154 = vector.shape_cast %2153 : vector<1x1x8x128xf32> to vector<8x128xf32>
    %2155 = arith.subf %2154, %722 : vector<8x128xf32>
    %2156 = math.exp %2155 : vector<8x128xf32>
    %c3_i32_784 = arith.constant 3 : i32
    %2157 = vector.broadcast %c3_i32_784 : i32 to vector<8x128xi32>
    %2158 = arith.cmpi sge, %724, %2157 : vector<8x128xi32>
    %c5_i32_785 = arith.constant 5 : i32
    %2159 = vector.broadcast %c5_i32_785 : i32 to vector<8x128xi32>
    %2160 = arith.cmpi sge, %726, %2159 : vector<8x128xi32>
    %2161 = arith.andi %2158, %2160 : vector<8x128xi1>
    %cst_786 = arith.constant 0.000000e+00 : f32
    %2162 = vector.broadcast %cst_786 : f32 to vector<8x128xf32>
    %2163 = arith.select %2161, %2156, %2162 : vector<8x128xi1>, vector<8x128xf32>
    %2164 = arith.addf %2140, %2156 : vector<8x128xf32>
    %2165 = arith.mulf %2156, %2155 : vector<8x128xf32>
    %2166 = arith.addf %2142, %2165 : vector<8x128xf32>
    %2167 = arith.addf %2143, %2163 : vector<8x128xf32>
    %2168 = arith.mulf %2163, %2155 : vector<8x128xf32>
    %2169 = arith.addf %2145, %2168 : vector<8x128xf32>
    %cst_787 = arith.constant 2.000000e+00 : f32
    %2170 = vector.broadcast %cst_787 : f32 to vector<8x128xf32>
    %2171 = arith.mulf %2163, %2170 : vector<8x128xf32>
    %2172 = arith.addf %2148, %2171 : vector<8x128xf32>
    %cst_788 = arith.constant 4.000000e+00 : f32
    %2173 = vector.broadcast %cst_788 : f32 to vector<8x128xf32>
    %2174 = arith.mulf %2163, %2173 : vector<8x128xf32>
    %2175 = arith.addf %2151, %2174 : vector<8x128xf32>
    %c0_789 = arith.constant 0 : index
    %c63_790 = arith.constant 63 : index
    %2176 = arith.index_cast %1 : i32 to index
    %c0_791 = arith.constant 0 : index
    %2177 = vector.load %arg2[%c0_789, %c63_790, %2176, %c0_791] : memref<1x81x8x128xf32, #tpu.memory_space<vmem>>, vector<1x1x8x128xf32>
    %2178 = vector.shape_cast %2177 : vector<1x1x8x128xf32> to vector<8x128xf32>
    %2179 = arith.subf %2178, %722 : vector<8x128xf32>
    %2180 = math.exp %2179 : vector<8x128xf32>
    %c4_i32_792 = arith.constant 4 : i32
    %2181 = vector.broadcast %c4_i32_792 : i32 to vector<8x128xi32>
    %2182 = arith.cmpi sge, %724, %2181 : vector<8x128xi32>
    %c3_i32_793 = arith.constant 3 : i32
    %2183 = vector.broadcast %c3_i32_793 : i32 to vector<8x128xi32>
    %2184 = arith.cmpi sle, %726, %2183 : vector<8x128xi32>
    %2185 = arith.andi %2182, %2184 : vector<8x128xi1>
    %cst_794 = arith.constant 0.000000e+00 : f32
    %2186 = vector.broadcast %cst_794 : f32 to vector<8x128xf32>
    %2187 = arith.select %2185, %2180, %2186 : vector<8x128xi1>, vector<8x128xf32>
    %2188 = arith.addf %2164, %2180 : vector<8x128xf32>
    %2189 = arith.mulf %2180, %2179 : vector<8x128xf32>
    %2190 = arith.addf %2166, %2189 : vector<8x128xf32>
    %2191 = arith.addf %2167, %2187 : vector<8x128xf32>
    %2192 = arith.mulf %2187, %2179 : vector<8x128xf32>
    %2193 = arith.addf %2169, %2192 : vector<8x128xf32>
    %cst_795 = arith.constant 3.000000e+00 : f32
    %2194 = vector.broadcast %cst_795 : f32 to vector<8x128xf32>
    %2195 = arith.mulf %2187, %2194 : vector<8x128xf32>
    %2196 = arith.addf %2172, %2195 : vector<8x128xf32>
    %cst_796 = arith.constant -4.000000e+00 : f32
    %2197 = vector.broadcast %cst_796 : f32 to vector<8x128xf32>
    %2198 = arith.mulf %2187, %2197 : vector<8x128xf32>
    %2199 = arith.addf %2175, %2198 : vector<8x128xf32>
    %c0_797 = arith.constant 0 : index
    %c64_798 = arith.constant 64 : index
    %2200 = arith.index_cast %1 : i32 to index
    %c0_799 = arith.constant 0 : index
    %2201 = vector.load %arg2[%c0_797, %c64_798, %2200, %c0_799] : memref<1x81x8x128xf32, #tpu.memory_space<vmem>>, vector<1x1x8x128xf32>
    %2202 = vector.shape_cast %2201 : vector<1x1x8x128xf32> to vector<8x128xf32>
    %2203 = arith.subf %2202, %722 : vector<8x128xf32>
    %2204 = math.exp %2203 : vector<8x128xf32>
    %c4_i32_800 = arith.constant 4 : i32
    %2205 = vector.broadcast %c4_i32_800 : i32 to vector<8x128xi32>
    %2206 = arith.cmpi sge, %724, %2205 : vector<8x128xi32>
    %c4_i32_801 = arith.constant 4 : i32
    %2207 = vector.broadcast %c4_i32_801 : i32 to vector<8x128xi32>
    %2208 = arith.cmpi sle, %726, %2207 : vector<8x128xi32>
    %2209 = arith.andi %2206, %2208 : vector<8x128xi1>
    %cst_802 = arith.constant 0.000000e+00 : f32
    %2210 = vector.broadcast %cst_802 : f32 to vector<8x128xf32>
    %2211 = arith.select %2209, %2204, %2210 : vector<8x128xi1>, vector<8x128xf32>
    %2212 = arith.addf %2188, %2204 : vector<8x128xf32>
    %2213 = arith.mulf %2204, %2203 : vector<8x128xf32>
    %2214 = arith.addf %2190, %2213 : vector<8x128xf32>
    %2215 = arith.addf %2191, %2211 : vector<8x128xf32>
    %2216 = arith.mulf %2211, %2203 : vector<8x128xf32>
    %2217 = arith.addf %2193, %2216 : vector<8x128xf32>
    %cst_803 = arith.constant 3.000000e+00 : f32
    %2218 = vector.broadcast %cst_803 : f32 to vector<8x128xf32>
    %2219 = arith.mulf %2211, %2218 : vector<8x128xf32>
    %2220 = arith.addf %2196, %2219 : vector<8x128xf32>
    %cst_804 = arith.constant -3.000000e+00 : f32
    %2221 = vector.broadcast %cst_804 : f32 to vector<8x128xf32>
    %2222 = arith.mulf %2211, %2221 : vector<8x128xf32>
    %2223 = arith.addf %2199, %2222 : vector<8x128xf32>
    %c0_805 = arith.constant 0 : index
    %c65_806 = arith.constant 65 : index
    %2224 = arith.index_cast %1 : i32 to index
    %c0_807 = arith.constant 0 : index
    %2225 = vector.load %arg2[%c0_805, %c65_806, %2224, %c0_807] : memref<1x81x8x128xf32, #tpu.memory_space<vmem>>, vector<1x1x8x128xf32>
    %2226 = vector.shape_cast %2225 : vector<1x1x8x128xf32> to vector<8x128xf32>
    %2227 = arith.subf %2226, %722 : vector<8x128xf32>
    %2228 = math.exp %2227 : vector<8x128xf32>
    %c4_i32_808 = arith.constant 4 : i32
    %2229 = vector.broadcast %c4_i32_808 : i32 to vector<8x128xi32>
    %2230 = arith.cmpi sge, %724, %2229 : vector<8x128xi32>
    %c5_i32_809 = arith.constant 5 : i32
    %2231 = vector.broadcast %c5_i32_809 : i32 to vector<8x128xi32>
    %2232 = arith.cmpi sle, %726, %2231 : vector<8x128xi32>
    %2233 = arith.andi %2230, %2232 : vector<8x128xi1>
    %cst_810 = arith.constant 0.000000e+00 : f32
    %2234 = vector.broadcast %cst_810 : f32 to vector<8x128xf32>
    %2235 = arith.select %2233, %2228, %2234 : vector<8x128xi1>, vector<8x128xf32>
    %2236 = arith.addf %2212, %2228 : vector<8x128xf32>
    %2237 = arith.mulf %2228, %2227 : vector<8x128xf32>
    %2238 = arith.addf %2214, %2237 : vector<8x128xf32>
    %2239 = arith.addf %2215, %2235 : vector<8x128xf32>
    %2240 = arith.mulf %2235, %2227 : vector<8x128xf32>
    %2241 = arith.addf %2217, %2240 : vector<8x128xf32>
    %cst_811 = arith.constant 3.000000e+00 : f32
    %2242 = vector.broadcast %cst_811 : f32 to vector<8x128xf32>
    %2243 = arith.mulf %2235, %2242 : vector<8x128xf32>
    %2244 = arith.addf %2220, %2243 : vector<8x128xf32>
    %cst_812 = arith.constant -2.000000e+00 : f32
    %2245 = vector.broadcast %cst_812 : f32 to vector<8x128xf32>
    %2246 = arith.mulf %2235, %2245 : vector<8x128xf32>
    %2247 = arith.addf %2223, %2246 : vector<8x128xf32>
    %c0_813 = arith.constant 0 : index
    %c66_814 = arith.constant 66 : index
    %2248 = arith.index_cast %1 : i32 to index
    %c0_815 = arith.constant 0 : index
    %2249 = vector.load %arg2[%c0_813, %c66_814, %2248, %c0_815] : memref<1x81x8x128xf32, #tpu.memory_space<vmem>>, vector<1x1x8x128xf32>
    %2250 = vector.shape_cast %2249 : vector<1x1x8x128xf32> to vector<8x128xf32>
    %2251 = arith.subf %2250, %722 : vector<8x128xf32>
    %2252 = math.exp %2251 : vector<8x128xf32>
    %c4_i32_816 = arith.constant 4 : i32
    %2253 = vector.broadcast %c4_i32_816 : i32 to vector<8x128xi32>
    %2254 = arith.cmpi sge, %724, %2253 : vector<8x128xi32>
    %c6_i32_817 = arith.constant 6 : i32
    %2255 = vector.broadcast %c6_i32_817 : i32 to vector<8x128xi32>
    %2256 = arith.cmpi sle, %726, %2255 : vector<8x128xi32>
    %2257 = arith.andi %2254, %2256 : vector<8x128xi1>
    %cst_818 = arith.constant 0.000000e+00 : f32
    %2258 = vector.broadcast %cst_818 : f32 to vector<8x128xf32>
    %2259 = arith.select %2257, %2252, %2258 : vector<8x128xi1>, vector<8x128xf32>
    %2260 = arith.addf %2236, %2252 : vector<8x128xf32>
    %2261 = arith.mulf %2252, %2251 : vector<8x128xf32>
    %2262 = arith.addf %2238, %2261 : vector<8x128xf32>
    %2263 = arith.addf %2239, %2259 : vector<8x128xf32>
    %2264 = arith.mulf %2259, %2251 : vector<8x128xf32>
    %2265 = arith.addf %2241, %2264 : vector<8x128xf32>
    %cst_819 = arith.constant 3.000000e+00 : f32
    %2266 = vector.broadcast %cst_819 : f32 to vector<8x128xf32>
    %2267 = arith.mulf %2259, %2266 : vector<8x128xf32>
    %2268 = arith.addf %2244, %2267 : vector<8x128xf32>
    %2269 = arith.subf %2247, %2259 : vector<8x128xf32>
    %c0_820 = arith.constant 0 : index
    %c67_821 = arith.constant 67 : index
    %2270 = arith.index_cast %1 : i32 to index
    %c0_822 = arith.constant 0 : index
    %2271 = vector.load %arg2[%c0_820, %c67_821, %2270, %c0_822] : memref<1x81x8x128xf32, #tpu.memory_space<vmem>>, vector<1x1x8x128xf32>
    %2272 = vector.shape_cast %2271 : vector<1x1x8x128xf32> to vector<8x128xf32>
    %2273 = arith.subf %2272, %722 : vector<8x128xf32>
    %2274 = math.exp %2273 : vector<8x128xf32>
    %c4_i32_823 = arith.constant 4 : i32
    %2275 = vector.broadcast %c4_i32_823 : i32 to vector<8x128xi32>
    %2276 = arith.cmpi sge, %724, %2275 : vector<8x128xi32>
    %c1_i32_824 = arith.constant 1 : i32
    %2277 = vector.broadcast %c1_i32_824 : i32 to vector<8x128xi32>
    %2278 = arith.cmpi sge, %726, %2277 : vector<8x128xi32>
    %c7_i32_825 = arith.constant 7 : i32
    %2279 = vector.broadcast %c7_i32_825 : i32 to vector<8x128xi32>
    %2280 = arith.cmpi sle, %726, %2279 : vector<8x128xi32>
    %2281 = arith.andi %2276, %2278 : vector<8x128xi1>
    %2282 = arith.andi %2281, %2280 : vector<8x128xi1>
    %cst_826 = arith.constant 0.000000e+00 : f32
    %2283 = vector.broadcast %cst_826 : f32 to vector<8x128xf32>
    %2284 = arith.select %2282, %2274, %2283 : vector<8x128xi1>, vector<8x128xf32>
    %2285 = arith.addf %2260, %2274 : vector<8x128xf32>
    %2286 = arith.mulf %2274, %2273 : vector<8x128xf32>
    %2287 = arith.addf %2262, %2286 : vector<8x128xf32>
    %2288 = arith.addf %2263, %2284 : vector<8x128xf32>
    %2289 = arith.mulf %2284, %2273 : vector<8x128xf32>
    %2290 = arith.addf %2265, %2289 : vector<8x128xf32>
    %cst_827 = arith.constant 3.000000e+00 : f32
    %2291 = vector.broadcast %cst_827 : f32 to vector<8x128xf32>
    %2292 = arith.mulf %2284, %2291 : vector<8x128xf32>
    %2293 = arith.addf %2268, %2292 : vector<8x128xf32>
    %c0_828 = arith.constant 0 : index
    %c68_829 = arith.constant 68 : index
    %2294 = arith.index_cast %1 : i32 to index
    %c0_830 = arith.constant 0 : index
    %2295 = vector.load %arg2[%c0_828, %c68_829, %2294, %c0_830] : memref<1x81x8x128xf32, #tpu.memory_space<vmem>>, vector<1x1x8x128xf32>
    %2296 = vector.shape_cast %2295 : vector<1x1x8x128xf32> to vector<8x128xf32>
    %2297 = arith.subf %2296, %722 : vector<8x128xf32>
    %2298 = math.exp %2297 : vector<8x128xf32>
    %c4_i32_831 = arith.constant 4 : i32
    %2299 = vector.broadcast %c4_i32_831 : i32 to vector<8x128xi32>
    %2300 = arith.cmpi sge, %724, %2299 : vector<8x128xi32>
    %c2_i32_832 = arith.constant 2 : i32
    %2301 = vector.broadcast %c2_i32_832 : i32 to vector<8x128xi32>
    %2302 = arith.cmpi sge, %726, %2301 : vector<8x128xi32>
    %2303 = arith.andi %2300, %2302 : vector<8x128xi1>
    %cst_833 = arith.constant 0.000000e+00 : f32
    %2304 = vector.broadcast %cst_833 : f32 to vector<8x128xf32>
    %2305 = arith.select %2303, %2298, %2304 : vector<8x128xi1>, vector<8x128xf32>
    %2306 = arith.addf %2285, %2298 : vector<8x128xf32>
    %2307 = arith.mulf %2298, %2297 : vector<8x128xf32>
    %2308 = arith.addf %2287, %2307 : vector<8x128xf32>
    %2309 = arith.addf %2288, %2305 : vector<8x128xf32>
    %2310 = arith.mulf %2305, %2297 : vector<8x128xf32>
    %2311 = arith.addf %2290, %2310 : vector<8x128xf32>
    %cst_834 = arith.constant 3.000000e+00 : f32
    %2312 = vector.broadcast %cst_834 : f32 to vector<8x128xf32>
    %2313 = arith.mulf %2305, %2312 : vector<8x128xf32>
    %2314 = arith.addf %2293, %2313 : vector<8x128xf32>
    %2315 = arith.addf %2269, %2305 : vector<8x128xf32>
    %c0_835 = arith.constant 0 : index
    %c69_836 = arith.constant 69 : index
    %2316 = arith.index_cast %1 : i32 to index
    %c0_837 = arith.constant 0 : index
    %2317 = vector.load %arg2[%c0_835, %c69_836, %2316, %c0_837] : memref<1x81x8x128xf32, #tpu.memory_space<vmem>>, vector<1x1x8x128xf32>
    %2318 = vector.shape_cast %2317 : vector<1x1x8x128xf32> to vector<8x128xf32>
    %2319 = arith.subf %2318, %722 : vector<8x128xf32>
    %2320 = math.exp %2319 : vector<8x128xf32>
    %c4_i32_838 = arith.constant 4 : i32
    %2321 = vector.broadcast %c4_i32_838 : i32 to vector<8x128xi32>
    %2322 = arith.cmpi sge, %724, %2321 : vector<8x128xi32>
    %c3_i32_839 = arith.constant 3 : i32
    %2323 = vector.broadcast %c3_i32_839 : i32 to vector<8x128xi32>
    %2324 = arith.cmpi sge, %726, %2323 : vector<8x128xi32>
    %2325 = arith.andi %2322, %2324 : vector<8x128xi1>
    %cst_840 = arith.constant 0.000000e+00 : f32
    %2326 = vector.broadcast %cst_840 : f32 to vector<8x128xf32>
    %2327 = arith.select %2325, %2320, %2326 : vector<8x128xi1>, vector<8x128xf32>
    %2328 = arith.addf %2306, %2320 : vector<8x128xf32>
    %2329 = arith.mulf %2320, %2319 : vector<8x128xf32>
    %2330 = arith.addf %2308, %2329 : vector<8x128xf32>
    %2331 = arith.addf %2309, %2327 : vector<8x128xf32>
    %2332 = arith.mulf %2327, %2319 : vector<8x128xf32>
    %2333 = arith.addf %2311, %2332 : vector<8x128xf32>
    %cst_841 = arith.constant 3.000000e+00 : f32
    %2334 = vector.broadcast %cst_841 : f32 to vector<8x128xf32>
    %2335 = arith.mulf %2327, %2334 : vector<8x128xf32>
    %2336 = arith.addf %2314, %2335 : vector<8x128xf32>
    %cst_842 = arith.constant 2.000000e+00 : f32
    %2337 = vector.broadcast %cst_842 : f32 to vector<8x128xf32>
    %2338 = arith.mulf %2327, %2337 : vector<8x128xf32>
    %2339 = arith.addf %2315, %2338 : vector<8x128xf32>
    %c0_843 = arith.constant 0 : index
    %c70_844 = arith.constant 70 : index
    %2340 = arith.index_cast %1 : i32 to index
    %c0_845 = arith.constant 0 : index
    %2341 = vector.load %arg2[%c0_843, %c70_844, %2340, %c0_845] : memref<1x81x8x128xf32, #tpu.memory_space<vmem>>, vector<1x1x8x128xf32>
    %2342 = vector.shape_cast %2341 : vector<1x1x8x128xf32> to vector<8x128xf32>
    %2343 = arith.subf %2342, %722 : vector<8x128xf32>
    %2344 = math.exp %2343 : vector<8x128xf32>
    %c4_i32_846 = arith.constant 4 : i32
    %2345 = vector.broadcast %c4_i32_846 : i32 to vector<8x128xi32>
    %2346 = arith.cmpi sge, %724, %2345 : vector<8x128xi32>
    %c4_i32_847 = arith.constant 4 : i32
    %2347 = vector.broadcast %c4_i32_847 : i32 to vector<8x128xi32>
    %2348 = arith.cmpi sge, %726, %2347 : vector<8x128xi32>
    %2349 = arith.andi %2346, %2348 : vector<8x128xi1>
    %cst_848 = arith.constant 0.000000e+00 : f32
    %2350 = vector.broadcast %cst_848 : f32 to vector<8x128xf32>
    %2351 = arith.select %2349, %2344, %2350 : vector<8x128xi1>, vector<8x128xf32>
    %2352 = arith.addf %2328, %2344 : vector<8x128xf32>
    %2353 = arith.mulf %2344, %2343 : vector<8x128xf32>
    %2354 = arith.addf %2330, %2353 : vector<8x128xf32>
    %2355 = arith.addf %2331, %2351 : vector<8x128xf32>
    %2356 = arith.mulf %2351, %2343 : vector<8x128xf32>
    %2357 = arith.addf %2333, %2356 : vector<8x128xf32>
    %cst_849 = arith.constant 3.000000e+00 : f32
    %2358 = vector.broadcast %cst_849 : f32 to vector<8x128xf32>
    %2359 = arith.mulf %2351, %2358 : vector<8x128xf32>
    %2360 = arith.addf %2336, %2359 : vector<8x128xf32>
    %cst_850 = arith.constant 3.000000e+00 : f32
    %2361 = vector.broadcast %cst_850 : f32 to vector<8x128xf32>
    %2362 = arith.mulf %2351, %2361 : vector<8x128xf32>
    %2363 = arith.addf %2339, %2362 : vector<8x128xf32>
    %c0_851 = arith.constant 0 : index
    %c71_852 = arith.constant 71 : index
    %2364 = arith.index_cast %1 : i32 to index
    %c0_853 = arith.constant 0 : index
    %2365 = vector.load %arg2[%c0_851, %c71_852, %2364, %c0_853] : memref<1x81x8x128xf32, #tpu.memory_space<vmem>>, vector<1x1x8x128xf32>
    %2366 = vector.shape_cast %2365 : vector<1x1x8x128xf32> to vector<8x128xf32>
    %2367 = arith.subf %2366, %722 : vector<8x128xf32>
    %2368 = math.exp %2367 : vector<8x128xf32>
    %c4_i32_854 = arith.constant 4 : i32
    %2369 = vector.broadcast %c4_i32_854 : i32 to vector<8x128xi32>
    %2370 = arith.cmpi sge, %724, %2369 : vector<8x128xi32>
    %c5_i32_855 = arith.constant 5 : i32
    %2371 = vector.broadcast %c5_i32_855 : i32 to vector<8x128xi32>
    %2372 = arith.cmpi sge, %726, %2371 : vector<8x128xi32>
    %2373 = arith.andi %2370, %2372 : vector<8x128xi1>
    %cst_856 = arith.constant 0.000000e+00 : f32
    %2374 = vector.broadcast %cst_856 : f32 to vector<8x128xf32>
    %2375 = arith.select %2373, %2368, %2374 : vector<8x128xi1>, vector<8x128xf32>
    %2376 = arith.addf %2352, %2368 : vector<8x128xf32>
    %2377 = arith.mulf %2368, %2367 : vector<8x128xf32>
    %2378 = arith.addf %2354, %2377 : vector<8x128xf32>
    %2379 = arith.addf %2355, %2375 : vector<8x128xf32>
    %2380 = arith.mulf %2375, %2367 : vector<8x128xf32>
    %2381 = arith.addf %2357, %2380 : vector<8x128xf32>
    %cst_857 = arith.constant 3.000000e+00 : f32
    %2382 = vector.broadcast %cst_857 : f32 to vector<8x128xf32>
    %2383 = arith.mulf %2375, %2382 : vector<8x128xf32>
    %2384 = arith.addf %2360, %2383 : vector<8x128xf32>
    %cst_858 = arith.constant 4.000000e+00 : f32
    %2385 = vector.broadcast %cst_858 : f32 to vector<8x128xf32>
    %2386 = arith.mulf %2375, %2385 : vector<8x128xf32>
    %2387 = arith.addf %2363, %2386 : vector<8x128xf32>
    %c0_859 = arith.constant 0 : index
    %c72_860 = arith.constant 72 : index
    %2388 = arith.index_cast %1 : i32 to index
    %c0_861 = arith.constant 0 : index
    %2389 = vector.load %arg2[%c0_859, %c72_860, %2388, %c0_861] : memref<1x81x8x128xf32, #tpu.memory_space<vmem>>, vector<1x1x8x128xf32>
    %2390 = vector.shape_cast %2389 : vector<1x1x8x128xf32> to vector<8x128xf32>
    %2391 = arith.subf %2390, %722 : vector<8x128xf32>
    %2392 = math.exp %2391 : vector<8x128xf32>
    %c5_i32_862 = arith.constant 5 : i32
    %2393 = vector.broadcast %c5_i32_862 : i32 to vector<8x128xi32>
    %2394 = arith.cmpi sge, %724, %2393 : vector<8x128xi32>
    %c3_i32_863 = arith.constant 3 : i32
    %2395 = vector.broadcast %c3_i32_863 : i32 to vector<8x128xi32>
    %2396 = arith.cmpi sle, %726, %2395 : vector<8x128xi32>
    %2397 = arith.andi %2394, %2396 : vector<8x128xi1>
    %cst_864 = arith.constant 0.000000e+00 : f32
    %2398 = vector.broadcast %cst_864 : f32 to vector<8x128xf32>
    %2399 = arith.select %2397, %2392, %2398 : vector<8x128xi1>, vector<8x128xf32>
    %2400 = arith.addf %2376, %2392 : vector<8x128xf32>
    %2401 = arith.mulf %2392, %2391 : vector<8x128xf32>
    %2402 = arith.addf %2378, %2401 : vector<8x128xf32>
    %2403 = arith.addf %2379, %2399 : vector<8x128xf32>
    %2404 = arith.mulf %2399, %2391 : vector<8x128xf32>
    %2405 = arith.addf %2381, %2404 : vector<8x128xf32>
    %cst_865 = arith.constant 4.000000e+00 : f32
    %2406 = vector.broadcast %cst_865 : f32 to vector<8x128xf32>
    %2407 = arith.mulf %2399, %2406 : vector<8x128xf32>
    %2408 = arith.addf %2384, %2407 : vector<8x128xf32>
    %cst_866 = arith.constant -4.000000e+00 : f32
    %2409 = vector.broadcast %cst_866 : f32 to vector<8x128xf32>
    %2410 = arith.mulf %2399, %2409 : vector<8x128xf32>
    %2411 = arith.addf %2387, %2410 : vector<8x128xf32>
    %c0_867 = arith.constant 0 : index
    %c73_868 = arith.constant 73 : index
    %2412 = arith.index_cast %1 : i32 to index
    %c0_869 = arith.constant 0 : index
    %2413 = vector.load %arg2[%c0_867, %c73_868, %2412, %c0_869] : memref<1x81x8x128xf32, #tpu.memory_space<vmem>>, vector<1x1x8x128xf32>
    %2414 = vector.shape_cast %2413 : vector<1x1x8x128xf32> to vector<8x128xf32>
    %2415 = arith.subf %2414, %722 : vector<8x128xf32>
    %2416 = math.exp %2415 : vector<8x128xf32>
    %c5_i32_870 = arith.constant 5 : i32
    %2417 = vector.broadcast %c5_i32_870 : i32 to vector<8x128xi32>
    %2418 = arith.cmpi sge, %724, %2417 : vector<8x128xi32>
    %c4_i32_871 = arith.constant 4 : i32
    %2419 = vector.broadcast %c4_i32_871 : i32 to vector<8x128xi32>
    %2420 = arith.cmpi sle, %726, %2419 : vector<8x128xi32>
    %2421 = arith.andi %2418, %2420 : vector<8x128xi1>
    %cst_872 = arith.constant 0.000000e+00 : f32
    %2422 = vector.broadcast %cst_872 : f32 to vector<8x128xf32>
    %2423 = arith.select %2421, %2416, %2422 : vector<8x128xi1>, vector<8x128xf32>
    %2424 = arith.addf %2400, %2416 : vector<8x128xf32>
    %2425 = arith.mulf %2416, %2415 : vector<8x128xf32>
    %2426 = arith.addf %2402, %2425 : vector<8x128xf32>
    %2427 = arith.addf %2403, %2423 : vector<8x128xf32>
    %2428 = arith.mulf %2423, %2415 : vector<8x128xf32>
    %2429 = arith.addf %2405, %2428 : vector<8x128xf32>
    %cst_873 = arith.constant 4.000000e+00 : f32
    %2430 = vector.broadcast %cst_873 : f32 to vector<8x128xf32>
    %2431 = arith.mulf %2423, %2430 : vector<8x128xf32>
    %2432 = arith.addf %2408, %2431 : vector<8x128xf32>
    %cst_874 = arith.constant -3.000000e+00 : f32
    %2433 = vector.broadcast %cst_874 : f32 to vector<8x128xf32>
    %2434 = arith.mulf %2423, %2433 : vector<8x128xf32>
    %2435 = arith.addf %2411, %2434 : vector<8x128xf32>
    %c0_875 = arith.constant 0 : index
    %c74_876 = arith.constant 74 : index
    %2436 = arith.index_cast %1 : i32 to index
    %c0_877 = arith.constant 0 : index
    %2437 = vector.load %arg2[%c0_875, %c74_876, %2436, %c0_877] : memref<1x81x8x128xf32, #tpu.memory_space<vmem>>, vector<1x1x8x128xf32>
    %2438 = vector.shape_cast %2437 : vector<1x1x8x128xf32> to vector<8x128xf32>
    %2439 = arith.subf %2438, %722 : vector<8x128xf32>
    %2440 = math.exp %2439 : vector<8x128xf32>
    %c5_i32_878 = arith.constant 5 : i32
    %2441 = vector.broadcast %c5_i32_878 : i32 to vector<8x128xi32>
    %2442 = arith.cmpi sge, %724, %2441 : vector<8x128xi32>
    %c5_i32_879 = arith.constant 5 : i32
    %2443 = vector.broadcast %c5_i32_879 : i32 to vector<8x128xi32>
    %2444 = arith.cmpi sle, %726, %2443 : vector<8x128xi32>
    %2445 = arith.andi %2442, %2444 : vector<8x128xi1>
    %cst_880 = arith.constant 0.000000e+00 : f32
    %2446 = vector.broadcast %cst_880 : f32 to vector<8x128xf32>
    %2447 = arith.select %2445, %2440, %2446 : vector<8x128xi1>, vector<8x128xf32>
    %2448 = arith.addf %2424, %2440 : vector<8x128xf32>
    %2449 = arith.mulf %2440, %2439 : vector<8x128xf32>
    %2450 = arith.addf %2426, %2449 : vector<8x128xf32>
    %2451 = arith.addf %2427, %2447 : vector<8x128xf32>
    %2452 = arith.mulf %2447, %2439 : vector<8x128xf32>
    %2453 = arith.addf %2429, %2452 : vector<8x128xf32>
    %cst_881 = arith.constant 4.000000e+00 : f32
    %2454 = vector.broadcast %cst_881 : f32 to vector<8x128xf32>
    %2455 = arith.mulf %2447, %2454 : vector<8x128xf32>
    %2456 = arith.addf %2432, %2455 : vector<8x128xf32>
    %cst_882 = arith.constant -2.000000e+00 : f32
    %2457 = vector.broadcast %cst_882 : f32 to vector<8x128xf32>
    %2458 = arith.mulf %2447, %2457 : vector<8x128xf32>
    %2459 = arith.addf %2435, %2458 : vector<8x128xf32>
    %c0_883 = arith.constant 0 : index
    %c75_884 = arith.constant 75 : index
    %2460 = arith.index_cast %1 : i32 to index
    %c0_885 = arith.constant 0 : index
    %2461 = vector.load %arg2[%c0_883, %c75_884, %2460, %c0_885] : memref<1x81x8x128xf32, #tpu.memory_space<vmem>>, vector<1x1x8x128xf32>
    %2462 = vector.shape_cast %2461 : vector<1x1x8x128xf32> to vector<8x128xf32>
    %2463 = arith.subf %2462, %722 : vector<8x128xf32>
    %2464 = math.exp %2463 : vector<8x128xf32>
    %c5_i32_886 = arith.constant 5 : i32
    %2465 = vector.broadcast %c5_i32_886 : i32 to vector<8x128xi32>
    %2466 = arith.cmpi sge, %724, %2465 : vector<8x128xi32>
    %c6_i32_887 = arith.constant 6 : i32
    %2467 = vector.broadcast %c6_i32_887 : i32 to vector<8x128xi32>
    %2468 = arith.cmpi sle, %726, %2467 : vector<8x128xi32>
    %2469 = arith.andi %2466, %2468 : vector<8x128xi1>
    %cst_888 = arith.constant 0.000000e+00 : f32
    %2470 = vector.broadcast %cst_888 : f32 to vector<8x128xf32>
    %2471 = arith.select %2469, %2464, %2470 : vector<8x128xi1>, vector<8x128xf32>
    %2472 = arith.addf %2448, %2464 : vector<8x128xf32>
    %2473 = arith.mulf %2464, %2463 : vector<8x128xf32>
    %2474 = arith.addf %2450, %2473 : vector<8x128xf32>
    %2475 = arith.addf %2451, %2471 : vector<8x128xf32>
    %2476 = arith.mulf %2471, %2463 : vector<8x128xf32>
    %2477 = arith.addf %2453, %2476 : vector<8x128xf32>
    %cst_889 = arith.constant 4.000000e+00 : f32
    %2478 = vector.broadcast %cst_889 : f32 to vector<8x128xf32>
    %2479 = arith.mulf %2471, %2478 : vector<8x128xf32>
    %2480 = arith.addf %2456, %2479 : vector<8x128xf32>
    %2481 = arith.subf %2459, %2471 : vector<8x128xf32>
    %c0_890 = arith.constant 0 : index
    %c76_891 = arith.constant 76 : index
    %2482 = arith.index_cast %1 : i32 to index
    %c0_892 = arith.constant 0 : index
    %2483 = vector.load %arg2[%c0_890, %c76_891, %2482, %c0_892] : memref<1x81x8x128xf32, #tpu.memory_space<vmem>>, vector<1x1x8x128xf32>
    %2484 = vector.shape_cast %2483 : vector<1x1x8x128xf32> to vector<8x128xf32>
    %2485 = arith.subf %2484, %722 : vector<8x128xf32>
    %2486 = math.exp %2485 : vector<8x128xf32>
    %c5_i32_893 = arith.constant 5 : i32
    %2487 = vector.broadcast %c5_i32_893 : i32 to vector<8x128xi32>
    %2488 = arith.cmpi sge, %724, %2487 : vector<8x128xi32>
    %c1_i32_894 = arith.constant 1 : i32
    %2489 = vector.broadcast %c1_i32_894 : i32 to vector<8x128xi32>
    %2490 = arith.cmpi sge, %726, %2489 : vector<8x128xi32>
    %c7_i32_895 = arith.constant 7 : i32
    %2491 = vector.broadcast %c7_i32_895 : i32 to vector<8x128xi32>
    %2492 = arith.cmpi sle, %726, %2491 : vector<8x128xi32>
    %2493 = arith.andi %2488, %2490 : vector<8x128xi1>
    %2494 = arith.andi %2493, %2492 : vector<8x128xi1>
    %cst_896 = arith.constant 0.000000e+00 : f32
    %2495 = vector.broadcast %cst_896 : f32 to vector<8x128xf32>
    %2496 = arith.select %2494, %2486, %2495 : vector<8x128xi1>, vector<8x128xf32>
    %2497 = arith.addf %2472, %2486 : vector<8x128xf32>
    %2498 = arith.mulf %2486, %2485 : vector<8x128xf32>
    %2499 = arith.addf %2474, %2498 : vector<8x128xf32>
    %2500 = arith.addf %2475, %2496 : vector<8x128xf32>
    %2501 = arith.mulf %2496, %2485 : vector<8x128xf32>
    %2502 = arith.addf %2477, %2501 : vector<8x128xf32>
    %cst_897 = arith.constant 4.000000e+00 : f32
    %2503 = vector.broadcast %cst_897 : f32 to vector<8x128xf32>
    %2504 = arith.mulf %2496, %2503 : vector<8x128xf32>
    %2505 = arith.addf %2480, %2504 : vector<8x128xf32>
    %c0_898 = arith.constant 0 : index
    %c77_899 = arith.constant 77 : index
    %2506 = arith.index_cast %1 : i32 to index
    %c0_900 = arith.constant 0 : index
    %2507 = vector.load %arg2[%c0_898, %c77_899, %2506, %c0_900] : memref<1x81x8x128xf32, #tpu.memory_space<vmem>>, vector<1x1x8x128xf32>
    %2508 = vector.shape_cast %2507 : vector<1x1x8x128xf32> to vector<8x128xf32>
    %2509 = arith.subf %2508, %722 : vector<8x128xf32>
    %2510 = math.exp %2509 : vector<8x128xf32>
    %c5_i32_901 = arith.constant 5 : i32
    %2511 = vector.broadcast %c5_i32_901 : i32 to vector<8x128xi32>
    %2512 = arith.cmpi sge, %724, %2511 : vector<8x128xi32>
    %c2_i32_902 = arith.constant 2 : i32
    %2513 = vector.broadcast %c2_i32_902 : i32 to vector<8x128xi32>
    %2514 = arith.cmpi sge, %726, %2513 : vector<8x128xi32>
    %2515 = arith.andi %2512, %2514 : vector<8x128xi1>
    %cst_903 = arith.constant 0.000000e+00 : f32
    %2516 = vector.broadcast %cst_903 : f32 to vector<8x128xf32>
    %2517 = arith.select %2515, %2510, %2516 : vector<8x128xi1>, vector<8x128xf32>
    %2518 = arith.addf %2497, %2510 : vector<8x128xf32>
    %2519 = arith.mulf %2510, %2509 : vector<8x128xf32>
    %2520 = arith.addf %2499, %2519 : vector<8x128xf32>
    %2521 = arith.addf %2500, %2517 : vector<8x128xf32>
    %2522 = arith.mulf %2517, %2509 : vector<8x128xf32>
    %2523 = arith.addf %2502, %2522 : vector<8x128xf32>
    %cst_904 = arith.constant 4.000000e+00 : f32
    %2524 = vector.broadcast %cst_904 : f32 to vector<8x128xf32>
    %2525 = arith.mulf %2517, %2524 : vector<8x128xf32>
    %2526 = arith.addf %2505, %2525 : vector<8x128xf32>
    %2527 = arith.addf %2481, %2517 : vector<8x128xf32>
    %c0_905 = arith.constant 0 : index
    %c78_906 = arith.constant 78 : index
    %2528 = arith.index_cast %1 : i32 to index
    %c0_907 = arith.constant 0 : index
    %2529 = vector.load %arg2[%c0_905, %c78_906, %2528, %c0_907] : memref<1x81x8x128xf32, #tpu.memory_space<vmem>>, vector<1x1x8x128xf32>
    %2530 = vector.shape_cast %2529 : vector<1x1x8x128xf32> to vector<8x128xf32>
    %2531 = arith.subf %2530, %722 : vector<8x128xf32>
    %2532 = math.exp %2531 : vector<8x128xf32>
    %c5_i32_908 = arith.constant 5 : i32
    %2533 = vector.broadcast %c5_i32_908 : i32 to vector<8x128xi32>
    %2534 = arith.cmpi sge, %724, %2533 : vector<8x128xi32>
    %c3_i32_909 = arith.constant 3 : i32
    %2535 = vector.broadcast %c3_i32_909 : i32 to vector<8x128xi32>
    %2536 = arith.cmpi sge, %726, %2535 : vector<8x128xi32>
    %2537 = arith.andi %2534, %2536 : vector<8x128xi1>
    %cst_910 = arith.constant 0.000000e+00 : f32
    %2538 = vector.broadcast %cst_910 : f32 to vector<8x128xf32>
    %2539 = arith.select %2537, %2532, %2538 : vector<8x128xi1>, vector<8x128xf32>
    %2540 = arith.addf %2518, %2532 : vector<8x128xf32>
    %2541 = arith.mulf %2532, %2531 : vector<8x128xf32>
    %2542 = arith.addf %2520, %2541 : vector<8x128xf32>
    %2543 = arith.addf %2521, %2539 : vector<8x128xf32>
    %2544 = arith.mulf %2539, %2531 : vector<8x128xf32>
    %2545 = arith.addf %2523, %2544 : vector<8x128xf32>
    %cst_911 = arith.constant 4.000000e+00 : f32
    %2546 = vector.broadcast %cst_911 : f32 to vector<8x128xf32>
    %2547 = arith.mulf %2539, %2546 : vector<8x128xf32>
    %2548 = arith.addf %2526, %2547 : vector<8x128xf32>
    %cst_912 = arith.constant 2.000000e+00 : f32
    %2549 = vector.broadcast %cst_912 : f32 to vector<8x128xf32>
    %2550 = arith.mulf %2539, %2549 : vector<8x128xf32>
    %2551 = arith.addf %2527, %2550 : vector<8x128xf32>
    %c0_913 = arith.constant 0 : index
    %c79_914 = arith.constant 79 : index
    %2552 = arith.index_cast %1 : i32 to index
    %c0_915 = arith.constant 0 : index
    %2553 = vector.load %arg2[%c0_913, %c79_914, %2552, %c0_915] : memref<1x81x8x128xf32, #tpu.memory_space<vmem>>, vector<1x1x8x128xf32>
    %2554 = vector.shape_cast %2553 : vector<1x1x8x128xf32> to vector<8x128xf32>
    %2555 = arith.subf %2554, %722 : vector<8x128xf32>
    %2556 = math.exp %2555 : vector<8x128xf32>
    %c5_i32_916 = arith.constant 5 : i32
    %2557 = vector.broadcast %c5_i32_916 : i32 to vector<8x128xi32>
    %2558 = arith.cmpi sge, %724, %2557 : vector<8x128xi32>
    %c4_i32_917 = arith.constant 4 : i32
    %2559 = vector.broadcast %c4_i32_917 : i32 to vector<8x128xi32>
    %2560 = arith.cmpi sge, %726, %2559 : vector<8x128xi32>
    %2561 = arith.andi %2558, %2560 : vector<8x128xi1>
    %cst_918 = arith.constant 0.000000e+00 : f32
    %2562 = vector.broadcast %cst_918 : f32 to vector<8x128xf32>
    %2563 = arith.select %2561, %2556, %2562 : vector<8x128xi1>, vector<8x128xf32>
    %2564 = arith.addf %2540, %2556 : vector<8x128xf32>
    %2565 = arith.mulf %2556, %2555 : vector<8x128xf32>
    %2566 = arith.addf %2542, %2565 : vector<8x128xf32>
    %2567 = arith.addf %2543, %2563 : vector<8x128xf32>
    %2568 = arith.mulf %2563, %2555 : vector<8x128xf32>
    %2569 = arith.addf %2545, %2568 : vector<8x128xf32>
    %cst_919 = arith.constant 4.000000e+00 : f32
    %2570 = vector.broadcast %cst_919 : f32 to vector<8x128xf32>
    %2571 = arith.mulf %2563, %2570 : vector<8x128xf32>
    %2572 = arith.addf %2548, %2571 : vector<8x128xf32>
    %cst_920 = arith.constant 3.000000e+00 : f32
    %2573 = vector.broadcast %cst_920 : f32 to vector<8x128xf32>
    %2574 = arith.mulf %2563, %2573 : vector<8x128xf32>
    %2575 = arith.addf %2551, %2574 : vector<8x128xf32>
    %c0_921 = arith.constant 0 : index
    %c80_922 = arith.constant 80 : index
    %2576 = arith.index_cast %1 : i32 to index
    %c0_923 = arith.constant 0 : index
    %2577 = vector.load %arg2[%c0_921, %c80_922, %2576, %c0_923] : memref<1x81x8x128xf32, #tpu.memory_space<vmem>>, vector<1x1x8x128xf32>
    %2578 = vector.shape_cast %2577 : vector<1x1x8x128xf32> to vector<8x128xf32>
    %2579 = arith.subf %2578, %722 : vector<8x128xf32>
    %2580 = math.exp %2579 : vector<8x128xf32>
    %c5_i32_924 = arith.constant 5 : i32
    %2581 = vector.broadcast %c5_i32_924 : i32 to vector<8x128xi32>
    %2582 = arith.cmpi sge, %724, %2581 : vector<8x128xi32>
    %c5_i32_925 = arith.constant 5 : i32
    %2583 = vector.broadcast %c5_i32_925 : i32 to vector<8x128xi32>
    %2584 = arith.cmpi sge, %726, %2583 : vector<8x128xi32>
    %2585 = arith.andi %2582, %2584 : vector<8x128xi1>
    %cst_926 = arith.constant 0.000000e+00 : f32
    %2586 = vector.broadcast %cst_926 : f32 to vector<8x128xf32>
    %2587 = arith.select %2585, %2580, %2586 : vector<8x128xi1>, vector<8x128xf32>
    %2588 = arith.addf %2564, %2580 : vector<8x128xf32>
    %2589 = arith.mulf %2580, %2579 : vector<8x128xf32>
    %2590 = arith.addf %2566, %2589 : vector<8x128xf32>
    %2591 = arith.addf %2567, %2587 : vector<8x128xf32>
    %2592 = arith.mulf %2587, %2579 : vector<8x128xf32>
    %2593 = arith.addf %2569, %2592 : vector<8x128xf32>
    %cst_927 = arith.constant 4.000000e+00 : f32
    %2594 = vector.broadcast %cst_927 : f32 to vector<8x128xf32>
    %2595 = arith.mulf %2587, %2594 : vector<8x128xf32>
    %2596 = arith.addf %2572, %2595 : vector<8x128xf32>
    %cst_928 = arith.constant 4.000000e+00 : f32
    %2597 = vector.broadcast %cst_928 : f32 to vector<8x128xf32>
    %2598 = arith.mulf %2587, %2597 : vector<8x128xf32>
    %2599 = arith.addf %2575, %2598 : vector<8x128xf32>
    %cst_929 = arith.constant 1.000000e+00 : f32
    %2600 = vector.broadcast %cst_929 : f32 to vector<8x128xf32>
    %2601 = arith.divf %2600, %2591 : vector<8x128xf32>
    %cst_930 = arith.constant 1.000000e+00 : f32
    %2602 = vector.broadcast %cst_930 : f32 to vector<8x128xf32>
    %2603 = arith.divf %2602, %2588 : vector<8x128xf32>
    %2604 = arith.mulf %2596, %2601 : vector<8x128xf32>
    %c0_931 = arith.constant 0 : index
    %c0_932 = arith.constant 0 : index
    %2605 = arith.index_cast %1 : i32 to index
    %c0_933 = arith.constant 0 : index
    %2606 = vector.load %arg3[%c0_931, %c0_932, %2605, %c0_933] : memref<1x4x8x128xf32, #tpu.memory_space<vmem>>, vector<1x1x8x128xf32>
    %2607 = vector.shape_cast %2606 : vector<1x1x8x128xf32> to vector<8x128xf32>
    %2608 = vector.shape_cast %2604 : vector<8x128xf32> to vector<1x1x8x128xf32>
    tpu.vector_store %arg3[%c0_931, %c0_932, %2605, %c0_933], %2608 {strides = array<i32>} : memref<1x4x8x128xf32, #tpu.memory_space<vmem>>, vector<1x1x8x128xf32>,
    %2609 = arith.mulf %2599, %2601 : vector<8x128xf32>
    %c0_934 = arith.constant 0 : index
    %c1_935 = arith.constant 1 : index
    %2610 = arith.index_cast %1 : i32 to index
    %c0_936 = arith.constant 0 : index
    %2611 = vector.load %arg3[%c0_934, %c1_935, %2610, %c0_936] : memref<1x4x8x128xf32, #tpu.memory_space<vmem>>, vector<1x1x8x128xf32>
    %2612 = vector.shape_cast %2611 : vector<1x1x8x128xf32> to vector<8x128xf32>
    %2613 = vector.shape_cast %2609 : vector<8x128xf32> to vector<1x1x8x128xf32>
    tpu.vector_store %arg3[%c0_934, %c1_935, %2610, %c0_936], %2613 {strides = array<i32>} : memref<1x4x8x128xf32, #tpu.memory_space<vmem>>, vector<1x1x8x128xf32>,
    %2614 = math.log %2591 : vector<8x128xf32>
    %2615 = arith.mulf %2593, %2601 : vector<8x128xf32>
    %2616 = arith.subf %2614, %2615 : vector<8x128xf32>
    %cst_937 = arith.constant 0.256949157 : f32
    %2617 = vector.broadcast %cst_937 : f32 to vector<8x128xf32>
    %2618 = arith.mulf %2616, %2617 : vector<8x128xf32>
    %c0_938 = arith.constant 0 : index
    %c2_939 = arith.constant 2 : index
    %2619 = arith.index_cast %1 : i32 to index
    %c0_940 = arith.constant 0 : index
    %2620 = vector.load %arg3[%c0_938, %c2_939, %2619, %c0_940] : memref<1x4x8x128xf32, #tpu.memory_space<vmem>>, vector<1x1x8x128xf32>
    %2621 = vector.shape_cast %2620 : vector<1x1x8x128xf32> to vector<8x128xf32>
    %2622 = vector.shape_cast %2618 : vector<8x128xf32> to vector<1x1x8x128xf32>
    tpu.vector_store %arg3[%c0_938, %c2_939, %2619, %c0_940], %2622 {strides = array<i32>} : memref<1x4x8x128xf32, #tpu.memory_space<vmem>>, vector<1x1x8x128xf32>,
    %2623 = math.log %2588 : vector<8x128xf32>
    %2624 = arith.mulf %2590, %2603 : vector<8x128xf32>
    %2625 = arith.subf %2623, %2624 : vector<8x128xf32>
    %cst_941 = arith.constant 0.227559805 : f32
    %2626 = vector.broadcast %cst_941 : f32 to vector<8x128xf32>
    %2627 = arith.mulf %2625, %2626 : vector<8x128xf32>
    %c0_942 = arith.constant 0 : index
    %c3_943 = arith.constant 3 : index
    %2628 = arith.index_cast %1 : i32 to index
    %c0_944 = arith.constant 0 : index
    %2629 = vector.load %arg3[%c0_942, %c3_943, %2628, %c0_944] : memref<1x4x8x128xf32, #tpu.memory_space<vmem>>, vector<1x1x8x128xf32>
    %2630 = vector.shape_cast %2629 : vector<1x1x8x128xf32> to vector<8x128xf32>
    %2631 = vector.shape_cast %2627 : vector<8x128xf32> to vector<1x1x8x128xf32>
    tpu.vector_store %arg3[%c0_942, %c3_943, %2628, %c0_944], %2631 {strides = array<i32>} : memref<1x4x8x128xf32, #tpu.memory_space<vmem>>, vector<1x1x8x128xf32>,
    %c1_i32_945 = arith.constant 1 : i32
    return
  }
  func.func @transform_0(%arg0: i32, %arg1: i32) -> (i32, i32, i32, i32) {
    %c0_i32 = arith.constant 0 : i32
    %c0_i32_0 = arith.constant 0 : i32
    %c0_i32_1 = arith.constant 0 : i32
    return %arg0, %c0_i32, %arg1, %c0_i32_0 : i32, i32, i32, i32
  }
  func.func @transform_1(%arg0: i32, %arg1: i32) -> (i32, i32, i32, i32) {
    %c0_i32 = arith.constant 0 : i32
    %c0_i32_0 = arith.constant 0 : i32
    %c0_i32_1 = arith.constant 0 : i32
    return %arg0, %c0_i32, %arg1, %c0_i32_0 : i32, i32, i32, i32
  }
}

</mosaic_0001>

<llo_original>
// kernel: tpu_custom_call.1
$region0: #{tpu_custom_call.1}
  #allocation0 [shape = 'u32[]', space=smem, size = 0x4, offset = 0x4, fixed_abs, tag = 'smem constant byte address 0x4 - core index']
  #allocation1 [shape = 'u32[144,128]{1,0:T(1,128)}', space=vmem, size = 0x12000, scoped, tag = 'internal scratch']
  %s0 = inlined_call_operand.hbm [shape: f32[2,81,8,128], index: 0, kind: input, shape index: {}]
  %s1 = inlined_call_operand.hbm [shape: f32[2,4,8,128], index: 1, kind: output, shape index: {}]
  %s2 = sld [smem:[#allocation0]]
  $region41: #{tpu_custom_call.1} parent=0
    _
  %s4 = ssub.s32 1, %s2
  %s5 = scalar_select 0, %s4, %s2
  $region1: #{tpu_custom_call.1} parent=0
    #allocation2 [shape = 'u8[663552]{0}', space=vmem, size = 0xa2000, scoped, tag = 'input window, operand 0']
    #allocation3 [shape = 's32[2]{0}', space=sflag, size = 0x8, scoped, tag = 'scoped memory for tpu_custom_call.1']
    #allocation4 [shape = 's32[2]{0}', space=sflag, size = 0x8, scoped, tag = 'scoped memory for tpu_custom_call.1']
    #allocation5 [shape = 'u8[32768]{0}', space=vmem, size = 0x8000, scoped, tag = 'output window, operand 0']
    %6 = vsyncpa [#allocation3], 0
    %s7 = scalar_lea.sflag [#allocation3], 1
    %8 = vsyncpa %s7, 0
    %9 = vsyncpa [#allocation4], 0
    %s10 = scalar_lea.sflag [#allocation4], 1
    %11 = vsyncpa %s10, 0
    loop: start=0, step=1, limit=4
    $region2: #{tpu_custom_call.1} parent=1 // loop_pre_header
      _
    $region3: #{tpu_custom_call.1} parent=1 // loop_header
      %s13 = sphi 0, %s17
      %p14 = scmp.ge.s32.totalorder %s13, 4
      %s20 = sphi 0, %s32
      %s21 = sphi 0, %s28
      %s22 = sphi 0, %s20
      %s23 = sphi 0, %s21
      %s24 = sphi 0, %s22
      %s25 = sphi 0, %s23
      %s37 = sphi 0, %s39
      %s40 = sphi 0, %s37
      %s41 = sphi 0, %s40
      %s57 = sphi 0, %s41
      %s65 = sphi 0, %s67
      %s68 = sphi 0, %s65
      %s69 = sphi 0, %s68
      %s85 = sphi 0, %s69
    $region4: #{tpu_custom_call.1} parent=1 // loop_header_branch
      %16 = sbr.rel (%p14) target = $region8
    $region5: #{tpu_custom_call.1} parent=1 // loop_body
      %s18 = ssub.s32 %s13, 1
      %s19 = ssub.s32 %s13, 2
      %s26 = sadd.s32 1, %s21
      %p27 = scmp.ge.s32.totalorder %s26, 1
      %s28 = scalar_select %p27, 0, %s26
      %s29 = sadd.s32 1, %s20
      %s30 = scalar_select %p27, %s29, %s20
      %p31 = scmp.ge.s32.totalorder %s30, 2
      %s32 = scalar_select %p31, 0, %s30
      %s33 = ssub.s32 %s20, %s32
      %s34 = ssub.s32 %s21, %s28
      %s35 = sor.u32 %s33, %s34
      %p36 = scmp.eq.s32.totalorder %s35, 0
      %s38 = sadd.s32 %s37, 1
      %s39 = scalar_select %p36, %s37, %s38
      %p42 = pneg %p36
      %p43 = scmp.eq.s32.totalorder %s13, 1
      %p44 = por %p42, %p43
      %p45 = scmp.ne.s32.totalorder %s37, %s40
      %p46 = scmp.eq.s32.totalorder %s13, 0
      %p47 = por %p45, %p46
      %p48 = scmp.ne.s32.totalorder %s37, %s40
      %p49 = scmp.eq.s32.totalorder %s18, 1
      %p50 = por %p48, %p49
      %p51 = scmp.ne.s32.totalorder %s40, %s41
      %p52 = scmp.eq.s32.totalorder %s18, 0
      %p53 = por %p51, %p52
      %p54 = scmp.ne.s32.totalorder %s40, %s41
      %p55 = scmp.eq.s32.totalorder %s19, 1
      %p56 = por %p54, %p55
      %p58 = scmp.ne.s32.totalorder %s41, %s57
      %p59 = scmp.eq.s32.totalorder %s19, 0
      %p60 = por %p58, %p59
      %s61 = ssub.s32 %s20, %s32
      %s62 = ssub.s32 %s21, %s28
      %s63 = sor.u32 %s61, %s62
      %p64 = scmp.eq.s32.totalorder %s63, 0
      %s66 = sadd.s32 %s65, 1
      %s67 = scalar_select %p64, %s65, %s66
      %p70 = pneg %p64
      %p71 = scmp.eq.s32.totalorder %s13, 1
      %p72 = por %p70, %p71
      %p73 = scmp.ne.s32.totalorder %s65, %s68
      %p74 = scmp.eq.s32.totalorder %s13, 0
      %p75 = por %p73, %p74
      %p76 = scmp.ne.s32.totalorder %s65, %s68
      %p77 = scmp.eq.s32.totalorder %s18, 1
      %p78 = por %p76, %p77
      %p79 = scmp.ne.s32.totalorder %s68, %s69
      %p80 = scmp.eq.s32.totalorder %s18, 0
      %p81 = por %p79, %p80
      %p82 = scmp.ne.s32.totalorder %s68, %s69
      %p83 = scmp.eq.s32.totalorder %s19, 1
      %p84 = por %p82, %p83
      %p86 = scmp.ne.s32.totalorder %s69, %s85
      %p87 = scmp.eq.s32.totalorder %s19, 0
      %p88 = por %p86, %p87
      %p89 = scmp.le.s32.totalorder 1, %s13
      %p90 = scmp.lt.s32.totalorder %s13, 3
      %p91 = pnand %p89, %p90
      %p92 = pneg %p91
      // Predicated region
      $region9: #{tpu_custom_call.1} parent=5 // pred_check
        _
      $region10: #{tpu_custom_call.1} parent=5 // pred_check_branch
        %94 = sbr.rel (%p91) target = $region12
      $region11: #{tpu_custom_call.1} parent=5 // pred_region
        %s95 = ssub.s32 %s13, 1
      $region12: #{tpu_custom_call.1} parent=5 // pred_fallthru
        _
      %p96 = scmp.lt.s32.totalorder %s13, 2
      // Predicated region
      $region13: #{tpu_custom_call.1} parent=5 // pred_check
        %p97 = pneg %p96
      $region14: #{tpu_custom_call.1} parent=5 // pred_check_branch
        %99 = sbr.rel (%p97) target = $region16
      $region15: #{tpu_custom_call.1} parent=5 // pred_region
        // Predicated region
        $region17: #{tpu_custom_call.1} parent=15 // pred_check
          %p100 = pneg %p47
        $region18: #{tpu_custom_call.1} parent=15 // pred_check_branch
          %102 = sbr.rel (%p100) target = $region20
        $region19: #{tpu_custom_call.1} parent=15 // pred_region
          %s103 = sand.u32 %s37, 1
          %s104 = scalar_lea.sflag [#allocation3], %s103
          %s105 = sand.u32 %s37, 1
          %s106 = smul.addr %s105, 648
          %s107 = scalar_lea.vmem [#allocation2], %s106
          %s109 = ssub.s32 10368, 10368
          %110 = vsyncadd %s104, %s109
          %s111 = smul.addr %s20, 81
          %s112 = sadd.s32 %s21, %s111
          %s113 = smul.addr %s112, 128
          %s114 = scalar_lea.hbm %s0, %s113
          %s115 = sshll.u32 %s107, 4
          %s116 = int_to_ptr.vmem [resolvable:$true] %s115
          %121 = dma.hbm_to_vmem [thread:$0]  %s114, 10368, %s116, %s104, 128, 128, 8
        $region20: #{tpu_custom_call.1} parent=15 // pred_fallthru
          _
      $region16: #{tpu_custom_call.1} parent=5 // pred_fallthru
        _
      %p122 = scmp.le.s32.totalorder 1, %s13
      %p123 = scmp.lt.s32.totalorder %s13, 3
      %p124 = pnand %p122, %p123
      %p125 = pneg %p124
      // Predicated region
      $region21: #{tpu_custom_call.1} parent=5 // pred_check
        _
      $region22: #{tpu_custom_call.1} parent=5 // pred_check_branch
        %127 = sbr.rel (%p124) target = $region24
      $region23: #{tpu_custom_call.1} parent=5 // pred_region
        %s128 = ssub.s32 %s13, 1
        %s129 = sand.u32 %s40, 1
        %s130 = scalar_lea.sflag [#allocation3], %s129
        %s131 = sand.u32 %s40, 1
        %s132 = smul.addr %s131, 648
        %s133 = scalar_lea.vmem [#allocation2], %s132
        // Predicated region
        $region25: #{tpu_custom_call.1} parent=23 // pred_check
          %p134 = pneg %p53
        $region26: #{tpu_custom_call.1} parent=23 // pred_check_branch
          %136 = sbr.rel (%p134) target = $region28
        $region27: #{tpu_custom_call.1} parent=23 // pred_region
          %137 = dma.done %s130, 10368
        $region28: #{tpu_custom_call.1} parent=23 // pred_fallthru
          _
        %s138 = sand.u32 %s40, 1
        %s139 = scalar_lea.sflag [#allocation3], %s138
        %s140 = sand.u32 %s40, 1
        %s141 = smul.addr %s140, 648
        %s142 = scalar_lea.vmem [#allocation2], %s141
        %p143 = pneg %p53
        %p144 = pneg %p50
        %p145 = pneg %p81
        %p146 = pneg %p78
        %s147 = sand.u32 %s68, 1
        %s148 = scalar_lea.sflag [#allocation4], %s147
        %s149 = sand.u32 %s68, 1
        %s150 = smul.addr %s149, 32
        %s151 = scalar_lea.vmem [#allocation5], %s150
        %v152 = vld [vmem:[%s133] sm:$0xff]
        %s153 = sadd.s32 0, 8
        %s154 = scalar_lea.vmem %s133, %s153 [#allocation2]
        %v155 = vld [vmem:[%s154] sm:$0xff]
        %vm156 = vcmp.gt.f32.partialorder %v155, %v152
        %v157 = vsel %vm156, %v155, %v152
        %v158 = vsel %vm156, 1, 0
        %s159 = sadd.s32 0, 16
        %s160 = scalar_lea.vmem %s133, %s159 [#allocation2]
        %v161 = vld [vmem:[%s160] sm:$0xff]
        %vm162 = vcmp.gt.f32.partialorder %v161, %v157
        %v163 = vsel %vm162, %v161, %v157
        %v164 = vsel %vm162, 2, %v158
        %s165 = sadd.s32 0, 24
        %s166 = scalar_lea.vmem %s133, %s165 [#allocation2]
        %v167 = vld [vmem:[%s166] sm:$0xff]
        %vm168 = vcmp.gt.f32.partialorder %v167, %v163
        %v169 = vsel %vm168, %v167, %v163
        %v170 = vsel %vm168, 3, %v164
        %s171 = sadd.s32 0, 32
        %s172 = scalar_lea.vmem %s133, %s171 [#allocation2]
        %v173 = vld [vmem:[%s172] sm:$0xff]
        %vm174 = vcmp.gt.f32.partialorder %v173, %v169
        %v175 = vsel %vm174, %v173, %v169
        %v176 = vsel %vm174, 4, %v170
        %s177 = sadd.s32 0, 40
        %s178 = scalar_lea.vmem %s133, %s177 [#allocation2]
        %v179 = vld [vmem:[%s178] sm:$0xff]
        %vm180 = vcmp.gt.f32.partialorder %v179, %v175
        %v181 = vsel %vm180, %v179, %v175
        %v182 = vsel %vm180, 5, %v176
        %s183 = sadd.s32 0, 48
        %s184 = scalar_lea.vmem %s133, %s183 [#allocation2]
        %v185 = vld [vmem:[%s184] sm:$0xff]
        %vm186 = vcmp.gt.f32.partialorder %v185, %v181
        %v187 = vsel %vm186, %v185, %v181
        %v188 = vsel %vm186, 6, %v182
        %s189 = sadd.s32 0, 56
        %s190 = scalar_lea.vmem %s133, %s189 [#allocation2]
        %v191 = vld [vmem:[%s190] sm:$0xff]
        %vm192 = vcmp.gt.f32.partialorder %v191, %v187
        %v193 = vsel %vm192, %v191, %v187
        %v194 = vsel %vm192, 7, %v188
        %s195 = sadd.s32 0, 64
        %s196 = scalar_lea.vmem %s133, %s195 [#allocation2]
        %v197 = vld [vmem:[%s196] sm:$0xff]
        %vm198 = vcmp.gt.f32.partialorder %v197, %v193
        %v199 = vsel %vm198, %v197, %v193
        %v200 = vsel %vm198, 8, %v194
        %s201 = sadd.s32 0, 72
        %s202 = scalar_lea.vmem %s133, %s201 [#allocation2]
        %v203 = vld [vmem:[%s202] sm:$0xff]
        %vm204 = vcmp.gt.f32.partialorder %v203, %v199
        %v205 = vsel %vm204, %v203, %v199
        %v206 = vsel %vm204, 1, 0
        %v207 = vsel %vm204, 0, %v200
        %s208 = sadd.s32 0, 80
        %s209 = scalar_lea.vmem %s133, %s208 [#allocation2]
        %v210 = vld [vmem:[%s209] sm:$0xff]
        %vm211 = vcmp.gt.f32.partialorder %v210, %v205
        %v212 = vsel %vm211, %v210, %v205
        %v213 = vsel %vm211, 1, %v206
        %v214 = vsel %vm211, 1, %v207
        %s215 = sadd.s32 0, 88
        %s216 = scalar_lea.vmem %s133, %s215 [#allocation2]
        %v217 = vld [vmem:[%s216] sm:$0xff]
        %vm218 = vcmp.gt.f32.partialorder %v217, %v212
        %v219 = vsel %vm218, %v217, %v212
        %v220 = vsel %vm218, 1, %v213
        %v221 = vsel %vm218, 2, %v214
        %s222 = sadd.s32 0, 96
        %s223 = scalar_lea.vmem %s133, %s222 [#allocation2]
        %v224 = vld [vmem:[%s223] sm:$0xff]
        %vm225 = vcmp.gt.f32.partialorder %v224, %v219
        %v226 = vsel %vm225, %v224, %v219
        %v227 = vsel %vm225, 1, %v220
        %v228 = vsel %vm225, 3, %v221
        %s229 = sadd.s32 0, 104
        %s230 = scalar_lea.vmem %s133, %s229 [#allocation2]
        %v231 = vld [vmem:[%s230] sm:$0xff]
        %vm232 = vcmp.gt.f32.partialorder %v231, %v226
        %v233 = vsel %vm232, %v231, %v226
        %v234 = vsel %vm232, 1, %v227
        %v235 = vsel %vm232, 4, %v228
        %s236 = sadd.s32 0, 112
        %s237 = scalar_lea.vmem %s133, %s236 [#allocation2]
        %v238 = vld [vmem:[%s237] sm:$0xff]
        %vm239 = vcmp.gt.f32.partialorder %v238, %v233
        %v240 = vsel %vm239, %v238, %v233
        %v241 = vsel %vm239, 1, %v234
        %v242 = vsel %vm239, 5, %v235
        %s243 = sadd.s32 0, 120
        %s244 = scalar_lea.vmem %s133, %s243 [#allocation2]
        %v245 = vld [vmem:[%s244] sm:$0xff]
        %vm246 = vcmp.gt.f32.partialorder %v245, %v240
        %v247 = vsel %vm246, %v245, %v240
        %v248 = vsel %vm246, 1, %v241
        %v249 = vsel %vm246, 6, %v242
        %s250 = sadd.s32 0, 128
        %s251 = scalar_lea.vmem %s133, %s250 [#allocation2]
        %v252 = vld [vmem:[%s251] sm:$0xff]
        %vm253 = vcmp.gt.f32.partialorder %v252, %v247
        %v254 = vsel %vm253, %v252, %v247
        %v255 = vsel %vm253, 1, %v248
        %v256 = vsel %vm253, 7, %v249
        %s257 = sadd.s32 0, 136
        %s258 = scalar_lea.vmem %s133, %s257 [#allocation2]
        %v259 = vld [vmem:[%s258] sm:$0xff]
        %vm260 = vcmp.gt.f32.partialorder %v259, %v254
        %v261 = vsel %vm260, %v259, %v254
        %v262 = vsel %vm260, 1, %v255
        %v263 = vsel %vm260, 8, %v256
        %s264 = sadd.s32 0, 144
        %s265 = scalar_lea.vmem %s133, %s264 [#allocation2]
        %v266 = vld [vmem:[%s265] sm:$0xff]
        %vm267 = vcmp.gt.f32.partialorder %v266, %v261
        %v268 = vsel %vm267, %v266, %v261
        %v269 = vsel %vm267, 2, %v262
        %v270 = vsel %vm267, 0, %v263
        %s271 = sadd.s32 0, 152
        %s272 = scalar_lea.vmem %s133, %s271 [#allocation2]
        %v273 = vld [vmem:[%s272] sm:$0xff]
        %vm274 = vcmp.gt.f32.partialorder %v273, %v268
        %v275 = vsel %vm274, %v273, %v268
        %v276 = vsel %vm274, 2, %v269
        %v277 = vsel %vm274, 1, %v270
        %s278 = sadd.s32 0, 160
        %s279 = scalar_lea.vmem %s133, %s278 [#allocation2]
        %v280 = vld [vmem:[%s279] sm:$0xff]
        %vm281 = vcmp.gt.f32.partialorder %v280, %v275
        %v282 = vsel %vm281, %v280, %v275
        %v283 = vsel %vm281, 2, %v276
        %v284 = vsel %vm281, 2, %v277
        %s285 = sadd.s32 0, 168
        %s286 = scalar_lea.vmem %s133, %s285 [#allocation2]
        %v287 = vld [vmem:[%s286] sm:$0xff]
        %vm288 = vcmp.gt.f32.partialorder %v287, %v282
        %v289 = vsel %vm288, %v287, %v282
        %v290 = vsel %vm288, 2, %v283
        %v291 = vsel %vm288, 3, %v284
        %s292 = sadd.s32 0, 176
        %s293 = scalar_lea.vmem %s133, %s292 [#allocation2]
        %v294 = vld [vmem:[%s293] sm:$0xff]
        %vm295 = vcmp.gt.f32.partialorder %v294, %v289
        %v296 = vsel %vm295, %v294, %v289
        %v297 = vsel %vm295, 2, %v290
        %v298 = vsel %vm295, 4, %v291
        %s299 = sadd.s32 0, 184
        %s300 = scalar_lea.vmem %s133, %s299 [#allocation2]
        %v301 = vld [vmem:[%s300] sm:$0xff]
        %vm302 = vcmp.gt.f32.partialorder %v301, %v296
        %v303 = vsel %vm302, %v301, %v296
        %v304 = vsel %vm302, 2, %v297
        %v305 = vsel %vm302, 5, %v298
        %s306 = sadd.s32 0, 192
        %s307 = scalar_lea.vmem %s133, %s306 [#allocation2]
        %v308 = vld [vmem:[%s307] sm:$0xff]
        %vm309 = vcmp.gt.f32.partialorder %v308, %v303
        %v310 = vsel %vm309, %v308, %v303
        %v311 = vsel %vm309, 2, %v304
        %v312 = vsel %vm309, 6, %v305
        %s313 = sadd.s32 0, 200
        %s314 = scalar_lea.vmem %s133, %s313 [#allocation2]
        %v315 = vld [vmem:[%s314] sm:$0xff]
        %vm316 = vcmp.gt.f32.partialorder %v315, %v310
        %v317 = vsel %vm316, %v315, %v310
        %v318 = vsel %vm316, 2, %v311
        %v319 = vsel %vm316, 7, %v312
        %s320 = sadd.s32 0, 208
        %s321 = scalar_lea.vmem %s133, %s320 [#allocation2]
        %v322 = vld [vmem:[%s321] sm:$0xff]
        %vm323 = vcmp.gt.f32.partialorder %v322, %v317
        %v324 = vsel %vm323, %v322, %v317
        %v325 = vsel %vm323, 2, %v318
        %v326 = vsel %vm323, 8, %v319
        %s327 = sadd.s32 0, 216
        %s328 = scalar_lea.vmem %s133, %s327 [#allocation2]
        %v329 = vld [vmem:[%s328] sm:$0xff]
        %vm330 = vcmp.gt.f32.partialorder %v329, %v324
        %v331 = vsel %vm330, %v329, %v324
        %v332 = vsel %vm330, 3, %v325
        %v333 = vsel %vm330, 0, %v326
        %s334 = sadd.s32 0, 224
        %s335 = scalar_lea.vmem %s133, %s334 [#allocation2]
        %v336 = vld [vmem:[%s335] sm:$0xff]
        %vm337 = vcmp.gt.f32.partialorder %v336, %v331
        %v338 = vsel %vm337, %v336, %v331
        %v339 = vsel %vm337, 3, %v332
        %v340 = vsel %vm337, 1, %v333
        %s341 = sadd.s32 0, 232
        %s342 = scalar_lea.vmem %s133, %s341 [#allocation2]
        %v343 = vld [vmem:[%s342] sm:$0xff]
        %vm344 = vcmp.gt.f32.partialorder %v343, %v338
        %v345 = vsel %vm344, %v343, %v338
        %v346 = vsel %vm344, 3, %v339
        %v347 = vsel %vm344, 2, %v340
        %s348 = sadd.s32 0, 240
        %s349 = scalar_lea.vmem %s133, %s348 [#allocation2]
        %v350 = vld [vmem:[%s349] sm:$0xff]
        %vm351 = vcmp.gt.f32.partialorder %v350, %v345
        %v352 = vsel %vm351, %v350, %v345
        %v353 = vsel %vm351, 3, %v346
        %v354 = vsel %vm351, 3, %v347
        %s355 = sadd.s32 0, 248
        %s356 = scalar_lea.vmem %s133, %s355 [#allocation2]
        %v357 = vld [vmem:[%s356] sm:$0xff]
        %vm358 = vcmp.gt.f32.partialorder %v357, %v352
        %v359 = vsel %vm358, %v357, %v352
        %v360 = vsel %vm358, 3, %v353
        %v361 = vsel %vm358, 4, %v354
        %s362 = sadd.s32 0, 256
        %s363 = scalar_lea.vmem %s133, %s362 [#allocation2]
        %v364 = vld [vmem:[%s363] sm:$0xff]
        %vm365 = vcmp.gt.f32.partialorder %v364, %v359
        %v366 = vsel %vm365, %v364, %v359
        %v367 = vsel %vm365, 3, %v360
        %v368 = vsel %vm365, 5, %v361
        %s369 = sadd.s32 0, 264
        %s370 = scalar_lea.vmem %s133, %s369 [#allocation2]
        %v371 = vld [vmem:[%s370] sm:$0xff]
        %vm372 = vcmp.gt.f32.partialorder %v371, %v366
        %v373 = vsel %vm372, %v371, %v366
        %v374 = vsel %vm372, 3, %v367
        %v375 = vsel %vm372, 6, %v368
        %s376 = sadd.s32 0, 272
        %s377 = scalar_lea.vmem %s133, %s376 [#allocation2]
        %v378 = vld [vmem:[%s377] sm:$0xff]
        %vm379 = vcmp.gt.f32.partialorder %v378, %v373
        %v380 = vsel %vm379, %v378, %v373
        %v381 = vsel %vm379, 3, %v374
        %v382 = vsel %vm379, 7, %v375
        %s383 = sadd.s32 0, 280
        %s384 = scalar_lea.vmem %s133, %s383 [#allocation2]
        %v385 = vld [vmem:[%s384] sm:$0xff]
        %vm386 = vcmp.gt.f32.partialorder %v385, %v380
        %v387 = vsel %vm386, %v385, %v380
        %v388 = vsel %vm386, 3, %v381
        %v389 = vsel %vm386, 8, %v382
        %s390 = sadd.s32 0, 288
        %s391 = scalar_lea.vmem %s133, %s390 [#allocation2]
        %v392 = vld [vmem:[%s391] sm:$0xff]
        %vm393 = vcmp.gt.f32.partialorder %v392, %v387
        %v394 = vsel %vm393, %v392, %v387
        %v395 = vsel %vm393, 4, %v388
        %v396 = vsel %vm393, 0, %v389
        %s397 = sadd.s32 0, 296
        %s398 = scalar_lea.vmem %s133, %s397 [#allocation2]
        %v399 = vld [vmem:[%s398] sm:$0xff]
        %vm400 = vcmp.gt.f32.partialorder %v399, %v394
        %v401 = vsel %vm400, %v399, %v394
        %v402 = vsel %vm400, 4, %v395
        %v403 = vsel %vm400, 1, %v396
        %s404 = sadd.s32 0, 304
        %s405 = scalar_lea.vmem %s133, %s404 [#allocation2]
        %v406 = vld [vmem:[%s405] sm:$0xff]
        %vm407 = vcmp.gt.f32.partialorder %v406, %v401
        %v408 = vsel %vm407, %v406, %v401
        %v409 = vsel %vm407, 4, %v402
        %v410 = vsel %vm407, 2, %v403
        %s411 = sadd.s32 0, 312
        %s412 = scalar_lea.vmem %s133, %s411 [#allocation2]
        %v413 = vld [vmem:[%s412] sm:$0xff]
        %vm414 = vcmp.gt.f32.partialorder %v413, %v408
        %v415 = vsel %vm414, %v413, %v408
        %v416 = vsel %vm414, 4, %v409
        %v417 = vsel %vm414, 3, %v410
        %s418 = sadd.s32 0, 320
        %s419 = scalar_lea.vmem %s133, %s418 [#allocation2]
        %v420 = vld [vmem:[%s419] sm:$0xff]
        %vm421 = vcmp.gt.f32.partialorder %v420, %v415
        %v422 = vsel %vm421, %v420, %v415
        %v423 = vsel %vm421, 4, %v416
        %v424 = vsel %vm421, 4, %v417
        %s425 = sadd.s32 0, 328
        %s426 = scalar_lea.vmem %s133, %s425 [#allocation2]
        %v427 = vld [vmem:[%s426] sm:$0xff]
        %vm428 = vcmp.gt.f32.partialorder %v427, %v422
        %v429 = vsel %vm428, %v427, %v422
        %v430 = vsel %vm428, 4, %v423
        %v431 = vsel %vm428, 5, %v424
        %s432 = sadd.s32 0, 336
        %s433 = scalar_lea.vmem %s133, %s432 [#allocation2]
        %v434 = vld [vmem:[%s433] sm:$0xff]
        %vm435 = vcmp.gt.f32.partialorder %v434, %v429
        %v436 = vsel %vm435, %v434, %v429
        %v437 = vsel %vm435, 4, %v430
        %v438 = vsel %vm435, 6, %v431
        %s439 = sadd.s32 0, 344
        %s440 = scalar_lea.vmem %s133, %s439 [#allocation2]
        %v441 = vld [vmem:[%s440] sm:$0xff]
        %vm442 = vcmp.gt.f32.partialorder %v441, %v436
        %v443 = vsel %vm442, %v441, %v436
        %v444 = vsel %vm442, 4, %v437
        %v445 = vsel %vm442, 7, %v438
        %s446 = sadd.s32 0, 352
        %s447 = scalar_lea.vmem %s133, %s446 [#allocation2]
        %v448 = vld [vmem:[%s447] sm:$0xff]
        %vm449 = vcmp.gt.f32.partialorder %v448, %v443
        %v450 = vsel %vm449, %v448, %v443
        %v451 = vsel %vm449, 4, %v444
        %v452 = vsel %vm449, 8, %v445
        %s453 = sadd.s32 0, 360
        %s454 = scalar_lea.vmem %s133, %s453 [#allocation2]
        %v455 = vld [vmem:[%s454] sm:$0xff]
        %vm456 = vcmp.gt.f32.partialorder %v455, %v450
        %v457 = vsel %vm456, %v455, %v450
        %v458 = vsel %vm456, 5, %v451
        %v459 = vsel %vm456, 0, %v452
        %s460 = sadd.s32 0, 368
        %s461 = scalar_lea.vmem %s133, %s460 [#allocation2]
        %v462 = vld [vmem:[%s461] sm:$0xff]
        %vm463 = vcmp.gt.f32.partialorder %v462, %v457
        %v464 = vsel %vm463, %v462, %v457
        %v465 = vsel %vm463, 5, %v458
        %v466 = vsel %vm463, 1, %v459
        %s467 = sadd.s32 0, 376
        %s468 = scalar_lea.vmem %s133, %s467 [#allocation2]
        %v469 = vld [vmem:[%s468] sm:$0xff]
        %vm470 = vcmp.gt.f32.partialorder %v469, %v464
        %v471 = vsel %vm470, %v469, %v464
        %v472 = vsel %vm470, 5, %v465
        %v473 = vsel %vm470, 2, %v466
        %s474 = sadd.s32 0, 384
        %s475 = scalar_lea.vmem %s133, %s474 [#allocation2]
        %v476 = vld [vmem:[%s475] sm:$0xff]
        %vm477 = vcmp.gt.f32.partialorder %v476, %v471
        %v478 = vsel %vm477, %v476, %v471
        %v479 = vsel %vm477, 5, %v472
        %v480 = vsel %vm477, 3, %v473
        %s481 = sadd.s32 0, 392
        %s482 = scalar_lea.vmem %s133, %s481 [#allocation2]
        %v483 = vld [vmem:[%s482] sm:$0xff]
        %vm484 = vcmp.gt.f32.partialorder %v483, %v478
        %v485 = vsel %vm484, %v483, %v478
        %v486 = vsel %vm484, 5, %v479
        %v487 = vsel %vm484, 4, %v480
        %s488 = sadd.s32 0, 400
        %s489 = scalar_lea.vmem %s133, %s488 [#allocation2]
        %v490 = vld [vmem:[%s489] sm:$0xff]
        %vm491 = vcmp.gt.f32.partialorder %v490, %v485
        %v492 = vsel %vm491, %v490, %v485
        %v493 = vsel %vm491, 5, %v486
        %v494 = vsel %vm491, 5, %v487
        %s495 = sadd.s32 0, 408
        %s496 = scalar_lea.vmem %s133, %s495 [#allocation2]
        %v497 = vld [vmem:[%s496] sm:$0xff]
        %vm498 = vcmp.gt.f32.partialorder %v497, %v492
        %v499 = vsel %vm498, %v497, %v492
        %v500 = vsel %vm498, 5, %v493
        %v501 = vsel %vm498, 6, %v494
        %s502 = sadd.s32 0, 416
        %s503 = scalar_lea.vmem %s133, %s502 [#allocation2]
        %v504 = vld [vmem:[%s503] sm:$0xff]
        %vm505 = vcmp.gt.f32.partialorder %v504, %v499
        %v506 = vsel %vm505, %v504, %v499
        %v507 = vsel %vm505, 5, %v500
        %v508 = vsel %vm505, 7, %v501
        %s509 = sadd.s32 0, 424
        %s510 = scalar_lea.vmem %s133, %s509 [#allocation2]
        %v511 = vld [vmem:[%s510] sm:$0xff]
        %vm512 = vcmp.gt.f32.partialorder %v511, %v506
        %v513 = vsel %vm512, %v511, %v506
        %v514 = vsel %vm512, 5, %v507
        %v515 = vsel %vm512, 8, %v508
        %s516 = sadd.s32 0, 432
        %s517 = scalar_lea.vmem %s133, %s516 [#allocation2]
        %v518 = vld [vmem:[%s517] sm:$0xff]
        %vm519 = vcmp.gt.f32.partialorder %v518, %v513
        %v520 = vsel %vm519, %v518, %v513
        %v521 = vsel %vm519, 6, %v514
        %v522 = vsel %vm519, 0, %v515
        %s523 = sadd.s32 0, 440
        %s524 = scalar_lea.vmem %s133, %s523 [#allocation2]
        %v525 = vld [vmem:[%s524] sm:$0xff]
        %vm526 = vcmp.gt.f32.partialorder %v525, %v520
        %v527 = vsel %vm526, %v525, %v520
        %v528 = vsel %vm526, 6, %v521
        %v529 = vsel %vm526, 1, %v522
        %s530 = sadd.s32 0, 448
        %s531 = scalar_lea.vmem %s133, %s530 [#allocation2]
        %v532 = vld [vmem:[%s531] sm:$0xff]
        %vm533 = vcmp.gt.f32.partialorder %v532, %v527
        %v534 = vsel %vm533, %v532, %v527
        %v535 = vsel %vm533, 6, %v528
        %v536 = vsel %vm533, 2, %v529
        %s537 = sadd.s32 0, 456
        %s538 = scalar_lea.vmem %s133, %s537 [#allocation2]
        %v539 = vld [vmem:[%s538] sm:$0xff]
        %vm540 = vcmp.gt.f32.partialorder %v539, %v534
        %v541 = vsel %vm540, %v539, %v534
        %v542 = vsel %vm540, 6, %v535
        %v543 = vsel %vm540, 3, %v536
        %s544 = sadd.s32 0, 464
        %s545 = scalar_lea.vmem %s133, %s544 [#allocation2]
        %v546 = vld [vmem:[%s545] sm:$0xff]
        %vm547 = vcmp.gt.f32.partialorder %v546, %v541
        %v548 = vsel %vm547, %v546, %v541
        %v549 = vsel %vm547, 6, %v542
        %v550 = vsel %vm547, 4, %v543
        %s551 = sadd.s32 0, 472
        %s552 = scalar_lea.vmem %s133, %s551 [#allocation2]
        %v553 = vld [vmem:[%s552] sm:$0xff]
        %vm554 = vcmp.gt.f32.partialorder %v553, %v548
        %v555 = vsel %vm554, %v553, %v548
        %v556 = vsel %vm554, 6, %v549
        %v557 = vsel %vm554, 5, %v550
        %s558 = sadd.s32 0, 480
        %s559 = scalar_lea.vmem %s133, %s558 [#allocation2]
        %v560 = vld [vmem:[%s559] sm:$0xff]
        %vm561 = vcmp.gt.f32.partialorder %v560, %v555
        %v562 = vsel %vm561, %v560, %v555
        %v563 = vsel %vm561, 6, %v556
        %v564 = vsel %vm561, 6, %v557
        %s565 = sadd.s32 0, 488
        %s566 = scalar_lea.vmem %s133, %s565 [#allocation2]
        %v567 = vld [vmem:[%s566] sm:$0xff]
        %vm568 = vcmp.gt.f32.partialorder %v567, %v562
        %v569 = vsel %vm568, %v567, %v562
        %v570 = vsel %vm568, 6, %v563
        %v571 = vsel %vm568, 7, %v564
        %s572 = sadd.s32 0, 496
        %s573 = scalar_lea.vmem %s133, %s572 [#allocation2]
        %v574 = vld [vmem:[%s573] sm:$0xff]
        %vm575 = vcmp.gt.f32.partialorder %v574, %v569
        %v576 = vsel %vm575, %v574, %v569
        %v577 = vsel %vm575, 6, %v570
        %v578 = vsel %vm575, 8, %v571
        %s579 = sadd.s32 0, 504
        %s580 = scalar_lea.vmem %s133, %s579 [#allocation2]
        %v581 = vld [vmem:[%s580] sm:$0xff]
        %vm582 = vcmp.gt.f32.partialorder %v581, %v576
        %v583 = vsel %vm582, %v581, %v576
        %v584 = vsel %vm582, 7, %v577
        %v585 = vsel %vm582, 0, %v578
        %s586 = sadd.s32 0, 512
        %s587 = scalar_lea.vmem %s133, %s586 [#allocation2]
        %v588 = vld [vmem:[%s587] sm:$0xff]
        %vm589 = vcmp.gt.f32.partialorder %v588, %v583
        %v590 = vsel %vm589, %v588, %v583
        %v591 = vsel %vm589, 7, %v584
        %v592 = vsel %vm589, 1, %v585
        %s593 = sadd.s32 0, 520
        %s594 = scalar_lea.vmem %s133, %s593 [#allocation2]
        %v595 = vld [vmem:[%s594] sm:$0xff]
        %vm596 = vcmp.gt.f32.partialorder %v595, %v590
        %v597 = vsel %vm596, %v595, %v590
        %v598 = vsel %vm596, 7, %v591
        %v599 = vsel %vm596, 2, %v592
        %s600 = sadd.s32 0, 528
        %s601 = scalar_lea.vmem %s133, %s600 [#allocation2]
        %v602 = vld [vmem:[%s601] sm:$0xff]
        %vm603 = vcmp.gt.f32.partialorder %v602, %v597
        %v604 = vsel %vm603, %v602, %v597
        %v605 = vsel %vm603, 7, %v598
        %v606 = vsel %vm603, 3, %v599
        %s607 = sadd.s32 0, 536
        %s608 = scalar_lea.vmem %s133, %s607 [#allocation2]
        %v609 = vld [vmem:[%s608] sm:$0xff]
        %vm610 = vcmp.gt.f32.partialorder %v609, %v604
        %v611 = vsel %vm610, %v609, %v604
        %v612 = vsel %vm610, 7, %v605
        %v613 = vsel %vm610, 4, %v606
        %s614 = sadd.s32 0, 544
        %s615 = scalar_lea.vmem %s133, %s614 [#allocation2]
        %v616 = vld [vmem:[%s615] sm:$0xff]
        %vm617 = vcmp.gt.f32.partialorder %v616, %v611
        %v618 = vsel %vm617, %v616, %v611
        %v619 = vsel %vm617, 7, %v612
        %v620 = vsel %vm617, 5, %v613
        %s621 = sadd.s32 0, 552
        %s622 = scalar_lea.vmem %s133, %s621 [#allocation2]
        %v623 = vld [vmem:[%s622] sm:$0xff]
        %vm624 = vcmp.gt.f32.partialorder %v623, %v618
        %v625 = vsel %vm624, %v623, %v618
        %v626 = vsel %vm624, 7, %v619
        %v627 = vsel %vm624, 6, %v620
        %s628 = sadd.s32 0, 560
        %s629 = scalar_lea.vmem %s133, %s628 [#allocation2]
        %v630 = vld [vmem:[%s629] sm:$0xff]
        %vm631 = vcmp.gt.f32.partialorder %v630, %v625
        %v632 = vsel %vm631, %v630, %v625
        %v633 = vsel %vm631, 7, %v626
        %v634 = vsel %vm631, 7, %v627
        %s635 = sadd.s32 0, 568
        %s636 = scalar_lea.vmem %s133, %s635 [#allocation2]
        %v637 = vld [vmem:[%s636] sm:$0xff]
        %vm638 = vcmp.gt.f32.partialorder %v637, %v632
        %v639 = vsel %vm638, %v637, %v632
        %v640 = vsel %vm638, 7, %v633
        %v641 = vsel %vm638, 8, %v634
        %s642 = sadd.s32 0, 576
        %s643 = scalar_lea.vmem %s133, %s642 [#allocation2]
        %v644 = vld [vmem:[%s643] sm:$0xff]
        %vm645 = vcmp.gt.f32.partialorder %v644, %v639
        %v646 = vsel %vm645, %v644, %v639
        %v647 = vsel %vm645, 8, %v640
        %v648 = vsel %vm645, 0, %v641
        %s649 = sadd.s32 0, 584
        %s650 = scalar_lea.vmem %s133, %s649 [#allocation2]
        %v651 = vld [vmem:[%s650] sm:$0xff]
        %vm652 = vcmp.gt.f32.partialorder %v651, %v646
        %v653 = vsel %vm652, %v651, %v646
        %v654 = vsel %vm652, 8, %v647
        %v655 = vsel %vm652, 1, %v648
        %s656 = sadd.s32 0, 592
        %s657 = scalar_lea.vmem %s133, %s656 [#allocation2]
        %v658 = vld [vmem:[%s657] sm:$0xff]
        %vm659 = vcmp.gt.f32.partialorder %v658, %v653
        %v660 = vsel %vm659, %v658, %v653
        %v661 = vsel %vm659, 8, %v654
        %v662 = vsel %vm659, 2, %v655
        %s663 = sadd.s32 0, 600
        %s664 = scalar_lea.vmem %s133, %s663 [#allocation2]
        %v665 = vld [vmem:[%s664] sm:$0xff]
        %vm666 = vcmp.gt.f32.partialorder %v665, %v660
        %v667 = vsel %vm666, %v665, %v660
        %v668 = vsel %vm666, 8, %v661
        %v669 = vsel %vm666, 3, %v662
        %s670 = sadd.s32 0, 608
        %s671 = scalar_lea.vmem %s133, %s670 [#allocation2]
        %v672 = vld [vmem:[%s671] sm:$0xff]
        %vm673 = vcmp.gt.f32.partialorder %v672, %v667
        %v674 = vsel %vm673, %v672, %v667
        %v675 = vsel %vm673, 8, %v668
        %v676 = vsel %vm673, 4, %v669
        %s677 = sadd.s32 0, 616
        %s678 = scalar_lea.vmem %s133, %s677 [#allocation2]
        %v679 = vld [vmem:[%s678] sm:$0xff]
        %vm680 = vcmp.gt.f32.partialorder %v679, %v674
        %v681 = vsel %vm680, %v679, %v674
        %v682 = vsel %vm680, 8, %v675
        %v683 = vsel %vm680, 5, %v676
        %s684 = sadd.s32 0, 624
        %s685 = scalar_lea.vmem %s133, %s684 [#allocation2]
        %v686 = vld [vmem:[%s685] sm:$0xff]
        %vm687 = vcmp.gt.f32.partialorder %v686, %v681
        %v688 = vsel %vm687, %v686, %v681
        %v689 = vsel %vm687, 8, %v682
        %v690 = vsel %vm687, 6, %v683
        %s691 = sadd.s32 0, 632
        %s692 = scalar_lea.vmem %s133, %s691 [#allocation2]
        %v693 = vld [vmem:[%s692] sm:$0xff]
        %vm694 = vcmp.gt.f32.partialorder %v693, %v688
        %v695 = vsel %vm694, %v693, %v688
        %v696 = vsel %vm694, 8, %v689
        %v697 = vsel %vm694, 7, %v690
        %s698 = sadd.s32 0, 640
        %s699 = scalar_lea.vmem %s133, %s698 [#allocation2]
        %v700 = vld [vmem:[%s699] sm:$0xff]
        %vm701 = vcmp.gt.f32.partialorder %v700, %v695
        %v702 = vsel %vm701, %v700, %v695
        %v703 = vsel %vm701, 8, %v696
        %v704 = vsel %vm701, 8, %v697
        %v705 = vsub.f32 %v152, %v702
        %v706 = vmul.f32 %v705, 1.442695
        %v707 = vpow.pop %v706
        %vm708 = vcmp.le.s32.totalorder %v703, 3
        %vm709 = vcmp.le.s32.totalorder %v704, 3
        %vm710 = vmand %vm708, %vm709
        %v711 = vsel %vm710, %v707, 0.0
        %v712 = vadd.f32 %v707, 0.0
        %v713 = vmul.f32 %v707, %v705
        %v714 = vadd.f32 %v713, 0.0
        %v715 = vadd.f32 %v711, 0.0
        %v716 = vmul.f32 %v711, %v705
        %v717 = vadd.f32 %v716, 0.0
        %v718 = vmul.f32 %v711, -4.0
        %v719 = vadd.f32 %v718, 0.0
        %v720 = vsub.f32 %v155, %v702
        %v721 = vmul.f32 %v720, 1.442695
        %v722 = vpow.pop %v721
        %vm723 = vcmp.le.s32.totalorder %v704, 4
        %vm724 = vmand %vm708, %vm723
        %v725 = vsel %vm724, %v722, 0.0
        %v726 = vadd.f32 %v712, %v722
        %v727 = vmul.f32 %v722, %v720
        %v728 = vadd.f32 %v714, %v727
        %v729 = vadd.f32 %v715, %v725
        %v730 = vmul.f32 %v725, %v720
        %v731 = vadd.f32 %v717, %v730
        %v732 = vmul.f32 %v725, -4.0
        %v733 = vadd.f32 %v719, %v732
        %v734 = vmul.f32 %v725, -3.0
        %v735 = vadd.f32 %v719, %v734
        %v736 = vsub.f32 %v161, %v702
        %v737 = vmul.f32 %v736, 1.442695
        %v738 = vpow.pop %v737
        %vm739 = vcmp.le.s32.totalorder %v704, 5
        %vm740 = vmand %vm708, %vm739
        %v741 = vsel %vm740, %v738, 0.0
        %v742 = vadd.f32 %v726, %v738
        %v743 = vmul.f32 %v738, %v736
        %v744 = vadd.f32 %v728, %v743
        %v745 = vadd.f32 %v729, %v741
        %v746 = vmul.f32 %v741, %v736
        %v747 = vadd.f32 %v731, %v746
        %v748 = vmul.f32 %v741, -4.0
        %v749 = vadd.f32 %v733, %v748
        %v750 = vmul.f32 %v741, -2.0
        %v751 = vadd.f32 %v735, %v750
        %v752 = vsub.f32 %v167, %v702
        %v753 = vmul.f32 %v752, 1.442695
        %v754 = vpow.pop %v753
        %vm755 = vcmp.le.s32.totalorder %v704, 6
        %vm756 = vmand %vm708, %vm755
        %v757 = vsel %vm756, %v754, 0.0
        %v758 = vadd.f32 %v742, %v754
        %v759 = vmul.f32 %v754, %v752
        %v760 = vadd.f32 %v744, %v759
        %v761 = vadd.f32 %v745, %v757
        %v762 = vmul.f32 %v757, %v752
        %v763 = vadd.f32 %v747, %v762
        %v764 = vmul.f32 %v757, -4.0
        %v765 = vadd.f32 %v749, %v764
        %v766 = vsub.f32 %v751, %v757
        %v767 = vsub.f32 %v173, %v702
        %v768 = vmul.f32 %v767, 1.442695
        %v769 = vpow.pop %v768
        %vm770 = vcmp.ge.s32.totalorder %v704, 1
        %vm771 = vcmp.le.s32.totalorder %v704, 7
        %vm772 = vmand %vm708, %vm770
        %vm773 = vmand %vm772, %vm771
        %v774 = vsel %vm773, %v769, 0.0
        %v775 = vadd.f32 %v758, %v769
        %v776 = vmul.f32 %v769, %v767
        %v777 = vadd.f32 %v760, %v776
        %v778 = vadd.f32 %v761, %v774
        %v779 = vmul.f32 %v774, %v767
        %v780 = vadd.f32 %v763, %v779
        %v781 = vmul.f32 %v774, -4.0
        %v782 = vadd.f32 %v765, %v781
        %v783 = vsub.f32 %v179, %v702
        %v784 = vmul.f32 %v783, 1.442695
        %v785 = vpow.pop %v784
        %vm786 = vcmp.ge.s32.totalorder %v704, 2
        %vm787 = vmand %vm708, %vm786
        %v788 = vsel %vm787, %v785, 0.0
        %v789 = vadd.f32 %v775, %v785
        %v790 = vmul.f32 %v785, %v783
        %v791 = vadd.f32 %v777, %v790
        %v792 = vadd.f32 %v778, %v788
        %v793 = vmul.f32 %v788, %v783
        %v794 = vadd.f32 %v780, %v793
        %v795 = vmul.f32 %v788, -4.0
        %v796 = vadd.f32 %v782, %v795
        %v797 = vadd.f32 %v766, %v788
        %v798 = vsub.f32 %v185, %v702
        %v799 = vmul.f32 %v798, 1.442695
        %v800 = vpow.pop %v799
        %vm801 = vcmp.ge.s32.totalorder %v704, 3
        %vm802 = vmand %vm708, %vm801
        %v803 = vsel %vm802, %v800, 0.0
        %v804 = vadd.f32 %v789, %v800
        %v805 = vmul.f32 %v800, %v798
        %v806 = vadd.f32 %v791, %v805
        %v807 = vadd.f32 %v792, %v803
        %v808 = vmul.f32 %v803, %v798
        %v809 = vadd.f32 %v794, %v808
        %v810 = vmul.f32 %v803, -4.0
        %v811 = vadd.f32 %v796, %v810
        %v812 = vmul.f32 %v803, 2.0
        %v813 = vadd.f32 %v797, %v812
        %v814 = vsub.f32 %v191, %v702
        %v815 = vmul.f32 %v814, 1.442695
        %v816 = vpow.pop %v815
        %vm817 = vcmp.ge.s32.totalorder %v704, 4
        %vm818 = vmand %vm708, %vm817
        %v819 = vsel %vm818, %v816, 0.0
        %v820 = vadd.f32 %v804, %v816
        %v821 = vmul.f32 %v816, %v814
        %v822 = vadd.f32 %v806, %v821
        %v823 = vadd.f32 %v807, %v819
        %v824 = vmul.f32 %v819, %v814
        %v825 = vadd.f32 %v809, %v824
        %v826 = vmul.f32 %v819, -4.0
        %v827 = vadd.f32 %v811, %v826
        %v828 = vmul.f32 %v819, 3.0
        %v829 = vadd.f32 %v813, %v828
        %v830 = vsub.f32 %v197, %v702
        %v831 = vmul.f32 %v830, 1.442695
        %v832 = vpow.pop %v831
        %vm833 = vcmp.ge.s32.totalorder %v704, 5
        %vm834 = vmand %vm708, %vm833
        %v835 = vsel %vm834, %v832, 0.0
        %v836 = vadd.f32 %v820, %v832
        %v837 = vmul.f32 %v832, %v830
        %v838 = vadd.f32 %v822, %v837
        %v839 = vadd.f32 %v823, %v835
        %v840 = vmul.f32 %v835, %v830
        %v841 = vadd.f32 %v825, %v840
        %v842 = vmul.f32 %v835, -4.0
        %v843 = vadd.f32 %v827, %v842
        %v844 = vmul.f32 %v835, 4.0
        %v845 = vadd.f32 %v829, %v844
        %v846 = vsub.f32 %v203, %v702
        %v847 = vmul.f32 %v846, 1.442695
        %v848 = vpow.pop %v847
        %vm849 = vcmp.le.s32.totalorder %v703, 4
        %vm850 = vmand %vm849, %vm709
        %v851 = vsel %vm850, %v848, 0.0
        %v852 = vadd.f32 %v836, %v848
        %v853 = vmul.f32 %v848, %v846
        %v854 = vadd.f32 %v838, %v853
        %v855 = vadd.f32 %v839, %v851
        %v856 = vmul.f32 %v851, %v846
        %v857 = vadd.f32 %v841, %v856
        %v858 = vmul.f32 %v851, -3.0
        %v859 = vadd.f32 %v843, %v858
        %v860 = vmul.f32 %v851, -4.0
        %v861 = vadd.f32 %v845, %v860
        %v862 = vsub.f32 %v210, %v702
        %v863 = vmul.f32 %v862, 1.442695
        %v864 = vpow.pop %v863
        %vm865 = vmand %vm849, %vm723
        %v866 = vsel %vm865, %v864, 0.0
        %v867 = vadd.f32 %v852, %v864
        %v868 = vmul.f32 %v864, %v862
        %v869 = vadd.f32 %v854, %v868
        %v870 = vadd.f32 %v855, %v866
        %v871 = vmul.f32 %v866, %v862
        %v872 = vadd.f32 %v857, %v871
        %v873 = vmul.f32 %v866, -3.0
        %v874 = vadd.f32 %v859, %v873
        %v875 = vadd.f32 %v861, %v873
        %v876 = vsub.f32 %v217, %v702
        %v877 = vmul.f32 %v876, 1.442695
        %v878 = vpow.pop %v877
        %vm879 = vmand %vm849, %vm739
        %v880 = vsel %vm879, %v878, 0.0
        %v881 = vadd.f32 %v867, %v878
        %v882 = vmul.f32 %v878, %v876
        %v883 = vadd.f32 %v869, %v882
        %v884 = vadd.f32 %v870, %v880
        %v885 = vmul.f32 %v880, %v876
        %v886 = vadd.f32 %v872, %v885
        %v887 = vmul.f32 %v880, -3.0
        %v888 = vadd.f32 %v874, %v887
        %v889 = vmul.f32 %v880, -2.0
        %v890 = vadd.f32 %v875, %v889
        %v891 = vsub.f32 %v224, %v702
        %v892 = vmul.f32 %v891, 1.442695
        %v893 = vpow.pop %v892
        %vm894 = vmand %vm849, %vm755
        %v895 = vsel %vm894, %v893, 0.0
        %v896 = vadd.f32 %v881, %v893
        %v897 = vmul.f32 %v893, %v891
        %v898 = vadd.f32 %v883, %v897
        %v899 = vadd.f32 %v884, %v895
        %v900 = vmul.f32 %v895, %v891
        %v901 = vadd.f32 %v886, %v900
        %v902 = vmul.f32 %v895, -3.0
        %v903 = vadd.f32 %v888, %v902
        %v904 = vsub.f32 %v890, %v895
        %v905 = vsub.f32 %v231, %v702
        %v906 = vmul.f32 %v905, 1.442695
        %v907 = vpow.pop %v906
        %vm908 = vmand %vm849, %vm770
        %vm909 = vmand %vm908, %vm771
        %v910 = vsel %vm909, %v907, 0.0
        %v911 = vadd.f32 %v896, %v907
        %v912 = vmul.f32 %v907, %v905
        %v913 = vadd.f32 %v898, %v912
        %v914 = vadd.f32 %v899, %v910
        %v915 = vmul.f32 %v910, %v905
        %v916 = vadd.f32 %v901, %v915
        %v917 = vmul.f32 %v910, -3.0
        %v918 = vadd.f32 %v903, %v917
        %v919 = vsub.f32 %v238, %v702
        %v920 = vmul.f32 %v919, 1.442695
        %v921 = vpow.pop %v920
        %vm922 = vmand %vm849, %vm786
        %v923 = vsel %vm922, %v921, 0.0
        %v924 = vadd.f32 %v911, %v921
        %v925 = vmul.f32 %v921, %v919
        %v926 = vadd.f32 %v913, %v925
        %v927 = vadd.f32 %v914, %v923
        %v928 = vmul.f32 %v923, %v919
        %v929 = vadd.f32 %v916, %v928
        %v930 = vmul.f32 %v923, -3.0
        %v931 = vadd.f32 %v918, %v930
        %v932 = vadd.f32 %v904, %v923
        %v933 = vsub.f32 %v245, %v702
        %v934 = vmul.f32 %v933, 1.442695
        %v935 = vpow.pop %v934
        %vm936 = vmand %vm849, %vm801
        %v937 = vsel %vm936, %v935, 0.0
        %v938 = vadd.f32 %v924, %v935
        %v939 = vmul.f32 %v935, %v933
        %v940 = vadd.f32 %v926, %v939
        %v941 = vadd.f32 %v927, %v937
        %v942 = vmul.f32 %v937, %v933
        %v943 = vadd.f32 %v929, %v942
        %v944 = vmul.f32 %v937, -3.0
        %v945 = vadd.f32 %v931, %v944
        %v946 = vmul.f32 %v937, 2.0
        %v947 = vadd.f32 %v932, %v946
        %v948 = vsub.f32 %v252, %v702
        %v949 = vmul.f32 %v948, 1.442695
        %v950 = vpow.pop %v949
        %vm951 = vmand %vm849, %vm817
        %v952 = vsel %vm951, %v950, 0.0
        %v953 = vadd.f32 %v938, %v950
        %v954 = vmul.f32 %v950, %v948
        %v955 = vadd.f32 %v940, %v954
        %v956 = vadd.f32 %v941, %v952
        %v957 = vmul.f32 %v952, %v948
        %v958 = vadd.f32 %v943, %v957
        %v959 = vmul.f32 %v952, -3.0
        %v960 = vadd.f32 %v945, %v959
        %v961 = vmul.f32 %v952, 3.0
        %v962 = vadd.f32 %v947, %v961
        %v963 = vsub.f32 %v259, %v702
        %v964 = vmul.f32 %v963, 1.442695
        %v965 = vpow.pop %v964
        %vm966 = vmand %vm849, %vm833
        %v967 = vsel %vm966, %v965, 0.0
        %v968 = vadd.f32 %v953, %v965
        %v969 = vmul.f32 %v965, %v963
        %v970 = vadd.f32 %v955, %v969
        %v971 = vadd.f32 %v956, %v967
        %v972 = vmul.f32 %v967, %v963
        %v973 = vadd.f32 %v958, %v972
        %v974 = vmul.f32 %v967, -3.0
        %v975 = vadd.f32 %v960, %v974
        %v976 = vmul.f32 %v967, 4.0
        %v977 = vadd.f32 %v962, %v976
        %v978 = vsub.f32 %v266, %v702
        %v979 = vmul.f32 %v978, 1.442695
        %v980 = vpow.pop %v979
        %vm981 = vcmp.le.s32.totalorder %v703, 5
        %vm982 = vmand %vm981, %vm709
        %v983 = vsel %vm982, %v980, 0.0
        %v984 = vadd.f32 %v968, %v980
        %v985 = vmul.f32 %v980, %v978
        %v986 = vadd.f32 %v970, %v985
        %v987 = vadd.f32 %v971, %v983
        %v988 = vmul.f32 %v983, %v978
        %v989 = vadd.f32 %v973, %v988
        %v990 = vmul.f32 %v983, -2.0
        %v991 = vadd.f32 %v975, %v990
        %v992 = vmul.f32 %v983, -4.0
        %v993 = vadd.f32 %v977, %v992
        %v994 = vsub.f32 %v273, %v702
        %v995 = vmul.f32 %v994, 1.442695
        %v996 = vpow.pop %v995
        %vm997 = vmand %vm981, %vm723
        %v998 = vsel %vm997, %v996, 0.0
        %v999 = vadd.f32 %v984, %v996
        %v1000 = vmul.f32 %v996, %v994
        %v1001 = vadd.f32 %v986, %v1000
        %v1002 = vadd.f32 %v987, %v998
        %v1003 = vmul.f32 %v998, %v994
        %v1004 = vadd.f32 %v989, %v1003
        %v1005 = vmul.f32 %v998, -2.0
        %v1006 = vadd.f32 %v991, %v1005
        %v1007 = vmul.f32 %v998, -3.0
        %v1008 = vadd.f32 %v993, %v1007
        %v1009 = vsub.f32 %v280, %v702
        %v1010 = vmul.f32 %v1009, 1.442695
        %v1011 = vpow.pop %v1010
        %vm1012 = vmand %vm981, %vm739
        %v1013 = vsel %vm1012, %v1011, 0.0
        %v1014 = vadd.f32 %v999, %v1011
        %v1015 = vmul.f32 %v1011, %v1009
        %v1016 = vadd.f32 %v1001, %v1015
        %v1017 = vadd.f32 %v1002, %v1013
        %v1018 = vmul.f32 %v1013, %v1009
        %v1019 = vadd.f32 %v1004, %v1018
        %v1020 = vmul.f32 %v1013, -2.0
        %v1021 = vadd.f32 %v1006, %v1020
        %v1022 = vadd.f32 %v1008, %v1020
        %v1023 = vsub.f32 %v287, %v702
        %v1024 = vmul.f32 %v1023, 1.442695
        %v1025 = vpow.pop %v1024
        %vm1026 = vmand %vm981, %vm755
        %v1027 = vsel %vm1026, %v1025, 0.0
        %v1028 = vadd.f32 %v1014, %v1025
        %v1029 = vmul.f32 %v1025, %v1023
        %v1030 = vadd.f32 %v1016, %v1029
        %v1031 = vadd.f32 %v1017, %v1027
        %v1032 = vmul.f32 %v1027, %v1023
        %v1033 = vadd.f32 %v1019, %v1032
        %v1034 = vmul.f32 %v1027, -2.0
        %v1035 = vadd.f32 %v1021, %v1034
        %v1036 = vsub.f32 %v1022, %v1027
        %v1037 = vsub.f32 %v294, %v702
        %v1038 = vmul.f32 %v1037, 1.442695
        %v1039 = vpow.pop %v1038
        %vm1040 = vmand %vm981, %vm770
        %vm1041 = vmand %vm1040, %vm771
        %v1042 = vsel %vm1041, %v1039, 0.0
        %v1043 = vadd.f32 %v1028, %v1039
        %v1044 = vmul.f32 %v1039, %v1037
        %v1045 = vadd.f32 %v1030, %v1044
        %v1046 = vadd.f32 %v1031, %v1042
        %v1047 = vmul.f32 %v1042, %v1037
        %v1048 = vadd.f32 %v1033, %v1047
        %v1049 = vmul.f32 %v1042, -2.0
        %v1050 = vadd.f32 %v1035, %v1049
        %v1051 = vsub.f32 %v301, %v702
        %v1052 = vmul.f32 %v1051, 1.442695
        %v1053 = vpow.pop %v1052
        %vm1054 = vmand %vm981, %vm786
        %v1055 = vsel %vm1054, %v1053, 0.0
        %v1056 = vadd.f32 %v1043, %v1053
        %v1057 = vmul.f32 %v1053, %v1051
        %v1058 = vadd.f32 %v1045, %v1057
        %v1059 = vadd.f32 %v1046, %v1055
        %v1060 = vmul.f32 %v1055, %v1051
        %v1061 = vadd.f32 %v1048, %v1060
        %v1062 = vmul.f32 %v1055, -2.0
        %v1063 = vadd.f32 %v1050, %v1062
        %v1064 = vadd.f32 %v1036, %v1055
        %v1065 = vsub.f32 %v308, %v702
        %v1066 = vmul.f32 %v1065, 1.442695
        %v1067 = vpow.pop %v1066
        %vm1068 = vmand %vm981, %vm801
        %v1069 = vsel %vm1068, %v1067, 0.0
        %v1070 = vadd.f32 %v1056, %v1067
        %v1071 = vmul.f32 %v1067, %v1065
        %v1072 = vadd.f32 %v1058, %v1071
        %v1073 = vadd.f32 %v1059, %v1069
        %v1074 = vmul.f32 %v1069, %v1065
        %v1075 = vadd.f32 %v1061, %v1074
        %v1076 = vmul.f32 %v1069, -2.0
        %v1077 = vadd.f32 %v1063, %v1076
        %v1078 = vmul.f32 %v1069, 2.0
        %v1079 = vadd.f32 %v1064, %v1078
        %v1080 = vsub.f32 %v315, %v702
        %v1081 = vmul.f32 %v1080, 1.442695
        %v1082 = vpow.pop %v1081
        %vm1083 = vmand %vm981, %vm817
        %v1084 = vsel %vm1083, %v1082, 0.0
        %v1085 = vadd.f32 %v1070, %v1082
        %v1086 = vmul.f32 %v1082, %v1080
        %v1087 = vadd.f32 %v1072, %v1086
        %v1088 = vadd.f32 %v1073, %v1084
        %v1089 = vmul.f32 %v1084, %v1080
        %v1090 = vadd.f32 %v1075, %v1089
        %v1091 = vmul.f32 %v1084, -2.0
        %v1092 = vadd.f32 %v1077, %v1091
        %v1093 = vmul.f32 %v1084, 3.0
        %v1094 = vadd.f32 %v1079, %v1093
        %v1095 = vsub.f32 %v322, %v702
        %v1096 = vmul.f32 %v1095, 1.442695
        %v1097 = vpow.pop %v1096
        %vm1098 = vmand %vm981, %vm833
        %v1099 = vsel %vm1098, %v1097, 0.0
        %v1100 = vadd.f32 %v1085, %v1097
        %v1101 = vmul.f32 %v1097, %v1095
        %v1102 = vadd.f32 %v1087, %v1101
        %v1103 = vadd.f32 %v1088, %v1099
        %v1104 = vmul.f32 %v1099, %v1095
        %v1105 = vadd.f32 %v1090, %v1104
        %v1106 = vmul.f32 %v1099, -2.0
        %v1107 = vadd.f32 %v1092, %v1106
        %v1108 = vmul.f32 %v1099, 4.0
        %v1109 = vadd.f32 %v1094, %v1108
        %v1110 = vsub.f32 %v329, %v702
        %v1111 = vmul.f32 %v1110, 1.442695
        %v1112 = vpow.pop %v1111
        %vm1113 = vcmp.le.s32.totalorder %v703, 6
        %vm1114 = vmand %vm1113, %vm709
        %v1115 = vsel %vm1114, %v1112, 0.0
        %v1116 = vadd.f32 %v1100, %v1112
        %v1117 = vmul.f32 %v1112, %v1110
        %v1118 = vadd.f32 %v1102, %v1117
        %v1119 = vadd.f32 %v1103, %v1115
        %v1120 = vmul.f32 %v1115, %v1110
        %v1121 = vadd.f32 %v1105, %v1120
        %v1122 = vsub.f32 %v1107, %v1115
        %v1123 = vmul.f32 %v1115, -4.0
        %v1124 = vadd.f32 %v1109, %v1123
        %v1125 = vsub.f32 %v336, %v702
        %v1126 = vmul.f32 %v1125, 1.442695
        %v1127 = vpow.pop %v1126
        %vm1128 = vmand %vm1113, %vm723
        %v1129 = vsel %vm1128, %v1127, 0.0
        %v1130 = vadd.f32 %v1116, %v1127
        %v1131 = vmul.f32 %v1127, %v1125
        %v1132 = vadd.f32 %v1118, %v1131
        %v1133 = vadd.f32 %v1119, %v1129
        %v1134 = vmul.f32 %v1129, %v1125
        %v1135 = vadd.f32 %v1121, %v1134
        %v1136 = vsub.f32 %v1122, %v1129
        %v1137 = vmul.f32 %v1129, -3.0
        %v1138 = vadd.f32 %v1124, %v1137
        %v1139 = vsub.f32 %v343, %v702
        %v1140 = vmul.f32 %v1139, 1.442695
        %v1141 = vpow.pop %v1140
        %vm1142 = vmand %vm1113, %vm739
        %v1143 = vsel %vm1142, %v1141, 0.0
        %v1144 = vadd.f32 %v1130, %v1141
        %v1145 = vmul.f32 %v1141, %v1139
        %v1146 = vadd.f32 %v1132, %v1145
        %v1147 = vadd.f32 %v1133, %v1143
        %v1148 = vmul.f32 %v1143, %v1139
        %v1149 = vadd.f32 %v1135, %v1148
        %v1150 = vsub.f32 %v1136, %v1143
        %v1151 = vmul.f32 %v1143, -2.0
        %v1152 = vadd.f32 %v1138, %v1151
        %v1153 = vsub.f32 %v350, %v702
        %v1154 = vmul.f32 %v1153, 1.442695
        %v1155 = vpow.pop %v1154
        %vm1156 = vmand %vm1113, %vm755
        %v1157 = vsel %vm1156, %v1155, 0.0
        %v1158 = vadd.f32 %v1144, %v1155
        %v1159 = vmul.f32 %v1155, %v1153
        %v1160 = vadd.f32 %v1146, %v1159
        %v1161 = vadd.f32 %v1147, %v1157
        %v1162 = vmul.f32 %v1157, %v1153
        %v1163 = vadd.f32 %v1149, %v1162
        %v1164 = vsub.f32 %v1150, %v1157
        %v1165 = vsub.f32 %v1152, %v1157
        %v1166 = vsub.f32 %v357, %v702
        %v1167 = vmul.f32 %v1166, 1.442695
        %v1168 = vpow.pop %v1167
        %vm1169 = vmand %vm1113, %vm770
        %vm1170 = vmand %vm1169, %vm771
        %v1171 = vsel %vm1170, %v1168, 0.0
        %v1172 = vadd.f32 %v1158, %v1168
        %v1173 = vmul.f32 %v1168, %v1166
        %v1174 = vadd.f32 %v1160, %v1173
        %v1175 = vadd.f32 %v1161, %v1171
        %v1176 = vmul.f32 %v1171, %v1166
        %v1177 = vadd.f32 %v1163, %v1176
        %v1178 = vsub.f32 %v1164, %v1171
        %v1179 = vsub.f32 %v364, %v702
        %v1180 = vmul.f32 %v1179, 1.442695
        %v1181 = vpow.pop %v1180
        %vm1182 = vmand %vm1113, %vm786
        %v1183 = vsel %vm1182, %v1181, 0.0
        %v1184 = vadd.f32 %v1172, %v1181
        %v1185 = vmul.f32 %v1181, %v1179
        %v1186 = vadd.f32 %v1174, %v1185
        %v1187 = vadd.f32 %v1175, %v1183
        %v1188 = vmul.f32 %v1183, %v1179
        %v1189 = vadd.f32 %v1177, %v1188
        %v1190 = vsub.f32 %v1178, %v1183
        %v1191 = vadd.f32 %v1165, %v1183
        %v1192 = vsub.f32 %v371, %v702
        %v1193 = vmul.f32 %v1192, 1.442695
        %v1194 = vpow.pop %v1193
        %vm1195 = vmand %vm1113, %vm801
        %v1196 = vsel %vm1195, %v1194, 0.0
        %v1197 = vadd.f32 %v1184, %v1194
        %v1198 = vmul.f32 %v1194, %v1192
        %v1199 = vadd.f32 %v1186, %v1198
        %v1200 = vadd.f32 %v1187, %v1196
        %v1201 = vmul.f32 %v1196, %v1192
        %v1202 = vadd.f32 %v1189, %v1201
        %v1203 = vsub.f32 %v1190, %v1196
        %v1204 = vmul.f32 %v1196, 2.0
        %v1205 = vadd.f32 %v1191, %v1204
        %v1206 = vsub.f32 %v378, %v702
        %v1207 = vmul.f32 %v1206, 1.442695
        %v1208 = vpow.pop %v1207
        %vm1209 = vmand %vm1113, %vm817
        %v1210 = vsel %vm1209, %v1208, 0.0
        %v1211 = vadd.f32 %v1197, %v1208
        %v1212 = vmul.f32 %v1208, %v1206
        %v1213 = vadd.f32 %v1199, %v1212
        %v1214 = vadd.f32 %v1200, %v1210
        %v1215 = vmul.f32 %v1210, %v1206
        %v1216 = vadd.f32 %v1202, %v1215
        %v1217 = vsub.f32 %v1203, %v1210
        %v1218 = vmul.f32 %v1210, 3.0
        %v1219 = vadd.f32 %v1205, %v1218
        %v1220 = vsub.f32 %v385, %v702
        %v1221 = vmul.f32 %v1220, 1.442695
        %v1222 = vpow.pop %v1221
        %vm1223 = vmand %vm1113, %vm833
        %v1224 = vsel %vm1223, %v1222, 0.0
        %v1225 = vadd.f32 %v1211, %v1222
        %v1226 = vmul.f32 %v1222, %v1220
        %v1227 = vadd.f32 %v1213, %v1226
        %v1228 = vadd.f32 %v1214, %v1224
        %v1229 = vmul.f32 %v1224, %v1220
        %v1230 = vadd.f32 %v1216, %v1229
        %v1231 = vsub.f32 %v1217, %v1224
        %v1232 = vmul.f32 %v1224, 4.0
        %v1233 = vadd.f32 %v1219, %v1232
        %v1234 = vsub.f32 %v392, %v702
        %v1235 = vmul.f32 %v1234, 1.442695
        %v1236 = vpow.pop %v1235
        %vm1237 = vcmp.ge.s32.totalorder %v703, 1
        %vm1238 = vcmp.le.s32.totalorder %v703, 7
        %vm1239 = vmand %vm1237, %vm1238
        %vm1240 = vmand %vm1239, %vm709
        %v1241 = vsel %vm1240, %v1236, 0.0
        %v1242 = vadd.f32 %v1225, %v1236
        %v1243 = vmul.f32 %v1236, %v1234
        %v1244 = vadd.f32 %v1227, %v1243
        %v1245 = vadd.f32 %v1228, %v1241
        %v1246 = vmul.f32 %v1241, %v1234
        %v1247 = vadd.f32 %v1230, %v1246
        %v1248 = vmul.f32 %v1241, -4.0
        %v1249 = vadd.f32 %v1233, %v1248
        %v1250 = vsub.f32 %v399, %v702
        %v1251 = vmul.f32 %v1250, 1.442695
        %v1252 = vpow.pop %v1251
        %vm1253 = vmand %vm1239, %vm723
        %v1254 = vsel %vm1253, %v1252, 0.0
        %v1255 = vadd.f32 %v1242, %v1252
        %v1256 = vmul.f32 %v1252, %v1250
        %v1257 = vadd.f32 %v1244, %v1256
        %v1258 = vadd.f32 %v1245, %v1254
        %v1259 = vmul.f32 %v1254, %v1250
        %v1260 = vadd.f32 %v1247, %v1259
        %v1261 = vmul.f32 %v1254, -3.0
        %v1262 = vadd.f32 %v1249, %v1261
        %v1263 = vsub.f32 %v406, %v702
        %v1264 = vmul.f32 %v1263, 1.442695
        %v1265 = vpow.pop %v1264
        %vm1266 = vmand %vm1239, %vm739
        %v1267 = vsel %vm1266, %v1265, 0.0
        %v1268 = vadd.f32 %v1255, %v1265
        %v1269 = vmul.f32 %v1265, %v1263
        %v1270 = vadd.f32 %v1257, %v1269
        %v1271 = vadd.f32 %v1258, %v1267
        %v1272 = vmul.f32 %v1267, %v1263
        %v1273 = vadd.f32 %v1260, %v1272
        %v1274 = vmul.f32 %v1267, -2.0
        %v1275 = vadd.f32 %v1262, %v1274
        %v1276 = vsub.f32 %v413, %v702
        %v1277 = vmul.f32 %v1276, 1.442695
        %v1278 = vpow.pop %v1277
        %vm1279 = vmand %vm1239, %vm755
        %v1280 = vsel %vm1279, %v1278, 0.0
        %v1281 = vadd.f32 %v1268, %v1278
        %v1282 = vmul.f32 %v1278, %v1276
        %v1283 = vadd.f32 %v1270, %v1282
        %v1284 = vadd.f32 %v1271, %v1280
        %v1285 = vmul.f32 %v1280, %v1276
        %v1286 = vadd.f32 %v1273, %v1285
        %v1287 = vsub.f32 %v1275, %v1280
        %v1288 = vsub.f32 %v420, %v702
        %v1289 = vmul.f32 %v1288, 1.442695
        %v1290 = vpow.pop %v1289
        %vm1291 = vmand %vm1239, %vm770
        %vm1292 = vmand %vm1291, %vm771
        %v1293 = vsel %vm1292, %v1290, 0.0
        %v1294 = vadd.f32 %v1281, %v1290
        %v1295 = vmul.f32 %v1290, %v1288
        %v1296 = vadd.f32 %v1283, %v1295
        %v1297 = vadd.f32 %v1284, %v1293
        %v1298 = vmul.f32 %v1293, %v1288
        %v1299 = vadd.f32 %v1286, %v1298
        %v1300 = vsub.f32 %v427, %v702
        %v1301 = vmul.f32 %v1300, 1.442695
        %v1302 = vpow.pop %v1301
        %vm1303 = vmand %vm1239, %vm786
        %v1304 = vsel %vm1303, %v1302, 0.0
        %v1305 = vadd.f32 %v1294, %v1302
        %v1306 = vmul.f32 %v1302, %v1300
        %v1307 = vadd.f32 %v1296, %v1306
        %v1308 = vadd.f32 %v1297, %v1304
        %v1309 = vmul.f32 %v1304, %v1300
        %v1310 = vadd.f32 %v1299, %v1309
        %v1311 = vadd.f32 %v1287, %v1304
        %v1312 = vsub.f32 %v434, %v702
        %v1313 = vmul.f32 %v1312, 1.442695
        %v1314 = vpow.pop %v1313
        %vm1315 = vmand %vm1239, %vm801
        %v1316 = vsel %vm1315, %v1314, 0.0
        %v1317 = vadd.f32 %v1305, %v1314
        %v1318 = vmul.f32 %v1314, %v1312
        %v1319 = vadd.f32 %v1307, %v1318
        %v1320 = vadd.f32 %v1308, %v1316
        %v1321 = vmul.f32 %v1316, %v1312
        %v1322 = vadd.f32 %v1310, %v1321
        %v1323 = vmul.f32 %v1316, 2.0
        %v1324 = vadd.f32 %v1311, %v1323
        %v1325 = vsub.f32 %v441, %v702
        %v1326 = vmul.f32 %v1325, 1.442695
        %v1327 = vpow.pop %v1326
        %vm1328 = vmand %vm1239, %vm817
        %v1329 = vsel %vm1328, %v1327, 0.0
        %v1330 = vadd.f32 %v1317, %v1327
        %v1331 = vmul.f32 %v1327, %v1325
        %v1332 = vadd.f32 %v1319, %v1331
        %v1333 = vadd.f32 %v1320, %v1329
        %v1334 = vmul.f32 %v1329, %v1325
        %v1335 = vadd.f32 %v1322, %v1334
        %v1336 = vmul.f32 %v1329, 3.0
        %v1337 = vadd.f32 %v1324, %v1336
        %v1338 = vsub.f32 %v448, %v702
        %v1339 = vmul.f32 %v1338, 1.442695
        %v1340 = vpow.pop %v1339
        %vm1341 = vmand %vm1239, %vm833
        %v1342 = vsel %vm1341, %v1340, 0.0
        %v1343 = vadd.f32 %v1330, %v1340
        %v1344 = vmul.f32 %v1340, %v1338
        %v1345 = vadd.f32 %v1332, %v1344
        %v1346 = vadd.f32 %v1333, %v1342
        %v1347 = vmul.f32 %v1342, %v1338
        %v1348 = vadd.f32 %v1335, %v1347
        %v1349 = vmul.f32 %v1342, 4.0
        %v1350 = vadd.f32 %v1337, %v1349
        %v1351 = vsub.f32 %v455, %v702
        %v1352 = vmul.f32 %v1351, 1.442695
        %v1353 = vpow.pop %v1352
        %vm1354 = vcmp.ge.s32.totalorder %v703, 2
        %vm1355 = vmand %vm1354, %vm709
        %v1356 = vsel %vm1355, %v1353, 0.0
        %v1357 = vadd.f32 %v1343, %v1353
        %v1358 = vmul.f32 %v1353, %v1351
        %v1359 = vadd.f32 %v1345, %v1358
        %v1360 = vadd.f32 %v1346, %v1356
        %v1361 = vmul.f32 %v1356, %v1351
        %v1362 = vadd.f32 %v1348, %v1361
        %v1363 = vadd.f32 %v1231, %v1356
        %v1364 = vmul.f32 %v1356, -4.0
        %v1365 = vadd.f32 %v1350, %v1364
        %v1366 = vsub.f32 %v462, %v702
        %v1367 = vmul.f32 %v1366, 1.442695
        %v1368 = vpow.pop %v1367
        %vm1369 = vmand %vm1354, %vm723
        %v1370 = vsel %vm1369, %v1368, 0.0
        %v1371 = vadd.f32 %v1357, %v1368
        %v1372 = vmul.f32 %v1368, %v1366
        %v1373 = vadd.f32 %v1359, %v1372
        %v1374 = vadd.f32 %v1360, %v1370
        %v1375 = vmul.f32 %v1370, %v1366
        %v1376 = vadd.f32 %v1362, %v1375
        %v1377 = vadd.f32 %v1363, %v1370
        %v1378 = vmul.f32 %v1370, -3.0
        %v1379 = vadd.f32 %v1365, %v1378
        %v1380 = vsub.f32 %v469, %v702
        %v1381 = vmul.f32 %v1380, 1.442695
        %v1382 = vpow.pop %v1381
        %vm1383 = vmand %vm1354, %vm739
        %v1384 = vsel %vm1383, %v1382, 0.0
        %v1385 = vadd.f32 %v1371, %v1382
        %v1386 = vmul.f32 %v1382, %v1380
        %v1387 = vadd.f32 %v1373, %v1386
        %v1388 = vadd.f32 %v1374, %v1384
        %v1389 = vmul.f32 %v1384, %v1380
        %v1390 = vadd.f32 %v1376, %v1389
        %v1391 = vadd.f32 %v1377, %v1384
        %v1392 = vmul.f32 %v1384, -2.0
        %v1393 = vadd.f32 %v1379, %v1392
        %v1394 = vsub.f32 %v476, %v702
        %v1395 = vmul.f32 %v1394, 1.442695
        %v1396 = vpow.pop %v1395
        %vm1397 = vmand %vm1354, %vm755
        %v1398 = vsel %vm1397, %v1396, 0.0
        %v1399 = vadd.f32 %v1385, %v1396
        %v1400 = vmul.f32 %v1396, %v1394
        %v1401 = vadd.f32 %v1387, %v1400
        %v1402 = vadd.f32 %v1388, %v1398
        %v1403 = vmul.f32 %v1398, %v1394
        %v1404 = vadd.f32 %v1390, %v1403
        %v1405 = vadd.f32 %v1391, %v1398
        %v1406 = vsub.f32 %v1393, %v1398
        %v1407 = vsub.f32 %v483, %v702
        %v1408 = vmul.f32 %v1407, 1.442695
        %v1409 = vpow.pop %v1408
        %vm1410 = vmand %vm1354, %vm770
        %vm1411 = vmand %vm1410, %vm771
        %v1412 = vsel %vm1411, %v1409, 0.0
        %v1413 = vadd.f32 %v1399, %v1409
        %v1414 = vmul.f32 %v1409, %v1407
        %v1415 = vadd.f32 %v1401, %v1414
        %v1416 = vadd.f32 %v1402, %v1412
        %v1417 = vmul.f32 %v1412, %v1407
        %v1418 = vadd.f32 %v1404, %v1417
        %v1419 = vadd.f32 %v1405, %v1412
        %v1420 = vsub.f32 %v490, %v702
        %v1421 = vmul.f32 %v1420, 1.442695
        %v1422 = vpow.pop %v1421
        %vm1423 = vmand %vm1354, %vm786
        %v1424 = vsel %vm1423, %v1422, 0.0
        %v1425 = vadd.f32 %v1413, %v1422
        %v1426 = vmul.f32 %v1422, %v1420
        %v1427 = vadd.f32 %v1415, %v1426
        %v1428 = vadd.f32 %v1416, %v1424
        %v1429 = vmul.f32 %v1424, %v1420
        %v1430 = vadd.f32 %v1418, %v1429
        %v1431 = vadd.f32 %v1419, %v1424
        %v1432 = vadd.f32 %v1406, %v1424
        %v1433 = vsub.f32 %v497, %v702
        %v1434 = vmul.f32 %v1433, 1.442695
        %v1435 = vpow.pop %v1434
        %vm1436 = vmand %vm1354, %vm801
        %v1437 = vsel %vm1436, %v1435, 0.0
        %v1438 = vadd.f32 %v1425, %v1435
        %v1439 = vmul.f32 %v1435, %v1433
        %v1440 = vadd.f32 %v1427, %v1439
        %v1441 = vadd.f32 %v1428, %v1437
        %v1442 = vmul.f32 %v1437, %v1433
        %v1443 = vadd.f32 %v1430, %v1442
        %v1444 = vadd.f32 %v1431, %v1437
        %v1445 = vmul.f32 %v1437, 2.0
        %v1446 = vadd.f32 %v1432, %v1445
        %v1447 = vsub.f32 %v504, %v702
        %v1448 = vmul.f32 %v1447, 1.442695
        %v1449 = vpow.pop %v1448
        %vm1450 = vmand %vm1354, %vm817
        %v1451 = vsel %vm1450, %v1449, 0.0
        %v1452 = vadd.f32 %v1438, %v1449
        %v1453 = vmul.f32 %v1449, %v1447
        %v1454 = vadd.f32 %v1440, %v1453
        %v1455 = vadd.f32 %v1441, %v1451
        %v1456 = vmul.f32 %v1451, %v1447
        %v1457 = vadd.f32 %v1443, %v1456
        %v1458 = vadd.f32 %v1444, %v1451
        %v1459 = vmul.f32 %v1451, 3.0
        %v1460 = vadd.f32 %v1446, %v1459
        %v1461 = vsub.f32 %v511, %v702
        %v1462 = vmul.f32 %v1461, 1.442695
        %v1463 = vpow.pop %v1462
        %vm1464 = vmand %vm1354, %vm833
        %v1465 = vsel %vm1464, %v1463, 0.0
        %v1466 = vadd.f32 %v1452, %v1463
        %v1467 = vmul.f32 %v1463, %v1461
        %v1468 = vadd.f32 %v1454, %v1467
        %v1469 = vadd.f32 %v1455, %v1465
        %v1470 = vmul.f32 %v1465, %v1461
        %v1471 = vadd.f32 %v1457, %v1470
        %v1472 = vadd.f32 %v1458, %v1465
        %v1473 = vmul.f32 %v1465, 4.0
        %v1474 = vadd.f32 %v1460, %v1473
        %v1475 = vsub.f32 %v518, %v702
        %v1476 = vmul.f32 %v1475, 1.442695
        %v1477 = vpow.pop %v1476
        %vm1478 = vcmp.ge.s32.totalorder %v703, 3
        %vm1479 = vmand %vm1478, %vm709
        %v1480 = vsel %vm1479, %v1477, 0.0
        %v1481 = vadd.f32 %v1466, %v1477
        %v1482 = vmul.f32 %v1477, %v1475
        %v1483 = vadd.f32 %v1468, %v1482
        %v1484 = vadd.f32 %v1469, %v1480
        %v1485 = vmul.f32 %v1480, %v1475
        %v1486 = vadd.f32 %v1471, %v1485
        %v1487 = vmul.f32 %v1480, 2.0
        %v1488 = vadd.f32 %v1472, %v1487
        %v1489 = vmul.f32 %v1480, -4.0
        %v1490 = vadd.f32 %v1474, %v1489
        %v1491 = vsub.f32 %v525, %v702
        %v1492 = vmul.f32 %v1491, 1.442695
        %v1493 = vpow.pop %v1492
        %vm1494 = vmand %vm1478, %vm723
        %v1495 = vsel %vm1494, %v1493, 0.0
        %v1496 = vadd.f32 %v1481, %v1493
        %v1497 = vmul.f32 %v1493, %v1491
        %v1498 = vadd.f32 %v1483, %v1497
        %v1499 = vadd.f32 %v1484, %v1495
        %v1500 = vmul.f32 %v1495, %v1491
        %v1501 = vadd.f32 %v1486, %v1500
        %v1502 = vmul.f32 %v1495, 2.0
        %v1503 = vadd.f32 %v1488, %v1502
        %v1504 = vmul.f32 %v1495, -3.0
        %v1505 = vadd.f32 %v1490, %v1504
        %v1506 = vsub.f32 %v532, %v702
        %v1507 = vmul.f32 %v1506, 1.442695
        %v1508 = vpow.pop %v1507
        %vm1509 = vmand %vm1478, %vm739
        %v1510 = vsel %vm1509, %v1508, 0.0
        %v1511 = vadd.f32 %v1496, %v1508
        %v1512 = vmul.f32 %v1508, %v1506
        %v1513 = vadd.f32 %v1498, %v1512
        %v1514 = vadd.f32 %v1499, %v1510
        %v1515 = vmul.f32 %v1510, %v1506
        %v1516 = vadd.f32 %v1501, %v1515
        %v1517 = vmul.f32 %v1510, 2.0
        %v1518 = vadd.f32 %v1503, %v1517
        %v1519 = vmul.f32 %v1510, -2.0
        %v1520 = vadd.f32 %v1505, %v1519
        %v1521 = vsub.f32 %v539, %v702
        %v1522 = vmul.f32 %v1521, 1.442695
        %v1523 = vpow.pop %v1522
        %vm1524 = vmand %vm1478, %vm755
        %v1525 = vsel %vm1524, %v1523, 0.0
        %v1526 = vadd.f32 %v1511, %v1523
        %v1527 = vmul.f32 %v1523, %v1521
        %v1528 = vadd.f32 %v1513, %v1527
        %v1529 = vadd.f32 %v1514, %v1525
        %v1530 = vmul.f32 %v1525, %v1521
        %v1531 = vadd.f32 %v1516, %v1530
        %v1532 = vmul.f32 %v1525, 2.0
        %v1533 = vadd.f32 %v1518, %v1532
        %v1534 = vsub.f32 %v1520, %v1525
        %v1535 = vsub.f32 %v546, %v702
        %v1536 = vmul.f32 %v1535, 1.442695
        %v1537 = vpow.pop %v1536
        %vm1538 = vmand %vm1478, %vm770
        %vm1539 = vmand %vm1538, %vm771
        %v1540 = vsel %vm1539, %v1537, 0.0
        %v1541 = vadd.f32 %v1526, %v1537
        %v1542 = vmul.f32 %v1537, %v1535
        %v1543 = vadd.f32 %v1528, %v1542
        %v1544 = vadd.f32 %v1529, %v1540
        %v1545 = vmul.f32 %v1540, %v1535
        %v1546 = vadd.f32 %v1531, %v1545
        %v1547 = vmul.f32 %v1540, 2.0
        %v1548 = vadd.f32 %v1533, %v1547
        %v1549 = vsub.f32 %v553, %v702
        %v1550 = vmul.f32 %v1549, 1.442695
        %v1551 = vpow.pop %v1550
        %vm1552 = vmand %vm1478, %vm786
        %v1553 = vsel %vm1552, %v1551, 0.0
        %v1554 = vadd.f32 %v1541, %v1551
        %v1555 = vmul.f32 %v1551, %v1549
        %v1556 = vadd.f32 %v1543, %v1555
        %v1557 = vadd.f32 %v1544, %v1553
        %v1558 = vmul.f32 %v1553, %v1549
        %v1559 = vadd.f32 %v1546, %v1558
        %v1560 = vmul.f32 %v1553, 2.0
        %v1561 = vadd.f32 %v1548, %v1560
        %v1562 = vadd.f32 %v1534, %v1553
        %v1563 = vsub.f32 %v560, %v702
        %v1564 = vmul.f32 %v1563, 1.442695
        %v1565 = vpow.pop %v1564
        %vm1566 = vmand %vm1478, %vm801
        %v1567 = vsel %vm1566, %v1565, 0.0
        %v1568 = vadd.f32 %v1554, %v1565
        %v1569 = vmul.f32 %v1565, %v1563
        %v1570 = vadd.f32 %v1556, %v1569
        %v1571 = vadd.f32 %v1557, %v1567
        %v1572 = vmul.f32 %v1567, %v1563
        %v1573 = vadd.f32 %v1559, %v1572
        %v1574 = vmul.f32 %v1567, 2.0
        %v1575 = vadd.f32 %v1561, %v1574
        %v1576 = vadd.f32 %v1562, %v1574
        %v1577 = vsub.f32 %v567, %v702
        %v1578 = vmul.f32 %v1577, 1.442695
        %v1579 = vpow.pop %v1578
        %vm1580 = vmand %vm1478, %vm817
        %v1581 = vsel %vm1580, %v1579, 0.0
        %v1582 = vadd.f32 %v1568, %v1579
        %v1583 = vmul.f32 %v1579, %v1577
        %v1584 = vadd.f32 %v1570, %v1583
        %v1585 = vadd.f32 %v1571, %v1581
        %v1586 = vmul.f32 %v1581, %v1577
        %v1587 = vadd.f32 %v1573, %v1586
        %v1588 = vmul.f32 %v1581, 2.0
        %v1589 = vadd.f32 %v1575, %v1588
        %v1590 = vmul.f32 %v1581, 3.0
        %v1591 = vadd.f32 %v1576, %v1590
        %v1592 = vsub.f32 %v574, %v702
        %v1593 = vmul.f32 %v1592, 1.442695
        %v1594 = vpow.pop %v1593
        %vm1595 = vmand %vm1478, %vm833
        %v1596 = vsel %vm1595, %v1594, 0.0
        %v1597 = vadd.f32 %v1582, %v1594
        %v1598 = vmul.f32 %v1594, %v1592
        %v1599 = vadd.f32 %v1584, %v1598
        %v1600 = vadd.f32 %v1585, %v1596
        %v1601 = vmul.f32 %v1596, %v1592
        %v1602 = vadd.f32 %v1587, %v1601
        %v1603 = vmul.f32 %v1596, 2.0
        %v1604 = vadd.f32 %v1589, %v1603
        %v1605 = vmul.f32 %v1596, 4.0
        %v1606 = vadd.f32 %v1591, %v1605
        %v1607 = vsub.f32 %v581, %v702
        %v1608 = vmul.f32 %v1607, 1.442695
        %v1609 = vpow.pop %v1608
        %vm1610 = vcmp.ge.s32.totalorder %v703, 4
        %vm1611 = vmand %vm1610, %vm709
        %v1612 = vsel %vm1611, %v1609, 0.0
        %v1613 = vadd.f32 %v1597, %v1609
        %v1614 = vmul.f32 %v1609, %v1607
        %v1615 = vadd.f32 %v1599, %v1614
        %v1616 = vadd.f32 %v1600, %v1612
        %v1617 = vmul.f32 %v1612, %v1607
        %v1618 = vadd.f32 %v1602, %v1617
        %v1619 = vmul.f32 %v1612, 3.0
        %v1620 = vadd.f32 %v1604, %v1619
        %v1621 = vmul.f32 %v1612, -4.0
        %v1622 = vadd.f32 %v1606, %v1621
        %v1623 = vsub.f32 %v588, %v702
        %v1624 = vmul.f32 %v1623, 1.442695
        %v1625 = vpow.pop %v1624
        %vm1626 = vmand %vm1610, %vm723
        %v1627 = vsel %vm1626, %v1625, 0.0
        %v1628 = vadd.f32 %v1613, %v1625
        %v1629 = vmul.f32 %v1625, %v1623
        %v1630 = vadd.f32 %v1615, %v1629
        %v1631 = vadd.f32 %v1616, %v1627
        %v1632 = vmul.f32 %v1627, %v1623
        %v1633 = vadd.f32 %v1618, %v1632
        %v1634 = vmul.f32 %v1627, 3.0
        %v1635 = vadd.f32 %v1620, %v1634
        %v1636 = vmul.f32 %v1627, -3.0
        %v1637 = vadd.f32 %v1622, %v1636
        %v1638 = vsub.f32 %v595, %v702
        %v1639 = vmul.f32 %v1638, 1.442695
        %v1640 = vpow.pop %v1639
        %vm1641 = vmand %vm1610, %vm739
        %v1642 = vsel %vm1641, %v1640, 0.0
        %v1643 = vadd.f32 %v1628, %v1640
        %v1644 = vmul.f32 %v1640, %v1638
        %v1645 = vadd.f32 %v1630, %v1644
        %v1646 = vadd.f32 %v1631, %v1642
        %v1647 = vmul.f32 %v1642, %v1638
        %v1648 = vadd.f32 %v1633, %v1647
        %v1649 = vmul.f32 %v1642, 3.0
        %v1650 = vadd.f32 %v1635, %v1649
        %v1651 = vmul.f32 %v1642, -2.0
        %v1652 = vadd.f32 %v1637, %v1651
        %v1653 = vsub.f32 %v602, %v702
        %v1654 = vmul.f32 %v1653, 1.442695
        %v1655 = vpow.pop %v1654
        %vm1656 = vmand %vm1610, %vm755
        %v1657 = vsel %vm1656, %v1655, 0.0
        %v1658 = vadd.f32 %v1643, %v1655
        %v1659 = vmul.f32 %v1655, %v1653
        %v1660 = vadd.f32 %v1645, %v1659
        %v1661 = vadd.f32 %v1646, %v1657
        %v1662 = vmul.f32 %v1657, %v1653
        %v1663 = vadd.f32 %v1648, %v1662
        %v1664 = vmul.f32 %v1657, 3.0
        %v1665 = vadd.f32 %v1650, %v1664
        %v1666 = vsub.f32 %v1652, %v1657
        %v1667 = vsub.f32 %v609, %v702
        %v1668 = vmul.f32 %v1667, 1.442695
        %v1669 = vpow.pop %v1668
        %vm1670 = vmand %vm1610, %vm770
        %vm1671 = vmand %vm1670, %vm771
        %v1672 = vsel %vm1671, %v1669, 0.0
        %v1673 = vadd.f32 %v1658, %v1669
        %v1674 = vmul.f32 %v1669, %v1667
        %v1675 = vadd.f32 %v1660, %v1674
        %v1676 = vadd.f32 %v1661, %v1672
        %v1677 = vmul.f32 %v1672, %v1667
        %v1678 = vadd.f32 %v1663, %v1677
        %v1679 = vmul.f32 %v1672, 3.0
        %v1680 = vadd.f32 %v1665, %v1679
        %v1681 = vsub.f32 %v616, %v702
        %v1682 = vmul.f32 %v1681, 1.442695
        %v1683 = vpow.pop %v1682
        %vm1684 = vmand %vm1610, %vm786
        %v1685 = vsel %vm1684, %v1683, 0.0
        %v1686 = vadd.f32 %v1673, %v1683
        %v1687 = vmul.f32 %v1683, %v1681
        %v1688 = vadd.f32 %v1675, %v1687
        %v1689 = vadd.f32 %v1676, %v1685
        %v1690 = vmul.f32 %v1685, %v1681
        %v1691 = vadd.f32 %v1678, %v1690
        %v1692 = vmul.f32 %v1685, 3.0
        %v1693 = vadd.f32 %v1680, %v1692
        %v1694 = vadd.f32 %v1666, %v1685
        %v1695 = vsub.f32 %v623, %v702
        %v1696 = vmul.f32 %v1695, 1.442695
        %v1697 = vpow.pop %v1696
        %vm1698 = vmand %vm1610, %vm801
        %v1699 = vsel %vm1698, %v1697, 0.0
        %v1700 = vadd.f32 %v1686, %v1697
        %v1701 = vmul.f32 %v1697, %v1695
        %v1702 = vadd.f32 %v1688, %v1701
        %v1703 = vadd.f32 %v1689, %v1699
        %v1704 = vmul.f32 %v1699, %v1695
        %v1705 = vadd.f32 %v1691, %v1704
        %v1706 = vmul.f32 %v1699, 3.0
        %v1707 = vadd.f32 %v1693, %v1706
        %v1708 = vmul.f32 %v1699, 2.0
        %v1709 = vadd.f32 %v1694, %v1708
        %v1710 = vsub.f32 %v630, %v702
        %v1711 = vmul.f32 %v1710, 1.442695
        %v1712 = vpow.pop %v1711
        %vm1713 = vmand %vm1610, %vm817
        %v1714 = vsel %vm1713, %v1712, 0.0
        %v1715 = vadd.f32 %v1700, %v1712
        %v1716 = vmul.f32 %v1712, %v1710
        %v1717 = vadd.f32 %v1702, %v1716
        %v1718 = vadd.f32 %v1703, %v1714
        %v1719 = vmul.f32 %v1714, %v1710
        %v1720 = vadd.f32 %v1705, %v1719
        %v1721 = vmul.f32 %v1714, 3.0
        %v1722 = vadd.f32 %v1707, %v1721
        %v1723 = vadd.f32 %v1709, %v1721
        %v1724 = vsub.f32 %v637, %v702
        %v1725 = vmul.f32 %v1724, 1.442695
        %v1726 = vpow.pop %v1725
        %vm1727 = vmand %vm1610, %vm833
        %v1728 = vsel %vm1727, %v1726, 0.0
        %v1729 = vadd.f32 %v1715, %v1726
        %v1730 = vmul.f32 %v1726, %v1724
        %v1731 = vadd.f32 %v1717, %v1730
        %v1732 = vadd.f32 %v1718, %v1728
        %v1733 = vmul.f32 %v1728, %v1724
        %v1734 = vadd.f32 %v1720, %v1733
        %v1735 = vmul.f32 %v1728, 3.0
        %v1736 = vadd.f32 %v1722, %v1735
        %v1737 = vmul.f32 %v1728, 4.0
        %v1738 = vadd.f32 %v1723, %v1737
        %v1739 = vsub.f32 %v644, %v702
        %v1740 = vmul.f32 %v1739, 1.442695
        %v1741 = vpow.pop %v1740
        %vm1742 = vcmp.ge.s32.totalorder %v703, 5
        %vm1743 = vmand %vm1742, %vm709
        %v1744 = vsel %vm1743, %v1741, 0.0
        %v1745 = vadd.f32 %v1729, %v1741
        %v1746 = vmul.f32 %v1741, %v1739
        %v1747 = vadd.f32 %v1731, %v1746
        %v1748 = vadd.f32 %v1732, %v1744
        %v1749 = vmul.f32 %v1744, %v1739
        %v1750 = vadd.f32 %v1734, %v1749
        %v1751 = vmul.f32 %v1744, 4.0
        %v1752 = vadd.f32 %v1736, %v1751
        %v1753 = vmul.f32 %v1744, -4.0
        %v1754 = vadd.f32 %v1738, %v1753
        %v1755 = vsub.f32 %v651, %v702
        %v1756 = vmul.f32 %v1755, 1.442695
        %v1757 = vpow.pop %v1756
        %vm1758 = vmand %vm1742, %vm723
        %v1759 = vsel %vm1758, %v1757, 0.0
        %v1760 = vadd.f32 %v1745, %v1757
        %v1761 = vmul.f32 %v1757, %v1755
        %v1762 = vadd.f32 %v1747, %v1761
        %v1763 = vadd.f32 %v1748, %v1759
        %v1764 = vmul.f32 %v1759, %v1755
        %v1765 = vadd.f32 %v1750, %v1764
        %v1766 = vmul.f32 %v1759, 4.0
        %v1767 = vadd.f32 %v1752, %v1766
        %v1768 = vmul.f32 %v1759, -3.0
        %v1769 = vadd.f32 %v1754, %v1768
        %v1770 = vsub.f32 %v658, %v702
        %v1771 = vmul.f32 %v1770, 1.442695
        %v1772 = vpow.pop %v1771
        %vm1773 = vmand %vm1742, %vm739
        %v1774 = vsel %vm1773, %v1772, 0.0
        %v1775 = vadd.f32 %v1760, %v1772
        %v1776 = vmul.f32 %v1772, %v1770
        %v1777 = vadd.f32 %v1762, %v1776
        %v1778 = vadd.f32 %v1763, %v1774
        %v1779 = vmul.f32 %v1774, %v1770
        %v1780 = vadd.f32 %v1765, %v1779
        %v1781 = vmul.f32 %v1774, 4.0
        %v1782 = vadd.f32 %v1767, %v1781
        %v1783 = vmul.f32 %v1774, -2.0
        %v1784 = vadd.f32 %v1769, %v1783
        %v1785 = vsub.f32 %v665, %v702
        %v1786 = vmul.f32 %v1785, 1.442695
        %v1787 = vpow.pop %v1786
        %vm1788 = vmand %vm1742, %vm755
        %v1789 = vsel %vm1788, %v1787, 0.0
        %v1790 = vadd.f32 %v1775, %v1787
        %v1791 = vmul.f32 %v1787, %v1785
        %v1792 = vadd.f32 %v1777, %v1791
        %v1793 = vadd.f32 %v1778, %v1789
        %v1794 = vmul.f32 %v1789, %v1785
        %v1795 = vadd.f32 %v1780, %v1794
        %v1796 = vmul.f32 %v1789, 4.0
        %v1797 = vadd.f32 %v1782, %v1796
        %v1798 = vsub.f32 %v1784, %v1789
        %v1799 = vsub.f32 %v672, %v702
        %v1800 = vmul.f32 %v1799, 1.442695
        %v1801 = vpow.pop %v1800
        %vm1802 = vmand %vm1742, %vm770
        %vm1803 = vmand %vm1802, %vm771
        %v1804 = vsel %vm1803, %v1801, 0.0
        %v1805 = vadd.f32 %v1790, %v1801
        %v1806 = vmul.f32 %v1801, %v1799
        %v1807 = vadd.f32 %v1792, %v1806
        %v1808 = vadd.f32 %v1793, %v1804
        %v1809 = vmul.f32 %v1804, %v1799
        %v1810 = vadd.f32 %v1795, %v1809
        %v1811 = vmul.f32 %v1804, 4.0
        %v1812 = vadd.f32 %v1797, %v1811
        %v1813 = vsub.f32 %v679, %v702
        %v1814 = vmul.f32 %v1813, 1.442695
        %v1815 = vpow.pop %v1814
        %vm1816 = vmand %vm1742, %vm786
        %v1817 = vsel %vm1816, %v1815, 0.0
        %v1818 = vadd.f32 %v1805, %v1815
        %v1819 = vmul.f32 %v1815, %v1813
        %v1820 = vadd.f32 %v1807, %v1819
        %v1821 = vadd.f32 %v1808, %v1817
        %v1822 = vmul.f32 %v1817, %v1813
        %v1823 = vadd.f32 %v1810, %v1822
        %v1824 = vmul.f32 %v1817, 4.0
        %v1825 = vadd.f32 %v1812, %v1824
        %v1826 = vadd.f32 %v1798, %v1817
        %v1827 = vsub.f32 %v686, %v702
        %v1828 = vmul.f32 %v1827, 1.442695
        %v1829 = vpow.pop %v1828
        %vm1830 = vmand %vm1742, %vm801
        %v1831 = vsel %vm1830, %v1829, 0.0
        %v1832 = vadd.f32 %v1818, %v1829
        %v1833 = vmul.f32 %v1829, %v1827
        %v1834 = vadd.f32 %v1820, %v1833
        %v1835 = vadd.f32 %v1821, %v1831
        %v1836 = vmul.f32 %v1831, %v1827
        %v1837 = vadd.f32 %v1823, %v1836
        %v1838 = vmul.f32 %v1831, 4.0
        %v1839 = vadd.f32 %v1825, %v1838
        %v1840 = vmul.f32 %v1831, 2.0
        %v1841 = vadd.f32 %v1826, %v1840
        %v1842 = vsub.f32 %v693, %v702
        %v1843 = vmul.f32 %v1842, 1.442695
        %v1844 = vpow.pop %v1843
        %vm1845 = vmand %vm1742, %vm817
        %v1846 = vsel %vm1845, %v1844, 0.0
        %v1847 = vadd.f32 %v1832, %v1844
        %v1848 = vmul.f32 %v1844, %v1842
        %v1849 = vadd.f32 %v1834, %v1848
        %v1850 = vadd.f32 %v1835, %v1846
        %v1851 = vmul.f32 %v1846, %v1842
        %v1852 = vadd.f32 %v1837, %v1851
        %v1853 = vmul.f32 %v1846, 4.0
        %v1854 = vadd.f32 %v1839, %v1853
        %v1855 = vmul.f32 %v1846, 3.0
        %v1856 = vadd.f32 %v1841, %v1855
        %v1857 = vsub.f32 %v700, %v702
        %v1858 = vmul.f32 %v1857, 1.442695
        %v1859 = vpow.pop %v1858
        %vm1860 = vmand %vm1742, %vm833
        %v1861 = vsel %vm1860, %v1859, 0.0
        %v1862 = vadd.f32 %v1847, %v1859
        %v1863 = vmul.f32 %v1859, %v1857
        %v1864 = vadd.f32 %v1849, %v1863
        %v1865 = vadd.f32 %v1850, %v1861
        %v1866 = vmul.f32 %v1861, %v1857
        %v1867 = vadd.f32 %v1852, %v1866
        %v1868 = vmul.f32 %v1861, 4.0
        %v1869 = vadd.f32 %v1854, %v1868
        %v1870 = vadd.f32 %v1856, %v1868
        %v1871 = vrcp.pop %v1865
        %v1872 = vmul.f32 1.0, %v1871
        %v1873 = vrcp.pop %v1862
        %v1874 = vmul.f32 1.0, %v1873
        %v1875 = vmul.f32 %v1869, %v1872
        %1876 = vst [vmem:[%s151] sm:$0xff] %v1875
        %v1877 = vmul.f32 %v1870, %v1872
        %s1878 = scalar_lea.vmem %s151, %s153 [#allocation5]
        %1879 = vst [vmem:[%s1878] sm:$0xff] %v1877
        %v1880 = vlog2.pop %v1865
        %v1881 = vmul.f32 %v1880, 0.6931472
        %v1882 = vmul.f32 %v1867, %v1872
        %v1883 = vsub.f32 %v1881, %v1882
        %v1884 = vmul.f32 %v1883, 0.25694916
        %s1885 = scalar_lea.vmem %s151, %s159 [#allocation5]
        %1886 = vst [vmem:[%s1885] sm:$0xff] %v1884
        %v1887 = vlog2.pop %v1862
        %v1888 = vmul.f32 %v1887, 0.6931472
        %v1889 = vmul.f32 %v1864, %v1874
        %v1890 = vsub.f32 %v1888, %v1889
        %v1891 = vmul.f32 %v1890, 0.2275598
        %s1892 = scalar_lea.vmem %s151, %s165 [#allocation5]
        %1893 = vst [vmem:[%s1892] sm:$0xff] %v1891
        %s1894 = sand.u32 %s68, 1
        %s1895 = scalar_lea.sflag [#allocation4], %s1894
        %s1896 = sand.u32 %s68, 1
        %s1897 = smul.addr %s1896, 32
        %s1898 = scalar_lea.vmem [#allocation5], %s1897
        // Predicated region
        $region29: #{tpu_custom_call.1} parent=23 // pred_check
          %p1899 = pneg %p78
        $region30: #{tpu_custom_call.1} parent=23 // pred_check_branch
          %1901 = sbr.rel (%p1899) target = $region32
        $region31: #{tpu_custom_call.1} parent=23 // pred_region
          %s1903 = ssub.s32 512, 512
          %1904 = vsyncadd %s1895, %s1903
          %s1905 = smul.addr %s22, 4
          %s1906 = sadd.s32 %s23, %s1905
          %s1907 = smul.addr %s1906, 128
          %s1908 = scalar_lea.hbm %s1, %s1907
          %s1909 = sshll.u32 %s1898, 4
          %s1910 = int_to_ptr.vmem [resolvable:$true] %s1909
          %1915 = dma.vmem_to_hbm [thread:$0]  %s1910, 512, %s1908, %s1895, 128, 128, 8
        $region32: #{tpu_custom_call.1} parent=23 // pred_fallthru
          _
      $region24: #{tpu_custom_call.1} parent=5 // pred_fallthru
        _
      %p1916 = scmp.le.s32.totalorder 2, %s13
      // Predicated region
      $region33: #{tpu_custom_call.1} parent=5 // pred_check
        %p1917 = pneg %p1916
      $region34: #{tpu_custom_call.1} parent=5 // pred_check_branch
        %1919 = sbr.rel (%p1917) target = $region36
      $region35: #{tpu_custom_call.1} parent=5 // pred_region
        %s1920 = ssub.s32 %s13, 2
        // Predicated region
        $region37: #{tpu_custom_call.1} parent=35 // pred_check
          %p1921 = pneg %p84
        $region38: #{tpu_custom_call.1} parent=35 // pred_check_branch
          %1923 = sbr.rel (%p1921) target = $region40
        $region39: #{tpu_custom_call.1} parent=35 // pred_region
          %s1924 = sand.u32 %s69, 1
          %s1925 = scalar_lea.sflag [#allocation4], %s1924
          %s1926 = sand.u32 %s69, 1
          %s1927 = smul.addr %s1926, 32
          %s1928 = scalar_lea.vmem [#allocation5], %s1927
          %1929 = dma.done %s1925, 512
        $region40: #{tpu_custom_call.1} parent=35 // pred_fallthru
          _
      $region36: #{tpu_custom_call.1} parent=5 // pred_fallthru
        _
    $region6: #{tpu_custom_call.1} parent=1 // loop_footer
      %s17 = sadd.s32 1, %s13
    $region7: #{tpu_custom_call.1} parent=1 // loop_footer_branch
      %12 = sbr.rel target = $region3
    $region8: #{tpu_custom_call.1} parent=1 // loop_exit
      _
    %1930 = vsyncpa [#allocation3], 1
    %s1931 = scalar_lea.sflag [#allocation3], 1
    %1932 = vsyncpa %s1931, 1
    %1933 = vsyncpa [#allocation4], 1
    %s1934 = scalar_lea.sflag [#allocation4], 1
    %1935 = vsyncpa %s1934, 1

</llo_original>
